<compile_context>
chip_gen: v6e
topology: v6e:2x2x1
jax: 0.10.0
libtpu: 0.0.40
codegen_flags: <defaults>
</compile_context>

<pallas_src>
import jax
import jax.numpy as jnp
import numpy as np
from jax.experimental import pallas as pl
from jax.experimental.pallas import tpu as pltpu

EPS = 1e-5
LANE = 128
_MIN_GRID_STEPS = 4          # keep the pipeline / both TCs busy when N allows


def _round_up(x, m):
    return ((x + m - 1) // m) * m


def _vmem_limit_bytes():
    """Per-generation VMEM request: 3/4 of physical, clamped to [32, 96] MiB."""
    cap = 64 * 1024 * 1024                     # conservative default (v7x TC)
    try:
        cap = int(pltpu.get_tpu_info().vmem_capacity_bytes)
    except Exception:
        pass
    return int(max(32 * 1024 * 1024, min(cap * 3 // 4, 96 * 1024 * 1024)))


def _pick_batch_block(N, H, W, cp):
    """Images per grid step: as many as fit half the VMEM budget, but keep
    >= _MIN_GRID_STEPS grid steps so DMA can pipeline / megacore can shard."""
    budget = _vmem_limit_bytes() // 2          # headroom for compiler temps
    per_img = 4 * cp * (2 * (H + 2) * (W + 2)  # padded input, double buffered
                        + 2 * H * W            # conv output, double buffered
                        + (H + 2) * (W + 2)    # halo scratch (kernel 2)
                        + 9 * H * W)           # im2col scratch
    fixed = 2 * 4 * 9 * cp * cp                # weight matrix, double buffered
    bb = max(1, min(N, (budget - fixed) // per_img))
    bb = min(bb, max(1, N // _MIN_GRID_STEPS))
    while N % bb:                              # blocks must tile N exactly
        bb -= 1
    return int(bb)


# ----------------------------- Pallas kernels ------------------------------

def _im2col_matmul(tap, w_ref, col_ref, B, H, W, cp):
    """3x3 conv as one MXU matmul: stage 9 shifted taps into the (B*H*W, 9*cp)
    VMEM scratch, then contract against the (9*cp, cp) weight matrix."""
    m = B * H * W
    for t in range(9):                         # static unroll, 9 taps
        dy, dx = divmod(t, 3)
        col_ref[:, t * cp:(t + 1) * cp] = tap(dy, dx).reshape(m, cp)
    return jnp.dot(col_ref[...], w_ref[...], preferred_element_type=jnp.float32)


def _write_stats(st_ref, acc):
    # single dense (2, cp) store of [sum, sum-of-squares] over the block rows
    st_ref[0] = jnp.concatenate(
        [jnp.sum(acc, axis=0, keepdims=True),
         jnp.sum(acc * acc, axis=0, keepdims=True)], axis=0)


def _conv_stats_kernel(x_ref, w_ref, y_ref, st_ref, col_ref):
    # x_ref: (B, H+2, W+2, cp) zero-padded input; w_ref: (9*cp, cp)
    # y_ref: (B, H, W, cp) conv output; st_ref: (1, 2, cp) block sum / sumsq
    B, H, W, cp = y_ref.shape
    acc = _im2col_matmul(lambda dy, dx: x_ref[:, dy:dy + H, dx:dx + W, :],
                         w_ref, col_ref, B, H, W, cp)
    y_ref[...] = acc.reshape(B, H, W, cp)
    _write_stats(st_ref, acc)


def _bnrelu_conv_stats_kernel(a_ref, sc_ref, sh_ref, w_ref, y_ref, st_ref,
                              apad_ref, col_ref):
    # BN1 + ReLU fused on the input read, then conv2 (+ stats of conv output).
    # a_ref: (B, H, W, cp) pre-BN conv1 output; apad_ref: (B, H+2, W+2, cp).
    B, H, W, cp = y_ref.shape
    scale = sc_ref[...].reshape(1, 1, 1, cp)
    shift = sh_ref[...].reshape(1, 1, 1, cp)
    act = jnp.maximum(a_ref[...] * scale + shift, 0.0)          # (B, H, W, cp)

    # Zero only the 1-pixel halo strips; interior is written exactly once.
    zrow = jnp.zeros((B, 1, W + 2, cp), jnp.float32)
    zcol = jnp.zeros((B, H + 2, 1, cp), jnp.float32)
    apad_ref[:, 0:1, :, :] = zrow
    apad_ref[:, H + 1:H + 2, :, :] = zrow
    apad_ref[:, :, 0:1, :] = zcol
    apad_ref[:, :, W + 1:W + 2, :] = zcol
    apad_ref[:, 1:H + 1, 1:W + 1, :] = act

    acc = _im2col_matmul(lambda dy, dx: apad_ref[:, dy:dy + H, dx:dx + W, :],
                         w_ref, col_ref, B, H, W, cp)
    y_ref[...] = acc.reshape(B, H, W, cp)
    _write_stats(st_ref, acc)


def _bn_relu_pool_kernel(y_ref, sc_ref, sh_ref, o_ref):
    # BN2 + ReLU + AvgPool(2,2); pooling = reshape + adjacent-pair adds (VPU).
    B, H, W, cp = y_ref.shape
    scale = sc_ref[...].reshape(1, 1, 1, cp)
    shift = sh_ref[...].reshape(1, 1, 1, cp)
    a = jnp.maximum(y_ref[...] * scale + shift, 0.0)            # (B, H, W, cp)
    a = a.reshape(B, H, W // 2, 2, cp)
    a = a[:, :, :, 0, :] + a[:, :, :, 1, :]                     # pool W pairs
    a = a.reshape(B, H // 2, 2, W // 2, cp)
    pooled = (a[:, :, 0, :, :] + a[:, :, 1, :, :]) * 0.25       # pool H pairs
    o_ref[...] = pooled.astype(o_ref.dtype)


# ----------------------------- kernel wrappers ------------------------------

def conv3x3_stats(xp, w_mat, bb):
    N, Hp, Wp, cp = xp.shape
    H, W = Hp - 2, Wp - 2
    steps = N // bb
    return pl.pallas_call(
        _conv_stats_kernel,
        out_shape=(jax.ShapeDtypeStruct((N, H, W, cp), jnp.float32),
                   jax.ShapeDtypeStruct((steps, 2, cp), jnp.float32)),
        grid=(steps,),
        in_specs=[pl.BlockSpec((bb, Hp, Wp, cp), lambda n: (n, 0, 0, 0)),
                  pl.BlockSpec((9 * cp, cp), lambda n: (0, 0))],
        out_specs=(pl.BlockSpec((bb, H, W, cp), lambda n: (n, 0, 0, 0)),
                   pl.BlockSpec((1, 2, cp), lambda n: (n, 0, 0))),
        scratch_shapes=[pltpu.VMEM((bb * H * W, 9 * cp), jnp.float32)],
        compiler_params=pltpu.CompilerParams(
            dimension_semantics=("parallel",),
            vmem_limit_bytes=_vmem_limit_bytes()),
    )(xp, w_mat)


def bnrelu_conv3x3_stats(y1, scale, shift, w_mat, bb):
    N, H, W, cp = y1.shape
    steps = N // bb
    return pl.pallas_call(
        _bnrelu_conv_stats_kernel,
        out_shape=(jax.ShapeDtypeStruct((N, H, W, cp), jnp.float32),
                   jax.ShapeDtypeStruct((steps, 2, cp), jnp.float32)),
        grid=(steps,),
        in_specs=[pl.BlockSpec((bb, H, W, cp), lambda n: (n, 0, 0, 0)),
                  pl.BlockSpec((1, cp), lambda n: (0, 0)),
                  pl.BlockSpec((1, cp), lambda n: (0, 0)),
                  pl.BlockSpec((9 * cp, cp), lambda n: (0, 0))],
        out_specs=(pl.BlockSpec((bb, H, W, cp), lambda n: (n, 0, 0, 0)),
                   pl.BlockSpec((1, 2, cp), lambda n: (n, 0, 0))),
        scratch_shapes=[pltpu.VMEM((bb, H + 2, W + 2, cp), jnp.float32),
                        pltpu.VMEM((bb * H * W, 9 * cp), jnp.float32)],
        compiler_params=pltpu.CompilerParams(
            dimension_semantics=("parallel",),
            vmem_limit_bytes=_vmem_limit_bytes()),
    )(y1, scale, shift, w_mat)


def bn_relu_pool(y2, scale, shift, bb):
    N, H, W, cp = y2.shape
    Ho, Wo = H // 2, W // 2
    steps = N // bb
    return pl.pallas_call(
        _bn_relu_pool_kernel,
        out_shape=jax.ShapeDtypeStruct((N, Ho, Wo, cp), jnp.float32),
        grid=(steps,),
        in_specs=[pl.BlockSpec((bb, H, W, cp), lambda n: (n, 0, 0, 0)),
                  pl.BlockSpec((1, cp), lambda n: (0, 0)),
                  pl.BlockSpec((1, cp), lambda n: (0, 0))],
        out_specs=pl.BlockSpec((bb, Ho, Wo, cp), lambda n: (n, 0, 0, 0)),
        compiler_params=pltpu.CompilerParams(
            dimension_semantics=("parallel",),
            vmem_limit_bytes=_vmem_limit_bytes()),
    )(y2, scale, shift)


# ------------------------------- glue (JAX) ---------------------------------

def _conv_weight_im2col(w, cp):
    # torch conv weight (Cout, Cin, 3, 3) -> (9*cp, cp) im2col matrix:
    # row index = 3*dy*cp + dx*cp + cin (matches the in-kernel col layout),
    # zero padded to the lane-dense channel size cp.
    cout, cin = w.shape[0], w.shape[1]
    wt = jnp.transpose(w, (2, 3, 1, 0)).reshape(9, cin, cout).astype(jnp.float32)
    wt = jnp.pad(wt, ((0, 0), (0, cp - cin), (0, cp - cout)))
    return wt.reshape(9 * cp, cp)


def bn_scale_shift(stats, gamma, beta, count, cp):
    # Reduce the tiny (steps, 2, cp) per-block partial sums -> fused BN affine.
    s = jnp.sum(stats[:, 0, :], axis=0)
    sq = jnp.sum(stats[:, 1, :], axis=0)
    mean = s / count
    var = jnp.maximum(sq / count - mean * mean, 0.0)   # biased (training BN)
    g = jnp.pad(gamma.astype(jnp.float32), (0, cp - gamma.shape[0]))
    b = jnp.pad(beta.astype(jnp.float32), (0, cp - beta.shape[0]))
    scale = g * jax.lax.rsqrt(var + EPS)
    shift = b - mean * scale
    return scale.reshape(1, cp), shift.reshape(1, cp)


def conv_block_forward(x_nchw, params):
    N, Cin, H, W = x_nchw.shape
    Cout = params["w1"].shape[0]
    assert H % 2 == 0 and W % 2 == 0, "AvgPool(2,2) needs even H, W"
    cp = _round_up(max(Cin, Cout), LANE)               # lane-dense channels
    bb = _pick_batch_block(N, H, W, cp)                # images per grid step

    x = jnp.transpose(x_nchw, (0, 2, 3, 1)).astype(jnp.float32)      # NHWC
    xp = jnp.pad(x, ((0, 0), (1, 1), (1, 1), (0, cp - Cin)))         # halo+pad

    w1 = _conv_weight_im2col(params["w1"], cp)         # (9*cp, cp)
    w2 = _conv_weight_im2col(params["w2"], cp)
    count = float(N * H * W)

    # conv1 (single im2col matmul) + fused batch-stat accumulation
    y1, st1 = conv3x3_stats(xp, w1, bb)
    sc1, sh1 = bn_scale_shift(st1, params["g1"], params["b1"], count, cp)

    # BN1+ReLU fused into conv2's input read, + stats of y2
    y2, st2 = bnrelu_conv3x3_stats(y1, sc1, sh1, w2, bb)
    sc2, sh2 = bn_scale_shift(st2, params["g2"], params["b2"], count, cp)

    # BN2 + ReLU + AvgPool(2,2) fused (reshape + pair-adds, no pool matrix)
    out = bn_relu_pool(y2, sc2, sh2, bb)

    out = out[..., :Cout]
    return jnp.transpose(out, (0, 3, 1, 2))                           # NCHW


# ------------------------------ pure-JAX ref ---------------------------------

def reference_forward(x_nchw, params):
    x = jnp.transpose(x_nchw, (0, 2, 3, 1)).astype(jnp.float32)

    def conv(z, w):
        return jax.lax.conv_general_dilated(
            z, jnp.transpose(w, (2, 3, 1, 0)), (1, 1), ((1, 1), (1, 1)),
            dimension_numbers=("NHWC", "HWIO", "NHWC"))

    def bn(z, g, b):
        m = jnp.mean(z, axis=(0, 1, 2))
        v = jnp.var(z, axis=(0, 1, 2))
        return (z - m) * jax.lax.rsqrt(v + EPS) * g + b

    y = jax.nn.relu(bn(conv(x, params["w1"]), params["g1"], params["b1"]))
    y = jax.nn.relu(bn(conv(y, params["w2"]), params["g2"], params["b2"]))
    n, h, w, c = y.shape
    y = y.reshape(n, h // 2, 2, w // 2, 2, c).mean(axis=(2, 4))
    return jnp.transpose(y, (0, 3, 1, 2))


# --------------------------------- main --------------------------------------

if __name__ == "__main__":
    N, Cin, Cout, H, W = 2, 4, 8, 16, 16
    key = jax.random.PRNGKey(0)
    kx, k1, k2 = jax.random.split(key, 3)

    def xavier_conv(k, cout, cin):
        fan_in, fan_out = cin * 9, cout * 9
        bound = (6.0 / (fan_in + fan_out)) ** 0.5
        return jax.random.uniform(k, (cout, cin, 3, 3), jnp.float32,
                                  -bound, bound)

    params = dict(
        w1=xavier_conv(k1, Cout, Cin),
        g1=jnp.ones((Cout,), jnp.float32), b1=jnp.zeros((Cout,), jnp.float32),
        w2=xavier_conv(k2, Cout, Cout),
        g2=jnp.ones((Cout,), jnp.float32), b2=jnp.zeros((Cout,), jnp.float32),
    )

    x = jax.random.normal(kx, (N, Cin, H, W), dtype=jnp.float32)

    out = jax.jit(conv_block_forward)(x, params)
    out = jax.block_until_ready(out)

    assert out.shape == (N, Cout, H // 2, W // 2)
    ref = reference_forward(x, params)
    np.testing.assert_allclose(np.asarray(out), np.asarray(ref),
                               atol=1e-3, rtol=1e-3)
    print("KERNEL_OK")
</pallas_src>

<mosaic_0001>
module attributes {stable_mosaic.version = 11 : i64} {
  func.func @_conv_stats_kernel(%arg0: i32, %arg1: memref<1x18x18x128xf32, #tpu.memory_space<vmem>>, %arg2: memref<1152x128xf32, #tpu.memory_space<vmem>>, %arg3: memref<1x16x16x128xf32, #tpu.memory_space<vmem>>, %arg4: memref<1x2x128xf32, #tpu.memory_space<vmem>>, %arg5: memref<256x1152xf32, #tpu.memory_space<vmem>>) attributes {dimension_semantics = [#tpu.dimension_semantics<parallel>], iteration_bounds = array<i64: 2>, scalar_prefetch = 0 : i64, scratch_operands = 1 : i64, tpu.core_type = #tpu.core_type<tc>, window_params = [{transform_indices = @transform_0, window_bounds = array<i64: 1, 18, 18, 128>}, {pipeline_mode = #tpu.pipeline_mode<synchronous>, transform_indices = @transform_1, window_bounds = array<i64: 1152, 128>}, {transform_indices = @transform_2, window_bounds = array<i64: 1, 16, 16, 128>}, {transform_indices = @transform_3, window_bounds = array<i64: 1, 2, 128>}]} {
    %c0 = arith.constant 0 : index
    %c0_0 = arith.constant 0 : index
    %c0_1 = arith.constant 0 : index
    %c0_2 = arith.constant 0 : index
    %0 = vector.load %arg1[%c0, %c0_0, %c0_1, %c0_2] : memref<1x18x18x128xf32, #tpu.memory_space<vmem>>, vector<1x16x16x128xf32>
    %1 = vector.shape_cast %0 : vector<1x16x16x128xf32> to vector<256x128xf32>
    %c0_3 = arith.constant 0 : index
    %c0_4 = arith.constant 0 : index
    %2 = vector.load %arg5[%c0_3, %c0_4] : memref<256x1152xf32, #tpu.memory_space<vmem>>, vector<256x128xf32>
    tpu.vector_store %arg5[%c0_3, %c0_4], %1 {strides = array<i32>} : memref<256x1152xf32, #tpu.memory_space<vmem>>, vector<256x128xf32>,
    %c0_5 = arith.constant 0 : index
    %c0_6 = arith.constant 0 : index
    %c1 = arith.constant 1 : index
    %c0_7 = arith.constant 0 : index
    %3 = vector.load %arg1[%c0_5, %c0_6, %c1, %c0_7] : memref<1x18x18x128xf32, #tpu.memory_space<vmem>>, vector<1x16x16x128xf32>
    %4 = vector.shape_cast %3 : vector<1x16x16x128xf32> to vector<256x128xf32>
    %c0_8 = arith.constant 0 : index
    %c128 = arith.constant 128 : index
    %5 = vector.load %arg5[%c0_8, %c128] : memref<256x1152xf32, #tpu.memory_space<vmem>>, vector<256x128xf32>
    tpu.vector_store %arg5[%c0_8, %c128], %4 {strides = array<i32>} : memref<256x1152xf32, #tpu.memory_space<vmem>>, vector<256x128xf32>,
    %c0_9 = arith.constant 0 : index
    %c0_10 = arith.constant 0 : index
    %c2 = arith.constant 2 : index
    %c0_11 = arith.constant 0 : index
    %6 = vector.load %arg1[%c0_9, %c0_10, %c2, %c0_11] : memref<1x18x18x128xf32, #tpu.memory_space<vmem>>, vector<1x16x16x128xf32>
    %7 = vector.shape_cast %6 : vector<1x16x16x128xf32> to vector<256x128xf32>
    %c0_12 = arith.constant 0 : index
    %c256 = arith.constant 256 : index
    %8 = vector.load %arg5[%c0_12, %c256] : memref<256x1152xf32, #tpu.memory_space<vmem>>, vector<256x128xf32>
    tpu.vector_store %arg5[%c0_12, %c256], %7 {strides = array<i32>} : memref<256x1152xf32, #tpu.memory_space<vmem>>, vector<256x128xf32>,
    %c0_13 = arith.constant 0 : index
    %c1_14 = arith.constant 1 : index
    %c0_15 = arith.constant 0 : index
    %c0_16 = arith.constant 0 : index
    %9 = vector.load %arg1[%c0_13, %c1_14, %c0_15, %c0_16] : memref<1x18x18x128xf32, #tpu.memory_space<vmem>>, vector<1x16x16x128xf32>
    %10 = vector.shape_cast %9 : vector<1x16x16x128xf32> to vector<256x128xf32>
    %c0_17 = arith.constant 0 : index
    %c384 = arith.constant 384 : index
    %11 = vector.load %arg5[%c0_17, %c384] : memref<256x1152xf32, #tpu.memory_space<vmem>>, vector<256x128xf32>
    tpu.vector_store %arg5[%c0_17, %c384], %10 {strides = array<i32>} : memref<256x1152xf32, #tpu.memory_space<vmem>>, vector<256x128xf32>,
    %c0_18 = arith.constant 0 : index
    %c1_19 = arith.constant 1 : index
    %c1_20 = arith.constant 1 : index
    %c0_21 = arith.constant 0 : index
    %12 = vector.load %arg1[%c0_18, %c1_19, %c1_20, %c0_21] : memref<1x18x18x128xf32, #tpu.memory_space<vmem>>, vector<1x16x16x128xf32>
    %13 = vector.shape_cast %12 : vector<1x16x16x128xf32> to vector<256x128xf32>
    %c0_22 = arith.constant 0 : index
    %c512 = arith.constant 512 : index
    %14 = vector.load %arg5[%c0_22, %c512] : memref<256x1152xf32, #tpu.memory_space<vmem>>, vector<256x128xf32>
    tpu.vector_store %arg5[%c0_22, %c512], %13 {strides = array<i32>} : memref<256x1152xf32, #tpu.memory_space<vmem>>, vector<256x128xf32>,
    %c0_23 = arith.constant 0 : index
    %c1_24 = arith.constant 1 : index
    %c2_25 = arith.constant 2 : index
    %c0_26 = arith.constant 0 : index
    %15 = vector.load %arg1[%c0_23, %c1_24, %c2_25, %c0_26] : memref<1x18x18x128xf32, #tpu.memory_space<vmem>>, vector<1x16x16x128xf32>
    %16 = vector.shape_cast %15 : vector<1x16x16x128xf32> to vector<256x128xf32>
    %c0_27 = arith.constant 0 : index
    %c640 = arith.constant 640 : index
    %17 = vector.load %arg5[%c0_27, %c640] : memref<256x1152xf32, #tpu.memory_space<vmem>>, vector<256x128xf32>
    tpu.vector_store %arg5[%c0_27, %c640], %16 {strides = array<i32>} : memref<256x1152xf32, #tpu.memory_space<vmem>>, vector<256x128xf32>,
    %c0_28 = arith.constant 0 : index
    %c2_29 = arith.constant 2 : index
    %c0_30 = arith.constant 0 : index
    %c0_31 = arith.constant 0 : index
    %18 = vector.load %arg1[%c0_28, %c2_29, %c0_30, %c0_31] : memref<1x18x18x128xf32, #tpu.memory_space<vmem>>, vector<1x16x16x128xf32>
    %19 = vector.shape_cast %18 : vector<1x16x16x128xf32> to vector<256x128xf32>
    %c0_32 = arith.constant 0 : index
    %c768 = arith.constant 768 : index
    %20 = vector.load %arg5[%c0_32, %c768] : memref<256x1152xf32, #tpu.memory_space<vmem>>, vector<256x128xf32>
    tpu.vector_store %arg5[%c0_32, %c768], %19 {strides = array<i32>} : memref<256x1152xf32, #tpu.memory_space<vmem>>, vector<256x128xf32>,
    %c0_33 = arith.constant 0 : index
    %c2_34 = arith.constant 2 : index
    %c1_35 = arith.constant 1 : index
    %c0_36 = arith.constant 0 : index
    %21 = vector.load %arg1[%c0_33, %c2_34, %c1_35, %c0_36] : memref<1x18x18x128xf32, #tpu.memory_space<vmem>>, vector<1x16x16x128xf32>
    %22 = vector.shape_cast %21 : vector<1x16x16x128xf32> to vector<256x128xf32>
    %c0_37 = arith.constant 0 : index
    %c896 = arith.constant 896 : index
    %23 = vector.load %arg5[%c0_37, %c896] : memref<256x1152xf32, #tpu.memory_space<vmem>>, vector<256x128xf32>
    tpu.vector_store %arg5[%c0_37, %c896], %22 {strides = array<i32>} : memref<256x1152xf32, #tpu.memory_space<vmem>>, vector<256x128xf32>,
    %c0_38 = arith.constant 0 : index
    %c2_39 = arith.constant 2 : index
    %c2_40 = arith.constant 2 : index
    %c0_41 = arith.constant 0 : index
    %24 = vector.load %arg1[%c0_38, %c2_39, %c2_40, %c0_41] : memref<1x18x18x128xf32, #tpu.memory_space<vmem>>, vector<1x16x16x128xf32>
    %25 = vector.shape_cast %24 : vector<1x16x16x128xf32> to vector<256x128xf32>
    %c0_42 = arith.constant 0 : index
    %c1024 = arith.constant 1024 : index
    %26 = vector.load %arg5[%c0_42, %c1024] : memref<256x1152xf32, #tpu.memory_space<vmem>>, vector<256x128xf32>
    tpu.vector_store %arg5[%c0_42, %c1024], %25 {strides = array<i32>} : memref<256x1152xf32, #tpu.memory_space<vmem>>, vector<256x128xf32>,
    %c0_43 = arith.constant 0 : index
    %c0_44 = arith.constant 0 : index
    %27 = vector.load %arg5[%c0_43, %c0_44] : memref<256x1152xf32, #tpu.memory_space<vmem>>, vector<256x1152xf32>
    %c0_45 = arith.constant 0 : index
    %c0_46 = arith.constant 0 : index
    %28 = vector.load %arg2[%c0_45, %c0_46] : memref<1152x128xf32, #tpu.memory_space<vmem>>, vector<1152x128xf32>
    %cst = arith.constant dense<0.000000e+00> : vector<256x128xf32>
    %29 = tpu.matmul %27, %28, %cst {dimension_numbers = #tpu.dot_dimension_numbers<[1], [0], [0], [1], [0, 0, 1, 1], [], []>} : vector<256x1152xf32>, vector<1152x128xf32>, vector<256x128xf32> -> vector<256x128xf32>
    %30 = vector.shape_cast %29 : vector<256x128xf32> to vector<1x16x16x128xf32>
    %c0_47 = arith.constant 0 : index
    %c0_48 = arith.constant 0 : index
    %c0_49 = arith.constant 0 : index
    %c0_50 = arith.constant 0 : index
    %31 = vector.load %arg3[%c0_47, %c0_48, %c0_49, %c0_50] : memref<1x16x16x128xf32, #tpu.memory_space<vmem>>, vector<1x16x16x128xf32>
    tpu.vector_store %arg3[%c0_47, %c0_48, %c0_49, %c0_50], %30 {strides = array<i32>} : memref<1x16x16x128xf32, #tpu.memory_space<vmem>>, vector<1x16x16x128xf32>,
    %cst_51 = arith.constant dense<0.000000e+00> : vector<128xf32>
    %32 = vector.multi_reduction <add>, %29, %cst_51 [0] : vector<256x128xf32> to vector<128xf32>
    %33 = vector.shape_cast %32 : vector<128xf32> to vector<1x128xf32>
    %34 = arith.mulf %29, %29 : vector<256x128xf32>
    %cst_52 = arith.constant dense<0.000000e+00> : vector<128xf32>
    %35 = vector.multi_reduction <add>, %34, %cst_52 [0] : vector<256x128xf32> to vector<128xf32>
    %36 = vector.shape_cast %35 : vector<128xf32> to vector<1x128xf32>
    %37 = tpu.concatenate %33, %36 in 0 : vector<1x128xf32>, vector<1x128xf32> -> vector<2x128xf32>
    %c0_53 = arith.constant 0 : index
    %c0_54 = arith.constant 0 : index
    %c0_55 = arith.constant 0 : index
    %38 = vector.load %arg4[%c0_53, %c0_54, %c0_55] : memref<1x2x128xf32, #tpu.memory_space<vmem>>, vector<1x2x128xf32>
    %39 = vector.shape_cast %38 : vector<1x2x128xf32> to vector<2x128xf32>
    %40 = vector.shape_cast %37 : vector<2x128xf32> to vector<1x2x128xf32>
    tpu.vector_store %arg4[%c0_53, %c0_54, %c0_55], %40 {strides = array<i32>} : memref<1x2x128xf32, #tpu.memory_space<vmem>>, vector<1x2x128xf32>,
    return
  }
  func.func @transform_0(%arg0: i32) -> (i32, i32, i32, i32) {
    %c0_i32 = arith.constant 0 : i32
    %c0_i32_0 = arith.constant 0 : i32
    %c0_i32_1 = arith.constant 0 : i32
    %c0_i32_2 = arith.constant 0 : i32
    return %arg0, %c0_i32, %c0_i32_0, %c0_i32_1 : i32, i32, i32, i32
  }
  func.func @transform_1(%arg0: i32) -> (i32, i32) {
    %c0_i32 = arith.constant 0 : i32
    %c0_i32_0 = arith.constant 0 : i32
    %c0_i32_1 = arith.constant 0 : i32
    return %c0_i32, %c0_i32_0 : i32, i32
  }
  func.func @transform_2(%arg0: i32) -> (i32, i32, i32, i32) {
    %c0_i32 = arith.constant 0 : i32
    %c0_i32_0 = arith.constant 0 : i32
    %c0_i32_1 = arith.constant 0 : i32
    %c0_i32_2 = arith.constant 0 : i32
    return %arg0, %c0_i32, %c0_i32_0, %c0_i32_1 : i32, i32, i32, i32
  }
  func.func @transform_3(%arg0: i32) -> (i32, i32, i32) {
    %c0_i32 = arith.constant 0 : i32
    %c0_i32_0 = arith.constant 0 : i32
    %c0_i32_1 = arith.constant 0 : i32
    return %arg0, %c0_i32, %c0_i32_0 : i32, i32, i32
  }
}

module attributes {stable_mosaic.version = 11 : i64} {
  func.func @_bnrelu_conv_stats_kernel(%arg0: i32, %arg1: memref<1x16x16x128xf32, #tpu.memory_space<vmem>>, %arg2: memref<1x128xf32, #tpu.memory_space<vmem>>, %arg3: memref<1x128xf32, #tpu.memory_space<vmem>>, %arg4: memref<1152x128xf32, #tpu.memory_space<vmem>>, %arg5: memref<1x16x16x128xf32, #tpu.memory_space<vmem>>, %arg6: memref<1x2x128xf32, #tpu.memory_space<vmem>>, %arg7: memref<1x18x18x128xf32, #tpu.memory_space<vmem>>, %arg8: memref<256x1152xf32, #tpu.memory_space<vmem>>) attributes {dimension_semantics = [#tpu.dimension_semantics<parallel>], iteration_bounds = array<i64: 2>, scalar_prefetch = 0 : i64, scratch_operands = 2 : i64, tpu.core_type = #tpu.core_type<tc>, window_params = [{transform_indices = @transform_0, window_bounds = array<i64: 1, 16, 16, 128>}, {pipeline_mode = #tpu.pipeline_mode<synchronous>, transform_indices = @transform_1, window_bounds = array<i64: 1, 128>}, {pipeline_mode = #tpu.pipeline_mode<synchronous>, transform_indices = @transform_2, window_bounds = array<i64: 1, 128>}, {pipeline_mode = #tpu.pipeline_mode<synchronous>, transform_indices = @transform_3, window_bounds = array<i64: 1152, 128>}, {transform_indices = @transform_4, window_bounds = array<i64: 1, 16, 16, 128>}, {transform_indices = @transform_5, window_bounds = array<i64: 1, 2, 128>}]} {
    %c0 = arith.constant 0 : index
    %c0_0 = arith.constant 0 : index
    %0 = vector.load %arg2[%c0, %c0_0] : memref<1x128xf32, #tpu.memory_space<vmem>>, vector<1x128xf32>
    %1 = vector.shape_cast %0 : vector<1x128xf32> to vector<1x1x1x128xf32>
    %c0_1 = arith.constant 0 : index
    %c0_2 = arith.constant 0 : index
    %2 = vector.load %arg3[%c0_1, %c0_2] : memref<1x128xf32, #tpu.memory_space<vmem>>, vector<1x128xf32>
    %3 = vector.shape_cast %2 : vector<1x128xf32> to vector<1x1x1x128xf32>
    %c0_3 = arith.constant 0 : index
    %c0_4 = arith.constant 0 : index
    %c0_5 = arith.constant 0 : index
    %c0_6 = arith.constant 0 : index
    %4 = vector.load %arg1[%c0_3, %c0_4, %c0_5, %c0_6] : memref<1x16x16x128xf32, #tpu.memory_space<vmem>>, vector<1x16x16x128xf32>
    %5 = vector.broadcast %1 : vector<1x1x1x128xf32> to vector<1x16x16x128xf32>
    %6 = arith.mulf %4, %5 : vector<1x16x16x128xf32>
    %7 = vector.broadcast %3 : vector<1x1x1x128xf32> to vector<1x16x16x128xf32>
    %8 = arith.addf %6, %7 : vector<1x16x16x128xf32>
    %cst = arith.constant 0.000000e+00 : f32
    %9 = vector.broadcast %cst : f32 to vector<1x16x16x128xf32>
    %10 = arith.maximumf %8, %9 : vector<1x16x16x128xf32>
    %cst_7 = arith.constant 0.000000e+00 : f32
    %11 = vector.broadcast %cst_7 : f32 to vector<1x1x18x128xf32>
    %cst_8 = arith.constant 0.000000e+00 : f32
    %12 = vector.broadcast %cst_8 : f32 to vector<1x18x1x128xf32>
    %c0_9 = arith.constant 0 : index
    %c0_10 = arith.constant 0 : index
    %c0_11 = arith.constant 0 : index
    %c0_12 = arith.constant 0 : index
    %13 = vector.load %arg7[%c0_9, %c0_10, %c0_11, %c0_12] : memref<1x18x18x128xf32, #tpu.memory_space<vmem>>, vector<1x1x18x128xf32>
    tpu.vector_store %arg7[%c0_9, %c0_10, %c0_11, %c0_12], %11 {strides = array<i32>} : memref<1x18x18x128xf32, #tpu.memory_space<vmem>>, vector<1x1x18x128xf32>,
    %c0_13 = arith.constant 0 : index
    %c17 = arith.constant 17 : index
    %c0_14 = arith.constant 0 : index
    %c0_15 = arith.constant 0 : index
    %14 = vector.load %arg7[%c0_13, %c17, %c0_14, %c0_15] : memref<1x18x18x128xf32, #tpu.memory_space<vmem>>, vector<1x1x18x128xf32>
    tpu.vector_store %arg7[%c0_13, %c17, %c0_14, %c0_15], %11 {strides = array<i32>} : memref<1x18x18x128xf32, #tpu.memory_space<vmem>>, vector<1x1x18x128xf32>,
    %c0_16 = arith.constant 0 : index
    %c0_17 = arith.constant 0 : index
    %c0_18 = arith.constant 0 : index
    %c0_19 = arith.constant 0 : index
    %15 = vector.load %arg7[%c0_16, %c0_17, %c0_18, %c0_19] : memref<1x18x18x128xf32, #tpu.memory_space<vmem>>, vector<1x18x1x128xf32>
    tpu.vector_store %arg7[%c0_16, %c0_17, %c0_18, %c0_19], %12 {strides = array<i32>} : memref<1x18x18x128xf32, #tpu.memory_space<vmem>>, vector<1x18x1x128xf32>,
    %c0_20 = arith.constant 0 : index
    %c0_21 = arith.constant 0 : index
    %c17_22 = arith.constant 17 : index
    %c0_23 = arith.constant 0 : index
    %16 = vector.load %arg7[%c0_20, %c0_21, %c17_22, %c0_23] : memref<1x18x18x128xf32, #tpu.memory_space<vmem>>, vector<1x18x1x128xf32>
    tpu.vector_store %arg7[%c0_20, %c0_21, %c17_22, %c0_23], %12 {strides = array<i32>} : memref<1x18x18x128xf32, #tpu.memory_space<vmem>>, vector<1x18x1x128xf32>,
    %c0_24 = arith.constant 0 : index
    %c1 = arith.constant 1 : index
    %c1_25 = arith.constant 1 : index
    %c0_26 = arith.constant 0 : index
    %17 = vector.load %arg7[%c0_24, %c1, %c1_25, %c0_26] : memref<1x18x18x128xf32, #tpu.memory_space<vmem>>, vector<1x16x16x128xf32>
    tpu.vector_store %arg7[%c0_24, %c1, %c1_25, %c0_26], %10 {strides = array<i32>} : memref<1x18x18x128xf32, #tpu.memory_space<vmem>>, vector<1x16x16x128xf32>,
    %c0_27 = arith.constant 0 : index
    %c0_28 = arith.constant 0 : index
    %c0_29 = arith.constant 0 : index
    %c0_30 = arith.constant 0 : index
    %18 = vector.load %arg7[%c0_27, %c0_28, %c0_29, %c0_30] : memref<1x18x18x128xf32, #tpu.memory_space<vmem>>, vector<1x16x16x128xf32>
    %19 = vector.shape_cast %18 : vector<1x16x16x128xf32> to vector<256x128xf32>
    %c0_31 = arith.constant 0 : index
    %c0_32 = arith.constant 0 : index
    %20 = vector.load %arg8[%c0_31, %c0_32] : memref<256x1152xf32, #tpu.memory_space<vmem>>, vector<256x128xf32>
    tpu.vector_store %arg8[%c0_31, %c0_32], %19 {strides = array<i32>} : memref<256x1152xf32, #tpu.memory_space<vmem>>, vector<256x128xf32>,
    %c0_33 = arith.constant 0 : index
    %c0_34 = arith.constant 0 : index
    %c1_35 = arith.constant 1 : index
    %c0_36 = arith.constant 0 : index
    %21 = vector.load %arg7[%c0_33, %c0_34, %c1_35, %c0_36] : memref<1x18x18x128xf32, #tpu.memory_space<vmem>>, vector<1x16x16x128xf32>
    %22 = vector.shape_cast %21 : vector<1x16x16x128xf32> to vector<256x128xf32>
    %c0_37 = arith.constant 0 : index
    %c128 = arith.constant 128 : index
    %23 = vector.load %arg8[%c0_37, %c128] : memref<256x1152xf32, #tpu.memory_space<vmem>>, vector<256x128xf32>
    tpu.vector_store %arg8[%c0_37, %c128], %22 {strides = array<i32>} : memref<256x1152xf32, #tpu.memory_space<vmem>>, vector<256x128xf32>,
    %c0_38 = arith.constant 0 : index
    %c0_39 = arith.constant 0 : index
    %c2 = arith.constant 2 : index
    %c0_40 = arith.constant 0 : index
    %24 = vector.load %arg7[%c0_38, %c0_39, %c2, %c0_40] : memref<1x18x18x128xf32, #tpu.memory_space<vmem>>, vector<1x16x16x128xf32>
    %25 = vector.shape_cast %24 : vector<1x16x16x128xf32> to vector<256x128xf32>
    %c0_41 = arith.constant 0 : index
    %c256 = arith.constant 256 : index
    %26 = vector.load %arg8[%c0_41, %c256] : memref<256x1152xf32, #tpu.memory_space<vmem>>, vector<256x128xf32>
    tpu.vector_store %arg8[%c0_41, %c256], %25 {strides = array<i32>} : memref<256x1152xf32, #tpu.memory_space<vmem>>, vector<256x128xf32>,
    %c0_42 = arith.constant 0 : index
    %c1_43 = arith.constant 1 : index
    %c0_44 = arith.constant 0 : index
    %c0_45 = arith.constant 0 : index
    %27 = vector.load %arg7[%c0_42, %c1_43, %c0_44, %c0_45] : memref<1x18x18x128xf32, #tpu.memory_space<vmem>>, vector<1x16x16x128xf32>
    %28 = vector.shape_cast %27 : vector<1x16x16x128xf32> to vector<256x128xf32>
    %c0_46 = arith.constant 0 : index
    %c384 = arith.constant 384 : index
    %29 = vector.load %arg8[%c0_46, %c384] : memref<256x1152xf32, #tpu.memory_space<vmem>>, vector<256x128xf32>
    tpu.vector_store %arg8[%c0_46, %c384], %28 {strides = array<i32>} : memref<256x1152xf32, #tpu.memory_space<vmem>>, vector<256x128xf32>,
    %c0_47 = arith.constant 0 : index
    %c1_48 = arith.constant 1 : index
    %c1_49 = arith.constant 1 : index
    %c0_50 = arith.constant 0 : index
    %30 = vector.load %arg7[%c0_47, %c1_48, %c1_49, %c0_50] : memref<1x18x18x128xf32, #tpu.memory_space<vmem>>, vector<1x16x16x128xf32>
    %31 = vector.shape_cast %30 : vector<1x16x16x128xf32> to vector<256x128xf32>
    %c0_51 = arith.constant 0 : index
    %c512 = arith.constant 512 : index
    %32 = vector.load %arg8[%c0_51, %c512] : memref<256x1152xf32, #tpu.memory_space<vmem>>, vector<256x128xf32>
    tpu.vector_store %arg8[%c0_51, %c512], %31 {strides = array<i32>} : memref<256x1152xf32, #tpu.memory_space<vmem>>, vector<256x128xf32>,
    %c0_52 = arith.constant 0 : index
    %c1_53 = arith.constant 1 : index
    %c2_54 = arith.constant 2 : index
    %c0_55 = arith.constant 0 : index
    %33 = vector.load %arg7[%c0_52, %c1_53, %c2_54, %c0_55] : memref<1x18x18x128xf32, #tpu.memory_space<vmem>>, vector<1x16x16x128xf32>
    %34 = vector.shape_cast %33 : vector<1x16x16x128xf32> to vector<256x128xf32>
    %c0_56 = arith.constant 0 : index
    %c640 = arith.constant 640 : index
    %35 = vector.load %arg8[%c0_56, %c640] : memref<256x1152xf32, #tpu.memory_space<vmem>>, vector<256x128xf32>
    tpu.vector_store %arg8[%c0_56, %c640], %34 {strides = array<i32>} : memref<256x1152xf32, #tpu.memory_space<vmem>>, vector<256x128xf32>,
    %c0_57 = arith.constant 0 : index
    %c2_58 = arith.constant 2 : index
    %c0_59 = arith.constant 0 : index
    %c0_60 = arith.constant 0 : index
    %36 = vector.load %arg7[%c0_57, %c2_58, %c0_59, %c0_60] : memref<1x18x18x128xf32, #tpu.memory_space<vmem>>, vector<1x16x16x128xf32>
    %37 = vector.shape_cast %36 : vector<1x16x16x128xf32> to vector<256x128xf32>
    %c0_61 = arith.constant 0 : index
    %c768 = arith.constant 768 : index
    %38 = vector.load %arg8[%c0_61, %c768] : memref<256x1152xf32, #tpu.memory_space<vmem>>, vector<256x128xf32>
    tpu.vector_store %arg8[%c0_61, %c768], %37 {strides = array<i32>} : memref<256x1152xf32, #tpu.memory_space<vmem>>, vector<256x128xf32>,
    %c0_62 = arith.constant 0 : index
    %c2_63 = arith.constant 2 : index
    %c1_64 = arith.constant 1 : index
    %c0_65 = arith.constant 0 : index
    %39 = vector.load %arg7[%c0_62, %c2_63, %c1_64, %c0_65] : memref<1x18x18x128xf32, #tpu.memory_space<vmem>>, vector<1x16x16x128xf32>
    %40 = vector.shape_cast %39 : vector<1x16x16x128xf32> to vector<256x128xf32>
    %c0_66 = arith.constant 0 : index
    %c896 = arith.constant 896 : index
    %41 = vector.load %arg8[%c0_66, %c896] : memref<256x1152xf32, #tpu.memory_space<vmem>>, vector<256x128xf32>
    tpu.vector_store %arg8[%c0_66, %c896], %40 {strides = array<i32>} : memref<256x1152xf32, #tpu.memory_space<vmem>>, vector<256x128xf32>,
    %c0_67 = arith.constant 0 : index
    %c2_68 = arith.constant 2 : index
    %c2_69 = arith.constant 2 : index
    %c0_70 = arith.constant 0 : index
    %42 = vector.load %arg7[%c0_67, %c2_68, %c2_69, %c0_70] : memref<1x18x18x128xf32, #tpu.memory_space<vmem>>, vector<1x16x16x128xf32>
    %43 = vector.shape_cast %42 : vector<1x16x16x128xf32> to vector<256x128xf32>
    %c0_71 = arith.constant 0 : index
    %c1024 = arith.constant 1024 : index
    %44 = vector.load %arg8[%c0_71, %c1024] : memref<256x1152xf32, #tpu.memory_space<vmem>>, vector<256x128xf32>
    tpu.vector_store %arg8[%c0_71, %c1024], %43 {strides = array<i32>} : memref<256x1152xf32, #tpu.memory_space<vmem>>, vector<256x128xf32>,
    %c0_72 = arith.constant 0 : index
    %c0_73 = arith.constant 0 : index
    %45 = vector.load %arg8[%c0_72, %c0_73] : memref<256x1152xf32, #tpu.memory_space<vmem>>, vector<256x1152xf32>
    %c0_74 = arith.constant 0 : index
    %c0_75 = arith.constant 0 : index
    %46 = vector.load %arg4[%c0_74, %c0_75] : memref<1152x128xf32, #tpu.memory_space<vmem>>, vector<1152x128xf32>
    %cst_76 = arith.constant dense<0.000000e+00> : vector<256x128xf32>
    %47 = tpu.matmul %45, %46, %cst_76 {dimension_numbers = #tpu.dot_dimension_numbers<[1], [0], [0], [1], [0, 0, 1, 1], [], []>} : vector<256x1152xf32>, vector<1152x128xf32>, vector<256x128xf32> -> vector<256x128xf32>
    %48 = vector.shape_cast %47 : vector<256x128xf32> to vector<1x16x16x128xf32>
    %c0_77 = arith.constant 0 : index
    %c0_78 = arith.constant 0 : index
    %c0_79 = arith.constant 0 : index
    %c0_80 = arith.constant 0 : index
    %49 = vector.load %arg5[%c0_77, %c0_78, %c0_79, %c0_80] : memref<1x16x16x128xf32, #tpu.memory_space<vmem>>, vector<1x16x16x128xf32>
    tpu.vector_store %arg5[%c0_77, %c0_78, %c0_79, %c0_80], %48 {strides = array<i32>} : memref<1x16x16x128xf32, #tpu.memory_space<vmem>>, vector<1x16x16x128xf32>,
    %cst_81 = arith.constant dense<0.000000e+00> : vector<128xf32>
    %50 = vector.multi_reduction <add>, %47, %cst_81 [0] : vector<256x128xf32> to vector<128xf32>
    %51 = vector.shape_cast %50 : vector<128xf32> to vector<1x128xf32>
    %52 = arith.mulf %47, %47 : vector<256x128xf32>
    %cst_82 = arith.constant dense<0.000000e+00> : vector<128xf32>
    %53 = vector.multi_reduction <add>, %52, %cst_82 [0] : vector<256x128xf32> to vector<128xf32>
    %54 = vector.shape_cast %53 : vector<128xf32> to vector<1x128xf32>
    %55 = tpu.concatenate %51, %54 in 0 : vector<1x128xf32>, vector<1x128xf32> -> vector<2x128xf32>
    %c0_83 = arith.constant 0 : index
    %c0_84 = arith.constant 0 : index
    %c0_85 = arith.constant 0 : index
    %56 = vector.load %arg6[%c0_83, %c0_84, %c0_85] : memref<1x2x128xf32, #tpu.memory_space<vmem>>, vector<1x2x128xf32>
    %57 = vector.shape_cast %56 : vector<1x2x128xf32> to vector<2x128xf32>
    %58 = vector.shape_cast %55 : vector<2x128xf32> to vector<1x2x128xf32>
    tpu.vector_store %arg6[%c0_83, %c0_84, %c0_85], %58 {strides = array<i32>} : memref<1x2x128xf32, #tpu.memory_space<vmem>>, vector<1x2x128xf32>,
    return
  }
  func.func @transform_0(%arg0: i32) -> (i32, i32, i32, i32) {
    %c0_i32 = arith.constant 0 : i32
    %c0_i32_0 = arith.constant 0 : i32
    %c0_i32_1 = arith.constant 0 : i32
    %c0_i32_2 = arith.constant 0 : i32
    return %arg0, %c0_i32, %c0_i32_0, %c0_i32_1 : i32, i32, i32, i32
  }
  func.func @transform_1(%arg0: i32) -> (i32, i32) {
    %c0_i32 = arith.constant 0 : i32
    %c0_i32_0 = arith.constant 0 : i32
    %c0_i32_1 = arith.constant 0 : i32
    return %c0_i32, %c0_i32_0 : i32, i32
  }
  func.func @transform_2(%arg0: i32) -> (i32, i32) {
    %c0_i32 = arith.constant 0 : i32
    %c0_i32_0 = arith.constant 0 : i32
    %c0_i32_1 = arith.constant 0 : i32
    return %c0_i32, %c0_i32_0 : i32, i32
  }
  func.func @transform_3(%arg0: i32) -> (i32, i32) {
    %c0_i32 = arith.constant 0 : i32
    %c0_i32_0 = arith.constant 0 : i32
    %c0_i32_1 = arith.constant 0 : i32
    return %c0_i32, %c0_i32_0 : i32, i32
  }
  func.func @transform_4(%arg0: i32) -> (i32, i32, i32, i32) {
    %c0_i32 = arith.constant 0 : i32
    %c0_i32_0 = arith.constant 0 : i32
    %c0_i32_1 = arith.constant 0 : i32
    %c0_i32_2 = arith.constant 0 : i32
    return %arg0, %c0_i32, %c0_i32_0, %c0_i32_1 : i32, i32, i32, i32
  }
  func.func @transform_5(%arg0: i32) -> (i32, i32, i32) {
    %c0_i32 = arith.constant 0 : i32
    %c0_i32_0 = arith.constant 0 : i32
    %c0_i32_1 = arith.constant 0 : i32
    return %arg0, %c0_i32, %c0_i32_0 : i32, i32, i32
  }
}

module attributes {stable_mosaic.version = 11 : i64} {
  func.func @_bn_relu_pool_kernel(%arg0: i32, %arg1: memref<1x16x16x128xf32, #tpu.memory_space<vmem>>, %arg2: memref<1x128xf32, #tpu.memory_space<vmem>>, %arg3: memref<1x128xf32, #tpu.memory_space<vmem>>, %arg4: memref<1x8x8x128xf32, #tpu.memory_space<vmem>>) attributes {dimension_semantics = [#tpu.dimension_semantics<parallel>], iteration_bounds = array<i64: 2>, scalar_prefetch = 0 : i64, scratch_operands = 0 : i64, tpu.core_type = #tpu.core_type<tc>, window_params = [{transform_indices = @transform_0, window_bounds = array<i64: 1, 16, 16, 128>}, {pipeline_mode = #tpu.pipeline_mode<synchronous>, transform_indices = @transform_1, window_bounds = array<i64: 1, 128>}, {pipeline_mode = #tpu.pipeline_mode<synchronous>, transform_indices = @transform_2, window_bounds = array<i64: 1, 128>}, {transform_indices = @transform_3, window_bounds = array<i64: 1, 8, 8, 128>}]} {
    %c0 = arith.constant 0 : index
    %c0_0 = arith.constant 0 : index
    %0 = vector.load %arg2[%c0, %c0_0] : memref<1x128xf32, #tpu.memory_space<vmem>>, vector<1x128xf32>
    %1 = vector.shape_cast %0 : vector<1x128xf32> to vector<1x1x1x128xf32>
    %c0_1 = arith.constant 0 : index
    %c0_2 = arith.constant 0 : index
    %2 = vector.load %arg3[%c0_1, %c0_2] : memref<1x128xf32, #tpu.memory_space<vmem>>, vector<1x128xf32>
    %3 = vector.shape_cast %2 : vector<1x128xf32> to vector<1x1x1x128xf32>
    %c0_3 = arith.constant 0 : index
    %c0_4 = arith.constant 0 : index
    %c0_5 = arith.constant 0 : index
    %c0_6 = arith.constant 0 : index
    %4 = vector.load %arg1[%c0_3, %c0_4, %c0_5, %c0_6] : memref<1x16x16x128xf32, #tpu.memory_space<vmem>>, vector<1x16x16x128xf32>
    %5 = vector.broadcast %1 : vector<1x1x1x128xf32> to vector<1x16x16x128xf32>
    %6 = arith.mulf %4, %5 : vector<1x16x16x128xf32>
    %7 = vector.broadcast %3 : vector<1x1x1x128xf32> to vector<1x16x16x128xf32>
    %8 = arith.addf %6, %7 : vector<1x16x16x128xf32>
    %cst = arith.constant 0.000000e+00 : f32
    %9 = vector.broadcast %cst : f32 to vector<1x16x16x128xf32>
    %10 = arith.maximumf %8, %9 : vector<1x16x16x128xf32>
    %11 = vector.shape_cast %10 : vector<1x16x16x128xf32> to vector<1x16x8x2x128xf32>
    %12 = vector.extract_strided_slice %11 {offsets = [0, 0, 0, 0, 0], sizes = [1, 16, 8, 1, 128], strides = [1, 1, 1, 1, 1]} : vector<1x16x8x2x128xf32> to vector<1x16x8x1x128xf32>
    %13 = vector.shape_cast %12 : vector<1x16x8x1x128xf32> to vector<1x16x8x128xf32>
    %14 = vector.extract_strided_slice %11 {offsets = [0, 0, 0, 1, 0], sizes = [1, 16, 8, 1, 128], strides = [1, 1, 1, 1, 1]} : vector<1x16x8x2x128xf32> to vector<1x16x8x1x128xf32>
    %15 = vector.shape_cast %14 : vector<1x16x8x1x128xf32> to vector<1x16x8x128xf32>
    %16 = arith.addf %13, %15 : vector<1x16x8x128xf32>
    %17 = vector.shape_cast %16 : vector<1x16x8x128xf32> to vector<1x8x2x8x128xf32>
    %18 = vector.extract_strided_slice %17 {offsets = [0, 0, 0, 0, 0], sizes = [1, 8, 1, 8, 128], strides = [1, 1, 1, 1, 1]} : vector<1x8x2x8x128xf32> to vector<1x8x1x8x128xf32>
    %19 = vector.shape_cast %18 : vector<1x8x1x8x128xf32> to vector<1x8x8x128xf32>
    %20 = vector.extract_strided_slice %17 {offsets = [0, 0, 1, 0, 0], sizes = [1, 8, 1, 8, 128], strides = [1, 1, 1, 1, 1]} : vector<1x8x2x8x128xf32> to vector<1x8x1x8x128xf32>
    %21 = vector.shape_cast %20 : vector<1x8x1x8x128xf32> to vector<1x8x8x128xf32>
    %22 = arith.addf %19, %21 : vector<1x8x8x128xf32>
    %cst_7 = arith.constant 2.500000e-01 : f32
    %23 = vector.broadcast %cst_7 : f32 to vector<1x8x8x128xf32>
    %24 = arith.mulf %22, %23 : vector<1x8x8x128xf32>
    %c0_8 = arith.constant 0 : index
    %c0_9 = arith.constant 0 : index
    %c0_10 = arith.constant 0 : index
    %c0_11 = arith.constant 0 : index
    %25 = vector.load %arg4[%c0_8, %c0_9, %c0_10, %c0_11] : memref<1x8x8x128xf32, #tpu.memory_space<vmem>>, vector<1x8x8x128xf32>
    tpu.vector_store %arg4[%c0_8, %c0_9, %c0_10, %c0_11], %24 {strides = array<i32>} : memref<1x8x8x128xf32, #tpu.memory_space<vmem>>, vector<1x8x8x128xf32>,
    return
  }
  func.func @transform_0(%arg0: i32) -> (i32, i32, i32, i32) {
    %c0_i32 = arith.constant 0 : i32
    %c0_i32_0 = arith.constant 0 : i32
    %c0_i32_1 = arith.constant 0 : i32
    %c0_i32_2 = arith.constant 0 : i32
    return %arg0, %c0_i32, %c0_i32_0, %c0_i32_1 : i32, i32, i32, i32
  }
  func.func @transform_1(%arg0: i32) -> (i32, i32) {
    %c0_i32 = arith.constant 0 : i32
    %c0_i32_0 = arith.constant 0 : i32
    %c0_i32_1 = arith.constant 0 : i32
    return %c0_i32, %c0_i32_0 : i32, i32
  }
  func.func @transform_2(%arg0: i32) -> (i32, i32) {
    %c0_i32 = arith.constant 0 : i32
    %c0_i32_0 = arith.constant 0 : i32
    %c0_i32_1 = arith.constant 0 : i32
    return %c0_i32, %c0_i32_0 : i32, i32
  }
  func.func @transform_3(%arg0: i32) -> (i32, i32, i32, i32) {
    %c0_i32 = arith.constant 0 : i32
    %c0_i32_0 = arith.constant 0 : i32
    %c0_i32_1 = arith.constant 0 : i32
    %c0_i32_2 = arith.constant 0 : i32
    return %arg0, %c0_i32, %c0_i32_0, %c0_i32_1 : i32, i32, i32, i32
  }
}

</mosaic_0001>

<llo_original>
// kernel: conv_block_forward.5
$region0: #{conv_block_forward.5}
  #allocation0 [shape = 'u32[]', space=smem, size = 0x4, offset = 0x4, fixed_abs, tag = 'smem constant byte address 0x4 - core index']
  #allocation1 [shape = 'u32[144,128]{1,0:T(1,128)}', space=vmem, size = 0x12000, scoped, tag = 'internal scratch']
  %s0 = inlined_call_operand.vmem [shape: f32[2,16,16,128], index: 0, kind: input, shape index: {}]
  %s1 = inlined_call_operand.vmem [shape: f32[1,128], index: 1, kind: input, shape index: {}]
  %s2 = inlined_call_operand.vmem [shape: f32[1,128], index: 2, kind: input, shape index: {}]
  %s3 = inlined_call_operand.vmem [shape: f32[2,8,8,128], index: 3, kind: output, shape index: {}]
  %s4 = sld [smem:[#allocation0]]
  $region45: #{conv_block_forward.5} parent=0
    _
  %s6 = ssub.s32 1, %s4
  %s7 = scalar_select 0, %s6, %s4
  loop: start=0, step=1, limit=4
  $region2: #{conv_block_forward.5} parent=0 // loop_pre_header
    _
  $region3: #{conv_block_forward.5} parent=0 // loop_header
    %s9 = sphi 0, %s13
    %p10 = scmp.ge.s32.totalorder %s9, 4
    %s19 = sphi 0, %s21
    %s22 = sphi 0, %s19
    %s23 = sphi 0, %s22
    %s39 = sphi 0, %s23
    %s43 = sphi 0, %s43
    %s45 = sphi 0, %s43
    %s46 = sphi 0, %s45
    %s60 = sphi 0, %s46
    %s64 = sphi 0, %s64
    %s66 = sphi 0, %s64
    %s67 = sphi 0, %s66
    %s81 = sphi 0, %s67
    %s87 = sphi 0, %s89
    %s90 = sphi 0, %s87
    %s91 = sphi 0, %s90
    %s107 = sphi 0, %s91
  $region4: #{conv_block_forward.5} parent=0 // loop_header_branch
    %12 = sbr.rel (%p10) target = $region8
  $region5: #{conv_block_forward.5} parent=0 // loop_body
    %s14 = ssub.s32 %s9, 1
    %s15 = ssub.s32 %s9, 2
    %s16 = sadd.s32 %s9, 1
    %s17 = ssub.s32 %s9, %s16
    %p18 = scmp.eq.s32.totalorder %s17, 0
    %s20 = sadd.s32 %s19, 1
    %s21 = scalar_select %p18, %s19, %s20
    %p24 = pneg %p18
    %p25 = scmp.eq.s32.totalorder %s9, 1
    %p26 = por %p24, %p25
    %p27 = scmp.ne.s32.totalorder %s19, %s22
    %p28 = scmp.eq.s32.totalorder %s9, 0
    %p29 = por %p27, %p28
    %p30 = scmp.ne.s32.totalorder %s19, %s22
    %p31 = scmp.eq.s32.totalorder %s14, 1
    %p32 = por %p30, %p31
    %p33 = scmp.ne.s32.totalorder %s22, %s23
    %p34 = scmp.eq.s32.totalorder %s14, 0
    %p35 = por %p33, %p34
    %p36 = scmp.ne.s32.totalorder %s22, %s23
    %p37 = scmp.eq.s32.totalorder %s15, 1
    %p38 = por %p36, %p37
    %p40 = scmp.ne.s32.totalorder %s23, %s39
    %p41 = scmp.eq.s32.totalorder %s15, 0
    %p42 = por %p40, %p41
    %s44 = sadd.s32 %s43, 1
    %p47 = scmp.eq.s32.totalorder %s9, 1
    %p48 = scmp.ne.s32.totalorder %s43, %s45
    %p49 = scmp.eq.s32.totalorder %s9, 0
    %p50 = por %p48, %p49
    %p51 = scmp.ne.s32.totalorder %s43, %s45
    %p52 = scmp.eq.s32.totalorder %s14, 1
    %p53 = por %p51, %p52
    %p54 = scmp.ne.s32.totalorder %s45, %s46
    %p55 = scmp.eq.s32.totalorder %s14, 0
    %p56 = por %p54, %p55
    %p57 = scmp.ne.s32.totalorder %s45, %s46
    %p58 = scmp.eq.s32.totalorder %s15, 1
    %p59 = por %p57, %p58
    %p61 = scmp.ne.s32.totalorder %s46, %s60
    %p62 = scmp.eq.s32.totalorder %s15, 0
    %p63 = por %p61, %p62
    %s65 = sadd.s32 %s64, 1
    %p68 = scmp.eq.s32.totalorder %s9, 1
    %p69 = scmp.ne.s32.totalorder %s64, %s66
    %p70 = scmp.eq.s32.totalorder %s9, 0
    %p71 = por %p69, %p70
    %p72 = scmp.ne.s32.totalorder %s64, %s66
    %p73 = scmp.eq.s32.totalorder %s14, 1
    %p74 = por %p72, %p73
    %p75 = scmp.ne.s32.totalorder %s66, %s67
    %p76 = scmp.eq.s32.totalorder %s14, 0
    %p77 = por %p75, %p76
    %p78 = scmp.ne.s32.totalorder %s66, %s67
    %p79 = scmp.eq.s32.totalorder %s15, 1
    %p80 = por %p78, %p79
    %p82 = scmp.ne.s32.totalorder %s67, %s81
    %p83 = scmp.eq.s32.totalorder %s15, 0
    %p84 = por %p82, %p83
    %s85 = ssub.s32 %s9, %s16
    %p86 = scmp.eq.s32.totalorder %s85, 0
    %s88 = sadd.s32 %s87, 1
    %s89 = scalar_select %p86, %s87, %s88
    %p92 = pneg %p86
    %p93 = scmp.eq.s32.totalorder %s9, 1
    %p94 = por %p92, %p93
    %p95 = scmp.ne.s32.totalorder %s87, %s90
    %p96 = scmp.eq.s32.totalorder %s9, 0
    %p97 = por %p95, %p96
    %p98 = scmp.ne.s32.totalorder %s87, %s90
    %p99 = scmp.eq.s32.totalorder %s14, 1
    %p100 = por %p98, %p99
    %p101 = scmp.ne.s32.totalorder %s90, %s91
    %p102 = scmp.eq.s32.totalorder %s14, 0
    %p103 = por %p101, %p102
    %p104 = scmp.ne.s32.totalorder %s90, %s91
    %p105 = scmp.eq.s32.totalorder %s15, 1
    %p106 = por %p104, %p105
    %p108 = scmp.ne.s32.totalorder %s91, %s107
    %p109 = scmp.eq.s32.totalorder %s15, 0
    %p110 = por %p108, %p109
    %p111 = scmp.le.s32.totalorder 1, %s9
    %p112 = scmp.lt.s32.totalorder %s9, 3
    %p113 = pnand %p111, %p112
    %p114 = pneg %p113
    // Predicated region
    $region9: #{conv_block_forward.5} parent=5 // pred_check
      _
    $region10: #{conv_block_forward.5} parent=5 // pred_check_branch
      %116 = sbr.rel (%p113) target = $region12
    $region11: #{conv_block_forward.5} parent=5 // pred_region
      %s117 = ssub.s32 %s9, 1
      // Predicated region
      $region13: #{conv_block_forward.5} parent=11 // pred_check
        %p118 = pneg %p56
      $region14: #{conv_block_forward.5} parent=11 // pred_check_branch
        %120 = sbr.rel (%p118) target = $region16
      $region15: #{conv_block_forward.5} parent=11 // pred_region
        _
      $region16: #{conv_block_forward.5} parent=11 // pred_fallthru
        _
      // Predicated region
      $region17: #{conv_block_forward.5} parent=11 // pred_check
        %p121 = pneg %p77
      $region18: #{conv_block_forward.5} parent=11 // pred_check_branch
        %123 = sbr.rel (%p121) target = $region20
      $region19: #{conv_block_forward.5} parent=11 // pred_region
        _
      $region20: #{conv_block_forward.5} parent=11 // pred_fallthru
        _
    $region12: #{conv_block_forward.5} parent=5 // pred_fallthru
      _
    %p124 = scmp.lt.s32.totalorder %s9, 2
    // Predicated region
    $region21: #{conv_block_forward.5} parent=5 // pred_check
      %p125 = pneg %p124
    $region22: #{conv_block_forward.5} parent=5 // pred_check_branch
      %127 = sbr.rel (%p125) target = $region24
    $region23: #{conv_block_forward.5} parent=5 // pred_region
      // Predicated region
      $region25: #{conv_block_forward.5} parent=23 // pred_check
        %p128 = pneg %p29
      $region26: #{conv_block_forward.5} parent=23 // pred_check_branch
        %130 = sbr.rel (%p128) target = $region28
      $region27: #{conv_block_forward.5} parent=23 // pred_region
        %p131 = scmp.lt.s32.totalorder %s9, 1
        %s132 = scalar_select %p131, %s9, 1
        %s133 = smul.addr %s132, 32
        %s134 = smul.addr %s133, 8
        %s135 = scalar_lea.vmem %s0, %s134
      $region28: #{conv_block_forward.5} parent=23 // pred_fallthru
        _
    $region24: #{conv_block_forward.5} parent=5 // pred_fallthru
      _
    %p136 = scmp.le.s32.totalorder 1, %s9
    %p137 = scmp.lt.s32.totalorder %s9, 3
    %p138 = pnand %p136, %p137
    %p139 = pneg %p138
    // Predicated region
    $region29: #{conv_block_forward.5} parent=5 // pred_check
      _
    $region30: #{conv_block_forward.5} parent=5 // pred_check_branch
      %141 = sbr.rel (%p138) target = $region32
    $region31: #{conv_block_forward.5} parent=5 // pred_region
      %s142 = ssub.s32 %s9, 1
      %p143 = scmp.lt.s32.totalorder %s14, 1
      %s144 = scalar_select %p143, %s14, 1
      %s145 = smul.addr %s144, 32
      %s146 = smul.addr %s145, 8
      %s147 = scalar_lea.vmem %s0, %s146
      %p148 = pneg %p35
      %p149 = pneg %p32
      %p150 = pneg %p56
      %p151 = pneg %p53
      %p152 = pneg %p77
      %p153 = pneg %p74
      %p154 = pneg %p103
      %p155 = pneg %p100
      %p156 = scmp.lt.s32.totalorder %s14, 1
      %s157 = scalar_select %p156, %s14, 1
      %s158 = smul.addr %s157, 8
      %s159 = smul.addr %s158, 8
      %s160 = scalar_lea.vmem %s3, %s159
      %p161 = scmp.lt.s32.totalorder %s14, 1
      %s162 = scalar_select %p161, %s14, 1
      %s163 = smul.addr %s162, 32
      %s164 = smul.addr %s163, 8
      %s165 = scalar_lea.vmem %s0, %s164
      %p166 = scmp.lt.s32.totalorder %s14, 1
      %s167 = scalar_select %p166, %s14, 1
      %s168 = smul.addr %s167, 8
      %s169 = smul.addr %s168, 8
      %s170 = scalar_lea.vmem %s3, %s169
      %v171 = vld [vmem:[%s1] sm:$0x1]
      %v172 = vld [vmem:[%s2] sm:$0x1]
      %v173 = vld [vmem:[%s165] sm:$0xff]
      %v174 = vld [vmem:[%s165 + $0x8] sm:$0xff]
      %v175 = vld [vmem:[%s165 + $0x10] sm:$0xff]
      %v176 = vld [vmem:[%s165 + $0x18] sm:$0xff]
      %v177 = vld [vmem:[%s165 + $0x20] sm:$0xff]
      %v178 = vld [vmem:[%s165 + $0x28] sm:$0xff]
      %v179 = vld [vmem:[%s165 + $0x30] sm:$0xff]
      %v180 = vld [vmem:[%s165 + $0x38] sm:$0xff]
      %v181 = vld [vmem:[%s165 + $0x40] sm:$0xff]
      %v182 = vld [vmem:[%s165 + $0x48] sm:$0xff]
      %v183 = vld [vmem:[%s165 + $0x50] sm:$0xff]
      %v184 = vld [vmem:[%s165 + $0x58] sm:$0xff]
      %v185 = vld [vmem:[%s165 + $0x60] sm:$0xff]
      %v186 = vld [vmem:[%s165 + $0x68] sm:$0xff]
      %v187 = vld [vmem:[%s165 + $0x70] sm:$0xff]
      %v188 = vld [vmem:[%s165 + $0x78] sm:$0xff]
      %v189 = vld [vmem:[%s165 + $0x80] sm:$0xff]
      %v190 = vld [vmem:[%s165 + $0x88] sm:$0xff]
      %v191 = vld [vmem:[%s165 + $0x90] sm:$0xff]
      %v192 = vld [vmem:[%s165 + $0x98] sm:$0xff]
      %v193 = vld [vmem:[%s165 + $0xa0] sm:$0xff]
      %v194 = vld [vmem:[%s165 + $0xa8] sm:$0xff]
      %v195 = vld [vmem:[%s165 + $0xb0] sm:$0xff]
      %v196 = vld [vmem:[%s165 + $0xb8] sm:$0xff]
      %v197 = vld [vmem:[%s165 + $0xc0] sm:$0xff]
      %v198 = vld [vmem:[%s165 + $0xc8] sm:$0xff]
      %v199 = vld [vmem:[%s165 + $0xd0] sm:$0xff]
      %v200 = vld [vmem:[%s165 + $0xd8] sm:$0xff]
      %v201 = vld [vmem:[%s165 + $0xe0] sm:$0xff]
      %v202 = vld [vmem:[%s165 + $0xe8] sm:$0xff]
      %v203 = vld [vmem:[%s165 + $0xf0] sm:$0xff]
      %v204 = vld [vmem:[%s165 + $0xf8] sm:$0xff]
      %v206 = vlaneseq
      %v207 = vshrl.u32 %v206, 7
      %v208 = vsub.s32 0, %v207
      %v209 = vrot.slane %v171, %v208
      %v211 = vmul.f32 %v173, %v209
      %v212 = vmul.f32 %v174, %v209
      %v213 = vmul.f32 %v175, %v209
      %v214 = vmul.f32 %v176, %v209
      %v215 = vmul.f32 %v177, %v209
      %v216 = vmul.f32 %v178, %v209
      %v217 = vmul.f32 %v179, %v209
      %v218 = vmul.f32 %v180, %v209
      %v219 = vmul.f32 %v181, %v209
      %v220 = vmul.f32 %v182, %v209
      %v221 = vmul.f32 %v183, %v209
      %v222 = vmul.f32 %v184, %v209
      %v223 = vmul.f32 %v185, %v209
      %v224 = vmul.f32 %v186, %v209
      %v225 = vmul.f32 %v187, %v209
      %v226 = vmul.f32 %v188, %v209
      %v227 = vmul.f32 %v189, %v209
      %v228 = vmul.f32 %v190, %v209
      %v229 = vmul.f32 %v191, %v209
      %v230 = vmul.f32 %v192, %v209
      %v231 = vmul.f32 %v193, %v209
      %v232 = vmul.f32 %v194, %v209
      %v233 = vmul.f32 %v195, %v209
      %v234 = vmul.f32 %v196, %v209
      %v235 = vmul.f32 %v197, %v209
      %v236 = vmul.f32 %v198, %v209
      %v237 = vmul.f32 %v199, %v209
      %v238 = vmul.f32 %v200, %v209
      %v239 = vmul.f32 %v201, %v209
      %v240 = vmul.f32 %v202, %v209
      %v241 = vmul.f32 %v203, %v209
      %v242 = vmul.f32 %v204, %v209
      %v244 = vlaneseq
      %v245 = vshrl.u32 %v244, 7
      %v246 = vsub.s32 0, %v245
      %v247 = vrot.slane %v172, %v246
      %v249 = vadd.f32 %v211, %v247
      %v250 = vadd.f32 %v212, %v247
      %v251 = vadd.f32 %v213, %v247
      %v252 = vadd.f32 %v214, %v247
      %v253 = vadd.f32 %v215, %v247
      %v254 = vadd.f32 %v216, %v247
      %v255 = vadd.f32 %v217, %v247
      %v256 = vadd.f32 %v218, %v247
      %v257 = vadd.f32 %v219, %v247
      %v258 = vadd.f32 %v220, %v247
      %v259 = vadd.f32 %v221, %v247
      %v260 = vadd.f32 %v222, %v247
      %v261 = vadd.f32 %v223, %v247
      %v262 = vadd.f32 %v224, %v247
      %v263 = vadd.f32 %v225, %v247
      %v264 = vadd.f32 %v226, %v247
      %v265 = vadd.f32 %v227, %v247
      %v266 = vadd.f32 %v228, %v247
      %v267 = vadd.f32 %v229, %v247
      %v268 = vadd.f32 %v230, %v247
      %v269 = vadd.f32 %v231, %v247
      %v270 = vadd.f32 %v232, %v247
      %v271 = vadd.f32 %v233, %v247
      %v272 = vadd.f32 %v234, %v247
      %v273 = vadd.f32 %v235, %v247
      %v274 = vadd.f32 %v236, %v247
      %v275 = vadd.f32 %v237, %v247
      %v276 = vadd.f32 %v238, %v247
      %v277 = vadd.f32 %v239, %v247
      %v278 = vadd.f32 %v240, %v247
      %v279 = vadd.f32 %v241, %v247
      %v280 = vadd.f32 %v242, %v247
      %v281 = vmax.f32 %v249, 0.0
      %v282 = vmax.f32 %v250, 0.0
      %v283 = vmax.f32 %v251, 0.0
      %v284 = vmax.f32 %v252, 0.0
      %v285 = vmax.f32 %v253, 0.0
      %v286 = vmax.f32 %v254, 0.0
      %v287 = vmax.f32 %v255, 0.0
      %v288 = vmax.f32 %v256, 0.0
      %v289 = vmax.f32 %v257, 0.0
      %v290 = vmax.f32 %v258, 0.0
      %v291 = vmax.f32 %v259, 0.0
      %v292 = vmax.f32 %v260, 0.0
      %v293 = vmax.f32 %v261, 0.0
      %v294 = vmax.f32 %v262, 0.0
      %v295 = vmax.f32 %v263, 0.0
      %v296 = vmax.f32 %v264, 0.0
      %v297 = vmax.f32 %v265, 0.0
      %v298 = vmax.f32 %v266, 0.0
      %v299 = vmax.f32 %v267, 0.0
      %v300 = vmax.f32 %v268, 0.0
      %v301 = vmax.f32 %v269, 0.0
      %v302 = vmax.f32 %v270, 0.0
      %v303 = vmax.f32 %v271, 0.0
      %v304 = vmax.f32 %v272, 0.0
      %v305 = vmax.f32 %v273, 0.0
      %v306 = vmax.f32 %v274, 0.0
      %v307 = vmax.f32 %v275, 0.0
      %v308 = vmax.f32 %v276, 0.0
      %v309 = vmax.f32 %v277, 0.0
      %v310 = vmax.f32 %v278, 0.0
      %v311 = vmax.f32 %v279, 0.0
      %v312 = vmax.f32 %v280, 0.0
      %v345 = vcombine.high %v281, %v281
      %v347 = vunpack.c.l.s4 1983009808
      %v348 = vunpack.c.0.s8 %v347
      %v349 = vlaneseq
      %v350 = vshrl.u32 %v349, 7
      %v351 = vsub.s32 %v348, %v350
      %v352 = vrot.slane %v281, %v351
      %v354 = vunpack.c.l.s4 1983009808
      %v355 = vunpack.c.0.s8 %v354
      %v356 = vlaneseq
      %v357 = vshrl.u32 %v356, 7
      %v358 = vsub.s32 %v355, %v357
      %v359 = vrot.slane %v345, %v358
      %v360 = vcombine.high %v352, %v352
      %v361 = vcombine.high %v359, %v359
      %v362 = vcombine.high %v282, %v282
      %v364 = vunpack.c.l.s4 1983009808
      %v365 = vunpack.c.0.s8 %v364
      %v366 = vlaneseq
      %v367 = vshrl.u32 %v366, 7
      %v368 = vsub.s32 %v365, %v367
      %v369 = vrot.slane %v282, %v368
      %v371 = vunpack.c.l.s4 1983009808
      %v372 = vunpack.c.0.s8 %v371
      %v373 = vlaneseq
      %v374 = vshrl.u32 %v373, 7
      %v375 = vsub.s32 %v372, %v374
      %v376 = vrot.slane %v362, %v375
      %v377 = vcombine.high %v369, %v369
      %v378 = vcombine.high %v376, %v376
      %v379 = vcombine.high %v283, %v283
      %v381 = vunpack.c.l.s4 1983009808
      %v382 = vunpack.c.0.s8 %v381
      %v383 = vlaneseq
      %v384 = vshrl.u32 %v383, 7
      %v385 = vsub.s32 %v382, %v384
      %v386 = vrot.slane %v283, %v385
      %v388 = vunpack.c.l.s4 1983009808
      %v389 = vunpack.c.0.s8 %v388
      %v390 = vlaneseq
      %v391 = vshrl.u32 %v390, 7
      %v392 = vsub.s32 %v389, %v391
      %v393 = vrot.slane %v379, %v392
      %v394 = vcombine.high %v386, %v386
      %v395 = vcombine.high %v393, %v393
      %v396 = vcombine.high %v284, %v284
      %v398 = vunpack.c.l.s4 1983009808
      %v399 = vunpack.c.0.s8 %v398
      %v400 = vlaneseq
      %v401 = vshrl.u32 %v400, 7
      %v402 = vsub.s32 %v399, %v401
      %v403 = vrot.slane %v284, %v402
      %v405 = vunpack.c.l.s4 1983009808
      %v406 = vunpack.c.0.s8 %v405
      %v407 = vlaneseq
      %v408 = vshrl.u32 %v407, 7
      %v409 = vsub.s32 %v406, %v408
      %v410 = vrot.slane %v396, %v409
      %v411 = vcombine.high %v403, %v403
      %v412 = vcombine.high %v410, %v410
      %v413 = vcombine.high %v285, %v285
      %v415 = vunpack.c.l.s4 1983009808
      %v416 = vunpack.c.0.s8 %v415
      %v417 = vlaneseq
      %v418 = vshrl.u32 %v417, 7
      %v419 = vsub.s32 %v416, %v418
      %v420 = vrot.slane %v285, %v419
      %v422 = vunpack.c.l.s4 1983009808
      %v423 = vunpack.c.0.s8 %v422
      %v424 = vlaneseq
      %v425 = vshrl.u32 %v424, 7
      %v426 = vsub.s32 %v423, %v425
      %v427 = vrot.slane %v413, %v426
      %v428 = vcombine.high %v420, %v420
      %v429 = vcombine.high %v427, %v427
      %v430 = vcombine.high %v286, %v286
      %v432 = vunpack.c.l.s4 1983009808
      %v433 = vunpack.c.0.s8 %v432
      %v434 = vlaneseq
      %v435 = vshrl.u32 %v434, 7
      %v436 = vsub.s32 %v433, %v435
      %v437 = vrot.slane %v286, %v436
      %v439 = vunpack.c.l.s4 1983009808
      %v440 = vunpack.c.0.s8 %v439
      %v441 = vlaneseq
      %v442 = vshrl.u32 %v441, 7
      %v443 = vsub.s32 %v440, %v442
      %v444 = vrot.slane %v430, %v443
      %v445 = vcombine.high %v437, %v437
      %v446 = vcombine.high %v444, %v444
      %v447 = vcombine.high %v287, %v287
      %v449 = vunpack.c.l.s4 1983009808
      %v450 = vunpack.c.0.s8 %v449
      %v451 = vlaneseq
      %v452 = vshrl.u32 %v451, 7
      %v453 = vsub.s32 %v450, %v452
      %v454 = vrot.slane %v287, %v453
      %v456 = vunpack.c.l.s4 1983009808
      %v457 = vunpack.c.0.s8 %v456
      %v458 = vlaneseq
      %v459 = vshrl.u32 %v458, 7
      %v460 = vsub.s32 %v457, %v459
      %v461 = vrot.slane %v447, %v460
      %v462 = vcombine.high %v454, %v454
      %v463 = vcombine.high %v461, %v461
      %v464 = vcombine.high %v288, %v288
      %v466 = vunpack.c.l.s4 1983009808
      %v467 = vunpack.c.0.s8 %v466
      %v468 = vlaneseq
      %v469 = vshrl.u32 %v468, 7
      %v470 = vsub.s32 %v467, %v469
      %v471 = vrot.slane %v288, %v470
      %v473 = vunpack.c.l.s4 1983009808
      %v474 = vunpack.c.0.s8 %v473
      %v475 = vlaneseq
      %v476 = vshrl.u32 %v475, 7
      %v477 = vsub.s32 %v474, %v476
      %v478 = vrot.slane %v464, %v477
      %v479 = vcombine.high %v471, %v471
      %v480 = vcombine.high %v478, %v478
      %v481 = vcombine.high %v289, %v289
      %v483 = vunpack.c.l.s4 1983009808
      %v484 = vunpack.c.0.s8 %v483
      %v485 = vlaneseq
      %v486 = vshrl.u32 %v485, 7
      %v487 = vsub.s32 %v484, %v486
      %v488 = vrot.slane %v289, %v487
      %v490 = vunpack.c.l.s4 1983009808
      %v491 = vunpack.c.0.s8 %v490
      %v492 = vlaneseq
      %v493 = vshrl.u32 %v492, 7
      %v494 = vsub.s32 %v491, %v493
      %v495 = vrot.slane %v481, %v494
      %v496 = vcombine.high %v488, %v488
      %v497 = vcombine.high %v495, %v495
      %v498 = vcombine.high %v290, %v290
      %v500 = vunpack.c.l.s4 1983009808
      %v501 = vunpack.c.0.s8 %v500
      %v502 = vlaneseq
      %v503 = vshrl.u32 %v502, 7
      %v504 = vsub.s32 %v501, %v503
      %v505 = vrot.slane %v290, %v504
      %v507 = vunpack.c.l.s4 1983009808
      %v508 = vunpack.c.0.s8 %v507
      %v509 = vlaneseq
      %v510 = vshrl.u32 %v509, 7
      %v511 = vsub.s32 %v508, %v510
      %v512 = vrot.slane %v498, %v511
      %v513 = vcombine.high %v505, %v505
      %v514 = vcombine.high %v512, %v512
      %v515 = vcombine.high %v291, %v291
      %v517 = vunpack.c.l.s4 1983009808
      %v518 = vunpack.c.0.s8 %v517
      %v519 = vlaneseq
      %v520 = vshrl.u32 %v519, 7
      %v521 = vsub.s32 %v518, %v520
      %v522 = vrot.slane %v291, %v521
      %v524 = vunpack.c.l.s4 1983009808
      %v525 = vunpack.c.0.s8 %v524
      %v526 = vlaneseq
      %v527 = vshrl.u32 %v526, 7
      %v528 = vsub.s32 %v525, %v527
      %v529 = vrot.slane %v515, %v528
      %v530 = vcombine.high %v522, %v522
      %v531 = vcombine.high %v529, %v529
      %v532 = vcombine.high %v292, %v292
      %v534 = vunpack.c.l.s4 1983009808
      %v535 = vunpack.c.0.s8 %v534
      %v536 = vlaneseq
      %v537 = vshrl.u32 %v536, 7
      %v538 = vsub.s32 %v535, %v537
      %v539 = vrot.slane %v292, %v538
      %v541 = vunpack.c.l.s4 1983009808
      %v542 = vunpack.c.0.s8 %v541
      %v543 = vlaneseq
      %v544 = vshrl.u32 %v543, 7
      %v545 = vsub.s32 %v542, %v544
      %v546 = vrot.slane %v532, %v545
      %v547 = vcombine.high %v539, %v539
      %v548 = vcombine.high %v546, %v546
      %v549 = vcombine.high %v293, %v293
      %v551 = vunpack.c.l.s4 1983009808
      %v552 = vunpack.c.0.s8 %v551
      %v553 = vlaneseq
      %v554 = vshrl.u32 %v553, 7
      %v555 = vsub.s32 %v552, %v554
      %v556 = vrot.slane %v293, %v555
      %v558 = vunpack.c.l.s4 1983009808
      %v559 = vunpack.c.0.s8 %v558
      %v560 = vlaneseq
      %v561 = vshrl.u32 %v560, 7
      %v562 = vsub.s32 %v559, %v561
      %v563 = vrot.slane %v549, %v562
      %v564 = vcombine.high %v556, %v556
      %v565 = vcombine.high %v563, %v563
      %v566 = vcombine.high %v294, %v294
      %v568 = vunpack.c.l.s4 1983009808
      %v569 = vunpack.c.0.s8 %v568
      %v570 = vlaneseq
      %v571 = vshrl.u32 %v570, 7
      %v572 = vsub.s32 %v569, %v571
      %v573 = vrot.slane %v294, %v572
      %v575 = vunpack.c.l.s4 1983009808
      %v576 = vunpack.c.0.s8 %v575
      %v577 = vlaneseq
      %v578 = vshrl.u32 %v577, 7
      %v579 = vsub.s32 %v576, %v578
      %v580 = vrot.slane %v566, %v579
      %v581 = vcombine.high %v573, %v573
      %v582 = vcombine.high %v580, %v580
      %v583 = vcombine.high %v295, %v295
      %v585 = vunpack.c.l.s4 1983009808
      %v586 = vunpack.c.0.s8 %v585
      %v587 = vlaneseq
      %v588 = vshrl.u32 %v587, 7
      %v589 = vsub.s32 %v586, %v588
      %v590 = vrot.slane %v295, %v589
      %v592 = vunpack.c.l.s4 1983009808
      %v593 = vunpack.c.0.s8 %v592
      %v594 = vlaneseq
      %v595 = vshrl.u32 %v594, 7
      %v596 = vsub.s32 %v593, %v595
      %v597 = vrot.slane %v583, %v596
      %v598 = vcombine.high %v590, %v590
      %v599 = vcombine.high %v597, %v597
      %v600 = vcombine.high %v296, %v296
      %v602 = vunpack.c.l.s4 1983009808
      %v603 = vunpack.c.0.s8 %v602
      %v604 = vlaneseq
      %v605 = vshrl.u32 %v604, 7
      %v606 = vsub.s32 %v603, %v605
      %v607 = vrot.slane %v296, %v606
      %v609 = vunpack.c.l.s4 1983009808
      %v610 = vunpack.c.0.s8 %v609
      %v611 = vlaneseq
      %v612 = vshrl.u32 %v611, 7
      %v613 = vsub.s32 %v610, %v612
      %v614 = vrot.slane %v600, %v613
      %v615 = vcombine.high %v607, %v607
      %v616 = vcombine.high %v614, %v614
      %v617 = vcombine.high %v297, %v297
      %v619 = vunpack.c.l.s4 1983009808
      %v620 = vunpack.c.0.s8 %v619
      %v621 = vlaneseq
      %v622 = vshrl.u32 %v621, 7
      %v623 = vsub.s32 %v620, %v622
      %v624 = vrot.slane %v297, %v623
      %v626 = vunpack.c.l.s4 1983009808
      %v627 = vunpack.c.0.s8 %v626
      %v628 = vlaneseq
      %v629 = vshrl.u32 %v628, 7
      %v630 = vsub.s32 %v627, %v629
      %v631 = vrot.slane %v617, %v630
      %v632 = vcombine.high %v624, %v624
      %v633 = vcombine.high %v631, %v631
      %v634 = vcombine.high %v298, %v298
      %v636 = vunpack.c.l.s4 1983009808
      %v637 = vunpack.c.0.s8 %v636
      %v638 = vlaneseq
      %v639 = vshrl.u32 %v638, 7
      %v640 = vsub.s32 %v637, %v639
      %v641 = vrot.slane %v298, %v640
      %v643 = vunpack.c.l.s4 1983009808
      %v644 = vunpack.c.0.s8 %v643
      %v645 = vlaneseq
      %v646 = vshrl.u32 %v645, 7
      %v647 = vsub.s32 %v644, %v646
      %v648 = vrot.slane %v634, %v647
      %v649 = vcombine.high %v641, %v641
      %v650 = vcombine.high %v648, %v648
      %v651 = vcombine.high %v299, %v299
      %v653 = vunpack.c.l.s4 1983009808
      %v654 = vunpack.c.0.s8 %v653
      %v655 = vlaneseq
      %v656 = vshrl.u32 %v655, 7
      %v657 = vsub.s32 %v654, %v656
      %v658 = vrot.slane %v299, %v657
      %v660 = vunpack.c.l.s4 1983009808
      %v661 = vunpack.c.0.s8 %v660
      %v662 = vlaneseq
      %v663 = vshrl.u32 %v662, 7
      %v664 = vsub.s32 %v661, %v663
      %v665 = vrot.slane %v651, %v664
      %v666 = vcombine.high %v658, %v658
      %v667 = vcombine.high %v665, %v665
      %v668 = vcombine.high %v300, %v300
      %v670 = vunpack.c.l.s4 1983009808
      %v671 = vunpack.c.0.s8 %v670
      %v672 = vlaneseq
      %v673 = vshrl.u32 %v672, 7
      %v674 = vsub.s32 %v671, %v673
      %v675 = vrot.slane %v300, %v674
      %v677 = vunpack.c.l.s4 1983009808
      %v678 = vunpack.c.0.s8 %v677
      %v679 = vlaneseq
      %v680 = vshrl.u32 %v679, 7
      %v681 = vsub.s32 %v678, %v680
      %v682 = vrot.slane %v668, %v681
      %v683 = vcombine.high %v675, %v675
      %v684 = vcombine.high %v682, %v682
      %v685 = vcombine.high %v301, %v301
      %v687 = vunpack.c.l.s4 1983009808
      %v688 = vunpack.c.0.s8 %v687
      %v689 = vlaneseq
      %v690 = vshrl.u32 %v689, 7
      %v691 = vsub.s32 %v688, %v690
      %v692 = vrot.slane %v301, %v691
      %v694 = vunpack.c.l.s4 1983009808
      %v695 = vunpack.c.0.s8 %v694
      %v696 = vlaneseq
      %v697 = vshrl.u32 %v696, 7
      %v698 = vsub.s32 %v695, %v697
      %v699 = vrot.slane %v685, %v698
      %v700 = vcombine.high %v692, %v692
      %v701 = vcombine.high %v699, %v699
      %v702 = vcombine.high %v302, %v302
      %v704 = vunpack.c.l.s4 1983009808
      %v705 = vunpack.c.0.s8 %v704
      %v706 = vlaneseq
      %v707 = vshrl.u32 %v706, 7
      %v708 = vsub.s32 %v705, %v707
      %v709 = vrot.slane %v302, %v708
      %v711 = vunpack.c.l.s4 1983009808
      %v712 = vunpack.c.0.s8 %v711
      %v713 = vlaneseq
      %v714 = vshrl.u32 %v713, 7
      %v715 = vsub.s32 %v712, %v714
      %v716 = vrot.slane %v702, %v715
      %v717 = vcombine.high %v709, %v709
      %v718 = vcombine.high %v716, %v716
      %v719 = vcombine.high %v303, %v303
      %v721 = vunpack.c.l.s4 1983009808
      %v722 = vunpack.c.0.s8 %v721
      %v723 = vlaneseq
      %v724 = vshrl.u32 %v723, 7
      %v725 = vsub.s32 %v722, %v724
      %v726 = vrot.slane %v303, %v725
      %v728 = vunpack.c.l.s4 1983009808
      %v729 = vunpack.c.0.s8 %v728
      %v730 = vlaneseq
      %v731 = vshrl.u32 %v730, 7
      %v732 = vsub.s32 %v729, %v731
      %v733 = vrot.slane %v719, %v732
      %v734 = vcombine.high %v726, %v726
      %v735 = vcombine.high %v733, %v733
      %v736 = vcombine.high %v304, %v304
      %v738 = vunpack.c.l.s4 1983009808
      %v739 = vunpack.c.0.s8 %v738
      %v740 = vlaneseq
      %v741 = vshrl.u32 %v740, 7
      %v742 = vsub.s32 %v739, %v741
      %v743 = vrot.slane %v304, %v742
      %v745 = vunpack.c.l.s4 1983009808
      %v746 = vunpack.c.0.s8 %v745
      %v747 = vlaneseq
      %v748 = vshrl.u32 %v747, 7
      %v749 = vsub.s32 %v746, %v748
      %v750 = vrot.slane %v736, %v749
      %v751 = vcombine.high %v743, %v743
      %v752 = vcombine.high %v750, %v750
      %v753 = vcombine.high %v305, %v305
      %v755 = vunpack.c.l.s4 1983009808
      %v756 = vunpack.c.0.s8 %v755
      %v757 = vlaneseq
      %v758 = vshrl.u32 %v757, 7
      %v759 = vsub.s32 %v756, %v758
      %v760 = vrot.slane %v305, %v759
      %v762 = vunpack.c.l.s4 1983009808
      %v763 = vunpack.c.0.s8 %v762
      %v764 = vlaneseq
      %v765 = vshrl.u32 %v764, 7
      %v766 = vsub.s32 %v763, %v765
      %v767 = vrot.slane %v753, %v766
      %v768 = vcombine.high %v760, %v760
      %v769 = vcombine.high %v767, %v767
      %v770 = vcombine.high %v306, %v306
      %v772 = vunpack.c.l.s4 1983009808
      %v773 = vunpack.c.0.s8 %v772
      %v774 = vlaneseq
      %v775 = vshrl.u32 %v774, 7
      %v776 = vsub.s32 %v773, %v775
      %v777 = vrot.slane %v306, %v776
      %v779 = vunpack.c.l.s4 1983009808
      %v780 = vunpack.c.0.s8 %v779
      %v781 = vlaneseq
      %v782 = vshrl.u32 %v781, 7
      %v783 = vsub.s32 %v780, %v782
      %v784 = vrot.slane %v770, %v783
      %v785 = vcombine.high %v777, %v777
      %v786 = vcombine.high %v784, %v784
      %v787 = vcombine.high %v307, %v307
      %v789 = vunpack.c.l.s4 1983009808
      %v790 = vunpack.c.0.s8 %v789
      %v791 = vlaneseq
      %v792 = vshrl.u32 %v791, 7
      %v793 = vsub.s32 %v790, %v792
      %v794 = vrot.slane %v307, %v793
      %v796 = vunpack.c.l.s4 1983009808
      %v797 = vunpack.c.0.s8 %v796
      %v798 = vlaneseq
      %v799 = vshrl.u32 %v798, 7
      %v800 = vsub.s32 %v797, %v799
      %v801 = vrot.slane %v787, %v800
      %v802 = vcombine.high %v794, %v794
      %v803 = vcombine.high %v801, %v801
      %v804 = vcombine.high %v308, %v308
      %v806 = vunpack.c.l.s4 1983009808
      %v807 = vunpack.c.0.s8 %v806
      %v808 = vlaneseq
      %v809 = vshrl.u32 %v808, 7
      %v810 = vsub.s32 %v807, %v809
      %v811 = vrot.slane %v308, %v810
      %v813 = vunpack.c.l.s4 1983009808
      %v814 = vunpack.c.0.s8 %v813
      %v815 = vlaneseq
      %v816 = vshrl.u32 %v815, 7
      %v817 = vsub.s32 %v814, %v816
      %v818 = vrot.slane %v804, %v817
      %v819 = vcombine.high %v811, %v811
      %v820 = vcombine.high %v818, %v818
      %v821 = vcombine.high %v309, %v309
      %v823 = vunpack.c.l.s4 1983009808
      %v824 = vunpack.c.0.s8 %v823
      %v825 = vlaneseq
      %v826 = vshrl.u32 %v825, 7
      %v827 = vsub.s32 %v824, %v826
      %v828 = vrot.slane %v309, %v827
      %v830 = vunpack.c.l.s4 1983009808
      %v831 = vunpack.c.0.s8 %v830
      %v832 = vlaneseq
      %v833 = vshrl.u32 %v832, 7
      %v834 = vsub.s32 %v831, %v833
      %v835 = vrot.slane %v821, %v834
      %v836 = vcombine.high %v828, %v828
      %v837 = vcombine.high %v835, %v835
      %v838 = vcombine.high %v310, %v310
      %v840 = vunpack.c.l.s4 1983009808
      %v841 = vunpack.c.0.s8 %v840
      %v842 = vlaneseq
      %v843 = vshrl.u32 %v842, 7
      %v844 = vsub.s32 %v841, %v843
      %v845 = vrot.slane %v310, %v844
      %v847 = vunpack.c.l.s4 1983009808
      %v848 = vunpack.c.0.s8 %v847
      %v849 = vlaneseq
      %v850 = vshrl.u32 %v849, 7
      %v851 = vsub.s32 %v848, %v850
      %v852 = vrot.slane %v838, %v851
      %v853 = vcombine.high %v845, %v845
      %v854 = vcombine.high %v852, %v852
      %v855 = vcombine.high %v311, %v311
      %v857 = vunpack.c.l.s4 1983009808
      %v858 = vunpack.c.0.s8 %v857
      %v859 = vlaneseq
      %v860 = vshrl.u32 %v859, 7
      %v861 = vsub.s32 %v858, %v860
      %v862 = vrot.slane %v311, %v861
      %v864 = vunpack.c.l.s4 1983009808
      %v865 = vunpack.c.0.s8 %v864
      %v866 = vlaneseq
      %v867 = vshrl.u32 %v866, 7
      %v868 = vsub.s32 %v865, %v867
      %v869 = vrot.slane %v855, %v868
      %v870 = vcombine.high %v862, %v862
      %v871 = vcombine.high %v869, %v869
      %v872 = vcombine.high %v312, %v312
      %v874 = vunpack.c.l.s4 1983009808
      %v875 = vunpack.c.0.s8 %v874
      %v876 = vlaneseq
      %v877 = vshrl.u32 %v876, 7
      %v878 = vsub.s32 %v875, %v877
      %v879 = vrot.slane %v312, %v878
      %v881 = vunpack.c.l.s4 1983009808
      %v882 = vunpack.c.0.s8 %v881
      %v883 = vlaneseq
      %v884 = vshrl.u32 %v883, 7
      %v885 = vsub.s32 %v882, %v884
      %v886 = vrot.slane %v872, %v885
      %v887 = vcombine.high %v879, %v879
      %v888 = vcombine.high %v886, %v886
      %v1017 = vrot.slane %v352, 7
      %v1018 = vrot.slane %v1017, 2
      %v1019 = vrot.slane %v360, 7
      %v1020 = vrot.slane %v1019, 2
      %v1021 = vrot.slane %v359, 7
      %v1022 = vrot.slane %v1021, 2
      %v1023 = vrot.slane %v361, 7
      %v1024 = vrot.slane %v1023, 2
      %v1025 = vrot.slane %v369, 7
      %v1026 = vrot.slane %v1025, 2
      %v1027 = vrot.slane %v377, 7
      %v1028 = vrot.slane %v1027, 2
      %v1029 = vrot.slane %v376, 7
      %v1030 = vrot.slane %v1029, 2
      %v1031 = vrot.slane %v378, 7
      %v1032 = vrot.slane %v1031, 2
      %v1033 = vrot.slane %v386, 7
      %v1034 = vrot.slane %v1033, 2
      %v1035 = vrot.slane %v394, 7
      %v1036 = vrot.slane %v1035, 2
      %v1037 = vrot.slane %v393, 7
      %v1038 = vrot.slane %v1037, 2
      %v1039 = vrot.slane %v395, 7
      %v1040 = vrot.slane %v1039, 2
      %v1041 = vrot.slane %v403, 7
      %v1042 = vrot.slane %v1041, 2
      %v1043 = vrot.slane %v411, 7
      %v1044 = vrot.slane %v1043, 2
      %v1045 = vrot.slane %v410, 7
      %v1046 = vrot.slane %v1045, 2
      %v1047 = vrot.slane %v412, 7
      %v1048 = vrot.slane %v1047, 2
      %v1049 = vrot.slane %v420, 7
      %v1050 = vrot.slane %v1049, 2
      %v1051 = vrot.slane %v428, 7
      %v1052 = vrot.slane %v1051, 2
      %v1053 = vrot.slane %v427, 7
      %v1054 = vrot.slane %v1053, 2
      %v1055 = vrot.slane %v429, 7
      %v1056 = vrot.slane %v1055, 2
      %v1057 = vrot.slane %v437, 7
      %v1058 = vrot.slane %v1057, 2
      %v1059 = vrot.slane %v445, 7
      %v1060 = vrot.slane %v1059, 2
      %v1061 = vrot.slane %v444, 7
      %v1062 = vrot.slane %v1061, 2
      %v1063 = vrot.slane %v446, 7
      %v1064 = vrot.slane %v1063, 2
      %v1065 = vrot.slane %v454, 7
      %v1066 = vrot.slane %v1065, 2
      %v1067 = vrot.slane %v462, 7
      %v1068 = vrot.slane %v1067, 2
      %v1069 = vrot.slane %v461, 7
      %v1070 = vrot.slane %v1069, 2
      %v1071 = vrot.slane %v463, 7
      %v1072 = vrot.slane %v1071, 2
      %v1073 = vrot.slane %v471, 7
      %v1074 = vrot.slane %v1073, 2
      %v1075 = vrot.slane %v479, 7
      %v1076 = vrot.slane %v1075, 2
      %v1077 = vrot.slane %v478, 7
      %v1078 = vrot.slane %v1077, 2
      %v1079 = vrot.slane %v480, 7
      %v1080 = vrot.slane %v1079, 2
      %v1081 = vrot.slane %v488, 7
      %v1082 = vrot.slane %v1081, 2
      %v1083 = vrot.slane %v496, 7
      %v1084 = vrot.slane %v1083, 2
      %v1085 = vrot.slane %v495, 7
      %v1086 = vrot.slane %v1085, 2
      %v1087 = vrot.slane %v497, 7
      %v1088 = vrot.slane %v1087, 2
      %v1089 = vrot.slane %v505, 7
      %v1090 = vrot.slane %v1089, 2
      %v1091 = vrot.slane %v513, 7
      %v1092 = vrot.slane %v1091, 2
      %v1093 = vrot.slane %v512, 7
      %v1094 = vrot.slane %v1093, 2
      %v1095 = vrot.slane %v514, 7
      %v1096 = vrot.slane %v1095, 2
      %v1097 = vrot.slane %v522, 7
      %v1098 = vrot.slane %v1097, 2
      %v1099 = vrot.slane %v530, 7
      %v1100 = vrot.slane %v1099, 2
      %v1101 = vrot.slane %v529, 7
      %v1102 = vrot.slane %v1101, 2
      %v1103 = vrot.slane %v531, 7
      %v1104 = vrot.slane %v1103, 2
      %v1105 = vrot.slane %v539, 7
      %v1106 = vrot.slane %v1105, 2
      %v1107 = vrot.slane %v547, 7
      %v1108 = vrot.slane %v1107, 2
      %v1109 = vrot.slane %v546, 7
      %v1110 = vrot.slane %v1109, 2
      %v1111 = vrot.slane %v548, 7
      %v1112 = vrot.slane %v1111, 2
      %v1113 = vrot.slane %v556, 7
      %v1114 = vrot.slane %v1113, 2
      %v1115 = vrot.slane %v564, 7
      %v1116 = vrot.slane %v1115, 2
      %v1117 = vrot.slane %v563, 7
      %v1118 = vrot.slane %v1117, 2
      %v1119 = vrot.slane %v565, 7
      %v1120 = vrot.slane %v1119, 2
      %v1121 = vrot.slane %v573, 7
      %v1122 = vrot.slane %v1121, 2
      %v1123 = vrot.slane %v581, 7
      %v1124 = vrot.slane %v1123, 2
      %v1125 = vrot.slane %v580, 7
      %v1126 = vrot.slane %v1125, 2
      %v1127 = vrot.slane %v582, 7
      %v1128 = vrot.slane %v1127, 2
      %v1129 = vrot.slane %v590, 7
      %v1130 = vrot.slane %v1129, 2
      %v1131 = vrot.slane %v598, 7
      %v1132 = vrot.slane %v1131, 2
      %v1133 = vrot.slane %v597, 7
      %v1134 = vrot.slane %v1133, 2
      %v1135 = vrot.slane %v599, 7
      %v1136 = vrot.slane %v1135, 2
      %v1137 = vrot.slane %v607, 7
      %v1138 = vrot.slane %v1137, 2
      %v1139 = vrot.slane %v615, 7
      %v1140 = vrot.slane %v1139, 2
      %v1141 = vrot.slane %v614, 7
      %v1142 = vrot.slane %v1141, 2
      %v1143 = vrot.slane %v616, 7
      %v1144 = vrot.slane %v1143, 2
      %v1145 = vrot.slane %v624, 7
      %v1146 = vrot.slane %v1145, 2
      %v1147 = vrot.slane %v632, 7
      %v1148 = vrot.slane %v1147, 2
      %v1149 = vrot.slane %v631, 7
      %v1150 = vrot.slane %v1149, 2
      %v1151 = vrot.slane %v633, 7
      %v1152 = vrot.slane %v1151, 2
      %v1153 = vrot.slane %v641, 7
      %v1154 = vrot.slane %v1153, 2
      %v1155 = vrot.slane %v649, 7
      %v1156 = vrot.slane %v1155, 2
      %v1157 = vrot.slane %v648, 7
      %v1158 = vrot.slane %v1157, 2
      %v1159 = vrot.slane %v650, 7
      %v1160 = vrot.slane %v1159, 2
      %v1161 = vrot.slane %v658, 7
      %v1162 = vrot.slane %v1161, 2
      %v1163 = vrot.slane %v666, 7
      %v1164 = vrot.slane %v1163, 2
      %v1165 = vrot.slane %v665, 7
      %v1166 = vrot.slane %v1165, 2
      %v1167 = vrot.slane %v667, 7
      %v1168 = vrot.slane %v1167, 2
      %v1169 = vrot.slane %v675, 7
      %v1170 = vrot.slane %v1169, 2
      %v1171 = vrot.slane %v683, 7
      %v1172 = vrot.slane %v1171, 2
      %v1173 = vrot.slane %v682, 7
      %v1174 = vrot.slane %v1173, 2
      %v1175 = vrot.slane %v684, 7
      %v1176 = vrot.slane %v1175, 2
      %v1177 = vrot.slane %v692, 7
      %v1178 = vrot.slane %v1177, 2
      %v1179 = vrot.slane %v700, 7
      %v1180 = vrot.slane %v1179, 2
      %v1181 = vrot.slane %v699, 7
      %v1182 = vrot.slane %v1181, 2
      %v1183 = vrot.slane %v701, 7
      %v1184 = vrot.slane %v1183, 2
      %v1185 = vrot.slane %v709, 7
      %v1186 = vrot.slane %v1185, 2
      %v1187 = vrot.slane %v717, 7
      %v1188 = vrot.slane %v1187, 2
      %v1189 = vrot.slane %v716, 7
      %v1190 = vrot.slane %v1189, 2
      %v1191 = vrot.slane %v718, 7
      %v1192 = vrot.slane %v1191, 2
      %v1193 = vrot.slane %v726, 7
      %v1194 = vrot.slane %v1193, 2
      %v1195 = vrot.slane %v734, 7
      %v1196 = vrot.slane %v1195, 2
      %v1197 = vrot.slane %v733, 7
      %v1198 = vrot.slane %v1197, 2
      %v1199 = vrot.slane %v735, 7
      %v1200 = vrot.slane %v1199, 2
      %v1201 = vrot.slane %v743, 7
      %v1202 = vrot.slane %v1201, 2
      %v1203 = vrot.slane %v751, 7
      %v1204 = vrot.slane %v1203, 2
      %v1205 = vrot.slane %v750, 7
      %v1206 = vrot.slane %v1205, 2
      %v1207 = vrot.slane %v752, 7
      %v1208 = vrot.slane %v1207, 2
      %v1209 = vrot.slane %v760, 7
      %v1210 = vrot.slane %v1209, 2
      %v1211 = vrot.slane %v768, 7
      %v1212 = vrot.slane %v1211, 2
      %v1213 = vrot.slane %v767, 7
      %v1214 = vrot.slane %v1213, 2
      %v1215 = vrot.slane %v769, 7
      %v1216 = vrot.slane %v1215, 2
      %v1217 = vrot.slane %v777, 7
      %v1218 = vrot.slane %v1217, 2
      %v1219 = vrot.slane %v785, 7
      %v1220 = vrot.slane %v1219, 2
      %v1221 = vrot.slane %v784, 7
      %v1222 = vrot.slane %v1221, 2
      %v1223 = vrot.slane %v786, 7
      %v1224 = vrot.slane %v1223, 2
      %v1225 = vrot.slane %v794, 7
      %v1226 = vrot.slane %v1225, 2
      %v1227 = vrot.slane %v802, 7
      %v1228 = vrot.slane %v1227, 2
      %v1229 = vrot.slane %v801, 7
      %v1230 = vrot.slane %v1229, 2
      %v1231 = vrot.slane %v803, 7
      %v1232 = vrot.slane %v1231, 2
      %v1233 = vrot.slane %v811, 7
      %v1234 = vrot.slane %v1233, 2
      %v1235 = vrot.slane %v819, 7
      %v1236 = vrot.slane %v1235, 2
      %v1237 = vrot.slane %v818, 7
      %v1238 = vrot.slane %v1237, 2
      %v1239 = vrot.slane %v820, 7
      %v1240 = vrot.slane %v1239, 2
      %v1241 = vrot.slane %v828, 7
      %v1242 = vrot.slane %v1241, 2
      %v1243 = vrot.slane %v836, 7
      %v1244 = vrot.slane %v1243, 2
      %v1245 = vrot.slane %v835, 7
      %v1246 = vrot.slane %v1245, 2
      %v1247 = vrot.slane %v837, 7
      %v1248 = vrot.slane %v1247, 2
      %v1249 = vrot.slane %v845, 7
      %v1250 = vrot.slane %v1249, 2
      %v1251 = vrot.slane %v853, 7
      %v1252 = vrot.slane %v1251, 2
      %v1253 = vrot.slane %v852, 7
      %v1254 = vrot.slane %v1253, 2
      %v1255 = vrot.slane %v854, 7
      %v1256 = vrot.slane %v1255, 2
      %v1257 = vrot.slane %v862, 7
      %v1258 = vrot.slane %v1257, 2
      %v1259 = vrot.slane %v870, 7
      %v1260 = vrot.slane %v1259, 2
      %v1261 = vrot.slane %v869, 7
      %v1262 = vrot.slane %v1261, 2
      %v1263 = vrot.slane %v871, 7
      %v1264 = vrot.slane %v1263, 2
      %v1265 = vrot.slane %v879, 7
      %v1266 = vrot.slane %v1265, 2
      %v1267 = vrot.slane %v887, 7
      %v1268 = vrot.slane %v1267, 2
      %v1269 = vrot.slane %v886, 7
      %v1270 = vrot.slane %v1269, 2
      %v1271 = vrot.slane %v888, 7
      %v1272 = vrot.slane %v1271, 2
      %v1401 = vadd.f32 %v352, %v1018
      %v1402 = vadd.f32 %v360, %v1020
      %v1403 = vadd.f32 %v359, %v1022
      %v1404 = vadd.f32 %v361, %v1024
      %v1405 = vadd.f32 %v369, %v1026
      %v1406 = vadd.f32 %v377, %v1028
      %v1407 = vadd.f32 %v376, %v1030
      %v1408 = vadd.f32 %v378, %v1032
      %v1409 = vadd.f32 %v386, %v1034
      %v1410 = vadd.f32 %v394, %v1036
      %v1411 = vadd.f32 %v393, %v1038
      %v1412 = vadd.f32 %v395, %v1040
      %v1413 = vadd.f32 %v403, %v1042
      %v1414 = vadd.f32 %v411, %v1044
      %v1415 = vadd.f32 %v410, %v1046
      %v1416 = vadd.f32 %v412, %v1048
      %v1417 = vadd.f32 %v420, %v1050
      %v1418 = vadd.f32 %v428, %v1052
      %v1419 = vadd.f32 %v427, %v1054
      %v1420 = vadd.f32 %v429, %v1056
      %v1421 = vadd.f32 %v437, %v1058
      %v1422 = vadd.f32 %v445, %v1060
      %v1423 = vadd.f32 %v444, %v1062
      %v1424 = vadd.f32 %v446, %v1064
      %v1425 = vadd.f32 %v454, %v1066
      %v1426 = vadd.f32 %v462, %v1068
      %v1427 = vadd.f32 %v461, %v1070
      %v1428 = vadd.f32 %v463, %v1072
      %v1429 = vadd.f32 %v471, %v1074
      %v1430 = vadd.f32 %v479, %v1076
      %v1431 = vadd.f32 %v478, %v1078
      %v1432 = vadd.f32 %v480, %v1080
      %v1433 = vadd.f32 %v488, %v1082
      %v1434 = vadd.f32 %v496, %v1084
      %v1435 = vadd.f32 %v495, %v1086
      %v1436 = vadd.f32 %v497, %v1088
      %v1437 = vadd.f32 %v505, %v1090
      %v1438 = vadd.f32 %v513, %v1092
      %v1439 = vadd.f32 %v512, %v1094
      %v1440 = vadd.f32 %v514, %v1096
      %v1441 = vadd.f32 %v522, %v1098
      %v1442 = vadd.f32 %v530, %v1100
      %v1443 = vadd.f32 %v529, %v1102
      %v1444 = vadd.f32 %v531, %v1104
      %v1445 = vadd.f32 %v539, %v1106
      %v1446 = vadd.f32 %v547, %v1108
      %v1447 = vadd.f32 %v546, %v1110
      %v1448 = vadd.f32 %v548, %v1112
      %v1449 = vadd.f32 %v556, %v1114
      %v1450 = vadd.f32 %v564, %v1116
      %v1451 = vadd.f32 %v563, %v1118
      %v1452 = vadd.f32 %v565, %v1120
      %v1453 = vadd.f32 %v573, %v1122
      %v1454 = vadd.f32 %v581, %v1124
      %v1455 = vadd.f32 %v580, %v1126
      %v1456 = vadd.f32 %v582, %v1128
      %v1457 = vadd.f32 %v590, %v1130
      %v1458 = vadd.f32 %v598, %v1132
      %v1459 = vadd.f32 %v597, %v1134
      %v1460 = vadd.f32 %v599, %v1136
      %v1461 = vadd.f32 %v607, %v1138
      %v1462 = vadd.f32 %v615, %v1140
      %v1463 = vadd.f32 %v614, %v1142
      %v1464 = vadd.f32 %v616, %v1144
      %v1465 = vadd.f32 %v624, %v1146
      %v1466 = vadd.f32 %v632, %v1148
      %v1467 = vadd.f32 %v631, %v1150
      %v1468 = vadd.f32 %v633, %v1152
      %v1469 = vadd.f32 %v641, %v1154
      %v1470 = vadd.f32 %v649, %v1156
      %v1471 = vadd.f32 %v648, %v1158
      %v1472 = vadd.f32 %v650, %v1160
      %v1473 = vadd.f32 %v658, %v1162
      %v1474 = vadd.f32 %v666, %v1164
      %v1475 = vadd.f32 %v665, %v1166
      %v1476 = vadd.f32 %v667, %v1168
      %v1477 = vadd.f32 %v675, %v1170
      %v1478 = vadd.f32 %v683, %v1172
      %v1479 = vadd.f32 %v682, %v1174
      %v1480 = vadd.f32 %v684, %v1176
      %v1481 = vadd.f32 %v692, %v1178
      %v1482 = vadd.f32 %v700, %v1180
      %v1483 = vadd.f32 %v699, %v1182
      %v1484 = vadd.f32 %v701, %v1184
      %v1485 = vadd.f32 %v709, %v1186
      %v1486 = vadd.f32 %v717, %v1188
      %v1487 = vadd.f32 %v716, %v1190
      %v1488 = vadd.f32 %v718, %v1192
      %v1489 = vadd.f32 %v726, %v1194
      %v1490 = vadd.f32 %v734, %v1196
      %v1491 = vadd.f32 %v733, %v1198
      %v1492 = vadd.f32 %v735, %v1200
      %v1493 = vadd.f32 %v743, %v1202
      %v1494 = vadd.f32 %v751, %v1204
      %v1495 = vadd.f32 %v750, %v1206
      %v1496 = vadd.f32 %v752, %v1208
      %v1497 = vadd.f32 %v760, %v1210
      %v1498 = vadd.f32 %v768, %v1212
      %v1499 = vadd.f32 %v767, %v1214
      %v1500 = vadd.f32 %v769, %v1216
      %v1501 = vadd.f32 %v777, %v1218
      %v1502 = vadd.f32 %v785, %v1220
      %v1503 = vadd.f32 %v784, %v1222
      %v1504 = vadd.f32 %v786, %v1224
      %v1505 = vadd.f32 %v794, %v1226
      %v1506 = vadd.f32 %v802, %v1228
      %v1507 = vadd.f32 %v801, %v1230
      %v1508 = vadd.f32 %v803, %v1232
      %v1509 = vadd.f32 %v811, %v1234
      %v1510 = vadd.f32 %v819, %v1236
      %v1511 = vadd.f32 %v818, %v1238
      %v1512 = vadd.f32 %v820, %v1240
      %v1513 = vadd.f32 %v828, %v1242
      %v1514 = vadd.f32 %v836, %v1244
      %v1515 = vadd.f32 %v835, %v1246
      %v1516 = vadd.f32 %v837, %v1248
      %v1517 = vadd.f32 %v845, %v1250
      %v1518 = vadd.f32 %v853, %v1252
      %v1519 = vadd.f32 %v852, %v1254
      %v1520 = vadd.f32 %v854, %v1256
      %v1521 = vadd.f32 %v862, %v1258
      %v1522 = vadd.f32 %v870, %v1260
      %v1523 = vadd.f32 %v869, %v1262
      %v1524 = vadd.f32 %v871, %v1264
      %v1525 = vadd.f32 %v879, %v1266
      %v1526 = vadd.f32 %v887, %v1268
      %v1527 = vadd.f32 %v886, %v1270
      %v1528 = vadd.f32 %v888, %v1272
      %v1529 = vadd.f32 %v1401, %v1409
      %v1530 = vadd.f32 %v1402, %v1410
      %v1531 = vadd.f32 %v1403, %v1411
      %v1532 = vadd.f32 %v1404, %v1412
      %v1533 = vadd.f32 %v1405, %v1413
      %v1534 = vadd.f32 %v1406, %v1414
      %v1535 = vadd.f32 %v1407, %v1415
      %v1536 = vadd.f32 %v1408, %v1416
      %v1537 = vadd.f32 %v1417, %v1425
      %v1538 = vadd.f32 %v1418, %v1426
      %v1539 = vadd.f32 %v1419, %v1427
      %v1540 = vadd.f32 %v1420, %v1428
      %v1541 = vadd.f32 %v1421, %v1429
      %v1542 = vadd.f32 %v1422, %v1430
      %v1543 = vadd.f32 %v1423, %v1431
      %v1544 = vadd.f32 %v1424, %v1432
      %v1545 = vadd.f32 %v1433, %v1441
      %v1546 = vadd.f32 %v1434, %v1442
      %v1547 = vadd.f32 %v1435, %v1443
      %v1548 = vadd.f32 %v1436, %v1444
      %v1549 = vadd.f32 %v1437, %v1445
      %v1550 = vadd.f32 %v1438, %v1446
      %v1551 = vadd.f32 %v1439, %v1447
      %v1552 = vadd.f32 %v1440, %v1448
      %v1553 = vadd.f32 %v1449, %v1457
      %v1554 = vadd.f32 %v1450, %v1458
      %v1555 = vadd.f32 %v1451, %v1459
      %v1556 = vadd.f32 %v1452, %v1460
      %v1557 = vadd.f32 %v1453, %v1461
      %v1558 = vadd.f32 %v1454, %v1462
      %v1559 = vadd.f32 %v1455, %v1463
      %v1560 = vadd.f32 %v1456, %v1464
      %v1561 = vadd.f32 %v1465, %v1473
      %v1562 = vadd.f32 %v1466, %v1474
      %v1563 = vadd.f32 %v1467, %v1475
      %v1564 = vadd.f32 %v1468, %v1476
      %v1565 = vadd.f32 %v1469, %v1477
      %v1566 = vadd.f32 %v1470, %v1478
      %v1567 = vadd.f32 %v1471, %v1479
      %v1568 = vadd.f32 %v1472, %v1480
      %v1569 = vadd.f32 %v1481, %v1489
      %v1570 = vadd.f32 %v1482, %v1490
      %v1571 = vadd.f32 %v1483, %v1491
      %v1572 = vadd.f32 %v1484, %v1492
      %v1573 = vadd.f32 %v1485, %v1493
      %v1574 = vadd.f32 %v1486, %v1494
      %v1575 = vadd.f32 %v1487, %v1495
      %v1576 = vadd.f32 %v1488, %v1496
      %v1577 = vadd.f32 %v1497, %v1505
      %v1578 = vadd.f32 %v1498, %v1506
      %v1579 = vadd.f32 %v1499, %v1507
      %v1580 = vadd.f32 %v1500, %v1508
      %v1581 = vadd.f32 %v1501, %v1509
      %v1582 = vadd.f32 %v1502, %v1510
      %v1583 = vadd.f32 %v1503, %v1511
      %v1584 = vadd.f32 %v1504, %v1512
      %v1585 = vadd.f32 %v1513, %v1521
      %v1586 = vadd.f32 %v1514, %v1522
      %v1587 = vadd.f32 %v1515, %v1523
      %v1588 = vadd.f32 %v1516, %v1524
      %v1589 = vadd.f32 %v1517, %v1525
      %v1590 = vadd.f32 %v1518, %v1526
      %v1591 = vadd.f32 %v1519, %v1527
      %v1592 = vadd.f32 %v1520, %v1528
      %v1593 = vmul.f32 %v1529, 0.25
      %v1594 = vmul.f32 %v1530, 0.25
      %v1595 = vmul.f32 %v1531, 0.25
      %v1596 = vmul.f32 %v1532, 0.25
      %v1597 = vmul.f32 %v1533, 0.25
      %v1598 = vmul.f32 %v1534, 0.25
      %v1599 = vmul.f32 %v1535, 0.25
      %v1600 = vmul.f32 %v1536, 0.25
      %v1601 = vmul.f32 %v1537, 0.25
      %v1602 = vmul.f32 %v1538, 0.25
      %v1603 = vmul.f32 %v1539, 0.25
      %v1604 = vmul.f32 %v1540, 0.25
      %v1605 = vmul.f32 %v1541, 0.25
      %v1606 = vmul.f32 %v1542, 0.25
      %v1607 = vmul.f32 %v1543, 0.25
      %v1608 = vmul.f32 %v1544, 0.25
      %v1609 = vmul.f32 %v1545, 0.25
      %v1610 = vmul.f32 %v1546, 0.25
      %v1611 = vmul.f32 %v1547, 0.25
      %v1612 = vmul.f32 %v1548, 0.25
      %v1613 = vmul.f32 %v1549, 0.25
      %v1614 = vmul.f32 %v1550, 0.25
      %v1615 = vmul.f32 %v1551, 0.25
      %v1616 = vmul.f32 %v1552, 0.25
      %v1617 = vmul.f32 %v1553, 0.25
      %v1618 = vmul.f32 %v1554, 0.25
      %v1619 = vmul.f32 %v1555, 0.25
      %v1620 = vmul.f32 %v1556, 0.25
      %v1621 = vmul.f32 %v1557, 0.25
      %v1622 = vmul.f32 %v1558, 0.25
      %v1623 = vmul.f32 %v1559, 0.25
      %v1624 = vmul.f32 %v1560, 0.25
      %v1625 = vmul.f32 %v1561, 0.25
      %v1626 = vmul.f32 %v1562, 0.25
      %v1627 = vmul.f32 %v1563, 0.25
      %v1628 = vmul.f32 %v1564, 0.25
      %v1629 = vmul.f32 %v1565, 0.25
      %v1630 = vmul.f32 %v1566, 0.25
      %v1631 = vmul.f32 %v1567, 0.25
      %v1632 = vmul.f32 %v1568, 0.25
      %v1633 = vmul.f32 %v1569, 0.25
      %v1634 = vmul.f32 %v1570, 0.25
      %v1635 = vmul.f32 %v1571, 0.25
      %v1636 = vmul.f32 %v1572, 0.25
      %v1637 = vmul.f32 %v1573, 0.25
      %v1638 = vmul.f32 %v1574, 0.25
      %v1639 = vmul.f32 %v1575, 0.25
      %v1640 = vmul.f32 %v1576, 0.25
      %v1641 = vmul.f32 %v1577, 0.25
      %v1642 = vmul.f32 %v1578, 0.25
      %v1643 = vmul.f32 %v1579, 0.25
      %v1644 = vmul.f32 %v1580, 0.25
      %v1645 = vmul.f32 %v1581, 0.25
      %v1646 = vmul.f32 %v1582, 0.25
      %v1647 = vmul.f32 %v1583, 0.25
      %v1648 = vmul.f32 %v1584, 0.25
      %v1649 = vmul.f32 %v1585, 0.25
      %v1650 = vmul.f32 %v1586, 0.25
      %v1651 = vmul.f32 %v1587, 0.25
      %v1652 = vmul.f32 %v1588, 0.25
      %v1653 = vmul.f32 %v1589, 0.25
      %v1654 = vmul.f32 %v1590, 0.25
      %v1655 = vmul.f32 %v1591, 0.25
      %v1656 = vmul.f32 %v1592, 0.25
      %v1721 = vlaneseq
      %v1722 = vshrl.u32 %v1721, 7
      %v1723 = vsub.s32 0, %v1722
      %v1724 = vrot.slane %v1593, %v1723
      %v1725 = vlaneseq
      %v1726 = vshrl.u32 %v1725, 7
      %v1727 = vsub.s32 0, %v1726
      %v1728 = vrot.slane %v1594, %v1727
      %v1729 = vlaneseq
      %v1730 = vshrl.u32 %v1729, 7
      %v1731 = vsub.s32 0, %v1730
      %v1732 = vrot.slane %v1595, %v1731
      %v1733 = vlaneseq
      %v1734 = vshrl.u32 %v1733, 7
      %v1735 = vsub.s32 0, %v1734
      %v1736 = vrot.slane %v1596, %v1735
      %v1737 = vlaneseq
      %v1738 = vshrl.u32 %v1737, 7
      %v1739 = vsub.s32 0, %v1738
      %v1740 = vrot.slane %v1597, %v1739
      %v1741 = vlaneseq
      %v1742 = vshrl.u32 %v1741, 7
      %v1743 = vsub.s32 0, %v1742
      %v1744 = vrot.slane %v1598, %v1743
      %v1745 = vlaneseq
      %v1746 = vshrl.u32 %v1745, 7
      %v1747 = vsub.s32 0, %v1746
      %v1748 = vrot.slane %v1599, %v1747
      %v1749 = vlaneseq
      %v1750 = vshrl.u32 %v1749, 7
      %v1751 = vsub.s32 0, %v1750
      %v1752 = vrot.slane %v1600, %v1751
      %v1753 = vlaneseq
      %v1754 = vshrl.u32 %v1753, 7
      %v1755 = vsub.s32 0, %v1754
      %v1756 = vrot.slane %v1601, %v1755
      %v1757 = vlaneseq
      %v1758 = vshrl.u32 %v1757, 7
      %v1759 = vsub.s32 0, %v1758
      %v1760 = vrot.slane %v1602, %v1759
      %v1761 = vlaneseq
      %v1762 = vshrl.u32 %v1761, 7
      %v1763 = vsub.s32 0, %v1762
      %v1764 = vrot.slane %v1603, %v1763
      %v1765 = vlaneseq
      %v1766 = vshrl.u32 %v1765, 7
      %v1767 = vsub.s32 0, %v1766
      %v1768 = vrot.slane %v1604, %v1767
      %v1769 = vlaneseq
      %v1770 = vshrl.u32 %v1769, 7
      %v1771 = vsub.s32 0, %v1770
      %v1772 = vrot.slane %v1605, %v1771
      %v1773 = vlaneseq
      %v1774 = vshrl.u32 %v1773, 7
      %v1775 = vsub.s32 0, %v1774
      %v1776 = vrot.slane %v1606, %v1775
      %v1777 = vlaneseq
      %v1778 = vshrl.u32 %v1777, 7
      %v1779 = vsub.s32 0, %v1778
      %v1780 = vrot.slane %v1607, %v1779
      %v1781 = vlaneseq
      %v1782 = vshrl.u32 %v1781, 7
      %v1783 = vsub.s32 0, %v1782
      %v1784 = vrot.slane %v1608, %v1783
      %v1785 = vlaneseq
      %v1786 = vshrl.u32 %v1785, 7
      %v1787 = vsub.s32 0, %v1786
      %v1788 = vrot.slane %v1609, %v1787
      %v1789 = vlaneseq
      %v1790 = vshrl.u32 %v1789, 7
      %v1791 = vsub.s32 0, %v1790
      %v1792 = vrot.slane %v1610, %v1791
      %v1793 = vlaneseq
      %v1794 = vshrl.u32 %v1793, 7
      %v1795 = vsub.s32 0, %v1794
      %v1796 = vrot.slane %v1611, %v1795
      %v1797 = vlaneseq
      %v1798 = vshrl.u32 %v1797, 7
      %v1799 = vsub.s32 0, %v1798
      %v1800 = vrot.slane %v1612, %v1799
      %v1801 = vlaneseq
      %v1802 = vshrl.u32 %v1801, 7
      %v1803 = vsub.s32 0, %v1802
      %v1804 = vrot.slane %v1613, %v1803
      %v1805 = vlaneseq
      %v1806 = vshrl.u32 %v1805, 7
      %v1807 = vsub.s32 0, %v1806
      %v1808 = vrot.slane %v1614, %v1807
      %v1809 = vlaneseq
      %v1810 = vshrl.u32 %v1809, 7
      %v1811 = vsub.s32 0, %v1810
      %v1812 = vrot.slane %v1615, %v1811
      %v1813 = vlaneseq
      %v1814 = vshrl.u32 %v1813, 7
      %v1815 = vsub.s32 0, %v1814
      %v1816 = vrot.slane %v1616, %v1815
      %v1817 = vlaneseq
      %v1818 = vshrl.u32 %v1817, 7
      %v1819 = vsub.s32 0, %v1818
      %v1820 = vrot.slane %v1617, %v1819
      %v1821 = vlaneseq
      %v1822 = vshrl.u32 %v1821, 7
      %v1823 = vsub.s32 0, %v1822
      %v1824 = vrot.slane %v1618, %v1823
      %v1825 = vlaneseq
      %v1826 = vshrl.u32 %v1825, 7
      %v1827 = vsub.s32 0, %v1826
      %v1828 = vrot.slane %v1619, %v1827
      %v1829 = vlaneseq
      %v1830 = vshrl.u32 %v1829, 7
      %v1831 = vsub.s32 0, %v1830
      %v1832 = vrot.slane %v1620, %v1831
      %v1833 = vlaneseq
      %v1834 = vshrl.u32 %v1833, 7
      %v1835 = vsub.s32 0, %v1834
      %v1836 = vrot.slane %v1621, %v1835
      %v1837 = vlaneseq
      %v1838 = vshrl.u32 %v1837, 7
      %v1839 = vsub.s32 0, %v1838
      %v1840 = vrot.slane %v1622, %v1839
      %v1841 = vlaneseq
      %v1842 = vshrl.u32 %v1841, 7
      %v1843 = vsub.s32 0, %v1842
      %v1844 = vrot.slane %v1623, %v1843
      %v1845 = vlaneseq
      %v1846 = vshrl.u32 %v1845, 7
      %v1847 = vsub.s32 0, %v1846
      %v1848 = vrot.slane %v1624, %v1847
      %v1849 = vlaneseq
      %v1850 = vshrl.u32 %v1849, 7
      %v1851 = vsub.s32 0, %v1850
      %v1852 = vrot.slane %v1625, %v1851
      %v1853 = vlaneseq
      %v1854 = vshrl.u32 %v1853, 7
      %v1855 = vsub.s32 0, %v1854
      %v1856 = vrot.slane %v1626, %v1855
      %v1857 = vlaneseq
      %v1858 = vshrl.u32 %v1857, 7
      %v1859 = vsub.s32 0, %v1858
      %v1860 = vrot.slane %v1627, %v1859
      %v1861 = vlaneseq
      %v1862 = vshrl.u32 %v1861, 7
      %v1863 = vsub.s32 0, %v1862
      %v1864 = vrot.slane %v1628, %v1863
      %v1865 = vlaneseq
      %v1866 = vshrl.u32 %v1865, 7
      %v1867 = vsub.s32 0, %v1866
      %v1868 = vrot.slane %v1629, %v1867
      %v1869 = vlaneseq
      %v1870 = vshrl.u32 %v1869, 7
      %v1871 = vsub.s32 0, %v1870
      %v1872 = vrot.slane %v1630, %v1871
      %v1873 = vlaneseq
      %v1874 = vshrl.u32 %v1873, 7
      %v1875 = vsub.s32 0, %v1874
      %v1876 = vrot.slane %v1631, %v1875
      %v1877 = vlaneseq
      %v1878 = vshrl.u32 %v1877, 7
      %v1879 = vsub.s32 0, %v1878
      %v1880 = vrot.slane %v1632, %v1879
      %v1881 = vlaneseq
      %v1882 = vshrl.u32 %v1881, 7
      %v1883 = vsub.s32 0, %v1882
      %v1884 = vrot.slane %v1633, %v1883
      %v1885 = vlaneseq
      %v1886 = vshrl.u32 %v1885, 7
      %v1887 = vsub.s32 0, %v1886
      %v1888 = vrot.slane %v1634, %v1887
      %v1889 = vlaneseq
      %v1890 = vshrl.u32 %v1889, 7
      %v1891 = vsub.s32 0, %v1890
      %v1892 = vrot.slane %v1635, %v1891
      %v1893 = vlaneseq
      %v1894 = vshrl.u32 %v1893, 7
      %v1895 = vsub.s32 0, %v1894
      %v1896 = vrot.slane %v1636, %v1895
      %v1897 = vlaneseq
      %v1898 = vshrl.u32 %v1897, 7
      %v1899 = vsub.s32 0, %v1898
      %v1900 = vrot.slane %v1637, %v1899
      %v1901 = vlaneseq
      %v1902 = vshrl.u32 %v1901, 7
      %v1903 = vsub.s32 0, %v1902
      %v1904 = vrot.slane %v1638, %v1903
      %v1905 = vlaneseq
      %v1906 = vshrl.u32 %v1905, 7
      %v1907 = vsub.s32 0, %v1906
      %v1908 = vrot.slane %v1639, %v1907
      %v1909 = vlaneseq
      %v1910 = vshrl.u32 %v1909, 7
      %v1911 = vsub.s32 0, %v1910
      %v1912 = vrot.slane %v1640, %v1911
      %v1913 = vlaneseq
      %v1914 = vshrl.u32 %v1913, 7
      %v1915 = vsub.s32 0, %v1914
      %v1916 = vrot.slane %v1641, %v1915
      %v1917 = vlaneseq
      %v1918 = vshrl.u32 %v1917, 7
      %v1919 = vsub.s32 0, %v1918
      %v1920 = vrot.slane %v1642, %v1919
      %v1921 = vlaneseq
      %v1922 = vshrl.u32 %v1921, 7
      %v1923 = vsub.s32 0, %v1922
      %v1924 = vrot.slane %v1643, %v1923
      %v1925 = vlaneseq
      %v1926 = vshrl.u32 %v1925, 7
      %v1927 = vsub.s32 0, %v1926
      %v1928 = vrot.slane %v1644, %v1927
      %v1929 = vlaneseq
      %v1930 = vshrl.u32 %v1929, 7
      %v1931 = vsub.s32 0, %v1930
      %v1932 = vrot.slane %v1645, %v1931
      %v1933 = vlaneseq
      %v1934 = vshrl.u32 %v1933, 7
      %v1935 = vsub.s32 0, %v1934
      %v1936 = vrot.slane %v1646, %v1935
      %v1937 = vlaneseq
      %v1938 = vshrl.u32 %v1937, 7
      %v1939 = vsub.s32 0, %v1938
      %v1940 = vrot.slane %v1647, %v1939
      %v1941 = vlaneseq
      %v1942 = vshrl.u32 %v1941, 7
      %v1943 = vsub.s32 0, %v1942
      %v1944 = vrot.slane %v1648, %v1943
      %v1945 = vlaneseq
      %v1946 = vshrl.u32 %v1945, 7
      %v1947 = vsub.s32 0, %v1946
      %v1948 = vrot.slane %v1649, %v1947
      %v1949 = vlaneseq
      %v1950 = vshrl.u32 %v1949, 7
      %v1951 = vsub.s32 0, %v1950
      %v1952 = vrot.slane %v1650, %v1951
      %v1953 = vlaneseq
      %v1954 = vshrl.u32 %v1953, 7
      %v1955 = vsub.s32 0, %v1954
      %v1956 = vrot.slane %v1651, %v1955
      %v1957 = vlaneseq
      %v1958 = vshrl.u32 %v1957, 7
      %v1959 = vsub.s32 0, %v1958
      %v1960 = vrot.slane %v1652, %v1959
      %v1961 = vlaneseq
      %v1962 = vshrl.u32 %v1961, 7
      %v1963 = vsub.s32 0, %v1962
      %v1964 = vrot.slane %v1653, %v1963
      %v1965 = vlaneseq
      %v1966 = vshrl.u32 %v1965, 7
      %v1967 = vsub.s32 0, %v1966
      %v1968 = vrot.slane %v1654, %v1967
      %v1969 = vlaneseq
      %v1970 = vshrl.u32 %v1969, 7
      %v1971 = vsub.s32 0, %v1970
      %v1972 = vrot.slane %v1655, %v1971
      %v1973 = vlaneseq
      %v1974 = vshrl.u32 %v1973, 7
      %v1975 = vsub.s32 0, %v1974
      %v1976 = vrot.slane %v1656, %v1975
      %vm1977 = vcmask 1041409
      %v1978 = vsel %vm1977, %v1728, %v1724
      %vm1979 = vcmask 1042434
      %v1980 = vsel %vm1979, %v1732, %v1978
      %vm1981 = vcmask 1043459
      %v1982 = vsel %vm1981, %v1736, %v1980
      %vm1983 = vcmask 1044484
      %v1984 = vsel %vm1983, %v1740, %v1982
      %vm1985 = vcmask 1045509
      %v1986 = vsel %vm1985, %v1744, %v1984
      %vm1987 = vcmask 1046534
      %v1988 = vsel %vm1987, %v1748, %v1986
      %vm1989 = vcmask 1047559
      %v1990 = vsel %vm1989, %v1752, %v1988
      %v1991 = vsel %vm1977, %v1760, %v1756
      %v1992 = vsel %vm1979, %v1764, %v1991
      %v1993 = vsel %vm1981, %v1768, %v1992
      %v1994 = vsel %vm1983, %v1772, %v1993
      %v1995 = vsel %vm1985, %v1776, %v1994
      %v1996 = vsel %vm1987, %v1780, %v1995
      %v1997 = vsel %vm1989, %v1784, %v1996
      %v1998 = vsel %vm1977, %v1792, %v1788
      %v1999 = vsel %vm1979, %v1796, %v1998
      %v2000 = vsel %vm1981, %v1800, %v1999
      %v2001 = vsel %vm1983, %v1804, %v2000
      %v2002 = vsel %vm1985, %v1808, %v2001
      %v2003 = vsel %vm1987, %v1812, %v2002
      %v2004 = vsel %vm1989, %v1816, %v2003
      %v2005 = vsel %vm1977, %v1824, %v1820
      %v2006 = vsel %vm1979, %v1828, %v2005
      %v2007 = vsel %vm1981, %v1832, %v2006
      %v2008 = vsel %vm1983, %v1836, %v2007
      %v2009 = vsel %vm1985, %v1840, %v2008
      %v2010 = vsel %vm1987, %v1844, %v2009
      %v2011 = vsel %vm1989, %v1848, %v2010
      %v2012 = vsel %vm1977, %v1856, %v1852
      %v2013 = vsel %vm1979, %v1860, %v2012
      %v2014 = vsel %vm1981, %v1864, %v2013
      %v2015 = vsel %vm1983, %v1868, %v2014
      %v2016 = vsel %vm1985, %v1872, %v2015
      %v2017 = vsel %vm1987, %v1876, %v2016
      %v2018 = vsel %vm1989, %v1880, %v2017
      %v2019 = vsel %vm1977, %v1888, %v1884
      %v2020 = vsel %vm1979, %v1892, %v2019
      %v2021 = vsel %vm1981, %v1896, %v2020
      %v2022 = vsel %vm1983, %v1900, %v2021
      %v2023 = vsel %vm1985, %v1904, %v2022
      %v2024 = vsel %vm1987, %v1908, %v2023
      %v2025 = vsel %vm1989, %v1912, %v2024
      %v2026 = vsel %vm1977, %v1920, %v1916
      %v2027 = vsel %vm1979, %v1924, %v2026
      %v2028 = vsel %vm1981, %v1928, %v2027
      %v2029 = vsel %vm1983, %v1932, %v2028
      %v2030 = vsel %vm1985, %v1936, %v2029
      %v2031 = vsel %vm1987, %v1940, %v2030
      %v2032 = vsel %vm1989, %v1944, %v2031
      %v2033 = vsel %vm1977, %v1952, %v1948
      %v2034 = vsel %vm1979, %v1956, %v2033
      %v2035 = vsel %vm1981, %v1960, %v2034
      %v2036 = vsel %vm1983, %v1964, %v2035
      %v2037 = vsel %vm1985, %v1968, %v2036
      %v2038 = vsel %vm1987, %v1972, %v2037
      %v2039 = vsel %vm1989, %v1976, %v2038
      %2048 = vst [vmem:[%s170] sm:$0xff] %v1990
      %2049 = vst [vmem:[%s170 + $0x8] sm:$0xff] %v1997
      %2050 = vst [vmem:[%s170 + $0x10] sm:$0xff] %v2004
      %2051 = vst [vmem:[%s170 + $0x18] sm:$0xff] %v2011
      %2052 = vst [vmem:[%s170 + $0x20] sm:$0xff] %v2018
      %2053 = vst [vmem:[%s170 + $0x28] sm:$0xff] %v2025
      %2054 = vst [vmem:[%s170 + $0x30] sm:$0xff] %v2032
      %2055 = vst [vmem:[%s170 + $0x38] sm:$0xff] %v2039
      %p2056 = scmp.lt.s32.totalorder %s14, 1
      %s2057 = scalar_select %p2056, %s14, 1
      %s2058 = smul.addr %s2057, 8
      %s2059 = smul.addr %s2058, 8
      %s2060 = scalar_lea.vmem %s3, %s2059
      // Predicated region
      $region33: #{conv_block_forward.5} parent=31 // pred_check
        %p2061 = pneg %p100
      $region34: #{conv_block_forward.5} parent=31 // pred_check_branch
        %2063 = sbr.rel (%p2061) target = $region36
      $region35: #{conv_block_forward.5} parent=31 // pred_region
        _
      $region36: #{conv_block_forward.5} parent=31 // pred_fallthru
        _
    $region32: #{conv_block_forward.5} parent=5 // pred_fallthru
      _
    %p2064 = scmp.le.s32.totalorder 2, %s9
    // Predicated region
    $region37: #{conv_block_forward.5} parent=5 // pred_check
      %p2065 = pneg %p2064
    $region38: #{conv_block_forward.5} parent=5 // pred_check_branch
      %2067 = sbr.rel (%p2065) target = $region40
    $region39: #{conv_block_forward.5} parent=5 // pred_region
      %s2068 = ssub.s32 %s9, 2
      // Predicated region
      $region41: #{conv_block_forward.5} parent=39 // pred_check
        %p2069 = pneg %p106
      $region42: #{conv_block_forward.5} parent=39 // pred_check_branch
        %2071 = sbr.rel (%p2069) target = $region44
      $region43: #{conv_block_forward.5} parent=39 // pred_region
        %p2072 = scmp.lt.s32.totalorder %s15, 1
        %s2073 = scalar_select %p2072, %s15, 1
        %s2074 = smul.addr %s2073, 8
        %s2075 = smul.addr %s2074, 8
        %s2076 = scalar_lea.vmem %s3, %s2075
      $region44: #{conv_block_forward.5} parent=39 // pred_fallthru
        _
    $region40: #{conv_block_forward.5} parent=5 // pred_fallthru
      _
  $region6: #{conv_block_forward.5} parent=0 // loop_footer
    %s13 = sadd.s32 1, %s9
  $region7: #{conv_block_forward.5} parent=0 // loop_footer_branch
    %8 = sbr.rel target = $region3
  $region8: #{conv_block_forward.5} parent=0 // loop_exit
    _

// kernel: conv_block_forward.3
$region0: #{conv_block_forward.3}
  #allocation0 [shape = 'u32[]', space=smem, size = 0x4, offset = 0x4, fixed_abs, tag = 'smem constant byte address 0x4 - core index']
  #allocation1 [shape = 'u32[144,128]{1,0:T(1,128)}', space=vmem, size = 0x12000, scoped, tag = 'internal scratch']
  #allocation2 [shape = 'f32[256,1152]{1,0:T(8,128)}', space=vmem, size = 0x120000, scoped, tag = 'scratch operand']
  %s0 = inlined_call_operand.vmem [shape: f32[2,18,18,128], index: 0, kind: input, shape index: {}]
  %s1 = inlined_call_operand.vmem [shape: f32[1152,128], index: 1, kind: input, shape index: {}]
  %s2 = inlined_call_operand.vmem [shape: f32[2,16,16,128], index: 2, kind: output, shape index: {0}]
  %s3 = inlined_call_operand.vmem [shape: f32[2,2,128], index: 3, kind: output, shape index: {1}]
  %4 = xla_tuple %s2, %s3
  %s5 = sld [smem:[#allocation0]]
  $region49: #{conv_block_forward.3} parent=0
    _
  %s7 = ssub.s32 1, %s5
  %s8 = scalar_select 0, %s7, %s5
  loop: start=0, step=1, limit=4
  $region2: #{conv_block_forward.3} parent=0 // loop_pre_header
    _
  $region3: #{conv_block_forward.3} parent=0 // loop_header
    %s10 = sphi 0, %s14
    %p11 = scmp.ge.s32.totalorder %s10, 4
    %s20 = sphi 0, %s22
    %s23 = sphi 0, %s20
    %s24 = sphi 0, %s23
    %s40 = sphi 0, %s24
    %s44 = sphi 0, %s44
    %s46 = sphi 0, %s44
    %s47 = sphi 0, %s46
    %s61 = sphi 0, %s47
    %s67 = sphi 0, %s69
    %s70 = sphi 0, %s67
    %s71 = sphi 0, %s70
    %s87 = sphi 0, %s71
    %s93 = sphi 0, %s95
    %s96 = sphi 0, %s93
    %s97 = sphi 0, %s96
    %s113 = sphi 0, %s97
  $region4: #{conv_block_forward.3} parent=0 // loop_header_branch
    %13 = sbr.rel (%p11) target = $region8
  $region5: #{conv_block_forward.3} parent=0 // loop_body
    %s15 = ssub.s32 %s10, 1
    %s16 = ssub.s32 %s10, 2
    %s17 = sadd.s32 %s10, 1
    %s18 = ssub.s32 %s10, %s17
    %p19 = scmp.eq.s32.totalorder %s18, 0
    %s21 = sadd.s32 %s20, 1
    %s22 = scalar_select %p19, %s20, %s21
    %p25 = pneg %p19
    %p26 = scmp.eq.s32.totalorder %s10, 1
    %p27 = por %p25, %p26
    %p28 = scmp.ne.s32.totalorder %s20, %s23
    %p29 = scmp.eq.s32.totalorder %s10, 0
    %p30 = por %p28, %p29
    %p31 = scmp.ne.s32.totalorder %s20, %s23
    %p32 = scmp.eq.s32.totalorder %s15, 1
    %p33 = por %p31, %p32
    %p34 = scmp.ne.s32.totalorder %s23, %s24
    %p35 = scmp.eq.s32.totalorder %s15, 0
    %p36 = por %p34, %p35
    %p37 = scmp.ne.s32.totalorder %s23, %s24
    %p38 = scmp.eq.s32.totalorder %s16, 1
    %p39 = por %p37, %p38
    %p41 = scmp.ne.s32.totalorder %s24, %s40
    %p42 = scmp.eq.s32.totalorder %s16, 0
    %p43 = por %p41, %p42
    %s45 = sadd.s32 %s44, 1
    %p48 = scmp.eq.s32.totalorder %s10, 1
    %p49 = scmp.ne.s32.totalorder %s44, %s46
    %p50 = scmp.eq.s32.totalorder %s10, 0
    %p51 = por %p49, %p50
    %p52 = scmp.ne.s32.totalorder %s44, %s46
    %p53 = scmp.eq.s32.totalorder %s15, 1
    %p54 = por %p52, %p53
    %p55 = scmp.ne.s32.totalorder %s46, %s47
    %p56 = scmp.eq.s32.totalorder %s15, 0
    %p57 = por %p55, %p56
    %p58 = scmp.ne.s32.totalorder %s46, %s47
    %p59 = scmp.eq.s32.totalorder %s16, 1
    %p60 = por %p58, %p59
    %p62 = scmp.ne.s32.totalorder %s47, %s61
    %p63 = scmp.eq.s32.totalorder %s16, 0
    %p64 = por %p62, %p63
    %s65 = ssub.s32 %s10, %s17
    %p66 = scmp.eq.s32.totalorder %s65, 0
    %s68 = sadd.s32 %s67, 1
    %s69 = scalar_select %p66, %s67, %s68
    %p72 = pneg %p66
    %p73 = scmp.eq.s32.totalorder %s10, 1
    %p74 = por %p72, %p73
    %p75 = scmp.ne.s32.totalorder %s67, %s70
    %p76 = scmp.eq.s32.totalorder %s10, 0
    %p77 = por %p75, %p76
    %p78 = scmp.ne.s32.totalorder %s67, %s70
    %p79 = scmp.eq.s32.totalorder %s15, 1
    %p80 = por %p78, %p79
    %p81 = scmp.ne.s32.totalorder %s70, %s71
    %p82 = scmp.eq.s32.totalorder %s15, 0
    %p83 = por %p81, %p82
    %p84 = scmp.ne.s32.totalorder %s70, %s71
    %p85 = scmp.eq.s32.totalorder %s16, 1
    %p86 = por %p84, %p85
    %p88 = scmp.ne.s32.totalorder %s71, %s87
    %p89 = scmp.eq.s32.totalorder %s16, 0
    %p90 = por %p88, %p89
    %s91 = ssub.s32 %s10, %s17
    %p92 = scmp.eq.s32.totalorder %s91, 0
    %s94 = sadd.s32 %s93, 1
    %s95 = scalar_select %p92, %s93, %s94
    %p98 = pneg %p92
    %p99 = scmp.eq.s32.totalorder %s10, 1
    %p100 = por %p98, %p99
    %p101 = scmp.ne.s32.totalorder %s93, %s96
    %p102 = scmp.eq.s32.totalorder %s10, 0
    %p103 = por %p101, %p102
    %p104 = scmp.ne.s32.totalorder %s93, %s96
    %p105 = scmp.eq.s32.totalorder %s15, 1
    %p106 = por %p104, %p105
    %p107 = scmp.ne.s32.totalorder %s96, %s97
    %p108 = scmp.eq.s32.totalorder %s15, 0
    %p109 = por %p107, %p108
    %p110 = scmp.ne.s32.totalorder %s96, %s97
    %p111 = scmp.eq.s32.totalorder %s16, 1
    %p112 = por %p110, %p111
    %p114 = scmp.ne.s32.totalorder %s97, %s113
    %p115 = scmp.eq.s32.totalorder %s16, 0
    %p116 = por %p114, %p115
    %p117 = scmp.le.s32.totalorder 1, %s10
    %p118 = scmp.lt.s32.totalorder %s10, 3
    %p119 = pnand %p117, %p118
    %p120 = pneg %p119
    // Predicated region
    $region9: #{conv_block_forward.3} parent=5 // pred_check
      _
    $region10: #{conv_block_forward.3} parent=5 // pred_check_branch
      %122 = sbr.rel (%p119) target = $region12
    $region11: #{conv_block_forward.3} parent=5 // pred_region
      %s123 = ssub.s32 %s10, 1
      // Predicated region
      $region13: #{conv_block_forward.3} parent=11 // pred_check
        %p124 = pneg %p57
      $region14: #{conv_block_forward.3} parent=11 // pred_check_branch
        %126 = sbr.rel (%p124) target = $region16
      $region15: #{conv_block_forward.3} parent=11 // pred_region
        _
      $region16: #{conv_block_forward.3} parent=11 // pred_fallthru
        _
    $region12: #{conv_block_forward.3} parent=5 // pred_fallthru
      _
    %p127 = scmp.lt.s32.totalorder %s10, 2
    // Predicated region
    $region17: #{conv_block_forward.3} parent=5 // pred_check
      %p128 = pneg %p127
    $region18: #{conv_block_forward.3} parent=5 // pred_check_branch
      %130 = sbr.rel (%p128) target = $region20
    $region19: #{conv_block_forward.3} parent=5 // pred_region
      // Predicated region
      $region21: #{conv_block_forward.3} parent=19 // pred_check
        %p131 = pneg %p30
      $region22: #{conv_block_forward.3} parent=19 // pred_check_branch
        %133 = sbr.rel (%p131) target = $region24
      $region23: #{conv_block_forward.3} parent=19 // pred_region
        %p134 = scmp.lt.s32.totalorder %s10, 1
        %s135 = scalar_select %p134, %s10, 1
        %s136 = smul.addr %s135, 54
        %s137 = smul.addr %s136, 8
        %s138 = scalar_lea.vmem %s0, %s137
      $region24: #{conv_block_forward.3} parent=19 // pred_fallthru
        _
    $region20: #{conv_block_forward.3} parent=5 // pred_fallthru
      _
    %p139 = scmp.le.s32.totalorder 1, %s10
    %p140 = scmp.lt.s32.totalorder %s10, 3
    %p141 = pnand %p139, %p140
    %p142 = pneg %p141
    // Predicated region
    $region25: #{conv_block_forward.3} parent=5 // pred_check
      _
    $region26: #{conv_block_forward.3} parent=5 // pred_check_branch
      %144 = sbr.rel (%p141) target = $region28
    $region27: #{conv_block_forward.3} parent=5 // pred_region
      %s145 = ssub.s32 %s10, 1
      %p146 = scmp.lt.s32.totalorder %s15, 1
      %s147 = scalar_select %p146, %s15, 1
      %s148 = smul.addr %s147, 54
      %s149 = smul.addr %s148, 8
      %s150 = scalar_lea.vmem %s0, %s149
      %p151 = pneg %p36
      %p152 = pneg %p33
      %p153 = pneg %p57
      %p154 = pneg %p54
      %p155 = pneg %p83
      %p156 = pneg %p80
      %p157 = scmp.lt.s32.totalorder %s15, 1
      %s158 = scalar_select %p157, %s15, 1
      %s159 = smul.addr %s158, 32
      %s160 = smul.addr %s159, 8
      %s161 = scalar_lea.vmem %s2, %s160
      %p162 = pneg %p109
      %p163 = pneg %p106
      %p164 = scmp.lt.s32.totalorder %s15, 1
      %s165 = scalar_select %p164, %s15, 1
      %s166 = smul.addr %s165, 2
      %s167 = scalar_lea.vmem %s3, %s166
      %p168 = scmp.lt.s32.totalorder %s15, 1
      %s169 = scalar_select %p168, %s15, 1
      %s170 = smul.addr %s169, 54
      %s171 = smul.addr %s170, 8
      %s172 = scalar_lea.vmem %s0, %s171
      %p173 = scmp.lt.s32.totalorder %s15, 1
      %s174 = scalar_select %p173, %s15, 1
      %s175 = smul.addr %s174, 32
      %s176 = smul.addr %s175, 8
      %s177 = scalar_lea.vmem %s2, %s176
      %p178 = scmp.lt.s32.totalorder %s15, 1
      %s179 = scalar_select %p178, %s15, 1
      %s180 = smul.addr %s179, 2
      %s181 = scalar_lea.vmem %s3, %s180
      %v182 = vld [vmem:[%s172] sm:$0xff]
      %v183 = vld [vmem:[%s172 + $0x8] sm:$0xff]
      %v184 = vld [vmem:[%s172 + $0x18] sm:$0xff]
      %v185 = vld [vmem:[%s172 + $0x20] sm:$0xff]
      %v186 = vld [vmem:[%s172 + $0x30] sm:$0xff]
      %v187 = vld [vmem:[%s172 + $0x38] sm:$0xff]
      %v188 = vld [vmem:[%s172 + $0x48] sm:$0xff]
      %v189 = vld [vmem:[%s172 + $0x50] sm:$0xff]
      %v190 = vld [vmem:[%s172 + $0x60] sm:$0xff]
      %v191 = vld [vmem:[%s172 + $0x68] sm:$0xff]
      %v192 = vld [vmem:[%s172 + $0x78] sm:$0xff]
      %v193 = vld [vmem:[%s172 + $0x80] sm:$0xff]
      %v194 = vld [vmem:[%s172 + $0x90] sm:$0xff]
      %v195 = vld [vmem:[%s172 + $0x98] sm:$0xff]
      %v196 = vld [vmem:[%s172 + $0xa8] sm:$0xff]
      %v197 = vld [vmem:[%s172 + $0xb0] sm:$0xff]
      %v198 = vld [vmem:[%s172 + $0xc0] sm:$0xff]
      %v199 = vld [vmem:[%s172 + $0xc8] sm:$0xff]
      %v200 = vld [vmem:[%s172 + $0xd8] sm:$0xff]
      %v201 = vld [vmem:[%s172 + $0xe0] sm:$0xff]
      %v202 = vld [vmem:[%s172 + $0xf0] sm:$0xff]
      %v203 = vld [vmem:[%s172 + $0xf8] sm:$0xff]
      %v204 = vld [vmem:[%s172 + $0x108] sm:$0xff]
      %v205 = vld [vmem:[%s172 + $0x110] sm:$0xff]
      %v206 = vld [vmem:[%s172 + $0x120] sm:$0xff]
      %v207 = vld [vmem:[%s172 + $0x128] sm:$0xff]
      %v208 = vld [vmem:[%s172 + $0x138] sm:$0xff]
      %v209 = vld [vmem:[%s172 + $0x140] sm:$0xff]
      %v210 = vld [vmem:[%s172 + $0x150] sm:$0xff]
      %v211 = vld [vmem:[%s172 + $0x158] sm:$0xff]
      %v212 = vld [vmem:[%s172 + $0x168] sm:$0xff]
      %v213 = vld [vmem:[%s172 + $0x170] sm:$0xff]
      %214 = vst [vmem:[#allocation2] sm:$0xff] %v182
      %215 = vst [vmem:[#allocation2 + $0x48] sm:$0xff] %v183
      %216 = vst [vmem:[#allocation2 + $0x90] sm:$0xff] %v184
      %217 = vst [vmem:[#allocation2 + $0xd8] sm:$0xff] %v185
      %218 = vst [vmem:[#allocation2 + $0x120] sm:$0xff] %v186
      %219 = vst [vmem:[#allocation2 + $0x168] sm:$0xff] %v187
      %220 = vst [vmem:[#allocation2 + $0x1b0] sm:$0xff] %v188
      %221 = vst [vmem:[#allocation2 + $0x1f8] sm:$0xff] %v189
      %222 = vst [vmem:[#allocation2 + $0x240] sm:$0xff] %v190
      %223 = vst [vmem:[#allocation2 + $0x288] sm:$0xff] %v191
      %224 = vst [vmem:[#allocation2 + $0x2d0] sm:$0xff] %v192
      %225 = vst [vmem:[#allocation2 + $0x318] sm:$0xff] %v193
      %226 = vst [vmem:[#allocation2 + $0x360] sm:$0xff] %v194
      %227 = vst [vmem:[#allocation2 + $0x3a8] sm:$0xff] %v195
      %228 = vst [vmem:[#allocation2 + $0x3f0] sm:$0xff] %v196
      %229 = vst [vmem:[#allocation2 + $0x438] sm:$0xff] %v197
      %230 = vst [vmem:[#allocation2 + $0x480] sm:$0xff] %v198
      %231 = vst [vmem:[#allocation2 + $0x4c8] sm:$0xff] %v199
      %232 = vst [vmem:[#allocation2 + $0x510] sm:$0xff] %v200
      %233 = vst [vmem:[#allocation2 + $0x558] sm:$0xff] %v201
      %234 = vst [vmem:[#allocation2 + $0x5a0] sm:$0xff] %v202
      %235 = vst [vmem:[#allocation2 + $0x5e8] sm:$0xff] %v203
      %236 = vst [vmem:[#allocation2 + $0x630] sm:$0xff] %v204
      %237 = vst [vmem:[#allocation2 + $0x678] sm:$0xff] %v205
      %238 = vst [vmem:[#allocation2 + $0x6c0] sm:$0xff] %v206
      %239 = vst [vmem:[#allocation2 + $0x708] sm:$0xff] %v207
      %240 = vst [vmem:[#allocation2 + $0x750] sm:$0xff] %v208
      %241 = vst [vmem:[#allocation2 + $0x798] sm:$0xff] %v209
      %242 = vst [vmem:[#allocation2 + $0x7e0] sm:$0xff] %v210
      %243 = vst [vmem:[#allocation2 + $0x828] sm:$0xff] %v211
      %244 = vst [vmem:[#allocation2 + $0x870] sm:$0xff] %v212
      %245 = vst [vmem:[#allocation2 + $0x8b8] sm:$0xff] %v213
      %v246 = vld [vmem:[%s172 + $0x1] sm:$0xff]
      %v247 = vld [vmem:[%s172 + $0x9] sm:$0xff]
      %v248 = vld [vmem:[%s172 + $0x19] sm:$0xff]
      %v249 = vld [vmem:[%s172 + $0x21] sm:$0xff]
      %v250 = vld [vmem:[%s172 + $0x31] sm:$0xff]
      %v251 = vld [vmem:[%s172 + $0x39] sm:$0xff]
      %v252 = vld [vmem:[%s172 + $0x49] sm:$0xff]
      %v253 = vld [vmem:[%s172 + $0x51] sm:$0xff]
      %v254 = vld [vmem:[%s172 + $0x61] sm:$0xff]
      %v255 = vld [vmem:[%s172 + $0x69] sm:$0xff]
      %v256 = vld [vmem:[%s172 + $0x79] sm:$0xff]
      %v257 = vld [vmem:[%s172 + $0x81] sm:$0xff]
      %v258 = vld [vmem:[%s172 + $0x91] sm:$0xff]
      %v259 = vld [vmem:[%s172 + $0x99] sm:$0xff]
      %v260 = vld [vmem:[%s172 + $0xa9] sm:$0xff]
      %v261 = vld [vmem:[%s172 + $0xb1] sm:$0xff]
      %v262 = vld [vmem:[%s172 + $0xc1] sm:$0xff]
      %v263 = vld [vmem:[%s172 + $0xc9] sm:$0xff]
      %v264 = vld [vmem:[%s172 + $0xd9] sm:$0xff]
      %v265 = vld [vmem:[%s172 + $0xe1] sm:$0xff]
      %v266 = vld [vmem:[%s172 + $0xf1] sm:$0xff]
      %v267 = vld [vmem:[%s172 + $0xf9] sm:$0xff]
      %v268 = vld [vmem:[%s172 + $0x109] sm:$0xff]
      %v269 = vld [vmem:[%s172 + $0x111] sm:$0xff]
      %v270 = vld [vmem:[%s172 + $0x121] sm:$0xff]
      %v271 = vld [vmem:[%s172 + $0x129] sm:$0xff]
      %v272 = vld [vmem:[%s172 + $0x139] sm:$0xff]
      %v273 = vld [vmem:[%s172 + $0x141] sm:$0xff]
      %v274 = vld [vmem:[%s172 + $0x151] sm:$0xff]
      %v275 = vld [vmem:[%s172 + $0x159] sm:$0xff]
      %v276 = vld [vmem:[%s172 + $0x169] sm:$0xff]
      %v277 = vld [vmem:[%s172 + $0x171] sm:$0xff]
      %278 = vst [vmem:[#allocation2 + $0x8] sm:$0xff] %v246
      %279 = vst [vmem:[#allocation2 + $0x50] sm:$0xff] %v247
      %280 = vst [vmem:[#allocation2 + $0x98] sm:$0xff] %v248
      %281 = vst [vmem:[#allocation2 + $0xe0] sm:$0xff] %v249
      %282 = vst [vmem:[#allocation2 + $0x128] sm:$0xff] %v250
      %283 = vst [vmem:[#allocation2 + $0x170] sm:$0xff] %v251
      %284 = vst [vmem:[#allocation2 + $0x1b8] sm:$0xff] %v252
      %285 = vst [vmem:[#allocation2 + $0x200] sm:$0xff] %v253
      %286 = vst [vmem:[#allocation2 + $0x248] sm:$0xff] %v254
      %287 = vst [vmem:[#allocation2 + $0x290] sm:$0xff] %v255
      %288 = vst [vmem:[#allocation2 + $0x2d8] sm:$0xff] %v256
      %289 = vst [vmem:[#allocation2 + $0x320] sm:$0xff] %v257
      %290 = vst [vmem:[#allocation2 + $0x368] sm:$0xff] %v258
      %291 = vst [vmem:[#allocation2 + $0x3b0] sm:$0xff] %v259
      %292 = vst [vmem:[#allocation2 + $0x3f8] sm:$0xff] %v260
      %293 = vst [vmem:[#allocation2 + $0x440] sm:$0xff] %v261
      %294 = vst [vmem:[#allocation2 + $0x488] sm:$0xff] %v262
      %295 = vst [vmem:[#allocation2 + $0x4d0] sm:$0xff] %v263
      %296 = vst [vmem:[#allocation2 + $0x518] sm:$0xff] %v264
      %297 = vst [vmem:[#allocation2 + $0x560] sm:$0xff] %v265
      %298 = vst [vmem:[#allocation2 + $0x5a8] sm:$0xff] %v266
      %299 = vst [vmem:[#allocation2 + $0x5f0] sm:$0xff] %v267
      %300 = vst [vmem:[#allocation2 + $0x638] sm:$0xff] %v268
      %301 = vst [vmem:[#allocation2 + $0x680] sm:$0xff] %v269
      %302 = vst [vmem:[#allocation2 + $0x6c8] sm:$0xff] %v270
      %303 = vst [vmem:[#allocation2 + $0x710] sm:$0xff] %v271
      %304 = vst [vmem:[#allocation2 + $0x758] sm:$0xff] %v272
      %305 = vst [vmem:[#allocation2 + $0x7a0] sm:$0xff] %v273
      %306 = vst [vmem:[#allocation2 + $0x7e8] sm:$0xff] %v274
      %307 = vst [vmem:[#allocation2 + $0x830] sm:$0xff] %v275
      %308 = vst [vmem:[#allocation2 + $0x878] sm:$0xff] %v276
      %309 = vst [vmem:[#allocation2 + $0x8c0] sm:$0xff] %v277
      %v310 = vld [vmem:[%s172 + $0x2] sm:$0xff]
      %v311 = vld [vmem:[%s172 + $0xa] sm:$0xff]
      %v312 = vld [vmem:[%s172 + $0x1a] sm:$0xff]
      %v313 = vld [vmem:[%s172 + $0x22] sm:$0xff]
      %v314 = vld [vmem:[%s172 + $0x32] sm:$0xff]
      %v315 = vld [vmem:[%s172 + $0x3a] sm:$0xff]
      %v316 = vld [vmem:[%s172 + $0x4a] sm:$0xff]
      %v317 = vld [vmem:[%s172 + $0x52] sm:$0xff]
      %v318 = vld [vmem:[%s172 + $0x62] sm:$0xff]
      %v319 = vld [vmem:[%s172 + $0x6a] sm:$0xff]
      %v320 = vld [vmem:[%s172 + $0x7a] sm:$0xff]
      %v321 = vld [vmem:[%s172 + $0x82] sm:$0xff]
      %v322 = vld [vmem:[%s172 + $0x92] sm:$0xff]
      %v323 = vld [vmem:[%s172 + $0x9a] sm:$0xff]
      %v324 = vld [vmem:[%s172 + $0xaa] sm:$0xff]
      %v325 = vld [vmem:[%s172 + $0xb2] sm:$0xff]
      %v326 = vld [vmem:[%s172 + $0xc2] sm:$0xff]
      %v327 = vld [vmem:[%s172 + $0xca] sm:$0xff]
      %v328 = vld [vmem:[%s172 + $0xda] sm:$0xff]
      %v329 = vld [vmem:[%s172 + $0xe2] sm:$0xff]
      %v330 = vld [vmem:[%s172 + $0xf2] sm:$0xff]
      %v331 = vld [vmem:[%s172 + $0xfa] sm:$0xff]
      %v332 = vld [vmem:[%s172 + $0x10a] sm:$0xff]
      %v333 = vld [vmem:[%s172 + $0x112] sm:$0xff]
      %v334 = vld [vmem:[%s172 + $0x122] sm:$0xff]
      %v335 = vld [vmem:[%s172 + $0x12a] sm:$0xff]
      %v336 = vld [vmem:[%s172 + $0x13a] sm:$0xff]
      %v337 = vld [vmem:[%s172 + $0x142] sm:$0xff]
      %v338 = vld [vmem:[%s172 + $0x152] sm:$0xff]
      %v339 = vld [vmem:[%s172 + $0x15a] sm:$0xff]
      %v340 = vld [vmem:[%s172 + $0x16a] sm:$0xff]
      %v341 = vld [vmem:[%s172 + $0x172] sm:$0xff]
      %342 = vst [vmem:[#allocation2 + $0x10] sm:$0xff] %v310
      %343 = vst [vmem:[#allocation2 + $0x58] sm:$0xff] %v311
      %344 = vst [vmem:[#allocation2 + $0xa0] sm:$0xff] %v312
      %345 = vst [vmem:[#allocation2 + $0xe8] sm:$0xff] %v313
      %346 = vst [vmem:[#allocation2 + $0x130] sm:$0xff] %v314
      %347 = vst [vmem:[#allocation2 + $0x178] sm:$0xff] %v315
      %348 = vst [vmem:[#allocation2 + $0x1c0] sm:$0xff] %v316
      %349 = vst [vmem:[#allocation2 + $0x208] sm:$0xff] %v317
      %350 = vst [vmem:[#allocation2 + $0x250] sm:$0xff] %v318
      %351 = vst [vmem:[#allocation2 + $0x298] sm:$0xff] %v319
      %352 = vst [vmem:[#allocation2 + $0x2e0] sm:$0xff] %v320
      %353 = vst [vmem:[#allocation2 + $0x328] sm:$0xff] %v321
      %354 = vst [vmem:[#allocation2 + $0x370] sm:$0xff] %v322
      %355 = vst [vmem:[#allocation2 + $0x3b8] sm:$0xff] %v323
      %356 = vst [vmem:[#allocation2 + $0x400] sm:$0xff] %v324
      %357 = vst [vmem:[#allocation2 + $0x448] sm:$0xff] %v325
      %358 = vst [vmem:[#allocation2 + $0x490] sm:$0xff] %v326
      %359 = vst [vmem:[#allocation2 + $0x4d8] sm:$0xff] %v327
      %360 = vst [vmem:[#allocation2 + $0x520] sm:$0xff] %v328
      %361 = vst [vmem:[#allocation2 + $0x568] sm:$0xff] %v329
      %362 = vst [vmem:[#allocation2 + $0x5b0] sm:$0xff] %v330
      %363 = vst [vmem:[#allocation2 + $0x5f8] sm:$0xff] %v331
      %364 = vst [vmem:[#allocation2 + $0x640] sm:$0xff] %v332
      %365 = vst [vmem:[#allocation2 + $0x688] sm:$0xff] %v333
      %366 = vst [vmem:[#allocation2 + $0x6d0] sm:$0xff] %v334
      %367 = vst [vmem:[#allocation2 + $0x718] sm:$0xff] %v335
      %368 = vst [vmem:[#allocation2 + $0x760] sm:$0xff] %v336
      %369 = vst [vmem:[#allocation2 + $0x7a8] sm:$0xff] %v337
      %370 = vst [vmem:[#allocation2 + $0x7f0] sm:$0xff] %v338
      %371 = vst [vmem:[#allocation2 + $0x838] sm:$0xff] %v339
      %372 = vst [vmem:[#allocation2 + $0x880] sm:$0xff] %v340
      %373 = vst [vmem:[#allocation2 + $0x8c8] sm:$0xff] %v341
      %s374 = scalar_lea.vmem %s172, 24
      %v375 = vld [vmem:[%s374] sm:$0xff]
      %v376 = vld [vmem:[%s374 + $0x8] sm:$0xff]
      %v377 = vld [vmem:[%s374 + $0x18] sm:$0xff]
      %v378 = vld [vmem:[%s374 + $0x20] sm:$0xff]
      %v379 = vld [vmem:[%s374 + $0x30] sm:$0xff]
      %v380 = vld [vmem:[%s374 + $0x38] sm:$0xff]
      %v381 = vld [vmem:[%s374 + $0x48] sm:$0xff]
      %v382 = vld [vmem:[%s374 + $0x50] sm:$0xff]
      %v383 = vld [vmem:[%s374 + $0x60] sm:$0xff]
      %v384 = vld [vmem:[%s374 + $0x68] sm:$0xff]
      %v385 = vld [vmem:[%s374 + $0x78] sm:$0xff]
      %v386 = vld [vmem:[%s374 + $0x80] sm:$0xff]
      %v387 = vld [vmem:[%s374 + $0x90] sm:$0xff]
      %v388 = vld [vmem:[%s374 + $0x98] sm:$0xff]
      %v389 = vld [vmem:[%s374 + $0xa8] sm:$0xff]
      %v390 = vld [vmem:[%s374 + $0xb0] sm:$0xff]
      %v391 = vld [vmem:[%s374 + $0xc0] sm:$0xff]
      %v392 = vld [vmem:[%s374 + $0xc8] sm:$0xff]
      %v393 = vld [vmem:[%s374 + $0xd8] sm:$0xff]
      %v394 = vld [vmem:[%s374 + $0xe0] sm:$0xff]
      %v395 = vld [vmem:[%s374 + $0xf0] sm:$0xff]
      %v396 = vld [vmem:[%s374 + $0xf8] sm:$0xff]
      %v397 = vld [vmem:[%s374 + $0x108] sm:$0xff]
      %v398 = vld [vmem:[%s374 + $0x110] sm:$0xff]
      %v399 = vld [vmem:[%s374 + $0x120] sm:$0xff]
      %v400 = vld [vmem:[%s374 + $0x128] sm:$0xff]
      %v401 = vld [vmem:[%s374 + $0x138] sm:$0xff]
      %v402 = vld [vmem:[%s374 + $0x140] sm:$0xff]
      %v403 = vld [vmem:[%s374 + $0x150] sm:$0xff]
      %v404 = vld [vmem:[%s374 + $0x158] sm:$0xff]
      %v405 = vld [vmem:[%s374 + $0x168] sm:$0xff]
      %v406 = vld [vmem:[%s374 + $0x170] sm:$0xff]
      %407 = vst [vmem:[#allocation2 + $0x18] sm:$0xff] %v375
      %408 = vst [vmem:[#allocation2 + $0x60] sm:$0xff] %v376
      %409 = vst [vmem:[#allocation2 + $0xa8] sm:$0xff] %v377
      %410 = vst [vmem:[#allocation2 + $0xf0] sm:$0xff] %v378
      %411 = vst [vmem:[#allocation2 + $0x138] sm:$0xff] %v379
      %412 = vst [vmem:[#allocation2 + $0x180] sm:$0xff] %v380
      %413 = vst [vmem:[#allocation2 + $0x1c8] sm:$0xff] %v381
      %414 = vst [vmem:[#allocation2 + $0x210] sm:$0xff] %v382
      %415 = vst [vmem:[#allocation2 + $0x258] sm:$0xff] %v383
      %416 = vst [vmem:[#allocation2 + $0x2a0] sm:$0xff] %v384
      %417 = vst [vmem:[#allocation2 + $0x2e8] sm:$0xff] %v385
      %418 = vst [vmem:[#allocation2 + $0x330] sm:$0xff] %v386
      %419 = vst [vmem:[#allocation2 + $0x378] sm:$0xff] %v387
      %420 = vst [vmem:[#allocation2 + $0x3c0] sm:$0xff] %v388
      %421 = vst [vmem:[#allocation2 + $0x408] sm:$0xff] %v389
      %422 = vst [vmem:[#allocation2 + $0x450] sm:$0xff] %v390
      %423 = vst [vmem:[#allocation2 + $0x498] sm:$0xff] %v391
      %424 = vst [vmem:[#allocation2 + $0x4e0] sm:$0xff] %v392
      %425 = vst [vmem:[#allocation2 + $0x528] sm:$0xff] %v393
      %426 = vst [vmem:[#allocation2 + $0x570] sm:$0xff] %v394
      %427 = vst [vmem:[#allocation2 + $0x5b8] sm:$0xff] %v395
      %428 = vst [vmem:[#allocation2 + $0x600] sm:$0xff] %v396
      %429 = vst [vmem:[#allocation2 + $0x648] sm:$0xff] %v397
      %430 = vst [vmem:[#allocation2 + $0x690] sm:$0xff] %v398
      %431 = vst [vmem:[#allocation2 + $0x6d8] sm:$0xff] %v399
      %432 = vst [vmem:[#allocation2 + $0x720] sm:$0xff] %v400
      %433 = vst [vmem:[#allocation2 + $0x768] sm:$0xff] %v401
      %434 = vst [vmem:[#allocation2 + $0x7b0] sm:$0xff] %v402
      %435 = vst [vmem:[#allocation2 + $0x7f8] sm:$0xff] %v403
      %436 = vst [vmem:[#allocation2 + $0x840] sm:$0xff] %v404
      %437 = vst [vmem:[#allocation2 + $0x888] sm:$0xff] %v405
      %438 = vst [vmem:[#allocation2 + $0x8d0] sm:$0xff] %v406
      %v439 = vld [vmem:[%s374 + $0x1] sm:$0xff]
      %v440 = vld [vmem:[%s374 + $0x9] sm:$0xff]
      %v441 = vld [vmem:[%s374 + $0x19] sm:$0xff]
      %v442 = vld [vmem:[%s374 + $0x21] sm:$0xff]
      %v443 = vld [vmem:[%s374 + $0x31] sm:$0xff]
      %v444 = vld [vmem:[%s374 + $0x39] sm:$0xff]
      %v445 = vld [vmem:[%s374 + $0x49] sm:$0xff]
      %v446 = vld [vmem:[%s374 + $0x51] sm:$0xff]
      %v447 = vld [vmem:[%s374 + $0x61] sm:$0xff]
      %v448 = vld [vmem:[%s374 + $0x69] sm:$0xff]
      %v449 = vld [vmem:[%s374 + $0x79] sm:$0xff]
      %v450 = vld [vmem:[%s374 + $0x81] sm:$0xff]
      %v451 = vld [vmem:[%s374 + $0x91] sm:$0xff]
      %v452 = vld [vmem:[%s374 + $0x99] sm:$0xff]
      %v453 = vld [vmem:[%s374 + $0xa9] sm:$0xff]
      %v454 = vld [vmem:[%s374 + $0xb1] sm:$0xff]
      %v455 = vld [vmem:[%s374 + $0xc1] sm:$0xff]
      %v456 = vld [vmem:[%s374 + $0xc9] sm:$0xff]
      %v457 = vld [vmem:[%s374 + $0xd9] sm:$0xff]
      %v458 = vld [vmem:[%s374 + $0xe1] sm:$0xff]
      %v459 = vld [vmem:[%s374 + $0xf1] sm:$0xff]
      %v460 = vld [vmem:[%s374 + $0xf9] sm:$0xff]
      %v461 = vld [vmem:[%s374 + $0x109] sm:$0xff]
      %v462 = vld [vmem:[%s374 + $0x111] sm:$0xff]
      %v463 = vld [vmem:[%s374 + $0x121] sm:$0xff]
      %v464 = vld [vmem:[%s374 + $0x129] sm:$0xff]
      %v465 = vld [vmem:[%s374 + $0x139] sm:$0xff]
      %v466 = vld [vmem:[%s374 + $0x141] sm:$0xff]
      %v467 = vld [vmem:[%s374 + $0x151] sm:$0xff]
      %v468 = vld [vmem:[%s374 + $0x159] sm:$0xff]
      %v469 = vld [vmem:[%s374 + $0x169] sm:$0xff]
      %v470 = vld [vmem:[%s374 + $0x171] sm:$0xff]
      %471 = vst [vmem:[#allocation2 + $0x20] sm:$0xff] %v439
      %472 = vst [vmem:[#allocation2 + $0x68] sm:$0xff] %v440
      %473 = vst [vmem:[#allocation2 + $0xb0] sm:$0xff] %v441
      %474 = vst [vmem:[#allocation2 + $0xf8] sm:$0xff] %v442
      %475 = vst [vmem:[#allocation2 + $0x140] sm:$0xff] %v443
      %476 = vst [vmem:[#allocation2 + $0x188] sm:$0xff] %v444
      %477 = vst [vmem:[#allocation2 + $0x1d0] sm:$0xff] %v445
      %478 = vst [vmem:[#allocation2 + $0x218] sm:$0xff] %v446
      %479 = vst [vmem:[#allocation2 + $0x260] sm:$0xff] %v447
      %480 = vst [vmem:[#allocation2 + $0x2a8] sm:$0xff] %v448
      %481 = vst [vmem:[#allocation2 + $0x2f0] sm:$0xff] %v449
      %482 = vst [vmem:[#allocation2 + $0x338] sm:$0xff] %v450
      %483 = vst [vmem:[#allocation2 + $0x380] sm:$0xff] %v451
      %484 = vst [vmem:[#allocation2 + $0x3c8] sm:$0xff] %v452
      %485 = vst [vmem:[#allocation2 + $0x410] sm:$0xff] %v453
      %486 = vst [vmem:[#allocation2 + $0x458] sm:$0xff] %v454
      %487 = vst [vmem:[#allocation2 + $0x4a0] sm:$0xff] %v455
      %488 = vst [vmem:[#allocation2 + $0x4e8] sm:$0xff] %v456
      %489 = vst [vmem:[#allocation2 + $0x530] sm:$0xff] %v457
      %490 = vst [vmem:[#allocation2 + $0x578] sm:$0xff] %v458
      %491 = vst [vmem:[#allocation2 + $0x5c0] sm:$0xff] %v459
      %492 = vst [vmem:[#allocation2 + $0x608] sm:$0xff] %v460
      %493 = vst [vmem:[#allocation2 + $0x650] sm:$0xff] %v461
      %494 = vst [vmem:[#allocation2 + $0x698] sm:$0xff] %v462
      %495 = vst [vmem:[#allocation2 + $0x6e0] sm:$0xff] %v463
      %496 = vst [vmem:[#allocation2 + $0x728] sm:$0xff] %v464
      %497 = vst [vmem:[#allocation2 + $0x770] sm:$0xff] %v465
      %498 = vst [vmem:[#allocation2 + $0x7b8] sm:$0xff] %v466
      %499 = vst [vmem:[#allocation2 + $0x800] sm:$0xff] %v467
      %500 = vst [vmem:[#allocation2 + $0x848] sm:$0xff] %v468
      %501 = vst [vmem:[#allocation2 + $0x890] sm:$0xff] %v469
      %502 = vst [vmem:[#allocation2 + $0x8d8] sm:$0xff] %v470
      %v503 = vld [vmem:[%s374 + $0x2] sm:$0xff]
      %v504 = vld [vmem:[%s374 + $0xa] sm:$0xff]
      %v505 = vld [vmem:[%s374 + $0x1a] sm:$0xff]
      %v506 = vld [vmem:[%s374 + $0x22] sm:$0xff]
      %v507 = vld [vmem:[%s374 + $0x32] sm:$0xff]
      %v508 = vld [vmem:[%s374 + $0x3a] sm:$0xff]
      %v509 = vld [vmem:[%s374 + $0x4a] sm:$0xff]
      %v510 = vld [vmem:[%s374 + $0x52] sm:$0xff]
      %v511 = vld [vmem:[%s374 + $0x62] sm:$0xff]
      %v512 = vld [vmem:[%s374 + $0x6a] sm:$0xff]
      %v513 = vld [vmem:[%s374 + $0x7a] sm:$0xff]
      %v514 = vld [vmem:[%s374 + $0x82] sm:$0xff]
      %v515 = vld [vmem:[%s374 + $0x92] sm:$0xff]
      %v516 = vld [vmem:[%s374 + $0x9a] sm:$0xff]
      %v517 = vld [vmem:[%s374 + $0xaa] sm:$0xff]
      %v518 = vld [vmem:[%s374 + $0xb2] sm:$0xff]
      %v519 = vld [vmem:[%s374 + $0xc2] sm:$0xff]
      %v520 = vld [vmem:[%s374 + $0xca] sm:$0xff]
      %v521 = vld [vmem:[%s374 + $0xda] sm:$0xff]
      %v522 = vld [vmem:[%s374 + $0xe2] sm:$0xff]
      %v523 = vld [vmem:[%s374 + $0xf2] sm:$0xff]
      %v524 = vld [vmem:[%s374 + $0xfa] sm:$0xff]
      %v525 = vld [vmem:[%s374 + $0x10a] sm:$0xff]
      %v526 = vld [vmem:[%s374 + $0x112] sm:$0xff]
      %v527 = vld [vmem:[%s374 + $0x122] sm:$0xff]
      %v528 = vld [vmem:[%s374 + $0x12a] sm:$0xff]
      %v529 = vld [vmem:[%s374 + $0x13a] sm:$0xff]
      %v530 = vld [vmem:[%s374 + $0x142] sm:$0xff]
      %v531 = vld [vmem:[%s374 + $0x152] sm:$0xff]
      %v532 = vld [vmem:[%s374 + $0x15a] sm:$0xff]
      %v533 = vld [vmem:[%s374 + $0x16a] sm:$0xff]
      %v534 = vld [vmem:[%s374 + $0x172] sm:$0xff]
      %535 = vst [vmem:[#allocation2 + $0x28] sm:$0xff] %v503
      %536 = vst [vmem:[#allocation2 + $0x70] sm:$0xff] %v504
      %537 = vst [vmem:[#allocation2 + $0xb8] sm:$0xff] %v505
      %538 = vst [vmem:[#allocation2 + $0x100] sm:$0xff] %v506
      %539 = vst [vmem:[#allocation2 + $0x148] sm:$0xff] %v507
      %540 = vst [vmem:[#allocation2 + $0x190] sm:$0xff] %v508
      %541 = vst [vmem:[#allocation2 + $0x1d8] sm:$0xff] %v509
      %542 = vst [vmem:[#allocation2 + $0x220] sm:$0xff] %v510
      %543 = vst [vmem:[#allocation2 + $0x268] sm:$0xff] %v511
      %544 = vst [vmem:[#allocation2 + $0x2b0] sm:$0xff] %v512
      %545 = vst [vmem:[#allocation2 + $0x2f8] sm:$0xff] %v513
      %546 = vst [vmem:[#allocation2 + $0x340] sm:$0xff] %v514
      %547 = vst [vmem:[#allocation2 + $0x388] sm:$0xff] %v515
      %548 = vst [vmem:[#allocation2 + $0x3d0] sm:$0xff] %v516
      %549 = vst [vmem:[#allocation2 + $0x418] sm:$0xff] %v517
      %550 = vst [vmem:[#allocation2 + $0x460] sm:$0xff] %v518
      %551 = vst [vmem:[#allocation2 + $0x4a8] sm:$0xff] %v519
      %552 = vst [vmem:[#allocation2 + $0x4f0] sm:$0xff] %v520
      %553 = vst [vmem:[#allocation2 + $0x538] sm:$0xff] %v521
      %554 = vst [vmem:[#allocation2 + $0x580] sm:$0xff] %v522
      %555 = vst [vmem:[#allocation2 + $0x5c8] sm:$0xff] %v523
      %556 = vst [vmem:[#allocation2 + $0x610] sm:$0xff] %v524
      %557 = vst [vmem:[#allocation2 + $0x658] sm:$0xff] %v525
      %558 = vst [vmem:[#allocation2 + $0x6a0] sm:$0xff] %v526
      %559 = vst [vmem:[#allocation2 + $0x6e8] sm:$0xff] %v527
      %560 = vst [vmem:[#allocation2 + $0x730] sm:$0xff] %v528
      %561 = vst [vmem:[#allocation2 + $0x778] sm:$0xff] %v529
      %562 = vst [vmem:[#allocation2 + $0x7c0] sm:$0xff] %v530
      %563 = vst [vmem:[#allocation2 + $0x808] sm:$0xff] %v531
      %564 = vst [vmem:[#allocation2 + $0x850] sm:$0xff] %v532
      %565 = vst [vmem:[#allocation2 + $0x898] sm:$0xff] %v533
      %566 = vst [vmem:[#allocation2 + $0x8e0] sm:$0xff] %v534
      %s567 = scalar_lea.vmem %s172, 48
      %v568 = vld [vmem:[%s567] sm:$0xff]
      %v569 = vld [vmem:[%s567 + $0x8] sm:$0xff]
      %v570 = vld [vmem:[%s567 + $0x18] sm:$0xff]
      %v571 = vld [vmem:[%s567 + $0x20] sm:$0xff]
      %v572 = vld [vmem:[%s567 + $0x30] sm:$0xff]
      %v573 = vld [vmem:[%s567 + $0x38] sm:$0xff]
      %v574 = vld [vmem:[%s567 + $0x48] sm:$0xff]
      %v575 = vld [vmem:[%s567 + $0x50] sm:$0xff]
      %v576 = vld [vmem:[%s567 + $0x60] sm:$0xff]
      %v577 = vld [vmem:[%s567 + $0x68] sm:$0xff]
      %v578 = vld [vmem:[%s567 + $0x78] sm:$0xff]
      %v579 = vld [vmem:[%s567 + $0x80] sm:$0xff]
      %v580 = vld [vmem:[%s567 + $0x90] sm:$0xff]
      %v581 = vld [vmem:[%s567 + $0x98] sm:$0xff]
      %v582 = vld [vmem:[%s567 + $0xa8] sm:$0xff]
      %v583 = vld [vmem:[%s567 + $0xb0] sm:$0xff]
      %v584 = vld [vmem:[%s567 + $0xc0] sm:$0xff]
      %v585 = vld [vmem:[%s567 + $0xc8] sm:$0xff]
      %v586 = vld [vmem:[%s567 + $0xd8] sm:$0xff]
      %v587 = vld [vmem:[%s567 + $0xe0] sm:$0xff]
      %v588 = vld [vmem:[%s567 + $0xf0] sm:$0xff]
      %v589 = vld [vmem:[%s567 + $0xf8] sm:$0xff]
      %v590 = vld [vmem:[%s567 + $0x108] sm:$0xff]
      %v591 = vld [vmem:[%s567 + $0x110] sm:$0xff]
      %v592 = vld [vmem:[%s567 + $0x120] sm:$0xff]
      %v593 = vld [vmem:[%s567 + $0x128] sm:$0xff]
      %v594 = vld [vmem:[%s567 + $0x138] sm:$0xff]
      %v595 = vld [vmem:[%s567 + $0x140] sm:$0xff]
      %v596 = vld [vmem:[%s567 + $0x150] sm:$0xff]
      %v597 = vld [vmem:[%s567 + $0x158] sm:$0xff]
      %v598 = vld [vmem:[%s567 + $0x168] sm:$0xff]
      %v599 = vld [vmem:[%s567 + $0x170] sm:$0xff]
      %600 = vst [vmem:[#allocation2 + $0x30] sm:$0xff] %v568
      %601 = vst [vmem:[#allocation2 + $0x78] sm:$0xff] %v569
      %602 = vst [vmem:[#allocation2 + $0xc0] sm:$0xff] %v570
      %603 = vst [vmem:[#allocation2 + $0x108] sm:$0xff] %v571
      %604 = vst [vmem:[#allocation2 + $0x150] sm:$0xff] %v572
      %605 = vst [vmem:[#allocation2 + $0x198] sm:$0xff] %v573
      %606 = vst [vmem:[#allocation2 + $0x1e0] sm:$0xff] %v574
      %607 = vst [vmem:[#allocation2 + $0x228] sm:$0xff] %v575
      %608 = vst [vmem:[#allocation2 + $0x270] sm:$0xff] %v576
      %609 = vst [vmem:[#allocation2 + $0x2b8] sm:$0xff] %v577
      %610 = vst [vmem:[#allocation2 + $0x300] sm:$0xff] %v578
      %611 = vst [vmem:[#allocation2 + $0x348] sm:$0xff] %v579
      %612 = vst [vmem:[#allocation2 + $0x390] sm:$0xff] %v580
      %613 = vst [vmem:[#allocation2 + $0x3d8] sm:$0xff] %v581
      %614 = vst [vmem:[#allocation2 + $0x420] sm:$0xff] %v582
      %615 = vst [vmem:[#allocation2 + $0x468] sm:$0xff] %v583
      %616 = vst [vmem:[#allocation2 + $0x4b0] sm:$0xff] %v584
      %617 = vst [vmem:[#allocation2 + $0x4f8] sm:$0xff] %v585
      %618 = vst [vmem:[#allocation2 + $0x540] sm:$0xff] %v586
      %619 = vst [vmem:[#allocation2 + $0x588] sm:$0xff] %v587
      %620 = vst [vmem:[#allocation2 + $0x5d0] sm:$0xff] %v588
      %621 = vst [vmem:[#allocation2 + $0x618] sm:$0xff] %v589
      %622 = vst [vmem:[#allocation2 + $0x660] sm:$0xff] %v590
      %623 = vst [vmem:[#allocation2 + $0x6a8] sm:$0xff] %v591
      %624 = vst [vmem:[#allocation2 + $0x6f0] sm:$0xff] %v592
      %625 = vst [vmem:[#allocation2 + $0x738] sm:$0xff] %v593
      %626 = vst [vmem:[#allocation2 + $0x780] sm:$0xff] %v594
      %627 = vst [vmem:[#allocation2 + $0x7c8] sm:$0xff] %v595
      %628 = vst [vmem:[#allocation2 + $0x810] sm:$0xff] %v596
      %629 = vst [vmem:[#allocation2 + $0x858] sm:$0xff] %v597
      %630 = vst [vmem:[#allocation2 + $0x8a0] sm:$0xff] %v598
      %631 = vst [vmem:[#allocation2 + $0x8e8] sm:$0xff] %v599
      %v632 = vld [vmem:[%s567 + $0x1] sm:$0xff]
      %v633 = vld [vmem:[%s567 + $0x9] sm:$0xff]
      %v634 = vld [vmem:[%s567 + $0x19] sm:$0xff]
      %v635 = vld [vmem:[%s567 + $0x21] sm:$0xff]
      %v636 = vld [vmem:[%s567 + $0x31] sm:$0xff]
      %v637 = vld [vmem:[%s567 + $0x39] sm:$0xff]
      %v638 = vld [vmem:[%s567 + $0x49] sm:$0xff]
      %v639 = vld [vmem:[%s567 + $0x51] sm:$0xff]
      %v640 = vld [vmem:[%s567 + $0x61] sm:$0xff]
      %v641 = vld [vmem:[%s567 + $0x69] sm:$0xff]
      %v642 = vld [vmem:[%s567 + $0x79] sm:$0xff]
      %v643 = vld [vmem:[%s567 + $0x81] sm:$0xff]
      %v644 = vld [vmem:[%s567 + $0x91] sm:$0xff]
      %v645 = vld [vmem:[%s567 + $0x99] sm:$0xff]
      %v646 = vld [vmem:[%s567 + $0xa9] sm:$0xff]
      %v647 = vld [vmem:[%s567 + $0xb1] sm:$0xff]
      %v648 = vld [vmem:[%s567 + $0xc1] sm:$0xff]
      %v649 = vld [vmem:[%s567 + $0xc9] sm:$0xff]
      %v650 = vld [vmem:[%s567 + $0xd9] sm:$0xff]
      %v651 = vld [vmem:[%s567 + $0xe1] sm:$0xff]
      %v652 = vld [vmem:[%s567 + $0xf1] sm:$0xff]
      %v653 = vld [vmem:[%s567 + $0xf9] sm:$0xff]
      %v654 = vld [vmem:[%s567 + $0x109] sm:$0xff]
      %v655 = vld [vmem:[%s567 + $0x111] sm:$0xff]
      %v656 = vld [vmem:[%s567 + $0x121] sm:$0xff]
      %v657 = vld [vmem:[%s567 + $0x129] sm:$0xff]
      %v658 = vld [vmem:[%s567 + $0x139] sm:$0xff]
      %v659 = vld [vmem:[%s567 + $0x141] sm:$0xff]
      %v660 = vld [vmem:[%s567 + $0x151] sm:$0xff]
      %v661 = vld [vmem:[%s567 + $0x159] sm:$0xff]
      %v662 = vld [vmem:[%s567 + $0x169] sm:$0xff]
      %v663 = vld [vmem:[%s567 + $0x171] sm:$0xff]
      %664 = vst [vmem:[#allocation2 + $0x38] sm:$0xff] %v632
      %665 = vst [vmem:[#allocation2 + $0x80] sm:$0xff] %v633
      %666 = vst [vmem:[#allocation2 + $0xc8] sm:$0xff] %v634
      %667 = vst [vmem:[#allocation2 + $0x110] sm:$0xff] %v635
      %668 = vst [vmem:[#allocation2 + $0x158] sm:$0xff] %v636
      %669 = vst [vmem:[#allocation2 + $0x1a0] sm:$0xff] %v637
      %670 = vst [vmem:[#allocation2 + $0x1e8] sm:$0xff] %v638
      %671 = vst [vmem:[#allocation2 + $0x230] sm:$0xff] %v639
      %672 = vst [vmem:[#allocation2 + $0x278] sm:$0xff] %v640
      %673 = vst [vmem:[#allocation2 + $0x2c0] sm:$0xff] %v641
      %674 = vst [vmem:[#allocation2 + $0x308] sm:$0xff] %v642
      %675 = vst [vmem:[#allocation2 + $0x350] sm:$0xff] %v643
      %676 = vst [vmem:[#allocation2 + $0x398] sm:$0xff] %v644
      %677 = vst [vmem:[#allocation2 + $0x3e0] sm:$0xff] %v645
      %678 = vst [vmem:[#allocation2 + $0x428] sm:$0xff] %v646
      %679 = vst [vmem:[#allocation2 + $0x470] sm:$0xff] %v647
      %680 = vst [vmem:[#allocation2 + $0x4b8] sm:$0xff] %v648
      %681 = vst [vmem:[#allocation2 + $0x500] sm:$0xff] %v649
      %682 = vst [vmem:[#allocation2 + $0x548] sm:$0xff] %v650
      %683 = vst [vmem:[#allocation2 + $0x590] sm:$0xff] %v651
      %684 = vst [vmem:[#allocation2 + $0x5d8] sm:$0xff] %v652
      %685 = vst [vmem:[#allocation2 + $0x620] sm:$0xff] %v653
      %686 = vst [vmem:[#allocation2 + $0x668] sm:$0xff] %v654
      %687 = vst [vmem:[#allocation2 + $0x6b0] sm:$0xff] %v655
      %688 = vst [vmem:[#allocation2 + $0x6f8] sm:$0xff] %v656
      %689 = vst [vmem:[#allocation2 + $0x740] sm:$0xff] %v657
      %690 = vst [vmem:[#allocation2 + $0x788] sm:$0xff] %v658
      %691 = vst [vmem:[#allocation2 + $0x7d0] sm:$0xff] %v659
      %692 = vst [vmem:[#allocation2 + $0x818] sm:$0xff] %v660
      %693 = vst [vmem:[#allocation2 + $0x860] sm:$0xff] %v661
      %694 = vst [vmem:[#allocation2 + $0x8a8] sm:$0xff] %v662
      %695 = vst [vmem:[#allocation2 + $0x8f0] sm:$0xff] %v663
      %v696 = vld [vmem:[%s567 + $0x2] sm:$0xff]
      %v697 = vld [vmem:[%s567 + $0xa] sm:$0xff]
      %v698 = vld [vmem:[%s567 + $0x1a] sm:$0xff]
      %v699 = vld [vmem:[%s567 + $0x22] sm:$0xff]
      %v700 = vld [vmem:[%s567 + $0x32] sm:$0xff]
      %v701 = vld [vmem:[%s567 + $0x3a] sm:$0xff]
      %v702 = vld [vmem:[%s567 + $0x4a] sm:$0xff]
      %v703 = vld [vmem:[%s567 + $0x52] sm:$0xff]
      %v704 = vld [vmem:[%s567 + $0x62] sm:$0xff]
      %v705 = vld [vmem:[%s567 + $0x6a] sm:$0xff]
      %v706 = vld [vmem:[%s567 + $0x7a] sm:$0xff]
      %v707 = vld [vmem:[%s567 + $0x82] sm:$0xff]
      %v708 = vld [vmem:[%s567 + $0x92] sm:$0xff]
      %v709 = vld [vmem:[%s567 + $0x9a] sm:$0xff]
      %v710 = vld [vmem:[%s567 + $0xaa] sm:$0xff]
      %v711 = vld [vmem:[%s567 + $0xb2] sm:$0xff]
      %v712 = vld [vmem:[%s567 + $0xc2] sm:$0xff]
      %v713 = vld [vmem:[%s567 + $0xca] sm:$0xff]
      %v714 = vld [vmem:[%s567 + $0xda] sm:$0xff]
      %v715 = vld [vmem:[%s567 + $0xe2] sm:$0xff]
      %v716 = vld [vmem:[%s567 + $0xf2] sm:$0xff]
      %v717 = vld [vmem:[%s567 + $0xfa] sm:$0xff]
      %v718 = vld [vmem:[%s567 + $0x10a] sm:$0xff]
      %v719 = vld [vmem:[%s567 + $0x112] sm:$0xff]
      %v720 = vld [vmem:[%s567 + $0x122] sm:$0xff]
      %v721 = vld [vmem:[%s567 + $0x12a] sm:$0xff]
      %v722 = vld [vmem:[%s567 + $0x13a] sm:$0xff]
      %v723 = vld [vmem:[%s567 + $0x142] sm:$0xff]
      %v724 = vld [vmem:[%s567 + $0x152] sm:$0xff]
      %v725 = vld [vmem:[%s567 + $0x15a] sm:$0xff]
      %v726 = vld [vmem:[%s567 + $0x16a] sm:$0xff]
      %v727 = vld [vmem:[%s567 + $0x172] sm:$0xff]
      %728 = vst [vmem:[#allocation2 + $0x40] sm:$0xff] %v696
      %729 = vst [vmem:[#allocation2 + $0x88] sm:$0xff] %v697
      %730 = vst [vmem:[#allocation2 + $0xd0] sm:$0xff] %v698
      %731 = vst [vmem:[#allocation2 + $0x118] sm:$0xff] %v699
      %732 = vst [vmem:[#allocation2 + $0x160] sm:$0xff] %v700
      %733 = vst [vmem:[#allocation2 + $0x1a8] sm:$0xff] %v701
      %734 = vst [vmem:[#allocation2 + $0x1f0] sm:$0xff] %v702
      %735 = vst [vmem:[#allocation2 + $0x238] sm:$0xff] %v703
      %736 = vst [vmem:[#allocation2 + $0x280] sm:$0xff] %v704
      %737 = vst [vmem:[#allocation2 + $0x2c8] sm:$0xff] %v705
      %738 = vst [vmem:[#allocation2 + $0x310] sm:$0xff] %v706
      %739 = vst [vmem:[#allocation2 + $0x358] sm:$0xff] %v707
      %740 = vst [vmem:[#allocation2 + $0x3a0] sm:$0xff] %v708
      %741 = vst [vmem:[#allocation2 + $0x3e8] sm:$0xff] %v709
      %742 = vst [vmem:[#allocation2 + $0x430] sm:$0xff] %v710
      %743 = vst [vmem:[#allocation2 + $0x478] sm:$0xff] %v711
      %744 = vst [vmem:[#allocation2 + $0x4c0] sm:$0xff] %v712
      %745 = vst [vmem:[#allocation2 + $0x508] sm:$0xff] %v713
      %746 = vst [vmem:[#allocation2 + $0x550] sm:$0xff] %v714
      %747 = vst [vmem:[#allocation2 + $0x598] sm:$0xff] %v715
      %748 = vst [vmem:[#allocation2 + $0x5e0] sm:$0xff] %v716
      %749 = vst [vmem:[#allocation2 + $0x628] sm:$0xff] %v717
      %750 = vst [vmem:[#allocation2 + $0x670] sm:$0xff] %v718
      %751 = vst [vmem:[#allocation2 + $0x6b8] sm:$0xff] %v719
      %752 = vst [vmem:[#allocation2 + $0x700] sm:$0xff] %v720
      %753 = vst [vmem:[#allocation2 + $0x748] sm:$0xff] %v721
      %754 = vst [vmem:[#allocation2 + $0x790] sm:$0xff] %v722
      %755 = vst [vmem:[#allocation2 + $0x7d8] sm:$0xff] %v723
      %756 = vst [vmem:[#allocation2 + $0x820] sm:$0xff] %v724
      %757 = vst [vmem:[#allocation2 + $0x868] sm:$0xff] %v725
      %758 = vst [vmem:[#allocation2 + $0x8b0] sm:$0xff] %v726
      %759 = vst [vmem:[#allocation2 + $0x8f8] sm:$0xff] %v727
      %v760 = vld [vmem:[#allocation2] sm:$0xff]
      %v761 = vld [vmem:[#allocation2 + $0x8] sm:$0xff]
      %v762 = vld [vmem:[#allocation2 + $0x10] sm:$0xff]
      %v763 = vld [vmem:[#allocation2 + $0x18] sm:$0xff]
      %v764 = vld [vmem:[#allocation2 + $0x20] sm:$0xff]
      %v765 = vld [vmem:[#allocation2 + $0x28] sm:$0xff]
      %v766 = vld [vmem:[#allocation2 + $0x30] sm:$0xff]
      %v767 = vld [vmem:[#allocation2 + $0x38] sm:$0xff]
      %v768 = vld [vmem:[#allocation2 + $0x40] sm:$0xff]
      %v769 = vld [vmem:[#allocation2 + $0x48] sm:$0xff]
      %v770 = vld [vmem:[#allocation2 + $0x50] sm:$0xff]
      %v771 = vld [vmem:[#allocation2 + $0x58] sm:$0xff]
      %v772 = vld [vmem:[#allocation2 + $0x60] sm:$0xff]
      %v773 = vld [vmem:[#allocation2 + $0x68] sm:$0xff]
      %v774 = vld [vmem:[#allocation2 + $0x70] sm:$0xff]
      %v775 = vld [vmem:[#allocation2 + $0x78] sm:$0xff]
      %v776 = vld [vmem:[#allocation2 + $0x80] sm:$0xff]
      %v777 = vld [vmem:[#allocation2 + $0x88] sm:$0xff]
      %v778 = vld [vmem:[#allocation2 + $0x90] sm:$0xff]
      %v779 = vld [vmem:[#allocation2 + $0x98] sm:$0xff]
      %v780 = vld [vmem:[#allocation2 + $0xa0] sm:$0xff]
      %v781 = vld [vmem:[#allocation2 + $0xa8] sm:$0xff]
      %v782 = vld [vmem:[#allocation2 + $0xb0] sm:$0xff]
      %v783 = vld [vmem:[#allocation2 + $0xb8] sm:$0xff]
      %v784 = vld [vmem:[#allocation2 + $0xc0] sm:$0xff]
      %v785 = vld [vmem:[#allocation2 + $0xc8] sm:$0xff]
      %v786 = vld [vmem:[#allocation2 + $0xd0] sm:$0xff]
      %v787 = vld [vmem:[#allocation2 + $0xd8] sm:$0xff]
      %v788 = vld [vmem:[#allocation2 + $0xe0] sm:$0xff]
      %v789 = vld [vmem:[#allocation2 + $0xe8] sm:$0xff]
      %v790 = vld [vmem:[#allocation2 + $0xf0] sm:$0xff]
      %v791 = vld [vmem:[#allocation2 + $0xf8] sm:$0xff]
      %v792 = vld [vmem:[#allocation2 + $0x100] sm:$0xff]
      %v793 = vld [vmem:[#allocation2 + $0x108] sm:$0xff]
      %v794 = vld [vmem:[#allocation2 + $0x110] sm:$0xff]
      %v795 = vld [vmem:[#allocation2 + $0x118] sm:$0xff]
      %v796 = vld [vmem:[#allocation2 + $0x120] sm:$0xff]
      %v797 = vld [vmem:[#allocation2 + $0x128] sm:$0xff]
      %v798 = vld [vmem:[#allocation2 + $0x130] sm:$0xff]
      %v799 = vld [vmem:[#allocation2 + $0x138] sm:$0xff]
      %v800 = vld [vmem:[#allocation2 + $0x140] sm:$0xff]
      %v801 = vld [vmem:[#allocation2 + $0x148] sm:$0xff]
      %v802 = vld [vmem:[#allocation2 + $0x150] sm:$0xff]
      %v803 = vld [vmem:[#allocation2 + $0x158] sm:$0xff]
      %v804 = vld [vmem:[#allocation2 + $0x160] sm:$0xff]
      %v805 = vld [vmem:[#allocation2 + $0x168] sm:$0xff]
      %v806 = vld [vmem:[#allocation2 + $0x170] sm:$0xff]
      %v807 = vld [vmem:[#allocation2 + $0x178] sm:$0xff]
      %v808 = vld [vmem:[#allocation2 + $0x180] sm:$0xff]
      %v809 = vld [vmem:[#allocation2 + $0x188] sm:$0xff]
      %v810 = vld [vmem:[#allocation2 + $0x190] sm:$0xff]
      %v811 = vld [vmem:[#allocation2 + $0x198] sm:$0xff]
      %v812 = vld [vmem:[#allocation2 + $0x1a0] sm:$0xff]
      %v813 = vld [vmem:[#allocation2 + $0x1a8] sm:$0xff]
      %v814 = vld [vmem:[#allocation2 + $0x1b0] sm:$0xff]
      %v815 = vld [vmem:[#allocation2 + $0x1b8] sm:$0xff]
      %v816 = vld [vmem:[#allocation2 + $0x1c0] sm:$0xff]
      %v817 = vld [vmem:[#allocation2 + $0x1c8] sm:$0xff]
      %v818 = vld [vmem:[#allocation2 + $0x1d0] sm:$0xff]
      %v819 = vld [vmem:[#allocation2 + $0x1d8] sm:$0xff]
      %v820 = vld [vmem:[#allocation2 + $0x1e0] sm:$0xff]
      %v821 = vld [vmem:[#allocation2 + $0x1e8] sm:$0xff]
      %v822 = vld [vmem:[#allocation2 + $0x1f0] sm:$0xff]
      %v823 = vld [vmem:[#allocation2 + $0x1f8] sm:$0xff]
      %v824 = vld [vmem:[#allocation2 + $0x200] sm:$0xff]
      %v825 = vld [vmem:[#allocation2 + $0x208] sm:$0xff]
      %v826 = vld [vmem:[#allocation2 + $0x210] sm:$0xff]
      %v827 = vld [vmem:[#allocation2 + $0x218] sm:$0xff]
      %v828 = vld [vmem:[#allocation2 + $0x220] sm:$0xff]
      %v829 = vld [vmem:[#allocation2 + $0x228] sm:$0xff]
      %v830 = vld [vmem:[#allocation2 + $0x230] sm:$0xff]
      %v831 = vld [vmem:[#allocation2 + $0x238] sm:$0xff]
      %v832 = vld [vmem:[#allocation2 + $0x240] sm:$0xff]
      %v833 = vld [vmem:[#allocation2 + $0x248] sm:$0xff]
      %v834 = vld [vmem:[#allocation2 + $0x250] sm:$0xff]
      %v835 = vld [vmem:[#allocation2 + $0x258] sm:$0xff]
      %v836 = vld [vmem:[#allocation2 + $0x260] sm:$0xff]
      %v837 = vld [vmem:[#allocation2 + $0x268] sm:$0xff]
      %v838 = vld [vmem:[#allocation2 + $0x270] sm:$0xff]
      %v839 = vld [vmem:[#allocation2 + $0x278] sm:$0xff]
      %v840 = vld [vmem:[#allocation2 + $0x280] sm:$0xff]
      %v841 = vld [vmem:[#allocation2 + $0x288] sm:$0xff]
      %v842 = vld [vmem:[#allocation2 + $0x290] sm:$0xff]
      %v843 = vld [vmem:[#allocation2 + $0x298] sm:$0xff]
      %v844 = vld [vmem:[#allocation2 + $0x2a0] sm:$0xff]
      %v845 = vld [vmem:[#allocation2 + $0x2a8] sm:$0xff]
      %v846 = vld [vmem:[#allocation2 + $0x2b0] sm:$0xff]
      %v847 = vld [vmem:[#allocation2 + $0x2b8] sm:$0xff]
      %v848 = vld [vmem:[#allocation2 + $0x2c0] sm:$0xff]
      %v849 = vld [vmem:[#allocation2 + $0x2c8] sm:$0xff]
      %v850 = vld [vmem:[#allocation2 + $0x2d0] sm:$0xff]
      %v851 = vld [vmem:[#allocation2 + $0x2d8] sm:$0xff]
      %v852 = vld [vmem:[#allocation2 + $0x2e0] sm:$0xff]
      %v853 = vld [vmem:[#allocation2 + $0x2e8] sm:$0xff]
      %v854 = vld [vmem:[#allocation2 + $0x2f0] sm:$0xff]
      %v855 = vld [vmem:[#allocation2 + $0x2f8] sm:$0xff]
      %v856 = vld [vmem:[#allocation2 + $0x300] sm:$0xff]
      %v857 = vld [vmem:[#allocation2 + $0x308] sm:$0xff]
      %v858 = vld [vmem:[#allocation2 + $0x310] sm:$0xff]
      %v859 = vld [vmem:[#allocation2 + $0x318] sm:$0xff]
      %v860 = vld [vmem:[#allocation2 + $0x320] sm:$0xff]
      %v861 = vld [vmem:[#allocation2 + $0x328] sm:$0xff]
      %v862 = vld [vmem:[#allocation2 + $0x330] sm:$0xff]
      %v863 = vld [vmem:[#allocation2 + $0x338] sm:$0xff]
      %v864 = vld [vmem:[#allocation2 + $0x340] sm:$0xff]
      %v865 = vld [vmem:[#allocation2 + $0x348] sm:$0xff]
      %v866 = vld [vmem:[#allocation2 + $0x350] sm:$0xff]
      %v867 = vld [vmem:[#allocation2 + $0x358] sm:$0xff]
      %v868 = vld [vmem:[#allocation2 + $0x360] sm:$0xff]
      %v869 = vld [vmem:[#allocation2 + $0x368] sm:$0xff]
      %v870 = vld [vmem:[#allocation2 + $0x370] sm:$0xff]
      %v871 = vld [vmem:[#allocation2 + $0x378] sm:$0xff]
      %v872 = vld [vmem:[#allocation2 + $0x380] sm:$0xff]
      %v873 = vld [vmem:[#allocation2 + $0x388] sm:$0xff]
      %v874 = vld [vmem:[#allocation2 + $0x390] sm:$0xff]
      %v875 = vld [vmem:[#allocation2 + $0x398] sm:$0xff]
      %v876 = vld [vmem:[#allocation2 + $0x3a0] sm:$0xff]
      %v877 = vld [vmem:[#allocation2 + $0x3a8] sm:$0xff]
      %v878 = vld [vmem:[#allocation2 + $0x3b0] sm:$0xff]
      %v879 = vld [vmem:[#allocation2 + $0x3b8] sm:$0xff]
      %v880 = vld [vmem:[#allocation2 + $0x3c0] sm:$0xff]
      %v881 = vld [vmem:[#allocation2 + $0x3c8] sm:$0xff]
      %v882 = vld [vmem:[#allocation2 + $0x3d0] sm:$0xff]
      %v883 = vld [vmem:[#allocation2 + $0x3d8] sm:$0xff]
      %v884 = vld [vmem:[#allocation2 + $0x3e0] sm:$0xff]
      %v885 = vld [vmem:[#allocation2 + $0x3e8] sm:$0xff]
      %v886 = vld [vmem:[#allocation2 + $0x3f0] sm:$0xff]
      %v887 = vld [vmem:[#allocation2 + $0x3f8] sm:$0xff]
      %v888 = vld [vmem:[#allocation2 + $0x400] sm:$0xff]
      %v889 = vld [vmem:[#allocation2 + $0x408] sm:$0xff]
      %v890 = vld [vmem:[#allocation2 + $0x410] sm:$0xff]
      %v891 = vld [vmem:[#allocation2 + $0x418] sm:$0xff]
      %v892 = vld [vmem:[#allocation2 + $0x420] sm:$0xff]
      %v893 = vld [vmem:[#allocation2 + $0x428] sm:$0xff]
      %v894 = vld [vmem:[#allocation2 + $0x430] sm:$0xff]
      %v895 = vld [vmem:[#allocation2 + $0x438] sm:$0xff]
      %v896 = vld [vmem:[#allocation2 + $0x440] sm:$0xff]
      %v897 = vld [vmem:[#allocation2 + $0x448] sm:$0xff]
      %v898 = vld [vmem:[#allocation2 + $0x450] sm:$0xff]
      %v899 = vld [vmem:[#allocation2 + $0x458] sm:$0xff]
      %v900 = vld [vmem:[#allocation2 + $0x460] sm:$0xff]
      %v901 = vld [vmem:[#allocation2 + $0x468] sm:$0xff]
      %v902 = vld [vmem:[#allocation2 + $0x470] sm:$0xff]
      %v903 = vld [vmem:[#allocation2 + $0x478] sm:$0xff]
      %v904 = vld [vmem:[#allocation2 + $0x480] sm:$0xff]
      %v905 = vld [vmem:[#allocation2 + $0x488] sm:$0xff]
      %v906 = vld [vmem:[#allocation2 + $0x490] sm:$0xff]
      %v907 = vld [vmem:[#allocation2 + $0x498] sm:$0xff]
      %v908 = vld [vmem:[#allocation2 + $0x4a0] sm:$0xff]
      %v909 = vld [vmem:[#allocation2 + $0x4a8] sm:$0xff]
      %v910 = vld [vmem:[#allocation2 + $0x4b0] sm:$0xff]
      %v911 = vld [vmem:[#allocation2 + $0x4b8] sm:$0xff]
      %v912 = vld [vmem:[#allocation2 + $0x4c0] sm:$0xff]
      %v913 = vld [vmem:[#allocation2 + $0x4c8] sm:$0xff]
      %v914 = vld [vmem:[#allocation2 + $0x4d0] sm:$0xff]
      %v915 = vld [vmem:[#allocation2 + $0x4d8] sm:$0xff]
      %v916 = vld [vmem:[#allocation2 + $0x4e0] sm:$0xff]
      %v917 = vld [vmem:[#allocation2 + $0x4e8] sm:$0xff]
      %v918 = vld [vmem:[#allocation2 + $0x4f0] sm:$0xff]
      %v919 = vld [vmem:[#allocation2 + $0x4f8] sm:$0xff]
      %v920 = vld [vmem:[#allocation2 + $0x500] sm:$0xff]
      %v921 = vld [vmem:[#allocation2 + $0x508] sm:$0xff]
      %v922 = vld [vmem:[#allocation2 + $0x510] sm:$0xff]
      %v923 = vld [vmem:[#allocation2 + $0x518] sm:$0xff]
      %v924 = vld [vmem:[#allocation2 + $0x520] sm:$0xff]
      %v925 = vld [vmem:[#allocation2 + $0x528] sm:$0xff]
      %v926 = vld [vmem:[#allocation2 + $0x530] sm:$0xff]
      %v927 = vld [vmem:[#allocation2 + $0x538] sm:$0xff]
      %v928 = vld [vmem:[#allocation2 + $0x540] sm:$0xff]
      %v929 = vld [vmem:[#allocation2 + $0x548] sm:$0xff]
      %v930 = vld [vmem:[#allocation2 + $0x550] sm:$0xff]
      %v931 = vld [vmem:[#allocation2 + $0x558] sm:$0xff]
      %v932 = vld [vmem:[#allocation2 + $0x560] sm:$0xff]
      %v933 = vld [vmem:[#allocation2 + $0x568] sm:$0xff]
      %v934 = vld [vmem:[#allocation2 + $0x570] sm:$0xff]
      %v935 = vld [vmem:[#allocation2 + $0x578] sm:$0xff]
      %v936 = vld [vmem:[#allocation2 + $0x580] sm:$0xff]
      %v937 = vld [vmem:[#allocation2 + $0x588] sm:$0xff]
      %v938 = vld [vmem:[#allocation2 + $0x590] sm:$0xff]
      %v939 = vld [vmem:[#allocation2 + $0x598] sm:$0xff]
      %v940 = vld [vmem:[#allocation2 + $0x5a0] sm:$0xff]
      %v941 = vld [vmem:[#allocation2 + $0x5a8] sm:$0xff]
      %v942 = vld [vmem:[#allocation2 + $0x5b0] sm:$0xff]
      %v943 = vld [vmem:[#allocation2 + $0x5b8] sm:$0xff]
      %v944 = vld [vmem:[#allocation2 + $0x5c0] sm:$0xff]
      %v945 = vld [vmem:[#allocation2 + $0x5c8] sm:$0xff]
      %v946 = vld [vmem:[#allocation2 + $0x5d0] sm:$0xff]
      %v947 = vld [vmem:[#allocation2 + $0x5d8] sm:$0xff]
      %v948 = vld [vmem:[#allocation2 + $0x5e0] sm:$0xff]
      %v949 = vld [vmem:[#allocation2 + $0x5e8] sm:$0xff]
      %v950 = vld [vmem:[#allocation2 + $0x5f0] sm:$0xff]
      %v951 = vld [vmem:[#allocation2 + $0x5f8] sm:$0xff]
      %v952 = vld [vmem:[#allocation2 + $0x600] sm:$0xff]
      %v953 = vld [vmem:[#allocation2 + $0x608] sm:$0xff]
      %v954 = vld [vmem:[#allocation2 + $0x610] sm:$0xff]
      %v955 = vld [vmem:[#allocation2 + $0x618] sm:$0xff]
      %v956 = vld [vmem:[#allocation2 + $0x620] sm:$0xff]
      %v957 = vld [vmem:[#allocation2 + $0x628] sm:$0xff]
      %v958 = vld [vmem:[#allocation2 + $0x630] sm:$0xff]
      %v959 = vld [vmem:[#allocation2 + $0x638] sm:$0xff]
      %v960 = vld [vmem:[#allocation2 + $0x640] sm:$0xff]
      %v961 = vld [vmem:[#allocation2 + $0x648] sm:$0xff]
      %v962 = vld [vmem:[#allocation2 + $0x650] sm:$0xff]
      %v963 = vld [vmem:[#allocation2 + $0x658] sm:$0xff]
      %v964 = vld [vmem:[#allocation2 + $0x660] sm:$0xff]
      %v965 = vld [vmem:[#allocation2 + $0x668] sm:$0xff]
      %v966 = vld [vmem:[#allocation2 + $0x670] sm:$0xff]
      %v967 = vld [vmem:[#allocation2 + $0x678] sm:$0xff]
      %v968 = vld [vmem:[#allocation2 + $0x680] sm:$0xff]
      %v969 = vld [vmem:[#allocation2 + $0x688] sm:$0xff]
      %v970 = vld [vmem:[#allocation2 + $0x690] sm:$0xff]
      %v971 = vld [vmem:[#allocation2 + $0x698] sm:$0xff]
      %v972 = vld [vmem:[#allocation2 + $0x6a0] sm:$0xff]
      %v973 = vld [vmem:[#allocation2 + $0x6a8] sm:$0xff]
      %v974 = vld [vmem:[#allocation2 + $0x6b0] sm:$0xff]
      %v975 = vld [vmem:[#allocation2 + $0x6b8] sm:$0xff]
      %v976 = vld [vmem:[#allocation2 + $0x6c0] sm:$0xff]
      %v977 = vld [vmem:[#allocation2 + $0x6c8] sm:$0xff]
      %v978 = vld [vmem:[#allocation2 + $0x6d0] sm:$0xff]
      %v979 = vld [vmem:[#allocation2 + $0x6d8] sm:$0xff]
      %v980 = vld [vmem:[#allocation2 + $0x6e0] sm:$0xff]
      %v981 = vld [vmem:[#allocation2 + $0x6e8] sm:$0xff]
      %v982 = vld [vmem:[#allocation2 + $0x6f0] sm:$0xff]
      %v983 = vld [vmem:[#allocation2 + $0x6f8] sm:$0xff]
      %v984 = vld [vmem:[#allocation2 + $0x700] sm:$0xff]
      %v985 = vld [vmem:[#allocation2 + $0x708] sm:$0xff]
      %v986 = vld [vmem:[#allocation2 + $0x710] sm:$0xff]
      %v987 = vld [vmem:[#allocation2 + $0x718] sm:$0xff]
      %v988 = vld [vmem:[#allocation2 + $0x720] sm:$0xff]
      %v989 = vld [vmem:[#allocation2 + $0x728] sm:$0xff]
      %v990 = vld [vmem:[#allocation2 + $0x730] sm:$0xff]
      %v991 = vld [vmem:[#allocation2 + $0x738] sm:$0xff]
      %v992 = vld [vmem:[#allocation2 + $0x740] sm:$0xff]
      %v993 = vld [vmem:[#allocation2 + $0x748] sm:$0xff]
      %v994 = vld [vmem:[#allocation2 + $0x750] sm:$0xff]
      %v995 = vld [vmem:[#allocation2 + $0x758] sm:$0xff]
      %v996 = vld [vmem:[#allocation2 + $0x760] sm:$0xff]
      %v997 = vld [vmem:[#allocation2 + $0x768] sm:$0xff]
      %v998 = vld [vmem:[#allocation2 + $0x770] sm:$0xff]
      %v999 = vld [vmem:[#allocation2 + $0x778] sm:$0xff]
      %v1000 = vld [vmem:[#allocation2 + $0x780] sm:$0xff]
      %v1001 = vld [vmem:[#allocation2 + $0x788] sm:$0xff]
      %v1002 = vld [vmem:[#allocation2 + $0x790] sm:$0xff]
      %v1003 = vld [vmem:[#allocation2 + $0x798] sm:$0xff]
      %v1004 = vld [vmem:[#allocation2 + $0x7a0] sm:$0xff]
      %v1005 = vld [vmem:[#allocation2 + $0x7a8] sm:$0xff]
      %v1006 = vld [vmem:[#allocation2 + $0x7b0] sm:$0xff]
      %v1007 = vld [vmem:[#allocation2 + $0x7b8] sm:$0xff]
      %v1008 = vld [vmem:[#allocation2 + $0x7c0] sm:$0xff]
      %v1009 = vld [vmem:[#allocation2 + $0x7c8] sm:$0xff]
      %v1010 = vld [vmem:[#allocation2 + $0x7d0] sm:$0xff]
      %v1011 = vld [vmem:[#allocation2 + $0x7d8] sm:$0xff]
      %v1012 = vld [vmem:[#allocation2 + $0x7e0] sm:$0xff]
      %v1013 = vld [vmem:[#allocation2 + $0x7e8] sm:$0xff]
      %v1014 = vld [vmem:[#allocation2 + $0x7f0] sm:$0xff]
      %v1015 = vld [vmem:[#allocation2 + $0x7f8] sm:$0xff]
      %v1016 = vld [vmem:[#allocation2 + $0x800] sm:$0xff]
      %v1017 = vld [vmem:[#allocation2 + $0x808] sm:$0xff]
      %v1018 = vld [vmem:[#allocation2 + $0x810] sm:$0xff]
      %v1019 = vld [vmem:[#allocation2 + $0x818] sm:$0xff]
      %v1020 = vld [vmem:[#allocation2 + $0x820] sm:$0xff]
      %v1021 = vld [vmem:[#allocation2 + $0x828] sm:$0xff]
      %v1022 = vld [vmem:[#allocation2 + $0x830] sm:$0xff]
      %v1023 = vld [vmem:[#allocation2 + $0x838] sm:$0xff]
      %v1024 = vld [vmem:[#allocation2 + $0x840] sm:$0xff]
      %v1025 = vld [vmem:[#allocation2 + $0x848] sm:$0xff]
      %v1026 = vld [vmem:[#allocation2 + $0x850] sm:$0xff]
      %v1027 = vld [vmem:[#allocation2 + $0x858] sm:$0xff]
      %v1028 = vld [vmem:[#allocation2 + $0x860] sm:$0xff]
      %v1029 = vld [vmem:[#allocation2 + $0x868] sm:$0xff]
      %v1030 = vld [vmem:[#allocation2 + $0x870] sm:$0xff]
      %v1031 = vld [vmem:[#allocation2 + $0x878] sm:$0xff]
      %v1032 = vld [vmem:[#allocation2 + $0x880] sm:$0xff]
      %v1033 = vld [vmem:[#allocation2 + $0x888] sm:$0xff]
      %v1034 = vld [vmem:[#allocation2 + $0x890] sm:$0xff]
      %v1035 = vld [vmem:[#allocation2 + $0x898] sm:$0xff]
      %v1036 = vld [vmem:[#allocation2 + $0x8a0] sm:$0xff]
      %v1037 = vld [vmem:[#allocation2 + $0x8a8] sm:$0xff]
      %v1038 = vld [vmem:[#allocation2 + $0x8b0] sm:$0xff]
      %v1039 = vld [vmem:[#allocation2 + $0x8b8] sm:$0xff]
      %v1040 = vld [vmem:[#allocation2 + $0x8c0] sm:$0xff]
      %v1041 = vld [vmem:[#allocation2 + $0x8c8] sm:$0xff]
      %v1042 = vld [vmem:[#allocation2 + $0x8d0] sm:$0xff]
      %v1043 = vld [vmem:[#allocation2 + $0x8d8] sm:$0xff]
      %v1044 = vld [vmem:[#allocation2 + $0x8e0] sm:$0xff]
      %v1045 = vld [vmem:[#allocation2 + $0x8e8] sm:$0xff]
      %v1046 = vld [vmem:[#allocation2 + $0x8f0] sm:$0xff]
      %v1047 = vld [vmem:[#allocation2 + $0x8f8] sm:$0xff]
      %v1048 = vld [vmem:[%s1] sm:$0xff]
      %v1049 = vld [vmem:[%s1 + $0x8] sm:$0xff]
      %v1050 = vld [vmem:[%s1 + $0x10] sm:$0xff]
      %v1051 = vld [vmem:[%s1 + $0x18] sm:$0xff]
      %v1052 = vld [vmem:[%s1 + $0x20] sm:$0xff]
      %v1053 = vld [vmem:[%s1 + $0x28] sm:$0xff]
      %v1054 = vld [vmem:[%s1 + $0x30] sm:$0xff]
      %v1055 = vld [vmem:[%s1 + $0x38] sm:$0xff]
      %v1056 = vld [vmem:[%s1 + $0x40] sm:$0xff]
      %v1057 = vld [vmem:[%s1 + $0x48] sm:$0xff]
      %v1058 = vld [vmem:[%s1 + $0x50] sm:$0xff]
      %v1059 = vld [vmem:[%s1 + $0x58] sm:$0xff]
      %v1060 = vld [vmem:[%s1 + $0x60] sm:$0xff]
      %v1061 = vld [vmem:[%s1 + $0x68] sm:$0xff]
      %v1062 = vld [vmem:[%s1 + $0x70] sm:$0xff]
      %v1063 = vld [vmem:[%s1 + $0x78] sm:$0xff]
      %v1064 = vld [vmem:[%s1 + $0x80] sm:$0xff]
      %v1065 = vld [vmem:[%s1 + $0x88] sm:$0xff]
      %v1066 = vld [vmem:[%s1 + $0x90] sm:$0xff]
      %v1067 = vld [vmem:[%s1 + $0x98] sm:$0xff]
      %v1068 = vld [vmem:[%s1 + $0xa0] sm:$0xff]
      %v1069 = vld [vmem:[%s1 + $0xa8] sm:$0xff]
      %v1070 = vld [vmem:[%s1 + $0xb0] sm:$0xff]
      %v1071 = vld [vmem:[%s1 + $0xb8] sm:$0xff]
      %v1072 = vld [vmem:[%s1 + $0xc0] sm:$0xff]
      %v1073 = vld [vmem:[%s1 + $0xc8] sm:$0xff]
      %v1074 = vld [vmem:[%s1 + $0xd0] sm:$0xff]
      %v1075 = vld [vmem:[%s1 + $0xd8] sm:$0xff]
      %v1076 = vld [vmem:[%s1 + $0xe0] sm:$0xff]
      %v1077 = vld [vmem:[%s1 + $0xe8] sm:$0xff]
      %v1078 = vld [vmem:[%s1 + $0xf0] sm:$0xff]
      %v1079 = vld [vmem:[%s1 + $0xf8] sm:$0xff]
      %v1080 = vld [vmem:[%s1 + $0x100] sm:$0xff]
      %v1081 = vld [vmem:[%s1 + $0x108] sm:$0xff]
      %v1082 = vld [vmem:[%s1 + $0x110] sm:$0xff]
      %v1083 = vld [vmem:[%s1 + $0x118] sm:$0xff]
      %v1084 = vld [vmem:[%s1 + $0x120] sm:$0xff]
      %v1085 = vld [vmem:[%s1 + $0x128] sm:$0xff]
      %v1086 = vld [vmem:[%s1 + $0x130] sm:$0xff]
      %v1087 = vld [vmem:[%s1 + $0x138] sm:$0xff]
      %v1088 = vld [vmem:[%s1 + $0x140] sm:$0xff]
      %v1089 = vld [vmem:[%s1 + $0x148] sm:$0xff]
      %v1090 = vld [vmem:[%s1 + $0x150] sm:$0xff]
      %v1091 = vld [vmem:[%s1 + $0x158] sm:$0xff]
      %v1092 = vld [vmem:[%s1 + $0x160] sm:$0xff]
      %v1093 = vld [vmem:[%s1 + $0x168] sm:$0xff]
      %v1094 = vld [vmem:[%s1 + $0x170] sm:$0xff]
      %v1095 = vld [vmem:[%s1 + $0x178] sm:$0xff]
      %v1096 = vld [vmem:[%s1 + $0x180] sm:$0xff]
      %v1097 = vld [vmem:[%s1 + $0x188] sm:$0xff]
      %v1098 = vld [vmem:[%s1 + $0x190] sm:$0xff]
      %v1099 = vld [vmem:[%s1 + $0x198] sm:$0xff]
      %v1100 = vld [vmem:[%s1 + $0x1a0] sm:$0xff]
      %v1101 = vld [vmem:[%s1 + $0x1a8] sm:$0xff]
      %v1102 = vld [vmem:[%s1 + $0x1b0] sm:$0xff]
      %v1103 = vld [vmem:[%s1 + $0x1b8] sm:$0xff]
      %v1104 = vld [vmem:[%s1 + $0x1c0] sm:$0xff]
      %v1105 = vld [vmem:[%s1 + $0x1c8] sm:$0xff]
      %v1106 = vld [vmem:[%s1 + $0x1d0] sm:$0xff]
      %v1107 = vld [vmem:[%s1 + $0x1d8] sm:$0xff]
      %v1108 = vld [vmem:[%s1 + $0x1e0] sm:$0xff]
      %v1109 = vld [vmem:[%s1 + $0x1e8] sm:$0xff]
      %v1110 = vld [vmem:[%s1 + $0x1f0] sm:$0xff]
      %v1111 = vld [vmem:[%s1 + $0x1f8] sm:$0xff]
      %v1112 = vld [vmem:[%s1 + $0x200] sm:$0xff]
      %v1113 = vld [vmem:[%s1 + $0x208] sm:$0xff]
      %v1114 = vld [vmem:[%s1 + $0x210] sm:$0xff]
      %v1115 = vld [vmem:[%s1 + $0x218] sm:$0xff]
      %v1116 = vld [vmem:[%s1 + $0x220] sm:$0xff]
      %v1117 = vld [vmem:[%s1 + $0x228] sm:$0xff]
      %v1118 = vld [vmem:[%s1 + $0x230] sm:$0xff]
      %v1119 = vld [vmem:[%s1 + $0x238] sm:$0xff]
      %v1120 = vld [vmem:[%s1 + $0x240] sm:$0xff]
      %v1121 = vld [vmem:[%s1 + $0x248] sm:$0xff]
      %v1122 = vld [vmem:[%s1 + $0x250] sm:$0xff]
      %v1123 = vld [vmem:[%s1 + $0x258] sm:$0xff]
      %v1124 = vld [vmem:[%s1 + $0x260] sm:$0xff]
      %v1125 = vld [vmem:[%s1 + $0x268] sm:$0xff]
      %v1126 = vld [vmem:[%s1 + $0x270] sm:$0xff]
      %v1127 = vld [vmem:[%s1 + $0x278] sm:$0xff]
      %v1128 = vld [vmem:[%s1 + $0x280] sm:$0xff]
      %v1129 = vld [vmem:[%s1 + $0x288] sm:$0xff]
      %v1130 = vld [vmem:[%s1 + $0x290] sm:$0xff]
      %v1131 = vld [vmem:[%s1 + $0x298] sm:$0xff]
      %v1132 = vld [vmem:[%s1 + $0x2a0] sm:$0xff]
      %v1133 = vld [vmem:[%s1 + $0x2a8] sm:$0xff]
      %v1134 = vld [vmem:[%s1 + $0x2b0] sm:$0xff]
      %v1135 = vld [vmem:[%s1 + $0x2b8] sm:$0xff]
      %v1136 = vld [vmem:[%s1 + $0x2c0] sm:$0xff]
      %v1137 = vld [vmem:[%s1 + $0x2c8] sm:$0xff]
      %v1138 = vld [vmem:[%s1 + $0x2d0] sm:$0xff]
      %v1139 = vld [vmem:[%s1 + $0x2d8] sm:$0xff]
      %v1140 = vld [vmem:[%s1 + $0x2e0] sm:$0xff]
      %v1141 = vld [vmem:[%s1 + $0x2e8] sm:$0xff]
      %v1142 = vld [vmem:[%s1 + $0x2f0] sm:$0xff]
      %v1143 = vld [vmem:[%s1 + $0x2f8] sm:$0xff]
      %v1144 = vld [vmem:[%s1 + $0x300] sm:$0xff]
      %v1145 = vld [vmem:[%s1 + $0x308] sm:$0xff]
      %v1146 = vld [vmem:[%s1 + $0x310] sm:$0xff]
      %v1147 = vld [vmem:[%s1 + $0x318] sm:$0xff]
      %v1148 = vld [vmem:[%s1 + $0x320] sm:$0xff]
      %v1149 = vld [vmem:[%s1 + $0x328] sm:$0xff]
      %v1150 = vld [vmem:[%s1 + $0x330] sm:$0xff]
      %v1151 = vld [vmem:[%s1 + $0x338] sm:$0xff]
      %v1152 = vld [vmem:[%s1 + $0x340] sm:$0xff]
      %v1153 = vld [vmem:[%s1 + $0x348] sm:$0xff]
      %v1154 = vld [vmem:[%s1 + $0x350] sm:$0xff]
      %v1155 = vld [vmem:[%s1 + $0x358] sm:$0xff]
      %v1156 = vld [vmem:[%s1 + $0x360] sm:$0xff]
      %v1157 = vld [vmem:[%s1 + $0x368] sm:$0xff]
      %v1158 = vld [vmem:[%s1 + $0x370] sm:$0xff]
      %v1159 = vld [vmem:[%s1 + $0x378] sm:$0xff]
      %v1160 = vld [vmem:[%s1 + $0x380] sm:$0xff]
      %v1161 = vld [vmem:[%s1 + $0x388] sm:$0xff]
      %v1162 = vld [vmem:[%s1 + $0x390] sm:$0xff]
      %v1163 = vld [vmem:[%s1 + $0x398] sm:$0xff]
      %v1164 = vld [vmem:[%s1 + $0x3a0] sm:$0xff]
      %v1165 = vld [vmem:[%s1 + $0x3a8] sm:$0xff]
      %v1166 = vld [vmem:[%s1 + $0x3b0] sm:$0xff]
      %v1167 = vld [vmem:[%s1 + $0x3b8] sm:$0xff]
      %v1168 = vld [vmem:[%s1 + $0x3c0] sm:$0xff]
      %v1169 = vld [vmem:[%s1 + $0x3c8] sm:$0xff]
      %v1170 = vld [vmem:[%s1 + $0x3d0] sm:$0xff]
      %v1171 = vld [vmem:[%s1 + $0x3d8] sm:$0xff]
      %v1172 = vld [vmem:[%s1 + $0x3e0] sm:$0xff]
      %v1173 = vld [vmem:[%s1 + $0x3e8] sm:$0xff]
      %v1174 = vld [vmem:[%s1 + $0x3f0] sm:$0xff]
      %v1175 = vld [vmem:[%s1 + $0x3f8] sm:$0xff]
      %v1176 = vld [vmem:[%s1 + $0x400] sm:$0xff]
      %v1177 = vld [vmem:[%s1 + $0x408] sm:$0xff]
      %v1178 = vld [vmem:[%s1 + $0x410] sm:$0xff]
      %v1179 = vld [vmem:[%s1 + $0x418] sm:$0xff]
      %v1180 = vld [vmem:[%s1 + $0x420] sm:$0xff]
      %v1181 = vld [vmem:[%s1 + $0x428] sm:$0xff]
      %v1182 = vld [vmem:[%s1 + $0x430] sm:$0xff]
      %v1183 = vld [vmem:[%s1 + $0x438] sm:$0xff]
      %v1184 = vld [vmem:[%s1 + $0x440] sm:$0xff]
      %v1185 = vld [vmem:[%s1 + $0x448] sm:$0xff]
      %v1186 = vld [vmem:[%s1 + $0x450] sm:$0xff]
      %v1187 = vld [vmem:[%s1 + $0x458] sm:$0xff]
      %v1188 = vld [vmem:[%s1 + $0x460] sm:$0xff]
      %v1189 = vld [vmem:[%s1 + $0x468] sm:$0xff]
      %v1190 = vld [vmem:[%s1 + $0x470] sm:$0xff]
      %v1191 = vld [vmem:[%s1 + $0x478] sm:$0xff]
      %1192 = vmatprep.subr.mxu0 0.0
      %1193 = vmatpush1.msra.mxu0 %v1063
      %1194 = vmatprep.subr.mxu0 0.0
      %1195 = vmatpush1.msra.mxu0 %v1062
      %1196 = vmatprep.subr.mxu0 0.0
      %1197 = vmatpush1.msra.mxu0 %v1061
      %1198 = vmatprep.subr.mxu0 0.0
      %1199 = vmatpush1.msra.mxu0 %v1060
      %1200 = vmatprep.subr.mxu0 0.0
      %1201 = vmatpush1.msra.mxu0 %v1059
      %1202 = vmatprep.subr.mxu0 0.0
      %1203 = vmatpush1.msra.mxu0 %v1058
      %1204 = vmatprep.subr.mxu0 0.0
      %1205 = vmatpush1.msra.mxu0 %v1057
      %1206 = vmatprep.subr.mxu0 0.0
      %1207 = vmatpush1.msra.mxu0 %v1056
      %1208 = vmatprep.subr.mxu0 0.0
      %1209 = vmatpush1.msra.mxu0 %v1055
      %1210 = vmatprep.subr.mxu0 0.0
      %1211 = vmatpush1.msra.mxu0 %v1054
      %1212 = vmatprep.subr.mxu0 0.0
      %1213 = vmatpush1.msra.mxu0 %v1053
      %1214 = vmatprep.subr.mxu0 0.0
      %1215 = vmatpush1.msra.mxu0 %v1052
      %1216 = vmatprep.subr.mxu0 0.0
      %1217 = vmatpush1.msra.mxu0 %v1051
      %1218 = vmatprep.subr.mxu0 0.0
      %1219 = vmatpush1.msra.mxu0 %v1050
      %1220 = vmatprep.subr.mxu0 0.0
      %1221 = vmatpush1.msra.mxu0 %v1049
      %1222 = vmatprep.subr.mxu0 0.0
      %1223 = vmatpush1.msra.mxu0 %v1048
      %1224 = vmatprep.subr.mxu0 0.0
      %1225 = vmatpush2.msra.mxu0 %v1079
      %1226 = vmatprep.subr.mxu0 0.0
      %1227 = vmatpush2.msra.mxu0 %v1078
      %1228 = vmatprep.subr.mxu0 0.0
      %1229 = vmatpush2.msra.mxu0 %v1077
      %1230 = vmatprep.subr.mxu0 0.0
      %1231 = vmatpush2.msra.mxu0 %v1076
      %1232 = vmatprep.subr.mxu0 0.0
      %1233 = vmatpush2.msra.mxu0 %v1075
      %1234 = vmatprep.subr.mxu0 0.0
      %1235 = vmatpush2.msra.mxu0 %v1074
      %1236 = vmatprep.subr.mxu0 0.0
      %1237 = vmatpush2.msra.mxu0 %v1073
      %1238 = vmatprep.subr.mxu0 0.0
      %1239 = vmatpush2.msra.mxu0 %v1072
      %1240 = vmatprep.subr.mxu0 0.0
      %1241 = vmatpush2.msra.mxu0 %v1071
      %1242 = vmatprep.subr.mxu0 0.0
      %1243 = vmatpush2.msra.mxu0 %v1070
      %1244 = vmatprep.subr.mxu0 0.0
      %1245 = vmatpush2.msra.mxu0 %v1069
      %1246 = vmatprep.subr.mxu0 0.0
      %1247 = vmatpush2.msra.mxu0 %v1068
      %1248 = vmatprep.subr.mxu0 0.0
      %1249 = vmatpush2.msra.mxu0 %v1067
      %1250 = vmatprep.subr.mxu0 0.0
      %1251 = vmatpush2.msra.mxu0 %v1066
      %1252 = vmatprep.subr.mxu0 0.0
      %1253 = vmatpush2.msra.mxu0 %v1065
      %1254 = vmatprep.subr.mxu0 0.0
      %1255 = vmatpush2.msra.mxu0 %v1064
      %1256 = vmatprep.mubr.f32.mxu0 %v761
      %1257 = vmatmul.mubr.f32.gmra.mxu0 %v760
      %v1258 = vpop.f32.mrf.mxu0
      %v1259 = vadd.f32 0.0, %v1258
      %v1260 = vpop.f32.mrf.mxu0
      %1261 = vmatprep.mubr.f32.mxu0 %v770
      %1262 = vmatmul.mubr.f32.gmra.mxu0 %v769
      %v1263 = vpop.f32.mrf.mxu0
      %v1264 = vadd.f32 0.0, %v1263
      %v1265 = vpop.f32.mrf.mxu0
      %1266 = vmatprep.mubr.f32.mxu0 %v779
      %1267 = vmatmul.mubr.f32.gmra.mxu0 %v778
      %v1268 = vpop.f32.mrf.mxu0
      %v1269 = vadd.f32 0.0, %v1268
      %v1270 = vpop.f32.mrf.mxu0
      %1271 = vmatprep.mubr.f32.mxu0 %v788
      %1272 = vmatmul.mubr.f32.gmra.mxu0 %v787
      %v1273 = vpop.f32.mrf.mxu0
      %v1274 = vadd.f32 0.0, %v1273
      %v1275 = vpop.f32.mrf.mxu0
      %1276 = vmatprep.mubr.f32.mxu0 %v797
      %1277 = vmatmul.mubr.f32.gmra.mxu0 %v796
      %v1278 = vpop.f32.mrf.mxu0
      %v1279 = vadd.f32 0.0, %v1278
      %v1280 = vpop.f32.mrf.mxu0
      %1281 = vmatprep.mubr.f32.mxu0 %v806
      %1282 = vmatmul.mubr.f32.gmra.mxu0 %v805
      %v1283 = vpop.f32.mrf.mxu0
      %v1284 = vadd.f32 0.0, %v1283
      %v1285 = vpop.f32.mrf.mxu0
      %1286 = vmatprep.mubr.f32.mxu0 %v815
      %1287 = vmatmul.mubr.f32.gmra.mxu0 %v814
      %v1288 = vpop.f32.mrf.mxu0
      %v1289 = vadd.f32 0.0, %v1288
      %v1290 = vpop.f32.mrf.mxu0
      %1291 = vmatprep.mubr.f32.mxu0 %v824
      %1292 = vmatmul.mubr.f32.gmra.mxu0 %v823
      %v1293 = vpop.f32.mrf.mxu0
      %v1294 = vadd.f32 0.0, %v1293
      %v1295 = vpop.f32.mrf.mxu0
      %1296 = vmatprep.mubr.f32.mxu0 %v833
      %1297 = vmatmul.mubr.f32.gmra.mxu0 %v832
      %v1298 = vpop.f32.mrf.mxu0
      %v1299 = vadd.f32 0.0, %v1298
      %v1300 = vpop.f32.mrf.mxu0
      %1301 = vmatprep.mubr.f32.mxu0 %v842
      %1302 = vmatmul.mubr.f32.gmra.mxu0 %v841
      %v1303 = vpop.f32.mrf.mxu0
      %v1304 = vadd.f32 0.0, %v1303
      %v1305 = vpop.f32.mrf.mxu0
      %1306 = vmatprep.mubr.f32.mxu0 %v851
      %1307 = vmatmul.mubr.f32.gmra.mxu0 %v850
      %v1308 = vpop.f32.mrf.mxu0
      %v1309 = vadd.f32 0.0, %v1308
      %v1310 = vpop.f32.mrf.mxu0
      %1311 = vmatprep.mubr.f32.mxu0 %v860
      %1312 = vmatmul.mubr.f32.gmra.mxu0 %v859
      %v1313 = vpop.f32.mrf.mxu0
      %v1314 = vadd.f32 0.0, %v1313
      %v1315 = vpop.f32.mrf.mxu0
      %1316 = vmatprep.mubr.f32.mxu0 %v869
      %1317 = vmatmul.mubr.f32.gmra.mxu0 %v868
      %v1318 = vpop.f32.mrf.mxu0
      %v1319 = vadd.f32 0.0, %v1318
      %v1320 = vpop.f32.mrf.mxu0
      %1321 = vmatprep.mubr.f32.mxu0 %v878
      %1322 = vmatmul.mubr.f32.gmra.mxu0 %v877
      %v1323 = vpop.f32.mrf.mxu0
      %v1324 = vadd.f32 0.0, %v1323
      %v1325 = vpop.f32.mrf.mxu0
      %1326 = vmatprep.mubr.f32.mxu0 %v887
      %1327 = vmatmul.mubr.f32.gmra.mxu0 %v886
      %v1328 = vpop.f32.mrf.mxu0
      %v1329 = vadd.f32 0.0, %v1328
      %v1330 = vpop.f32.mrf.mxu0
      %1331 = vmatprep.mubr.f32.mxu0 %v896
      %1332 = vmatmul.mubr.f32.gmra.mxu0 %v895
      %v1333 = vpop.f32.mrf.mxu0
      %v1334 = vadd.f32 0.0, %v1333
      %v1335 = vpop.f32.mrf.mxu0
      %1336 = vmatprep.mubr.f32.mxu0 %v905
      %1337 = vmatmul.mubr.f32.gmra.mxu0 %v904
      %v1338 = vpop.f32.mrf.mxu0
      %v1339 = vadd.f32 0.0, %v1338
      %v1340 = vpop.f32.mrf.mxu0
      %1341 = vmatprep.mubr.f32.mxu0 %v914
      %1342 = vmatmul.mubr.f32.gmra.mxu0 %v913
      %v1343 = vpop.f32.mrf.mxu0
      %v1344 = vadd.f32 0.0, %v1343
      %v1345 = vpop.f32.mrf.mxu0
      %1346 = vmatprep.mubr.f32.mxu0 %v923
      %1347 = vmatmul.mubr.f32.gmra.mxu0 %v922
      %v1348 = vpop.f32.mrf.mxu0
      %v1349 = vadd.f32 0.0, %v1348
      %v1350 = vpop.f32.mrf.mxu0
      %1351 = vmatprep.mubr.f32.mxu0 %v932
      %1352 = vmatmul.mubr.f32.gmra.mxu0 %v931
      %v1353 = vpop.f32.mrf.mxu0
      %v1354 = vadd.f32 0.0, %v1353
      %v1355 = vpop.f32.mrf.mxu0
      %1356 = vmatprep.mubr.f32.mxu0 %v941
      %1357 = vmatmul.mubr.f32.gmra.mxu0 %v940
      %v1358 = vpop.f32.mrf.mxu0
      %v1359 = vadd.f32 0.0, %v1358
      %v1360 = vpop.f32.mrf.mxu0
      %1361 = vmatprep.mubr.f32.mxu0 %v950
      %1362 = vmatmul.mubr.f32.gmra.mxu0 %v949
      %v1363 = vpop.f32.mrf.mxu0
      %v1364 = vadd.f32 0.0, %v1363
      %v1365 = vpop.f32.mrf.mxu0
      %1366 = vmatprep.mubr.f32.mxu0 %v959
      %1367 = vmatmul.mubr.f32.gmra.mxu0 %v958
      %v1368 = vpop.f32.mrf.mxu0
      %v1369 = vadd.f32 0.0, %v1368
      %v1370 = vpop.f32.mrf.mxu0
      %1371 = vmatprep.mubr.f32.mxu0 %v968
      %1372 = vmatmul.mubr.f32.gmra.mxu0 %v967
      %v1373 = vpop.f32.mrf.mxu0
      %v1374 = vadd.f32 0.0, %v1373
      %v1375 = vpop.f32.mrf.mxu0
      %1376 = vmatprep.mubr.f32.mxu0 %v977
      %1377 = vmatmul.mubr.f32.gmra.mxu0 %v976
      %v1378 = vpop.f32.mrf.mxu0
      %v1379 = vadd.f32 0.0, %v1378
      %v1380 = vpop.f32.mrf.mxu0
      %1381 = vmatprep.mubr.f32.mxu0 %v986
      %1382 = vmatmul.mubr.f32.gmra.mxu0 %v985
      %v1383 = vpop.f32.mrf.mxu0
      %v1384 = vadd.f32 0.0, %v1383
      %v1385 = vpop.f32.mrf.mxu0
      %1386 = vmatprep.mubr.f32.mxu0 %v995
      %1387 = vmatmul.mubr.f32.gmra.mxu0 %v994
      %v1388 = vpop.f32.mrf.mxu0
      %v1389 = vadd.f32 0.0, %v1388
      %v1390 = vpop.f32.mrf.mxu0
      %1391 = vmatprep.mubr.f32.mxu0 %v1004
      %1392 = vmatmul.mubr.f32.gmra.mxu0 %v1003
      %v1393 = vpop.f32.mrf.mxu0
      %v1394 = vadd.f32 0.0, %v1393
      %v1395 = vpop.f32.mrf.mxu0
      %1396 = vmatprep.mubr.f32.mxu0 %v1013
      %1397 = vmatmul.mubr.f32.gmra.mxu0 %v1012
      %v1398 = vpop.f32.mrf.mxu0
      %v1399 = vadd.f32 0.0, %v1398
      %v1400 = vpop.f32.mrf.mxu0
      %1401 = vmatprep.mubr.f32.mxu0 %v1022
      %1402 = vmatmul.mubr.f32.gmra.mxu0 %v1021
      %v1403 = vpop.f32.mrf.mxu0
      %v1404 = vadd.f32 0.0, %v1403
      %v1405 = vpop.f32.mrf.mxu0
      %1406 = vmatprep.mubr.f32.mxu0 %v1031
      %1407 = vmatmul.mubr.f32.gmra.mxu0 %v1030
      %v1408 = vpop.f32.mrf.mxu0
      %v1409 = vadd.f32 0.0, %v1408
      %v1410 = vpop.f32.mrf.mxu0
      %1411 = vmatprep.mubr.f32.mxu0 %v1040
      %1412 = vmatmul.mubr.f32.gmra.mxu0 %v1039
      %v1413 = vpop.f32.mrf.mxu0
      %v1414 = vadd.f32 0.0, %v1413
      %v1415 = vpop.f32.mrf.mxu0
      %1416 = vdwg.mxu0
      %1417 = vmatprep.subr.mxu0 0.0
      %1418 = vmatpush1.msra.mxu0 %v1095
      %1419 = vmatprep.subr.mxu0 0.0
      %1420 = vmatpush1.msra.mxu0 %v1094
      %1421 = vmatprep.subr.mxu0 0.0
      %1422 = vmatpush1.msra.mxu0 %v1093
      %1423 = vmatprep.subr.mxu0 0.0
      %1424 = vmatpush1.msra.mxu0 %v1092
      %1425 = vmatprep.subr.mxu0 0.0
      %1426 = vmatpush1.msra.mxu0 %v1091
      %1427 = vmatprep.subr.mxu0 0.0
      %1428 = vmatpush1.msra.mxu0 %v1090
      %1429 = vmatprep.subr.mxu0 0.0
      %1430 = vmatpush1.msra.mxu0 %v1089
      %1431 = vmatprep.subr.mxu0 0.0
      %1432 = vmatpush1.msra.mxu0 %v1088
      %1433 = vmatprep.subr.mxu0 0.0
      %1434 = vmatpush1.msra.mxu0 %v1087
      %1435 = vmatprep.subr.mxu0 0.0
      %1436 = vmatpush1.msra.mxu0 %v1086
      %1437 = vmatprep.subr.mxu0 0.0
      %1438 = vmatpush1.msra.mxu0 %v1085
      %1439 = vmatprep.subr.mxu0 0.0
      %1440 = vmatpush1.msra.mxu0 %v1084
      %1441 = vmatprep.subr.mxu0 0.0
      %1442 = vmatpush1.msra.mxu0 %v1083
      %1443 = vmatprep.subr.mxu0 0.0
      %1444 = vmatpush1.msra.mxu0 %v1082
      %1445 = vmatprep.subr.mxu0 0.0
      %1446 = vmatpush1.msra.mxu0 %v1081
      %1447 = vmatprep.subr.mxu0 0.0
      %1448 = vmatpush1.msra.mxu0 %v1080
      %1449 = vmatprep.subr.mxu0 0.0
      %1450 = vmatpush2.msra.mxu0 %v1111
      %1451 = vmatprep.subr.mxu0 0.0
      %1452 = vmatpush2.msra.mxu0 %v1110
      %1453 = vmatprep.subr.mxu0 0.0
      %1454 = vmatpush2.msra.mxu0 %v1109
      %1455 = vmatprep.subr.mxu0 0.0
      %1456 = vmatpush2.msra.mxu0 %v1108
      %1457 = vmatprep.subr.mxu0 0.0
      %1458 = vmatpush2.msra.mxu0 %v1107
      %1459 = vmatprep.subr.mxu0 0.0
      %1460 = vmatpush2.msra.mxu0 %v1106
      %1461 = vmatprep.subr.mxu0 0.0
      %1462 = vmatpush2.msra.mxu0 %v1105
      %1463 = vmatprep.subr.mxu0 0.0
      %1464 = vmatpush2.msra.mxu0 %v1104
      %1465 = vmatprep.subr.mxu0 0.0
      %1466 = vmatpush2.msra.mxu0 %v1103
      %1467 = vmatprep.subr.mxu0 0.0
      %1468 = vmatpush2.msra.mxu0 %v1102
      %1469 = vmatprep.subr.mxu0 0.0
      %1470 = vmatpush2.msra.mxu0 %v1101
      %1471 = vmatprep.subr.mxu0 0.0
      %1472 = vmatpush2.msra.mxu0 %v1100
      %1473 = vmatprep.subr.mxu0 0.0
      %1474 = vmatpush2.msra.mxu0 %v1099
      %1475 = vmatprep.subr.mxu0 0.0
      %1476 = vmatpush2.msra.mxu0 %v1098
      %1477 = vmatprep.subr.mxu0 0.0
      %1478 = vmatpush2.msra.mxu0 %v1097
      %1479 = vmatprep.subr.mxu0 0.0
      %1480 = vmatpush2.msra.mxu0 %v1096
      %1481 = vmatprep.mubr.f32.mxu0 %v763
      %1482 = vmatmul.mubr.f32.gmra.mxu0 %v762
      %v1483 = vpop.f32.mrf.mxu0
      %v1484 = vadd.f32 %v1259, %v1483
      %v1485 = vpop.f32.mrf.mxu0
      %1486 = vmatprep.mubr.f32.mxu0 %v772
      %1487 = vmatmul.mubr.f32.gmra.mxu0 %v771
      %v1488 = vpop.f32.mrf.mxu0
      %v1489 = vadd.f32 %v1264, %v1488
      %v1490 = vpop.f32.mrf.mxu0
      %1491 = vmatprep.mubr.f32.mxu0 %v781
      %1492 = vmatmul.mubr.f32.gmra.mxu0 %v780
      %v1493 = vpop.f32.mrf.mxu0
      %v1494 = vadd.f32 %v1269, %v1493
      %v1495 = vpop.f32.mrf.mxu0
      %1496 = vmatprep.mubr.f32.mxu0 %v790
      %1497 = vmatmul.mubr.f32.gmra.mxu0 %v789
      %v1498 = vpop.f32.mrf.mxu0
      %v1499 = vadd.f32 %v1274, %v1498
      %v1500 = vpop.f32.mrf.mxu0
      %1501 = vmatprep.mubr.f32.mxu0 %v799
      %1502 = vmatmul.mubr.f32.gmra.mxu0 %v798
      %v1503 = vpop.f32.mrf.mxu0
      %v1504 = vadd.f32 %v1279, %v1503
      %v1505 = vpop.f32.mrf.mxu0
      %1506 = vmatprep.mubr.f32.mxu0 %v808
      %1507 = vmatmul.mubr.f32.gmra.mxu0 %v807
      %v1508 = vpop.f32.mrf.mxu0
      %v1509 = vadd.f32 %v1284, %v1508
      %v1510 = vpop.f32.mrf.mxu0
      %1511 = vmatprep.mubr.f32.mxu0 %v817
      %1512 = vmatmul.mubr.f32.gmra.mxu0 %v816
      %v1513 = vpop.f32.mrf.mxu0
      %v1514 = vadd.f32 %v1289, %v1513
      %v1515 = vpop.f32.mrf.mxu0
      %1516 = vmatprep.mubr.f32.mxu0 %v826
      %1517 = vmatmul.mubr.f32.gmra.mxu0 %v825
      %v1518 = vpop.f32.mrf.mxu0
      %v1519 = vadd.f32 %v1294, %v1518
      %v1520 = vpop.f32.mrf.mxu0
      %1521 = vmatprep.mubr.f32.mxu0 %v835
      %1522 = vmatmul.mubr.f32.gmra.mxu0 %v834
      %v1523 = vpop.f32.mrf.mxu0
      %v1524 = vadd.f32 %v1299, %v1523
      %v1525 = vpop.f32.mrf.mxu0
      %1526 = vmatprep.mubr.f32.mxu0 %v844
      %1527 = vmatmul.mubr.f32.gmra.mxu0 %v843
      %v1528 = vpop.f32.mrf.mxu0
      %v1529 = vadd.f32 %v1304, %v1528
      %v1530 = vpop.f32.mrf.mxu0
      %1531 = vmatprep.mubr.f32.mxu0 %v853
      %1532 = vmatmul.mubr.f32.gmra.mxu0 %v852
      %v1533 = vpop.f32.mrf.mxu0
      %v1534 = vadd.f32 %v1309, %v1533
      %v1535 = vpop.f32.mrf.mxu0
      %1536 = vmatprep.mubr.f32.mxu0 %v862
      %1537 = vmatmul.mubr.f32.gmra.mxu0 %v861
      %v1538 = vpop.f32.mrf.mxu0
      %v1539 = vadd.f32 %v1314, %v1538
      %v1540 = vpop.f32.mrf.mxu0
      %1541 = vmatprep.mubr.f32.mxu0 %v871
      %1542 = vmatmul.mubr.f32.gmra.mxu0 %v870
      %v1543 = vpop.f32.mrf.mxu0
      %v1544 = vadd.f32 %v1319, %v1543
      %v1545 = vpop.f32.mrf.mxu0
      %1546 = vmatprep.mubr.f32.mxu0 %v880
      %1547 = vmatmul.mubr.f32.gmra.mxu0 %v879
      %v1548 = vpop.f32.mrf.mxu0
      %v1549 = vadd.f32 %v1324, %v1548
      %v1550 = vpop.f32.mrf.mxu0
      %1551 = vmatprep.mubr.f32.mxu0 %v889
      %1552 = vmatmul.mubr.f32.gmra.mxu0 %v888
      %v1553 = vpop.f32.mrf.mxu0
      %v1554 = vadd.f32 %v1329, %v1553
      %v1555 = vpop.f32.mrf.mxu0
      %1556 = vmatprep.mubr.f32.mxu0 %v898
      %1557 = vmatmul.mubr.f32.gmra.mxu0 %v897
      %v1558 = vpop.f32.mrf.mxu0
      %v1559 = vadd.f32 %v1334, %v1558
      %v1560 = vpop.f32.mrf.mxu0
      %1561 = vmatprep.mubr.f32.mxu0 %v907
      %1562 = vmatmul.mubr.f32.gmra.mxu0 %v906
      %v1563 = vpop.f32.mrf.mxu0
      %v1564 = vadd.f32 %v1339, %v1563
      %v1565 = vpop.f32.mrf.mxu0
      %1566 = vmatprep.mubr.f32.mxu0 %v916
      %1567 = vmatmul.mubr.f32.gmra.mxu0 %v915
      %v1568 = vpop.f32.mrf.mxu0
      %v1569 = vadd.f32 %v1344, %v1568
      %v1570 = vpop.f32.mrf.mxu0
      %1571 = vmatprep.mubr.f32.mxu0 %v925
      %1572 = vmatmul.mubr.f32.gmra.mxu0 %v924
      %v1573 = vpop.f32.mrf.mxu0
      %v1574 = vadd.f32 %v1349, %v1573
      %v1575 = vpop.f32.mrf.mxu0
      %1576 = vmatprep.mubr.f32.mxu0 %v934
      %1577 = vmatmul.mubr.f32.gmra.mxu0 %v933
      %v1578 = vpop.f32.mrf.mxu0
      %v1579 = vadd.f32 %v1354, %v1578
      %v1580 = vpop.f32.mrf.mxu0
      %1581 = vmatprep.mubr.f32.mxu0 %v943
      %1582 = vmatmul.mubr.f32.gmra.mxu0 %v942
      %v1583 = vpop.f32.mrf.mxu0
      %v1584 = vadd.f32 %v1359, %v1583
      %v1585 = vpop.f32.mrf.mxu0
      %1586 = vmatprep.mubr.f32.mxu0 %v952
      %1587 = vmatmul.mubr.f32.gmra.mxu0 %v951
      %v1588 = vpop.f32.mrf.mxu0
      %v1589 = vadd.f32 %v1364, %v1588
      %v1590 = vpop.f32.mrf.mxu0
      %1591 = vmatprep.mubr.f32.mxu0 %v961
      %1592 = vmatmul.mubr.f32.gmra.mxu0 %v960
      %v1593 = vpop.f32.mrf.mxu0
      %v1594 = vadd.f32 %v1369, %v1593
      %v1595 = vpop.f32.mrf.mxu0
      %1596 = vmatprep.mubr.f32.mxu0 %v970
      %1597 = vmatmul.mubr.f32.gmra.mxu0 %v969
      %v1598 = vpop.f32.mrf.mxu0
      %v1599 = vadd.f32 %v1374, %v1598
      %v1600 = vpop.f32.mrf.mxu0
      %1601 = vmatprep.mubr.f32.mxu0 %v979
      %1602 = vmatmul.mubr.f32.gmra.mxu0 %v978
      %v1603 = vpop.f32.mrf.mxu0
      %v1604 = vadd.f32 %v1379, %v1603
      %v1605 = vpop.f32.mrf.mxu0
      %1606 = vmatprep.mubr.f32.mxu0 %v988
      %1607 = vmatmul.mubr.f32.gmra.mxu0 %v987
      %v1608 = vpop.f32.mrf.mxu0
      %v1609 = vadd.f32 %v1384, %v1608
      %v1610 = vpop.f32.mrf.mxu0
      %1611 = vmatprep.mubr.f32.mxu0 %v997
      %1612 = vmatmul.mubr.f32.gmra.mxu0 %v996
      %v1613 = vpop.f32.mrf.mxu0
      %v1614 = vadd.f32 %v1389, %v1613
      %v1615 = vpop.f32.mrf.mxu0
      %1616 = vmatprep.mubr.f32.mxu0 %v1006
      %1617 = vmatmul.mubr.f32.gmra.mxu0 %v1005
      %v1618 = vpop.f32.mrf.mxu0
      %v1619 = vadd.f32 %v1394, %v1618
      %v1620 = vpop.f32.mrf.mxu0
      %1621 = vmatprep.mubr.f32.mxu0 %v1015
      %1622 = vmatmul.mubr.f32.gmra.mxu0 %v1014
      %v1623 = vpop.f32.mrf.mxu0
      %v1624 = vadd.f32 %v1399, %v1623
      %v1625 = vpop.f32.mrf.mxu0
      %1626 = vmatprep.mubr.f32.mxu0 %v1024
      %1627 = vmatmul.mubr.f32.gmra.mxu0 %v1023
      %v1628 = vpop.f32.mrf.mxu0
      %v1629 = vadd.f32 %v1404, %v1628
      %v1630 = vpop.f32.mrf.mxu0
      %1631 = vmatprep.mubr.f32.mxu0 %v1033
      %1632 = vmatmul.mubr.f32.gmra.mxu0 %v1032
      %v1633 = vpop.f32.mrf.mxu0
      %v1634 = vadd.f32 %v1409, %v1633
      %v1635 = vpop.f32.mrf.mxu0
      %1636 = vmatprep.mubr.f32.mxu0 %v1042
      %1637 = vmatmul.mubr.f32.gmra.mxu0 %v1041
      %v1638 = vpop.f32.mrf.mxu0
      %v1639 = vadd.f32 %v1414, %v1638
      %v1640 = vpop.f32.mrf.mxu0
      %1641 = vdwg.mxu0
      %1642 = vmatprep.subr.mxu0 0.0
      %1643 = vmatpush1.msra.mxu0 %v1127
      %1644 = vmatprep.subr.mxu0 0.0
      %1645 = vmatpush1.msra.mxu0 %v1126
      %1646 = vmatprep.subr.mxu0 0.0
      %1647 = vmatpush1.msra.mxu0 %v1125
      %1648 = vmatprep.subr.mxu0 0.0
      %1649 = vmatpush1.msra.mxu0 %v1124
      %1650 = vmatprep.subr.mxu0 0.0
      %1651 = vmatpush1.msra.mxu0 %v1123
      %1652 = vmatprep.subr.mxu0 0.0
      %1653 = vmatpush1.msra.mxu0 %v1122
      %1654 = vmatprep.subr.mxu0 0.0
      %1655 = vmatpush1.msra.mxu0 %v1121
      %1656 = vmatprep.subr.mxu0 0.0
      %1657 = vmatpush1.msra.mxu0 %v1120
      %1658 = vmatprep.subr.mxu0 0.0
      %1659 = vmatpush1.msra.mxu0 %v1119
      %1660 = vmatprep.subr.mxu0 0.0
      %1661 = vmatpush1.msra.mxu0 %v1118
      %1662 = vmatprep.subr.mxu0 0.0
      %1663 = vmatpush1.msra.mxu0 %v1117
      %1664 = vmatprep.subr.mxu0 0.0
      %1665 = vmatpush1.msra.mxu0 %v1116
      %1666 = vmatprep.subr.mxu0 0.0
      %1667 = vmatpush1.msra.mxu0 %v1115
      %1668 = vmatprep.subr.mxu0 0.0
      %1669 = vmatpush1.msra.mxu0 %v1114
      %1670 = vmatprep.subr.mxu0 0.0
      %1671 = vmatpush1.msra.mxu0 %v1113
      %1672 = vmatprep.subr.mxu0 0.0
      %1673 = vmatpush1.msra.mxu0 %v1112
      %1674 = vmatprep.subr.mxu0 0.0
      %1675 = vmatpush2.msra.mxu0 %v1143
      %1676 = vmatprep.subr.mxu0 0.0
      %1677 = vmatpush2.msra.mxu0 %v1142
      %1678 = vmatprep.subr.mxu0 0.0
      %1679 = vmatpush2.msra.mxu0 %v1141
      %1680 = vmatprep.subr.mxu0 0.0
      %1681 = vmatpush2.msra.mxu0 %v1140
      %1682 = vmatprep.subr.mxu0 0.0
      %1683 = vmatpush2.msra.mxu0 %v1139
      %1684 = vmatprep.subr.mxu0 0.0
      %1685 = vmatpush2.msra.mxu0 %v1138
      %1686 = vmatprep.subr.mxu0 0.0
      %1687 = vmatpush2.msra.mxu0 %v1137
      %1688 = vmatprep.subr.mxu0 0.0
      %1689 = vmatpush2.msra.mxu0 %v1136
      %1690 = vmatprep.subr.mxu0 0.0
      %1691 = vmatpush2.msra.mxu0 %v1135
      %1692 = vmatprep.subr.mxu0 0.0
      %1693 = vmatpush2.msra.mxu0 %v1134
      %1694 = vmatprep.subr.mxu0 0.0
      %1695 = vmatpush2.msra.mxu0 %v1133
      %1696 = vmatprep.subr.mxu0 0.0
      %1697 = vmatpush2.msra.mxu0 %v1132
      %1698 = vmatprep.subr.mxu0 0.0
      %1699 = vmatpush2.msra.mxu0 %v1131
      %1700 = vmatprep.subr.mxu0 0.0
      %1701 = vmatpush2.msra.mxu0 %v1130
      %1702 = vmatprep.subr.mxu0 0.0
      %1703 = vmatpush2.msra.mxu0 %v1129
      %1704 = vmatprep.subr.mxu0 0.0
      %1705 = vmatpush2.msra.mxu0 %v1128
      %1706 = vmatprep.mubr.f32.mxu0 %v765
      %1707 = vmatmul.mubr.f32.gmra.mxu0 %v764
      %v1708 = vpop.f32.mrf.mxu0
      %v1709 = vadd.f32 %v1484, %v1708
      %v1710 = vpop.f32.mrf.mxu0
      %1711 = vmatprep.mubr.f32.mxu0 %v774
      %1712 = vmatmul.mubr.f32.gmra.mxu0 %v773
      %v1713 = vpop.f32.mrf.mxu0
      %v1714 = vadd.f32 %v1489, %v1713
      %v1715 = vpop.f32.mrf.mxu0
      %1716 = vmatprep.mubr.f32.mxu0 %v783
      %1717 = vmatmul.mubr.f32.gmra.mxu0 %v782
      %v1718 = vpop.f32.mrf.mxu0
      %v1719 = vadd.f32 %v1494, %v1718
      %v1720 = vpop.f32.mrf.mxu0
      %1721 = vmatprep.mubr.f32.mxu0 %v792
      %1722 = vmatmul.mubr.f32.gmra.mxu0 %v791
      %v1723 = vpop.f32.mrf.mxu0
      %v1724 = vadd.f32 %v1499, %v1723
      %v1725 = vpop.f32.mrf.mxu0
      %1726 = vmatprep.mubr.f32.mxu0 %v801
      %1727 = vmatmul.mubr.f32.gmra.mxu0 %v800
      %v1728 = vpop.f32.mrf.mxu0
      %v1729 = vadd.f32 %v1504, %v1728
      %v1730 = vpop.f32.mrf.mxu0
      %1731 = vmatprep.mubr.f32.mxu0 %v810
      %1732 = vmatmul.mubr.f32.gmra.mxu0 %v809
      %v1733 = vpop.f32.mrf.mxu0
      %v1734 = vadd.f32 %v1509, %v1733
      %v1735 = vpop.f32.mrf.mxu0
      %1736 = vmatprep.mubr.f32.mxu0 %v819
      %1737 = vmatmul.mubr.f32.gmra.mxu0 %v818
      %v1738 = vpop.f32.mrf.mxu0
      %v1739 = vadd.f32 %v1514, %v1738
      %v1740 = vpop.f32.mrf.mxu0
      %1741 = vmatprep.mubr.f32.mxu0 %v828
      %1742 = vmatmul.mubr.f32.gmra.mxu0 %v827
      %v1743 = vpop.f32.mrf.mxu0
      %v1744 = vadd.f32 %v1519, %v1743
      %v1745 = vpop.f32.mrf.mxu0
      %1746 = vmatprep.mubr.f32.mxu0 %v837
      %1747 = vmatmul.mubr.f32.gmra.mxu0 %v836
      %v1748 = vpop.f32.mrf.mxu0
      %v1749 = vadd.f32 %v1524, %v1748
      %v1750 = vpop.f32.mrf.mxu0
      %1751 = vmatprep.mubr.f32.mxu0 %v846
      %1752 = vmatmul.mubr.f32.gmra.mxu0 %v845
      %v1753 = vpop.f32.mrf.mxu0
      %v1754 = vadd.f32 %v1529, %v1753
      %v1755 = vpop.f32.mrf.mxu0
      %1756 = vmatprep.mubr.f32.mxu0 %v855
      %1757 = vmatmul.mubr.f32.gmra.mxu0 %v854
      %v1758 = vpop.f32.mrf.mxu0
      %v1759 = vadd.f32 %v1534, %v1758
      %v1760 = vpop.f32.mrf.mxu0
      %1761 = vmatprep.mubr.f32.mxu0 %v864
      %1762 = vmatmul.mubr.f32.gmra.mxu0 %v863
      %v1763 = vpop.f32.mrf.mxu0
      %v1764 = vadd.f32 %v1539, %v1763
      %v1765 = vpop.f32.mrf.mxu0
      %1766 = vmatprep.mubr.f32.mxu0 %v873
      %1767 = vmatmul.mubr.f32.gmra.mxu0 %v872
      %v1768 = vpop.f32.mrf.mxu0
      %v1769 = vadd.f32 %v1544, %v1768
      %v1770 = vpop.f32.mrf.mxu0
      %1771 = vmatprep.mubr.f32.mxu0 %v882
      %1772 = vmatmul.mubr.f32.gmra.mxu0 %v881
      %v1773 = vpop.f32.mrf.mxu0
      %v1774 = vadd.f32 %v1549, %v1773
      %v1775 = vpop.f32.mrf.mxu0
      %1776 = vmatprep.mubr.f32.mxu0 %v891
      %1777 = vmatmul.mubr.f32.gmra.mxu0 %v890
      %v1778 = vpop.f32.mrf.mxu0
      %v1779 = vadd.f32 %v1554, %v1778
      %v1780 = vpop.f32.mrf.mxu0
      %1781 = vmatprep.mubr.f32.mxu0 %v900
      %1782 = vmatmul.mubr.f32.gmra.mxu0 %v899
      %v1783 = vpop.f32.mrf.mxu0
      %v1784 = vadd.f32 %v1559, %v1783
      %v1785 = vpop.f32.mrf.mxu0
      %1786 = vmatprep.mubr.f32.mxu0 %v909
      %1787 = vmatmul.mubr.f32.gmra.mxu0 %v908
      %v1788 = vpop.f32.mrf.mxu0
      %v1789 = vadd.f32 %v1564, %v1788
      %v1790 = vpop.f32.mrf.mxu0
      %1791 = vmatprep.mubr.f32.mxu0 %v918
      %1792 = vmatmul.mubr.f32.gmra.mxu0 %v917
      %v1793 = vpop.f32.mrf.mxu0
      %v1794 = vadd.f32 %v1569, %v1793
      %v1795 = vpop.f32.mrf.mxu0
      %1796 = vmatprep.mubr.f32.mxu0 %v927
      %1797 = vmatmul.mubr.f32.gmra.mxu0 %v926
      %v1798 = vpop.f32.mrf.mxu0
      %v1799 = vadd.f32 %v1574, %v1798
      %v1800 = vpop.f32.mrf.mxu0
      %1801 = vmatprep.mubr.f32.mxu0 %v936
      %1802 = vmatmul.mubr.f32.gmra.mxu0 %v935
      %v1803 = vpop.f32.mrf.mxu0
      %v1804 = vadd.f32 %v1579, %v1803
      %v1805 = vpop.f32.mrf.mxu0
      %1806 = vmatprep.mubr.f32.mxu0 %v945
      %1807 = vmatmul.mubr.f32.gmra.mxu0 %v944
      %v1808 = vpop.f32.mrf.mxu0
      %v1809 = vadd.f32 %v1584, %v1808
      %v1810 = vpop.f32.mrf.mxu0
      %1811 = vmatprep.mubr.f32.mxu0 %v954
      %1812 = vmatmul.mubr.f32.gmra.mxu0 %v953
      %v1813 = vpop.f32.mrf.mxu0
      %v1814 = vadd.f32 %v1589, %v1813
      %v1815 = vpop.f32.mrf.mxu0
      %1816 = vmatprep.mubr.f32.mxu0 %v963
      %1817 = vmatmul.mubr.f32.gmra.mxu0 %v962
      %v1818 = vpop.f32.mrf.mxu0
      %v1819 = vadd.f32 %v1594, %v1818
      %v1820 = vpop.f32.mrf.mxu0
      %1821 = vmatprep.mubr.f32.mxu0 %v972
      %1822 = vmatmul.mubr.f32.gmra.mxu0 %v971
      %v1823 = vpop.f32.mrf.mxu0
      %v1824 = vadd.f32 %v1599, %v1823
      %v1825 = vpop.f32.mrf.mxu0
      %1826 = vmatprep.mubr.f32.mxu0 %v981
      %1827 = vmatmul.mubr.f32.gmra.mxu0 %v980
      %v1828 = vpop.f32.mrf.mxu0
      %v1829 = vadd.f32 %v1604, %v1828
      %v1830 = vpop.f32.mrf.mxu0
      %1831 = vmatprep.mubr.f32.mxu0 %v990
      %1832 = vmatmul.mubr.f32.gmra.mxu0 %v989
      %v1833 = vpop.f32.mrf.mxu0
      %v1834 = vadd.f32 %v1609, %v1833
      %v1835 = vpop.f32.mrf.mxu0
      %1836 = vmatprep.mubr.f32.mxu0 %v999
      %1837 = vmatmul.mubr.f32.gmra.mxu0 %v998
      %v1838 = vpop.f32.mrf.mxu0
      %v1839 = vadd.f32 %v1614, %v1838
      %v1840 = vpop.f32.mrf.mxu0
      %1841 = vmatprep.mubr.f32.mxu0 %v1008
      %1842 = vmatmul.mubr.f32.gmra.mxu0 %v1007
      %v1843 = vpop.f32.mrf.mxu0
      %v1844 = vadd.f32 %v1619, %v1843
      %v1845 = vpop.f32.mrf.mxu0
      %1846 = vmatprep.mubr.f32.mxu0 %v1017
      %1847 = vmatmul.mubr.f32.gmra.mxu0 %v1016
      %v1848 = vpop.f32.mrf.mxu0
      %v1849 = vadd.f32 %v1624, %v1848
      %v1850 = vpop.f32.mrf.mxu0
      %1851 = vmatprep.mubr.f32.mxu0 %v1026
      %1852 = vmatmul.mubr.f32.gmra.mxu0 %v1025
      %v1853 = vpop.f32.mrf.mxu0
      %v1854 = vadd.f32 %v1629, %v1853
      %v1855 = vpop.f32.mrf.mxu0
      %1856 = vmatprep.mubr.f32.mxu0 %v1035
      %1857 = vmatmul.mubr.f32.gmra.mxu0 %v1034
      %v1858 = vpop.f32.mrf.mxu0
      %v1859 = vadd.f32 %v1634, %v1858
      %v1860 = vpop.f32.mrf.mxu0
      %1861 = vmatprep.mubr.f32.mxu0 %v1044
      %1862 = vmatmul.mubr.f32.gmra.mxu0 %v1043
      %v1863 = vpop.f32.mrf.mxu0
      %v1864 = vadd.f32 %v1639, %v1863
      %v1865 = vpop.f32.mrf.mxu0
      %1866 = vdwg.mxu0
      %1867 = vmatprep.subr.mxu0 0.0
      %1868 = vmatpush1.msra.mxu0 %v1159
      %1869 = vmatprep.subr.mxu0 0.0
      %1870 = vmatpush1.msra.mxu0 %v1158
      %1871 = vmatprep.subr.mxu0 0.0
      %1872 = vmatpush1.msra.mxu0 %v1157
      %1873 = vmatprep.subr.mxu0 0.0
      %1874 = vmatpush1.msra.mxu0 %v1156
      %1875 = vmatprep.subr.mxu0 0.0
      %1876 = vmatpush1.msra.mxu0 %v1155
      %1877 = vmatprep.subr.mxu0 0.0
      %1878 = vmatpush1.msra.mxu0 %v1154
      %1879 = vmatprep.subr.mxu0 0.0
      %1880 = vmatpush1.msra.mxu0 %v1153
      %1881 = vmatprep.subr.mxu0 0.0
      %1882 = vmatpush1.msra.mxu0 %v1152
      %1883 = vmatprep.subr.mxu0 0.0
      %1884 = vmatpush1.msra.mxu0 %v1151
      %1885 = vmatprep.subr.mxu0 0.0
      %1886 = vmatpush1.msra.mxu0 %v1150
      %1887 = vmatprep.subr.mxu0 0.0
      %1888 = vmatpush1.msra.mxu0 %v1149
      %1889 = vmatprep.subr.mxu0 0.0
      %1890 = vmatpush1.msra.mxu0 %v1148
      %1891 = vmatprep.subr.mxu0 0.0
      %1892 = vmatpush1.msra.mxu0 %v1147
      %1893 = vmatprep.subr.mxu0 0.0
      %1894 = vmatpush1.msra.mxu0 %v1146
      %1895 = vmatprep.subr.mxu0 0.0
      %1896 = vmatpush1.msra.mxu0 %v1145
      %1897 = vmatprep.subr.mxu0 0.0
      %1898 = vmatpush1.msra.mxu0 %v1144
      %1899 = vmatprep.subr.mxu0 0.0
      %1900 = vmatpush2.msra.mxu0 %v1175
      %1901 = vmatprep.subr.mxu0 0.0
      %1902 = vmatpush2.msra.mxu0 %v1174
      %1903 = vmatprep.subr.mxu0 0.0
      %1904 = vmatpush2.msra.mxu0 %v1173
      %1905 = vmatprep.subr.mxu0 0.0
      %1906 = vmatpush2.msra.mxu0 %v1172
      %1907 = vmatprep.subr.mxu0 0.0
      %1908 = vmatpush2.msra.mxu0 %v1171
      %1909 = vmatprep.subr.mxu0 0.0
      %1910 = vmatpush2.msra.mxu0 %v1170
      %1911 = vmatprep.subr.mxu0 0.0
      %1912 = vmatpush2.msra.mxu0 %v1169
      %1913 = vmatprep.subr.mxu0 0.0
      %1914 = vmatpush2.msra.mxu0 %v1168
      %1915 = vmatprep.subr.mxu0 0.0
      %1916 = vmatpush2.msra.mxu0 %v1167
      %1917 = vmatprep.subr.mxu0 0.0
      %1918 = vmatpush2.msra.mxu0 %v1166
      %1919 = vmatprep.subr.mxu0 0.0
      %1920 = vmatpush2.msra.mxu0 %v1165
      %1921 = vmatprep.subr.mxu0 0.0
      %1922 = vmatpush2.msra.mxu0 %v1164
      %1923 = vmatprep.subr.mxu0 0.0
      %1924 = vmatpush2.msra.mxu0 %v1163
      %1925 = vmatprep.subr.mxu0 0.0
      %1926 = vmatpush2.msra.mxu0 %v1162
      %1927 = vmatprep.subr.mxu0 0.0
      %1928 = vmatpush2.msra.mxu0 %v1161
      %1929 = vmatprep.subr.mxu0 0.0
      %1930 = vmatpush2.msra.mxu0 %v1160
      %1931 = vmatprep.mubr.f32.mxu0 %v767
      %1932 = vmatmul.mubr.f32.gmra.mxu0 %v766
      %v1933 = vpop.f32.mrf.mxu0
      %v1934 = vadd.f32 %v1709, %v1933
      %v1935 = vpop.f32.mrf.mxu0
      %1936 = vmatprep.mubr.f32.mxu0 %v776
      %1937 = vmatmul.mubr.f32.gmra.mxu0 %v775
      %v1938 = vpop.f32.mrf.mxu0
      %v1939 = vadd.f32 %v1714, %v1938
      %v1940 = vpop.f32.mrf.mxu0
      %1941 = vmatprep.mubr.f32.mxu0 %v785
      %1942 = vmatmul.mubr.f32.gmra.mxu0 %v784
      %v1943 = vpop.f32.mrf.mxu0
      %v1944 = vadd.f32 %v1719, %v1943
      %v1945 = vpop.f32.mrf.mxu0
      %1946 = vmatprep.mubr.f32.mxu0 %v794
      %1947 = vmatmul.mubr.f32.gmra.mxu0 %v793
      %v1948 = vpop.f32.mrf.mxu0
      %v1949 = vadd.f32 %v1724, %v1948
      %v1950 = vpop.f32.mrf.mxu0
      %1951 = vmatprep.mubr.f32.mxu0 %v803
      %1952 = vmatmul.mubr.f32.gmra.mxu0 %v802
      %v1953 = vpop.f32.mrf.mxu0
      %v1954 = vadd.f32 %v1729, %v1953
      %v1955 = vpop.f32.mrf.mxu0
      %1956 = vmatprep.mubr.f32.mxu0 %v812
      %1957 = vmatmul.mubr.f32.gmra.mxu0 %v811
      %v1958 = vpop.f32.mrf.mxu0
      %v1959 = vadd.f32 %v1734, %v1958
      %v1960 = vpop.f32.mrf.mxu0
      %1961 = vmatprep.mubr.f32.mxu0 %v821
      %1962 = vmatmul.mubr.f32.gmra.mxu0 %v820
      %v1963 = vpop.f32.mrf.mxu0
      %v1964 = vadd.f32 %v1739, %v1963
      %v1965 = vpop.f32.mrf.mxu0
      %1966 = vmatprep.mubr.f32.mxu0 %v830
      %1967 = vmatmul.mubr.f32.gmra.mxu0 %v829
      %v1968 = vpop.f32.mrf.mxu0
      %v1969 = vadd.f32 %v1744, %v1968
      %v1970 = vpop.f32.mrf.mxu0
      %1971 = vmatprep.mubr.f32.mxu0 %v839
      %1972 = vmatmul.mubr.f32.gmra.mxu0 %v838
      %v1973 = vpop.f32.mrf.mxu0
      %v1974 = vadd.f32 %v1749, %v1973
      %v1975 = vpop.f32.mrf.mxu0
      %1976 = vmatprep.mubr.f32.mxu0 %v848
      %1977 = vmatmul.mubr.f32.gmra.mxu0 %v847
      %v1978 = vpop.f32.mrf.mxu0
      %v1979 = vadd.f32 %v1754, %v1978
      %v1980 = vpop.f32.mrf.mxu0
      %1981 = vmatprep.mubr.f32.mxu0 %v857
      %1982 = vmatmul.mubr.f32.gmra.mxu0 %v856
      %v1983 = vpop.f32.mrf.mxu0
      %v1984 = vadd.f32 %v1759, %v1983
      %v1985 = vpop.f32.mrf.mxu0
      %1986 = vmatprep.mubr.f32.mxu0 %v866
      %1987 = vmatmul.mubr.f32.gmra.mxu0 %v865
      %v1988 = vpop.f32.mrf.mxu0
      %v1989 = vadd.f32 %v1764, %v1988
      %v1990 = vpop.f32.mrf.mxu0
      %1991 = vmatprep.mubr.f32.mxu0 %v875
      %1992 = vmatmul.mubr.f32.gmra.mxu0 %v874
      %v1993 = vpop.f32.mrf.mxu0
      %v1994 = vadd.f32 %v1769, %v1993
      %v1995 = vpop.f32.mrf.mxu0
      %1996 = vmatprep.mubr.f32.mxu0 %v884
      %1997 = vmatmul.mubr.f32.gmra.mxu0 %v883
      %v1998 = vpop.f32.mrf.mxu0
      %v1999 = vadd.f32 %v1774, %v1998
      %v2000 = vpop.f32.mrf.mxu0
      %2001 = vmatprep.mubr.f32.mxu0 %v893
      %2002 = vmatmul.mubr.f32.gmra.mxu0 %v892
      %v2003 = vpop.f32.mrf.mxu0
      %v2004 = vadd.f32 %v1779, %v2003
      %v2005 = vpop.f32.mrf.mxu0
      %2006 = vmatprep.mubr.f32.mxu0 %v902
      %2007 = vmatmul.mubr.f32.gmra.mxu0 %v901
      %v2008 = vpop.f32.mrf.mxu0
      %v2009 = vadd.f32 %v1784, %v2008
      %v2010 = vpop.f32.mrf.mxu0
      %2011 = vmatprep.mubr.f32.mxu0 %v911
      %2012 = vmatmul.mubr.f32.gmra.mxu0 %v910
      %v2013 = vpop.f32.mrf.mxu0
      %v2014 = vadd.f32 %v1789, %v2013
      %v2015 = vpop.f32.mrf.mxu0
      %2016 = vmatprep.mubr.f32.mxu0 %v920
      %2017 = vmatmul.mubr.f32.gmra.mxu0 %v919
      %v2018 = vpop.f32.mrf.mxu0
      %v2019 = vadd.f32 %v1794, %v2018
      %v2020 = vpop.f32.mrf.mxu0
      %2021 = vmatprep.mubr.f32.mxu0 %v929
      %2022 = vmatmul.mubr.f32.gmra.mxu0 %v928
      %v2023 = vpop.f32.mrf.mxu0
      %v2024 = vadd.f32 %v1799, %v2023
      %v2025 = vpop.f32.mrf.mxu0
      %2026 = vmatprep.mubr.f32.mxu0 %v938
      %2027 = vmatmul.mubr.f32.gmra.mxu0 %v937
      %v2028 = vpop.f32.mrf.mxu0
      %v2029 = vadd.f32 %v1804, %v2028
      %v2030 = vpop.f32.mrf.mxu0
      %2031 = vmatprep.mubr.f32.mxu0 %v947
      %2032 = vmatmul.mubr.f32.gmra.mxu0 %v946
      %v2033 = vpop.f32.mrf.mxu0
      %v2034 = vadd.f32 %v1809, %v2033
      %v2035 = vpop.f32.mrf.mxu0
      %2036 = vmatprep.mubr.f32.mxu0 %v956
      %2037 = vmatmul.mubr.f32.gmra.mxu0 %v955
      %v2038 = vpop.f32.mrf.mxu0
      %v2039 = vadd.f32 %v1814, %v2038
      %v2040 = vpop.f32.mrf.mxu0
      %2041 = vmatprep.mubr.f32.mxu0 %v965
      %2042 = vmatmul.mubr.f32.gmra.mxu0 %v964
      %v2043 = vpop.f32.mrf.mxu0
      %v2044 = vadd.f32 %v1819, %v2043
      %v2045 = vpop.f32.mrf.mxu0
      %2046 = vmatprep.mubr.f32.mxu0 %v974
      %2047 = vmatmul.mubr.f32.gmra.mxu0 %v973
      %v2048 = vpop.f32.mrf.mxu0
      %v2049 = vadd.f32 %v1824, %v2048
      %v2050 = vpop.f32.mrf.mxu0
      %2051 = vmatprep.mubr.f32.mxu0 %v983
      %2052 = vmatmul.mubr.f32.gmra.mxu0 %v982
      %v2053 = vpop.f32.mrf.mxu0
      %v2054 = vadd.f32 %v1829, %v2053
      %v2055 = vpop.f32.mrf.mxu0
      %2056 = vmatprep.mubr.f32.mxu0 %v992
      %2057 = vmatmul.mubr.f32.gmra.mxu0 %v991
      %v2058 = vpop.f32.mrf.mxu0
      %v2059 = vadd.f32 %v1834, %v2058
      %v2060 = vpop.f32.mrf.mxu0
      %2061 = vmatprep.mubr.f32.mxu0 %v1001
      %2062 = vmatmul.mubr.f32.gmra.mxu0 %v1000
      %v2063 = vpop.f32.mrf.mxu0
      %v2064 = vadd.f32 %v1839, %v2063
      %v2065 = vpop.f32.mrf.mxu0
      %2066 = vmatprep.mubr.f32.mxu0 %v1010
      %2067 = vmatmul.mubr.f32.gmra.mxu0 %v1009
      %v2068 = vpop.f32.mrf.mxu0
      %v2069 = vadd.f32 %v1844, %v2068
      %v2070 = vpop.f32.mrf.mxu0
      %2071 = vmatprep.mubr.f32.mxu0 %v1019
      %2072 = vmatmul.mubr.f32.gmra.mxu0 %v1018
      %v2073 = vpop.f32.mrf.mxu0
      %v2074 = vadd.f32 %v1849, %v2073
      %v2075 = vpop.f32.mrf.mxu0
      %2076 = vmatprep.mubr.f32.mxu0 %v1028
      %2077 = vmatmul.mubr.f32.gmra.mxu0 %v1027
      %v2078 = vpop.f32.mrf.mxu0
      %v2079 = vadd.f32 %v1854, %v2078
      %v2080 = vpop.f32.mrf.mxu0
      %2081 = vmatprep.mubr.f32.mxu0 %v1037
      %2082 = vmatmul.mubr.f32.gmra.mxu0 %v1036
      %v2083 = vpop.f32.mrf.mxu0
      %v2084 = vadd.f32 %v1859, %v2083
      %v2085 = vpop.f32.mrf.mxu0
      %2086 = vmatprep.mubr.f32.mxu0 %v1046
      %2087 = vmatmul.mubr.f32.gmra.mxu0 %v1045
      %v2088 = vpop.f32.mrf.mxu0
      %v2089 = vadd.f32 %v1864, %v2088
      %v2090 = vpop.f32.mrf.mxu0
      %2091 = vdwg.mxu0
      %2092 = vmatprep.subr.mxu0 0.0
      %2093 = vmatpush1.msra.mxu0 %v1191
      %2094 = vmatprep.subr.mxu0 0.0
      %2095 = vmatpush1.msra.mxu0 %v1190
      %2096 = vmatprep.subr.mxu0 0.0
      %2097 = vmatpush1.msra.mxu0 %v1189
      %2098 = vmatprep.subr.mxu0 0.0
      %2099 = vmatpush1.msra.mxu0 %v1188
      %2100 = vmatprep.subr.mxu0 0.0
      %2101 = vmatpush1.msra.mxu0 %v1187
      %2102 = vmatprep.subr.mxu0 0.0
      %2103 = vmatpush1.msra.mxu0 %v1186
      %2104 = vmatprep.subr.mxu0 0.0
      %2105 = vmatpush1.msra.mxu0 %v1185
      %2106 = vmatprep.subr.mxu0 0.0
      %2107 = vmatpush1.msra.mxu0 %v1184
      %2108 = vmatprep.subr.mxu0 0.0
      %2109 = vmatpush1.msra.mxu0 %v1183
      %2110 = vmatprep.subr.mxu0 0.0
      %2111 = vmatpush1.msra.mxu0 %v1182
      %2112 = vmatprep.subr.mxu0 0.0
      %2113 = vmatpush1.msra.mxu0 %v1181
      %2114 = vmatprep.subr.mxu0 0.0
      %2115 = vmatpush1.msra.mxu0 %v1180
      %2116 = vmatprep.subr.mxu0 0.0
      %2117 = vmatpush1.msra.mxu0 %v1179
      %2118 = vmatprep.subr.mxu0 0.0
      %2119 = vmatpush1.msra.mxu0 %v1178
      %2120 = vmatprep.subr.mxu0 0.0
      %2121 = vmatpush1.msra.mxu0 %v1177
      %2122 = vmatprep.subr.mxu0 0.0
      %2123 = vmatpush1.msra.mxu0 %v1176
      %2124 = vmatprep.subr.mxu0 0.0
      %2125 = vmatpush2.msra.mxu0 0.0
      %2126 = vmatprep.subr.mxu0 0.0
      %2127 = vmatpush2.msra.mxu0 0.0
      %2128 = vmatprep.subr.mxu0 0.0
      %2129 = vmatpush2.msra.mxu0 0.0
      %2130 = vmatprep.subr.mxu0 0.0
      %2131 = vmatpush2.msra.mxu0 0.0
      %2132 = vmatprep.subr.mxu0 0.0
      %2133 = vmatpush2.msra.mxu0 0.0
      %2134 = vmatprep.subr.mxu0 0.0
      %2135 = vmatpush2.msra.mxu0 0.0
      %2136 = vmatprep.subr.mxu0 0.0
      %2137 = vmatpush2.msra.mxu0 0.0
      %2138 = vmatprep.subr.mxu0 0.0
      %2139 = vmatpush2.msra.mxu0 0.0
      %2140 = vmatprep.subr.mxu0 0.0
      %2141 = vmatpush2.msra.mxu0 0.0
      %2142 = vmatprep.subr.mxu0 0.0
      %2143 = vmatpush2.msra.mxu0 0.0
      %2144 = vmatprep.subr.mxu0 0.0
      %2145 = vmatpush2.msra.mxu0 0.0
      %2146 = vmatprep.subr.mxu0 0.0
      %2147 = vmatpush2.msra.mxu0 0.0
      %2148 = vmatprep.subr.mxu0 0.0
      %2149 = vmatpush2.msra.mxu0 0.0
      %2150 = vmatprep.subr.mxu0 0.0
      %2151 = vmatpush2.msra.mxu0 0.0
      %2152 = vmatprep.subr.mxu0 0.0
      %2153 = vmatpush2.msra.mxu0 0.0
      %2154 = vmatprep.subr.mxu0 0.0
      %2155 = vmatpush2.msra.mxu0 0.0
      %2156 = vmatprep.mubr.f32.mxu0 0.0
      %2157 = vmatmul.mubr.f32.gmra.mxu0 %v768
      %v2158 = vpop.f32.mrf.mxu0
      %v2159 = vadd.f32 %v1934, %v2158
      %v2160 = vpop.f32.mrf.mxu0
      %2161 = vmatprep.mubr.f32.mxu0 0.0
      %2162 = vmatmul.mubr.f32.gmra.mxu0 %v777
      %v2163 = vpop.f32.mrf.mxu0
      %v2164 = vadd.f32 %v1939, %v2163
      %v2165 = vpop.f32.mrf.mxu0
      %2166 = vmatprep.mubr.f32.mxu0 0.0
      %2167 = vmatmul.mubr.f32.gmra.mxu0 %v786
      %v2168 = vpop.f32.mrf.mxu0
      %v2169 = vadd.f32 %v1944, %v2168
      %v2170 = vpop.f32.mrf.mxu0
      %2171 = vmatprep.mubr.f32.mxu0 0.0
      %2172 = vmatmul.mubr.f32.gmra.mxu0 %v795
      %v2173 = vpop.f32.mrf.mxu0
      %v2174 = vadd.f32 %v1949, %v2173
      %v2175 = vpop.f32.mrf.mxu0
      %2176 = vmatprep.mubr.f32.mxu0 0.0
      %2177 = vmatmul.mubr.f32.gmra.mxu0 %v804
      %v2178 = vpop.f32.mrf.mxu0
      %v2179 = vadd.f32 %v1954, %v2178
      %v2180 = vpop.f32.mrf.mxu0
      %2181 = vmatprep.mubr.f32.mxu0 0.0
      %2182 = vmatmul.mubr.f32.gmra.mxu0 %v813
      %v2183 = vpop.f32.mrf.mxu0
      %v2184 = vadd.f32 %v1959, %v2183
      %v2185 = vpop.f32.mrf.mxu0
      %2186 = vmatprep.mubr.f32.mxu0 0.0
      %2187 = vmatmul.mubr.f32.gmra.mxu0 %v822
      %v2188 = vpop.f32.mrf.mxu0
      %v2189 = vadd.f32 %v1964, %v2188
      %v2190 = vpop.f32.mrf.mxu0
      %2191 = vmatprep.mubr.f32.mxu0 0.0
      %2192 = vmatmul.mubr.f32.gmra.mxu0 %v831
      %v2193 = vpop.f32.mrf.mxu0
      %v2194 = vadd.f32 %v1969, %v2193
      %v2195 = vpop.f32.mrf.mxu0
      %2196 = vmatprep.mubr.f32.mxu0 0.0
      %2197 = vmatmul.mubr.f32.gmra.mxu0 %v840
      %v2198 = vpop.f32.mrf.mxu0
      %v2199 = vadd.f32 %v1974, %v2198
      %v2200 = vpop.f32.mrf.mxu0
      %2201 = vmatprep.mubr.f32.mxu0 0.0
      %2202 = vmatmul.mubr.f32.gmra.mxu0 %v849
      %v2203 = vpop.f32.mrf.mxu0
      %v2204 = vadd.f32 %v1979, %v2203
      %v2205 = vpop.f32.mrf.mxu0
      %2206 = vmatprep.mubr.f32.mxu0 0.0
      %2207 = vmatmul.mubr.f32.gmra.mxu0 %v858
      %v2208 = vpop.f32.mrf.mxu0
      %v2209 = vadd.f32 %v1984, %v2208
      %v2210 = vpop.f32.mrf.mxu0
      %2211 = vmatprep.mubr.f32.mxu0 0.0
      %2212 = vmatmul.mubr.f32.gmra.mxu0 %v867
      %v2213 = vpop.f32.mrf.mxu0
      %v2214 = vadd.f32 %v1989, %v2213
      %v2215 = vpop.f32.mrf.mxu0
      %2216 = vmatprep.mubr.f32.mxu0 0.0
      %2217 = vmatmul.mubr.f32.gmra.mxu0 %v876
      %v2218 = vpop.f32.mrf.mxu0
      %v2219 = vadd.f32 %v1994, %v2218
      %v2220 = vpop.f32.mrf.mxu0
      %2221 = vmatprep.mubr.f32.mxu0 0.0
      %2222 = vmatmul.mubr.f32.gmra.mxu0 %v885
      %v2223 = vpop.f32.mrf.mxu0
      %v2224 = vadd.f32 %v1999, %v2223
      %v2225 = vpop.f32.mrf.mxu0
      %2226 = vmatprep.mubr.f32.mxu0 0.0
      %2227 = vmatmul.mubr.f32.gmra.mxu0 %v894
      %v2228 = vpop.f32.mrf.mxu0
      %v2229 = vadd.f32 %v2004, %v2228
      %v2230 = vpop.f32.mrf.mxu0
      %2231 = vmatprep.mubr.f32.mxu0 0.0
      %2232 = vmatmul.mubr.f32.gmra.mxu0 %v903
      %v2233 = vpop.f32.mrf.mxu0
      %v2234 = vadd.f32 %v2009, %v2233
      %v2235 = vpop.f32.mrf.mxu0
      %2236 = vmatprep.mubr.f32.mxu0 0.0
      %2237 = vmatmul.mubr.f32.gmra.mxu0 %v912
      %v2238 = vpop.f32.mrf.mxu0
      %v2239 = vadd.f32 %v2014, %v2238
      %v2240 = vpop.f32.mrf.mxu0
      %2241 = vmatprep.mubr.f32.mxu0 0.0
      %2242 = vmatmul.mubr.f32.gmra.mxu0 %v921
      %v2243 = vpop.f32.mrf.mxu0
      %v2244 = vadd.f32 %v2019, %v2243
      %v2245 = vpop.f32.mrf.mxu0
      %2246 = vmatprep.mubr.f32.mxu0 0.0
      %2247 = vmatmul.mubr.f32.gmra.mxu0 %v930
      %v2248 = vpop.f32.mrf.mxu0
      %v2249 = vadd.f32 %v2024, %v2248
      %v2250 = vpop.f32.mrf.mxu0
      %2251 = vmatprep.mubr.f32.mxu0 0.0
      %2252 = vmatmul.mubr.f32.gmra.mxu0 %v939
      %v2253 = vpop.f32.mrf.mxu0
      %v2254 = vadd.f32 %v2029, %v2253
      %v2255 = vpop.f32.mrf.mxu0
      %2256 = vmatprep.mubr.f32.mxu0 0.0
      %2257 = vmatmul.mubr.f32.gmra.mxu0 %v948
      %v2258 = vpop.f32.mrf.mxu0
      %v2259 = vadd.f32 %v2034, %v2258
      %v2260 = vpop.f32.mrf.mxu0
      %2261 = vmatprep.mubr.f32.mxu0 0.0
      %2262 = vmatmul.mubr.f32.gmra.mxu0 %v957
      %v2263 = vpop.f32.mrf.mxu0
      %v2264 = vadd.f32 %v2039, %v2263
      %v2265 = vpop.f32.mrf.mxu0
      %2266 = vmatprep.mubr.f32.mxu0 0.0
      %2267 = vmatmul.mubr.f32.gmra.mxu0 %v966
      %v2268 = vpop.f32.mrf.mxu0
      %v2269 = vadd.f32 %v2044, %v2268
      %v2270 = vpop.f32.mrf.mxu0
      %2271 = vmatprep.mubr.f32.mxu0 0.0
      %2272 = vmatmul.mubr.f32.gmra.mxu0 %v975
      %v2273 = vpop.f32.mrf.mxu0
      %v2274 = vadd.f32 %v2049, %v2273
      %v2275 = vpop.f32.mrf.mxu0
      %2276 = vmatprep.mubr.f32.mxu0 0.0
      %2277 = vmatmul.mubr.f32.gmra.mxu0 %v984
      %v2278 = vpop.f32.mrf.mxu0
      %v2279 = vadd.f32 %v2054, %v2278
      %v2280 = vpop.f32.mrf.mxu0
      %2281 = vmatprep.mubr.f32.mxu0 0.0
      %2282 = vmatmul.mubr.f32.gmra.mxu0 %v993
      %v2283 = vpop.f32.mrf.mxu0
      %v2284 = vadd.f32 %v2059, %v2283
      %v2285 = vpop.f32.mrf.mxu0
      %2286 = vmatprep.mubr.f32.mxu0 0.0
      %2287 = vmatmul.mubr.f32.gmra.mxu0 %v1002
      %v2288 = vpop.f32.mrf.mxu0
      %v2289 = vadd.f32 %v2064, %v2288
      %v2290 = vpop.f32.mrf.mxu0
      %2291 = vmatprep.mubr.f32.mxu0 0.0
      %2292 = vmatmul.mubr.f32.gmra.mxu0 %v1011
      %v2293 = vpop.f32.mrf.mxu0
      %v2294 = vadd.f32 %v2069, %v2293
      %v2295 = vpop.f32.mrf.mxu0
      %2296 = vmatprep.mubr.f32.mxu0 0.0
      %2297 = vmatmul.mubr.f32.gmra.mxu0 %v1020
      %v2298 = vpop.f32.mrf.mxu0
      %v2299 = vadd.f32 %v2074, %v2298
      %v2300 = vpop.f32.mrf.mxu0
      %2301 = vmatprep.mubr.f32.mxu0 0.0
      %2302 = vmatmul.mubr.f32.gmra.mxu0 %v1029
      %v2303 = vpop.f32.mrf.mxu0
      %v2304 = vadd.f32 %v2079, %v2303
      %v2305 = vpop.f32.mrf.mxu0
      %2306 = vmatprep.mubr.f32.mxu0 0.0
      %2307 = vmatmul.mubr.f32.gmra.mxu0 %v1038
      %v2308 = vpop.f32.mrf.mxu0
      %v2309 = vadd.f32 %v2084, %v2308
      %v2310 = vpop.f32.mrf.mxu0
      %2311 = vmatprep.mubr.f32.mxu0 0.0
      %2312 = vmatmul.mubr.f32.gmra.mxu0 %v1047
      %v2313 = vpop.f32.mrf.mxu0
      %v2314 = vadd.f32 %v2089, %v2313
      %v2315 = vpop.f32.mrf.mxu0
      %2316 = vdwg.mxu0
      %2317 = vst [vmem:[%s177] sm:$0xff] %v2159
      %2318 = vst [vmem:[%s177 + $0x8] sm:$0xff] %v2164
      %2319 = vst [vmem:[%s177 + $0x10] sm:$0xff] %v2169
      %2320 = vst [vmem:[%s177 + $0x18] sm:$0xff] %v2174
      %2321 = vst [vmem:[%s177 + $0x20] sm:$0xff] %v2179
      %2322 = vst [vmem:[%s177 + $0x28] sm:$0xff] %v2184
      %2323 = vst [vmem:[%s177 + $0x30] sm:$0xff] %v2189
      %2324 = vst [vmem:[%s177 + $0x38] sm:$0xff] %v2194
      %2325 = vst [vmem:[%s177 + $0x40] sm:$0xff] %v2199
      %2326 = vst [vmem:[%s177 + $0x48] sm:$0xff] %v2204
      %2327 = vst [vmem:[%s177 + $0x50] sm:$0xff] %v2209
      %2328 = vst [vmem:[%s177 + $0x58] sm:$0xff] %v2214
      %2329 = vst [vmem:[%s177 + $0x60] sm:$0xff] %v2219
      %2330 = vst [vmem:[%s177 + $0x68] sm:$0xff] %v2224
      %2331 = vst [vmem:[%s177 + $0x70] sm:$0xff] %v2229
      %2332 = vst [vmem:[%s177 + $0x78] sm:$0xff] %v2234
      %2333 = vst [vmem:[%s177 + $0x80] sm:$0xff] %v2239
      %2334 = vst [vmem:[%s177 + $0x88] sm:$0xff] %v2244
      %2335 = vst [vmem:[%s177 + $0x90] sm:$0xff] %v2249
      %2336 = vst [vmem:[%s177 + $0x98] sm:$0xff] %v2254
      %2337 = vst [vmem:[%s177 + $0xa0] sm:$0xff] %v2259
      %2338 = vst [vmem:[%s177 + $0xa8] sm:$0xff] %v2264
      %2339 = vst [vmem:[%s177 + $0xb0] sm:$0xff] %v2269
      %2340 = vst [vmem:[%s177 + $0xb8] sm:$0xff] %v2274
      %2341 = vst [vmem:[%s177 + $0xc0] sm:$0xff] %v2279
      %2342 = vst [vmem:[%s177 + $0xc8] sm:$0xff] %v2284
      %2343 = vst [vmem:[%s177 + $0xd0] sm:$0xff] %v2289
      %2344 = vst [vmem:[%s177 + $0xd8] sm:$0xff] %v2294
      %2345 = vst [vmem:[%s177 + $0xe0] sm:$0xff] %v2299
      %2346 = vst [vmem:[%s177 + $0xe8] sm:$0xff] %v2304
      %2347 = vst [vmem:[%s177 + $0xf0] sm:$0xff] %v2309
      %2348 = vst [vmem:[%s177 + $0xf8] sm:$0xff] %v2314
      %v2349 = vadd.f32 %v2159, %v2164
      %v2350 = vadd.f32 %v2349, %v2169
      %v2351 = vadd.f32 %v2350, %v2174
      %v2352 = vadd.f32 %v2351, %v2179
      %v2353 = vadd.f32 %v2352, %v2184
      %v2354 = vadd.f32 %v2353, %v2189
      %v2355 = vadd.f32 %v2354, %v2194
      %v2356 = vadd.f32 %v2355, %v2199
      %v2357 = vadd.f32 %v2356, %v2204
      %v2358 = vadd.f32 %v2357, %v2209
      %v2359 = vadd.f32 %v2358, %v2214
      %v2360 = vadd.f32 %v2359, %v2219
      %v2361 = vadd.f32 %v2360, %v2224
      %v2362 = vadd.f32 %v2361, %v2229
      %v2363 = vadd.f32 %v2362, %v2234
      %v2364 = vadd.f32 %v2363, %v2239
      %v2365 = vadd.f32 %v2364, %v2244
      %v2366 = vadd.f32 %v2365, %v2249
      %v2367 = vadd.f32 %v2366, %v2254
      %v2368 = vadd.f32 %v2367, %v2259
      %v2369 = vadd.f32 %v2368, %v2264
      %v2370 = vadd.f32 %v2369, %v2269
      %v2371 = vadd.f32 %v2370, %v2274
      %v2372 = vadd.f32 %v2371, %v2279
      %v2373 = vadd.f32 %v2372, %v2284
      %v2374 = vadd.f32 %v2373, %v2289
      %v2375 = vadd.f32 %v2374, %v2294
      %v2376 = vadd.f32 %v2375, %v2299
      %v2377 = vadd.f32 %v2376, %v2304
      %v2378 = vadd.f32 %v2377, %v2309
      %v2379 = vadd.f32 %v2378, %v2314
      %v2380 = vrot.slane %v2379, 4
      %v2381 = vadd.f32 %v2379, %v2380
      %v2382 = vrot.slane %v2381, 2
      %v2383 = vadd.f32 %v2381, %v2382
      %v2384 = vrot.slane %v2383, 1
      %v2385 = vadd.f32 %v2383, %v2384
      %v2386 = vmul.f32 %v2159, %v2159
      %v2387 = vmul.f32 %v2164, %v2164
      %v2388 = vmul.f32 %v2169, %v2169
      %v2389 = vmul.f32 %v2174, %v2174
      %v2390 = vmul.f32 %v2179, %v2179
      %v2391 = vmul.f32 %v2184, %v2184
      %v2392 = vmul.f32 %v2189, %v2189
      %v2393 = vmul.f32 %v2194, %v2194
      %v2394 = vmul.f32 %v2199, %v2199
      %v2395 = vmul.f32 %v2204, %v2204
      %v2396 = vmul.f32 %v2209, %v2209
      %v2397 = vmul.f32 %v2214, %v2214
      %v2398 = vmul.f32 %v2219, %v2219
      %v2399 = vmul.f32 %v2224, %v2224
      %v2400 = vmul.f32 %v2229, %v2229
      %v2401 = vmul.f32 %v2234, %v2234
      %v2402 = vmul.f32 %v2239, %v2239
      %v2403 = vmul.f32 %v2244, %v2244
      %v2404 = vmul.f32 %v2249, %v2249
      %v2405 = vmul.f32 %v2254, %v2254
      %v2406 = vmul.f32 %v2259, %v2259
      %v2407 = vmul.f32 %v2264, %v2264
      %v2408 = vmul.f32 %v2269, %v2269
      %v2409 = vmul.f32 %v2274, %v2274
      %v2410 = vmul.f32 %v2279, %v2279
      %v2411 = vmul.f32 %v2284, %v2284
      %v2412 = vmul.f32 %v2289, %v2289
      %v2413 = vmul.f32 %v2294, %v2294
      %v2414 = vmul.f32 %v2299, %v2299
      %v2415 = vmul.f32 %v2304, %v2304
      %v2416 = vmul.f32 %v2309, %v2309
      %v2417 = vmul.f32 %v2314, %v2314
      %v2418 = vadd.f32 %v2386, %v2387
      %v2419 = vadd.f32 %v2418, %v2388
      %v2420 = vadd.f32 %v2419, %v2389
      %v2421 = vadd.f32 %v2420, %v2390
      %v2422 = vadd.f32 %v2421, %v2391
      %v2423 = vadd.f32 %v2422, %v2392
      %v2424 = vadd.f32 %v2423, %v2393
      %v2425 = vadd.f32 %v2424, %v2394
      %v2426 = vadd.f32 %v2425, %v2395
      %v2427 = vadd.f32 %v2426, %v2396
      %v2428 = vadd.f32 %v2427, %v2397
      %v2429 = vadd.f32 %v2428, %v2398
      %v2430 = vadd.f32 %v2429, %v2399
      %v2431 = vadd.f32 %v2430, %v2400
      %v2432 = vadd.f32 %v2431, %v2401
      %v2433 = vadd.f32 %v2432, %v2402
      %v2434 = vadd.f32 %v2433, %v2403
      %v2435 = vadd.f32 %v2434, %v2404
      %v2436 = vadd.f32 %v2435, %v2405
      %v2437 = vadd.f32 %v2436, %v2406
      %v2438 = vadd.f32 %v2437, %v2407
      %v2439 = vadd.f32 %v2438, %v2408
      %v2440 = vadd.f32 %v2439, %v2409
      %v2441 = vadd.f32 %v2440, %v2410
      %v2442 = vadd.f32 %v2441, %v2411
      %v2443 = vadd.f32 %v2442, %v2412
      %v2444 = vadd.f32 %v2443, %v2413
      %v2445 = vadd.f32 %v2444, %v2414
      %v2446 = vadd.f32 %v2445, %v2415
      %v2447 = vadd.f32 %v2446, %v2416
      %v2448 = vadd.f32 %v2447, %v2417
      %v2449 = vrot.slane %v2448, 4
      %v2450 = vadd.f32 %v2448, %v2449
      %v2451 = vrot.slane %v2450, 2
      %v2452 = vadd.f32 %v2450, %v2451
      %v2453 = vrot.slane %v2452, 1
      %v2454 = vadd.f32 %v2452, %v2453
      %vm2455 = vcmask 1040384
      %v2456 = vsel %vm2455, %v2385, %v2454
      %2457 = vst [vmem:[%s181] sm:$0x3] %v2456
      %p2458 = scmp.lt.s32.totalorder %s15, 1
      %s2459 = scalar_select %p2458, %s15, 1
      %s2460 = smul.addr %s2459, 32
      %s2461 = smul.addr %s2460, 8
      %s2462 = scalar_lea.vmem %s2, %s2461
      %p2463 = scmp.lt.s32.totalorder %s15, 1
      %s2464 = scalar_select %p2463, %s15, 1
      %s2465 = smul.addr %s2464, 2
      %s2466 = scalar_lea.vmem %s3, %s2465
      // Predicated region
      $region29: #{conv_block_forward.3} parent=27 // pred_check
        %p2467 = pneg %p80
      $region30: #{conv_block_forward.3} parent=27 // pred_check_branch
        %2469 = sbr.rel (%p2467) target = $region32
      $region31: #{conv_block_forward.3} parent=27 // pred_region
        _
      $region32: #{conv_block_forward.3} parent=27 // pred_fallthru
        _
      // Predicated region
      $region33: #{conv_block_forward.3} parent=27 // pred_check
        %p2470 = pneg %p106
      $region34: #{conv_block_forward.3} parent=27 // pred_check_branch
        %2472 = sbr.rel (%p2470) target = $region36
      $region35: #{conv_block_forward.3} parent=27 // pred_region
        _
      $region36: #{conv_block_forward.3} parent=27 // pred_fallthru
        _
    $region28: #{conv_block_forward.3} parent=5 // pred_fallthru
      _
    %p2473 = scmp.le.s32.totalorder 2, %s10
    // Predicated region
    $region37: #{conv_block_forward.3} parent=5 // pred_check
      %p2474 = pneg %p2473
    $region38: #{conv_block_forward.3} parent=5 // pred_check_branch
      %2476 = sbr.rel (%p2474) target = $region40
    $region39: #{conv_block_forward.3} parent=5 // pred_region
      %s2477 = ssub.s32 %s10, 2
      // Predicated region
      $region41: #{conv_block_forward.3} parent=39 // pred_check
        %p2478 = pneg %p86
      $region42: #{conv_block_forward.3} parent=39 // pred_check_branch
        %2480 = sbr.rel (%p2478) target = $region44
      $region43: #{conv_block_forward.3} parent=39 // pred_region
        %p2481 = scmp.lt.s32.totalorder %s16, 1
        %s2482 = scalar_select %p2481, %s16, 1
        %s2483 = smul.addr %s2482, 32
        %s2484 = smul.addr %s2483, 8
        %s2485 = scalar_lea.vmem %s2, %s2484
      $region44: #{conv_block_forward.3} parent=39 // pred_fallthru
        _
      // Predicated region
      $region45: #{conv_block_forward.3} parent=39 // pred_check
        %p2486 = pneg %p112
      $region46: #{conv_block_forward.3} parent=39 // pred_check_branch
        %2488 = sbr.rel (%p2486) target = $region48
      $region47: #{conv_block_forward.3} parent=39 // pred_region
        %p2489 = scmp.lt.s32.totalorder %s16, 1
        %s2490 = scalar_select %p2489, %s16, 1
        %s2491 = smul.addr %s2490, 2
        %s2492 = scalar_lea.vmem %s3, %s2491
      $region48: #{conv_block_forward.3} parent=39 // pred_fallthru
        _
    $region40: #{conv_block_forward.3} parent=5 // pred_fallthru
      _
  $region6: #{conv_block_forward.3} parent=0 // loop_footer
    %s14 = sadd.s32 1, %s10
  $region7: #{conv_block_forward.3} parent=0 // loop_footer_branch
    %9 = sbr.rel target = $region3
  $region8: #{conv_block_forward.3} parent=0 // loop_exit
    _

// kernel: conv_block_forward.4
$region0: #{conv_block_forward.4}
  #allocation0 [shape = 'u32[]', space=smem, size = 0x4, offset = 0x4, fixed_abs, tag = 'smem constant byte address 0x4 - core index']
  #allocation1 [shape = 'u32[144,128]{1,0:T(1,128)}', space=vmem, size = 0x12000, scoped, tag = 'internal scratch']
  #allocation2 [shape = 'f32[1,18,18,128]{3,2,1,0:T(8,128)}', space=vmem, size = 0x36000, scoped, tag = 'scratch operand']
  #allocation3 [shape = 'f32[256,1152]{1,0:T(8,128)}', space=vmem, size = 0x120000, scoped, tag = 'scratch operand']
  %s0 = inlined_call_operand.vmem [shape: f32[2,16,16,128], index: 0, kind: input, shape index: {}]
  %s1 = inlined_call_operand.vmem [shape: f32[1,128], index: 1, kind: input, shape index: {}]
  %s2 = inlined_call_operand.vmem [shape: f32[1,128], index: 2, kind: input, shape index: {}]
  %s3 = inlined_call_operand.vmem [shape: f32[1152,128], index: 3, kind: input, shape index: {}]
  %s4 = inlined_call_operand.vmem [shape: f32[2,16,16,128], index: 4, kind: output, shape index: {0}]
  %s5 = inlined_call_operand.vmem [shape: f32[2,2,128], index: 5, kind: output, shape index: {1}]
  %6 = xla_tuple %s4, %s5
  %s7 = sld [smem:[#allocation0]]
  $region57: #{conv_block_forward.4} parent=0
    _
  %s9 = ssub.s32 1, %s7
  %s10 = scalar_select 0, %s9, %s7
  loop: start=0, step=1, limit=4
  $region2: #{conv_block_forward.4} parent=0 // loop_pre_header
    _
  $region3: #{conv_block_forward.4} parent=0 // loop_header
    %s12 = sphi 0, %s16
    %p13 = scmp.ge.s32.totalorder %s12, 4
    %s22 = sphi 0, %s24
    %s25 = sphi 0, %s22
    %s26 = sphi 0, %s25
    %s42 = sphi 0, %s26
    %s46 = sphi 0, %s46
    %s48 = sphi 0, %s46
    %s49 = sphi 0, %s48
    %s63 = sphi 0, %s49
    %s67 = sphi 0, %s67
    %s69 = sphi 0, %s67
    %s70 = sphi 0, %s69
    %s84 = sphi 0, %s70
    %s88 = sphi 0, %s88
    %s90 = sphi 0, %s88
    %s91 = sphi 0, %s90
    %s105 = sphi 0, %s91
    %s111 = sphi 0, %s113
    %s114 = sphi 0, %s111
    %s115 = sphi 0, %s114
    %s131 = sphi 0, %s115
    %s137 = sphi 0, %s139
    %s140 = sphi 0, %s137
    %s141 = sphi 0, %s140
    %s157 = sphi 0, %s141
  $region4: #{conv_block_forward.4} parent=0 // loop_header_branch
    %15 = sbr.rel (%p13) target = $region8
  $region5: #{conv_block_forward.4} parent=0 // loop_body
    %s17 = ssub.s32 %s12, 1
    %s18 = ssub.s32 %s12, 2
    %s19 = sadd.s32 %s12, 1
    %s20 = ssub.s32 %s12, %s19
    %p21 = scmp.eq.s32.totalorder %s20, 0
    %s23 = sadd.s32 %s22, 1
    %s24 = scalar_select %p21, %s22, %s23
    %p27 = pneg %p21
    %p28 = scmp.eq.s32.totalorder %s12, 1
    %p29 = por %p27, %p28
    %p30 = scmp.ne.s32.totalorder %s22, %s25
    %p31 = scmp.eq.s32.totalorder %s12, 0
    %p32 = por %p30, %p31
    %p33 = scmp.ne.s32.totalorder %s22, %s25
    %p34 = scmp.eq.s32.totalorder %s17, 1
    %p35 = por %p33, %p34
    %p36 = scmp.ne.s32.totalorder %s25, %s26
    %p37 = scmp.eq.s32.totalorder %s17, 0
    %p38 = por %p36, %p37
    %p39 = scmp.ne.s32.totalorder %s25, %s26
    %p40 = scmp.eq.s32.totalorder %s18, 1
    %p41 = por %p39, %p40
    %p43 = scmp.ne.s32.totalorder %s26, %s42
    %p44 = scmp.eq.s32.totalorder %s18, 0
    %p45 = por %p43, %p44
    %s47 = sadd.s32 %s46, 1
    %p50 = scmp.eq.s32.totalorder %s12, 1
    %p51 = scmp.ne.s32.totalorder %s46, %s48
    %p52 = scmp.eq.s32.totalorder %s12, 0
    %p53 = por %p51, %p52
    %p54 = scmp.ne.s32.totalorder %s46, %s48
    %p55 = scmp.eq.s32.totalorder %s17, 1
    %p56 = por %p54, %p55
    %p57 = scmp.ne.s32.totalorder %s48, %s49
    %p58 = scmp.eq.s32.totalorder %s17, 0
    %p59 = por %p57, %p58
    %p60 = scmp.ne.s32.totalorder %s48, %s49
    %p61 = scmp.eq.s32.totalorder %s18, 1
    %p62 = por %p60, %p61
    %p64 = scmp.ne.s32.totalorder %s49, %s63
    %p65 = scmp.eq.s32.totalorder %s18, 0
    %p66 = por %p64, %p65
    %s68 = sadd.s32 %s67, 1
    %p71 = scmp.eq.s32.totalorder %s12, 1
    %p72 = scmp.ne.s32.totalorder %s67, %s69
    %p73 = scmp.eq.s32.totalorder %s12, 0
    %p74 = por %p72, %p73
    %p75 = scmp.ne.s32.totalorder %s67, %s69
    %p76 = scmp.eq.s32.totalorder %s17, 1
    %p77 = por %p75, %p76
    %p78 = scmp.ne.s32.totalorder %s69, %s70
    %p79 = scmp.eq.s32.totalorder %s17, 0
    %p80 = por %p78, %p79
    %p81 = scmp.ne.s32.totalorder %s69, %s70
    %p82 = scmp.eq.s32.totalorder %s18, 1
    %p83 = por %p81, %p82
    %p85 = scmp.ne.s32.totalorder %s70, %s84
    %p86 = scmp.eq.s32.totalorder %s18, 0
    %p87 = por %p85, %p86
    %s89 = sadd.s32 %s88, 1
    %p92 = scmp.eq.s32.totalorder %s12, 1
    %p93 = scmp.ne.s32.totalorder %s88, %s90
    %p94 = scmp.eq.s32.totalorder %s12, 0
    %p95 = por %p93, %p94
    %p96 = scmp.ne.s32.totalorder %s88, %s90
    %p97 = scmp.eq.s32.totalorder %s17, 1
    %p98 = por %p96, %p97
    %p99 = scmp.ne.s32.totalorder %s90, %s91
    %p100 = scmp.eq.s32.totalorder %s17, 0
    %p101 = por %p99, %p100
    %p102 = scmp.ne.s32.totalorder %s90, %s91
    %p103 = scmp.eq.s32.totalorder %s18, 1
    %p104 = por %p102, %p103
    %p106 = scmp.ne.s32.totalorder %s91, %s105
    %p107 = scmp.eq.s32.totalorder %s18, 0
    %p108 = por %p106, %p107
    %s109 = ssub.s32 %s12, %s19
    %p110 = scmp.eq.s32.totalorder %s109, 0
    %s112 = sadd.s32 %s111, 1
    %s113 = scalar_select %p110, %s111, %s112
    %p116 = pneg %p110
    %p117 = scmp.eq.s32.totalorder %s12, 1
    %p118 = por %p116, %p117
    %p119 = scmp.ne.s32.totalorder %s111, %s114
    %p120 = scmp.eq.s32.totalorder %s12, 0
    %p121 = por %p119, %p120
    %p122 = scmp.ne.s32.totalorder %s111, %s114
    %p123 = scmp.eq.s32.totalorder %s17, 1
    %p124 = por %p122, %p123
    %p125 = scmp.ne.s32.totalorder %s114, %s115
    %p126 = scmp.eq.s32.totalorder %s17, 0
    %p127 = por %p125, %p126
    %p128 = scmp.ne.s32.totalorder %s114, %s115
    %p129 = scmp.eq.s32.totalorder %s18, 1
    %p130 = por %p128, %p129
    %p132 = scmp.ne.s32.totalorder %s115, %s131
    %p133 = scmp.eq.s32.totalorder %s18, 0
    %p134 = por %p132, %p133
    %s135 = ssub.s32 %s12, %s19
    %p136 = scmp.eq.s32.totalorder %s135, 0
    %s138 = sadd.s32 %s137, 1
    %s139 = scalar_select %p136, %s137, %s138
    %p142 = pneg %p136
    %p143 = scmp.eq.s32.totalorder %s12, 1
    %p144 = por %p142, %p143
    %p145 = scmp.ne.s32.totalorder %s137, %s140
    %p146 = scmp.eq.s32.totalorder %s12, 0
    %p147 = por %p145, %p146
    %p148 = scmp.ne.s32.totalorder %s137, %s140
    %p149 = scmp.eq.s32.totalorder %s17, 1
    %p150 = por %p148, %p149
    %p151 = scmp.ne.s32.totalorder %s140, %s141
    %p152 = scmp.eq.s32.totalorder %s17, 0
    %p153 = por %p151, %p152
    %p154 = scmp.ne.s32.totalorder %s140, %s141
    %p155 = scmp.eq.s32.totalorder %s18, 1
    %p156 = por %p154, %p155
    %p158 = scmp.ne.s32.totalorder %s141, %s157
    %p159 = scmp.eq.s32.totalorder %s18, 0
    %p160 = por %p158, %p159
    %p161 = scmp.le.s32.totalorder 1, %s12
    %p162 = scmp.lt.s32.totalorder %s12, 3
    %p163 = pnand %p161, %p162
    %p164 = pneg %p163
    // Predicated region
    $region9: #{conv_block_forward.4} parent=5 // pred_check
      _
    $region10: #{conv_block_forward.4} parent=5 // pred_check_branch
      %166 = sbr.rel (%p163) target = $region12
    $region11: #{conv_block_forward.4} parent=5 // pred_region
      %s167 = ssub.s32 %s12, 1
      // Predicated region
      $region13: #{conv_block_forward.4} parent=11 // pred_check
        %p168 = pneg %p59
      $region14: #{conv_block_forward.4} parent=11 // pred_check_branch
        %170 = sbr.rel (%p168) target = $region16
      $region15: #{conv_block_forward.4} parent=11 // pred_region
        _
      $region16: #{conv_block_forward.4} parent=11 // pred_fallthru
        _
      // Predicated region
      $region17: #{conv_block_forward.4} parent=11 // pred_check
        %p171 = pneg %p80
      $region18: #{conv_block_forward.4} parent=11 // pred_check_branch
        %173 = sbr.rel (%p171) target = $region20
      $region19: #{conv_block_forward.4} parent=11 // pred_region
        _
      $region20: #{conv_block_forward.4} parent=11 // pred_fallthru
        _
      // Predicated region
      $region21: #{conv_block_forward.4} parent=11 // pred_check
        %p174 = pneg %p101
      $region22: #{conv_block_forward.4} parent=11 // pred_check_branch
        %176 = sbr.rel (%p174) target = $region24
      $region23: #{conv_block_forward.4} parent=11 // pred_region
        _
      $region24: #{conv_block_forward.4} parent=11 // pred_fallthru
        _
    $region12: #{conv_block_forward.4} parent=5 // pred_fallthru
      _
    %p177 = scmp.lt.s32.totalorder %s12, 2
    // Predicated region
    $region25: #{conv_block_forward.4} parent=5 // pred_check
      %p178 = pneg %p177
    $region26: #{conv_block_forward.4} parent=5 // pred_check_branch
      %180 = sbr.rel (%p178) target = $region28
    $region27: #{conv_block_forward.4} parent=5 // pred_region
      // Predicated region
      $region29: #{conv_block_forward.4} parent=27 // pred_check
        %p181 = pneg %p32
      $region30: #{conv_block_forward.4} parent=27 // pred_check_branch
        %183 = sbr.rel (%p181) target = $region32
      $region31: #{conv_block_forward.4} parent=27 // pred_region
        %p184 = scmp.lt.s32.totalorder %s12, 1
        %s185 = scalar_select %p184, %s12, 1
        %s186 = smul.addr %s185, 32
        %s187 = smul.addr %s186, 8
        %s188 = scalar_lea.vmem %s0, %s187
      $region32: #{conv_block_forward.4} parent=27 // pred_fallthru
        _
    $region28: #{conv_block_forward.4} parent=5 // pred_fallthru
      _
    %p189 = scmp.le.s32.totalorder 1, %s12
    %p190 = scmp.lt.s32.totalorder %s12, 3
    %p191 = pnand %p189, %p190
    %p192 = pneg %p191
    // Predicated region
    $region33: #{conv_block_forward.4} parent=5 // pred_check
      _
    $region34: #{conv_block_forward.4} parent=5 // pred_check_branch
      %194 = sbr.rel (%p191) target = $region36
    $region35: #{conv_block_forward.4} parent=5 // pred_region
      %s195 = ssub.s32 %s12, 1
      %p196 = scmp.lt.s32.totalorder %s17, 1
      %s197 = scalar_select %p196, %s17, 1
      %s198 = smul.addr %s197, 32
      %s199 = smul.addr %s198, 8
      %s200 = scalar_lea.vmem %s0, %s199
      %p201 = pneg %p38
      %p202 = pneg %p35
      %p203 = pneg %p59
      %p204 = pneg %p56
      %p205 = pneg %p80
      %p206 = pneg %p77
      %p207 = pneg %p101
      %p208 = pneg %p98
      %p209 = pneg %p127
      %p210 = pneg %p124
      %p211 = scmp.lt.s32.totalorder %s17, 1
      %s212 = scalar_select %p211, %s17, 1
      %s213 = smul.addr %s212, 32
      %s214 = smul.addr %s213, 8
      %s215 = scalar_lea.vmem %s4, %s214
      %p216 = pneg %p153
      %p217 = pneg %p150
      %p218 = scmp.lt.s32.totalorder %s17, 1
      %s219 = scalar_select %p218, %s17, 1
      %s220 = smul.addr %s219, 2
      %s221 = scalar_lea.vmem %s5, %s220
      %p222 = scmp.lt.s32.totalorder %s17, 1
      %s223 = scalar_select %p222, %s17, 1
      %s224 = smul.addr %s223, 32
      %s225 = smul.addr %s224, 8
      %s226 = scalar_lea.vmem %s0, %s225
      %p227 = scmp.lt.s32.totalorder %s17, 1
      %s228 = scalar_select %p227, %s17, 1
      %s229 = smul.addr %s228, 32
      %s230 = smul.addr %s229, 8
      %s231 = scalar_lea.vmem %s4, %s230
      %p232 = scmp.lt.s32.totalorder %s17, 1
      %s233 = scalar_select %p232, %s17, 1
      %s234 = smul.addr %s233, 2
      %s235 = scalar_lea.vmem %s5, %s234
      %v236 = vld [vmem:[%s1] sm:$0x1]
      %v237 = vld [vmem:[%s2] sm:$0x1]
      %v238 = vld [vmem:[%s226] sm:$0xff]
      %v239 = vld [vmem:[%s226 + $0x8] sm:$0xff]
      %v240 = vld [vmem:[%s226 + $0x10] sm:$0xff]
      %v241 = vld [vmem:[%s226 + $0x18] sm:$0xff]
      %v242 = vld [vmem:[%s226 + $0x20] sm:$0xff]
      %v243 = vld [vmem:[%s226 + $0x28] sm:$0xff]
      %v244 = vld [vmem:[%s226 + $0x30] sm:$0xff]
      %v245 = vld [vmem:[%s226 + $0x38] sm:$0xff]
      %v246 = vld [vmem:[%s226 + $0x40] sm:$0xff]
      %v247 = vld [vmem:[%s226 + $0x48] sm:$0xff]
      %v248 = vld [vmem:[%s226 + $0x50] sm:$0xff]
      %v249 = vld [vmem:[%s226 + $0x58] sm:$0xff]
      %v250 = vld [vmem:[%s226 + $0x60] sm:$0xff]
      %v251 = vld [vmem:[%s226 + $0x68] sm:$0xff]
      %v252 = vld [vmem:[%s226 + $0x70] sm:$0xff]
      %v253 = vld [vmem:[%s226 + $0x78] sm:$0xff]
      %v254 = vld [vmem:[%s226 + $0x80] sm:$0xff]
      %v255 = vld [vmem:[%s226 + $0x88] sm:$0xff]
      %v256 = vld [vmem:[%s226 + $0x90] sm:$0xff]
      %v257 = vld [vmem:[%s226 + $0x98] sm:$0xff]
      %v258 = vld [vmem:[%s226 + $0xa0] sm:$0xff]
      %v259 = vld [vmem:[%s226 + $0xa8] sm:$0xff]
      %v260 = vld [vmem:[%s226 + $0xb0] sm:$0xff]
      %v261 = vld [vmem:[%s226 + $0xb8] sm:$0xff]
      %v262 = vld [vmem:[%s226 + $0xc0] sm:$0xff]
      %v263 = vld [vmem:[%s226 + $0xc8] sm:$0xff]
      %v264 = vld [vmem:[%s226 + $0xd0] sm:$0xff]
      %v265 = vld [vmem:[%s226 + $0xd8] sm:$0xff]
      %v266 = vld [vmem:[%s226 + $0xe0] sm:$0xff]
      %v267 = vld [vmem:[%s226 + $0xe8] sm:$0xff]
      %v268 = vld [vmem:[%s226 + $0xf0] sm:$0xff]
      %v269 = vld [vmem:[%s226 + $0xf8] sm:$0xff]
      %v271 = vlaneseq
      %v272 = vshrl.u32 %v271, 7
      %v273 = vsub.s32 0, %v272
      %v274 = vrot.slane %v236, %v273
      %v276 = vmul.f32 %v238, %v274
      %v277 = vmul.f32 %v239, %v274
      %v278 = vmul.f32 %v240, %v274
      %v279 = vmul.f32 %v241, %v274
      %v280 = vmul.f32 %v242, %v274
      %v281 = vmul.f32 %v243, %v274
      %v282 = vmul.f32 %v244, %v274
      %v283 = vmul.f32 %v245, %v274
      %v284 = vmul.f32 %v246, %v274
      %v285 = vmul.f32 %v247, %v274
      %v286 = vmul.f32 %v248, %v274
      %v287 = vmul.f32 %v249, %v274
      %v288 = vmul.f32 %v250, %v274
      %v289 = vmul.f32 %v251, %v274
      %v290 = vmul.f32 %v252, %v274
      %v291 = vmul.f32 %v253, %v274
      %v292 = vmul.f32 %v254, %v274
      %v293 = vmul.f32 %v255, %v274
      %v294 = vmul.f32 %v256, %v274
      %v295 = vmul.f32 %v257, %v274
      %v296 = vmul.f32 %v258, %v274
      %v297 = vmul.f32 %v259, %v274
      %v298 = vmul.f32 %v260, %v274
      %v299 = vmul.f32 %v261, %v274
      %v300 = vmul.f32 %v262, %v274
      %v301 = vmul.f32 %v263, %v274
      %v302 = vmul.f32 %v264, %v274
      %v303 = vmul.f32 %v265, %v274
      %v304 = vmul.f32 %v266, %v274
      %v305 = vmul.f32 %v267, %v274
      %v306 = vmul.f32 %v268, %v274
      %v307 = vmul.f32 %v269, %v274
      %v309 = vlaneseq
      %v310 = vshrl.u32 %v309, 7
      %v311 = vsub.s32 0, %v310
      %v312 = vrot.slane %v237, %v311
      %v314 = vadd.f32 %v276, %v312
      %v315 = vadd.f32 %v277, %v312
      %v316 = vadd.f32 %v278, %v312
      %v317 = vadd.f32 %v279, %v312
      %v318 = vadd.f32 %v280, %v312
      %v319 = vadd.f32 %v281, %v312
      %v320 = vadd.f32 %v282, %v312
      %v321 = vadd.f32 %v283, %v312
      %v322 = vadd.f32 %v284, %v312
      %v323 = vadd.f32 %v285, %v312
      %v324 = vadd.f32 %v286, %v312
      %v325 = vadd.f32 %v287, %v312
      %v326 = vadd.f32 %v288, %v312
      %v327 = vadd.f32 %v289, %v312
      %v328 = vadd.f32 %v290, %v312
      %v329 = vadd.f32 %v291, %v312
      %v330 = vadd.f32 %v292, %v312
      %v331 = vadd.f32 %v293, %v312
      %v332 = vadd.f32 %v294, %v312
      %v333 = vadd.f32 %v295, %v312
      %v334 = vadd.f32 %v296, %v312
      %v335 = vadd.f32 %v297, %v312
      %v336 = vadd.f32 %v298, %v312
      %v337 = vadd.f32 %v299, %v312
      %v338 = vadd.f32 %v300, %v312
      %v339 = vadd.f32 %v301, %v312
      %v340 = vadd.f32 %v302, %v312
      %v341 = vadd.f32 %v303, %v312
      %v342 = vadd.f32 %v304, %v312
      %v343 = vadd.f32 %v305, %v312
      %v344 = vadd.f32 %v306, %v312
      %v345 = vadd.f32 %v307, %v312
      %v346 = vmax.f32 %v314, 0.0
      %v347 = vmax.f32 %v315, 0.0
      %v348 = vmax.f32 %v316, 0.0
      %v349 = vmax.f32 %v317, 0.0
      %v350 = vmax.f32 %v318, 0.0
      %v351 = vmax.f32 %v319, 0.0
      %v352 = vmax.f32 %v320, 0.0
      %v353 = vmax.f32 %v321, 0.0
      %v354 = vmax.f32 %v322, 0.0
      %v355 = vmax.f32 %v323, 0.0
      %v356 = vmax.f32 %v324, 0.0
      %v357 = vmax.f32 %v325, 0.0
      %v358 = vmax.f32 %v326, 0.0
      %v359 = vmax.f32 %v327, 0.0
      %v360 = vmax.f32 %v328, 0.0
      %v361 = vmax.f32 %v329, 0.0
      %v362 = vmax.f32 %v330, 0.0
      %v363 = vmax.f32 %v331, 0.0
      %v364 = vmax.f32 %v332, 0.0
      %v365 = vmax.f32 %v333, 0.0
      %v366 = vmax.f32 %v334, 0.0
      %v367 = vmax.f32 %v335, 0.0
      %v368 = vmax.f32 %v336, 0.0
      %v369 = vmax.f32 %v337, 0.0
      %v370 = vmax.f32 %v338, 0.0
      %v371 = vmax.f32 %v339, 0.0
      %v372 = vmax.f32 %v340, 0.0
      %v373 = vmax.f32 %v341, 0.0
      %v374 = vmax.f32 %v342, 0.0
      %v375 = vmax.f32 %v343, 0.0
      %v376 = vmax.f32 %v344, 0.0
      %v377 = vmax.f32 %v345, 0.0
      %378 = vst [vmem:[#allocation2] sm:$0xff] 0.0
      %379 = vst [vmem:[#allocation2 + $0x8] sm:$0xff] 0.0
      %380 = vst [vmem:[#allocation2 + $0x10] sm:$0x3] 0.0
      %s381 = scalar_lea.vmem [#allocation2], 408
      %382 = vst [vmem:[%s381] sm:$0xff] 0.0
      %383 = vst [vmem:[%s381 + $0x8] sm:$0xff] 0.0
      %384 = vst [vmem:[%s381 + $0x10] sm:$0x3] 0.0
      %385 = vst [vmem:[#allocation2] sm:$0x1] 0.0
      %386 = vst [vmem:[#allocation2 + $0x18] sm:$0x1] 0.0
      %387 = vst [vmem:[#allocation2 + $0x30] sm:$0x1] 0.0
      %388 = vst [vmem:[#allocation2 + $0x48] sm:$0x1] 0.0
      %389 = vst [vmem:[#allocation2 + $0x60] sm:$0x1] 0.0
      %390 = vst [vmem:[#allocation2 + $0x78] sm:$0x1] 0.0
      %391 = vst [vmem:[#allocation2 + $0x90] sm:$0x1] 0.0
      %392 = vst [vmem:[#allocation2 + $0xa8] sm:$0x1] 0.0
      %393 = vst [vmem:[#allocation2 + $0xc0] sm:$0x1] 0.0
      %394 = vst [vmem:[#allocation2 + $0xd8] sm:$0x1] 0.0
      %395 = vst [vmem:[#allocation2 + $0xf0] sm:$0x1] 0.0
      %396 = vst [vmem:[#allocation2 + $0x108] sm:$0x1] 0.0
      %397 = vst [vmem:[#allocation2 + $0x120] sm:$0x1] 0.0
      %398 = vst [vmem:[#allocation2 + $0x138] sm:$0x1] 0.0
      %399 = vst [vmem:[#allocation2 + $0x150] sm:$0x1] 0.0
      %400 = vst [vmem:[#allocation2 + $0x168] sm:$0x1] 0.0
      %401 = vst [vmem:[#allocation2 + $0x180] sm:$0x1] 0.0
      %402 = vst [vmem:[#allocation2 + $0x198] sm:$0x1] 0.0
      %403 = vst [vmem:[#allocation2 + $0x11] sm:$0x1] 0.0
      %404 = vst [vmem:[#allocation2 + $0x29] sm:$0x1] 0.0
      %405 = vst [vmem:[#allocation2 + $0x41] sm:$0x1] 0.0
      %406 = vst [vmem:[#allocation2 + $0x59] sm:$0x1] 0.0
      %407 = vst [vmem:[#allocation2 + $0x71] sm:$0x1] 0.0
      %408 = vst [vmem:[#allocation2 + $0x89] sm:$0x1] 0.0
      %409 = vst [vmem:[#allocation2 + $0xa1] sm:$0x1] 0.0
      %410 = vst [vmem:[#allocation2 + $0xb9] sm:$0x1] 0.0
      %411 = vst [vmem:[#allocation2 + $0xd1] sm:$0x1] 0.0
      %412 = vst [vmem:[#allocation2 + $0xe9] sm:$0x1] 0.0
      %413 = vst [vmem:[#allocation2 + $0x101] sm:$0x1] 0.0
      %414 = vst [vmem:[#allocation2 + $0x119] sm:$0x1] 0.0
      %415 = vst [vmem:[#allocation2 + $0x131] sm:$0x1] 0.0
      %416 = vst [vmem:[#allocation2 + $0x149] sm:$0x1] 0.0
      %417 = vst [vmem:[#allocation2 + $0x161] sm:$0x1] 0.0
      %418 = vst [vmem:[#allocation2 + $0x179] sm:$0x1] 0.0
      %419 = vst [vmem:[#allocation2 + $0x191] sm:$0x1] 0.0
      %420 = vst [vmem:[#allocation2 + $0x1a9] sm:$0x1] 0.0
      %s421 = scalar_lea.vmem [#allocation2], 24
      %422 = vst [vmem:[%s421 + $0x1] sm:$0xff] %v346
      %423 = vst [vmem:[%s421 + $0x9] sm:$0xff] %v347
      %424 = vst [vmem:[%s421 + $0x19] sm:$0xff] %v348
      %425 = vst [vmem:[%s421 + $0x21] sm:$0xff] %v349
      %426 = vst [vmem:[%s421 + $0x31] sm:$0xff] %v350
      %427 = vst [vmem:[%s421 + $0x39] sm:$0xff] %v351
      %428 = vst [vmem:[%s421 + $0x49] sm:$0xff] %v352
      %429 = vst [vmem:[%s421 + $0x51] sm:$0xff] %v353
      %430 = vst [vmem:[%s421 + $0x61] sm:$0xff] %v354
      %431 = vst [vmem:[%s421 + $0x69] sm:$0xff] %v355
      %432 = vst [vmem:[%s421 + $0x79] sm:$0xff] %v356
      %433 = vst [vmem:[%s421 + $0x81] sm:$0xff] %v357
      %434 = vst [vmem:[%s421 + $0x91] sm:$0xff] %v358
      %435 = vst [vmem:[%s421 + $0x99] sm:$0xff] %v359
      %436 = vst [vmem:[%s421 + $0xa9] sm:$0xff] %v360
      %437 = vst [vmem:[%s421 + $0xb1] sm:$0xff] %v361
      %438 = vst [vmem:[%s421 + $0xc1] sm:$0xff] %v362
      %439 = vst [vmem:[%s421 + $0xc9] sm:$0xff] %v363
      %440 = vst [vmem:[%s421 + $0xd9] sm:$0xff] %v364
      %441 = vst [vmem:[%s421 + $0xe1] sm:$0xff] %v365
      %442 = vst [vmem:[%s421 + $0xf1] sm:$0xff] %v366
      %443 = vst [vmem:[%s421 + $0xf9] sm:$0xff] %v367
      %444 = vst [vmem:[%s421 + $0x109] sm:$0xff] %v368
      %445 = vst [vmem:[%s421 + $0x111] sm:$0xff] %v369
      %446 = vst [vmem:[%s421 + $0x121] sm:$0xff] %v370
      %447 = vst [vmem:[%s421 + $0x129] sm:$0xff] %v371
      %448 = vst [vmem:[%s421 + $0x139] sm:$0xff] %v372
      %449 = vst [vmem:[%s421 + $0x141] sm:$0xff] %v373
      %450 = vst [vmem:[%s421 + $0x151] sm:$0xff] %v374
      %451 = vst [vmem:[%s421 + $0x159] sm:$0xff] %v375
      %452 = vst [vmem:[%s421 + $0x169] sm:$0xff] %v376
      %453 = vst [vmem:[%s421 + $0x171] sm:$0xff] %v377
      %v454 = vld [vmem:[#allocation2] sm:$0xff]
      %v455 = vld [vmem:[#allocation2 + $0x8] sm:$0xff]
      %v456 = vld [vmem:[#allocation2 + $0x18] sm:$0xff]
      %v457 = vld [vmem:[#allocation2 + $0x20] sm:$0xff]
      %v458 = vld [vmem:[#allocation2 + $0x30] sm:$0xff]
      %v459 = vld [vmem:[#allocation2 + $0x38] sm:$0xff]
      %v460 = vld [vmem:[#allocation2 + $0x48] sm:$0xff]
      %v461 = vld [vmem:[#allocation2 + $0x50] sm:$0xff]
      %v462 = vld [vmem:[#allocation2 + $0x60] sm:$0xff]
      %v463 = vld [vmem:[#allocation2 + $0x68] sm:$0xff]
      %v464 = vld [vmem:[#allocation2 + $0x78] sm:$0xff]
      %v465 = vld [vmem:[#allocation2 + $0x80] sm:$0xff]
      %v466 = vld [vmem:[#allocation2 + $0x90] sm:$0xff]
      %v467 = vld [vmem:[#allocation2 + $0x98] sm:$0xff]
      %v468 = vld [vmem:[#allocation2 + $0xa8] sm:$0xff]
      %v469 = vld [vmem:[#allocation2 + $0xb0] sm:$0xff]
      %v470 = vld [vmem:[#allocation2 + $0xc0] sm:$0xff]
      %v471 = vld [vmem:[#allocation2 + $0xc8] sm:$0xff]
      %v472 = vld [vmem:[#allocation2 + $0xd8] sm:$0xff]
      %v473 = vld [vmem:[#allocation2 + $0xe0] sm:$0xff]
      %v474 = vld [vmem:[#allocation2 + $0xf0] sm:$0xff]
      %v475 = vld [vmem:[#allocation2 + $0xf8] sm:$0xff]
      %v476 = vld [vmem:[#allocation2 + $0x108] sm:$0xff]
      %v477 = vld [vmem:[#allocation2 + $0x110] sm:$0xff]
      %v478 = vld [vmem:[#allocation2 + $0x120] sm:$0xff]
      %v479 = vld [vmem:[#allocation2 + $0x128] sm:$0xff]
      %v480 = vld [vmem:[#allocation2 + $0x138] sm:$0xff]
      %v481 = vld [vmem:[#allocation2 + $0x140] sm:$0xff]
      %v482 = vld [vmem:[#allocation2 + $0x150] sm:$0xff]
      %v483 = vld [vmem:[#allocation2 + $0x158] sm:$0xff]
      %v484 = vld [vmem:[#allocation2 + $0x168] sm:$0xff]
      %v485 = vld [vmem:[#allocation2 + $0x170] sm:$0xff]
      %486 = vst [vmem:[#allocation3] sm:$0xff] %v454
      %487 = vst [vmem:[#allocation3 + $0x48] sm:$0xff] %v455
      %488 = vst [vmem:[#allocation3 + $0x90] sm:$0xff] %v456
      %489 = vst [vmem:[#allocation3 + $0xd8] sm:$0xff] %v457
      %490 = vst [vmem:[#allocation3 + $0x120] sm:$0xff] %v458
      %491 = vst [vmem:[#allocation3 + $0x168] sm:$0xff] %v459
      %492 = vst [vmem:[#allocation3 + $0x1b0] sm:$0xff] %v460
      %493 = vst [vmem:[#allocation3 + $0x1f8] sm:$0xff] %v461
      %494 = vst [vmem:[#allocation3 + $0x240] sm:$0xff] %v462
      %495 = vst [vmem:[#allocation3 + $0x288] sm:$0xff] %v463
      %496 = vst [vmem:[#allocation3 + $0x2d0] sm:$0xff] %v464
      %497 = vst [vmem:[#allocation3 + $0x318] sm:$0xff] %v465
      %498 = vst [vmem:[#allocation3 + $0x360] sm:$0xff] %v466
      %499 = vst [vmem:[#allocation3 + $0x3a8] sm:$0xff] %v467
      %500 = vst [vmem:[#allocation3 + $0x3f0] sm:$0xff] %v468
      %501 = vst [vmem:[#allocation3 + $0x438] sm:$0xff] %v469
      %502 = vst [vmem:[#allocation3 + $0x480] sm:$0xff] %v470
      %503 = vst [vmem:[#allocation3 + $0x4c8] sm:$0xff] %v471
      %504 = vst [vmem:[#allocation3 + $0x510] sm:$0xff] %v472
      %505 = vst [vmem:[#allocation3 + $0x558] sm:$0xff] %v473
      %506 = vst [vmem:[#allocation3 + $0x5a0] sm:$0xff] %v474
      %507 = vst [vmem:[#allocation3 + $0x5e8] sm:$0xff] %v475
      %508 = vst [vmem:[#allocation3 + $0x630] sm:$0xff] %v476
      %509 = vst [vmem:[#allocation3 + $0x678] sm:$0xff] %v477
      %510 = vst [vmem:[#allocation3 + $0x6c0] sm:$0xff] %v478
      %511 = vst [vmem:[#allocation3 + $0x708] sm:$0xff] %v479
      %512 = vst [vmem:[#allocation3 + $0x750] sm:$0xff] %v480
      %513 = vst [vmem:[#allocation3 + $0x798] sm:$0xff] %v481
      %514 = vst [vmem:[#allocation3 + $0x7e0] sm:$0xff] %v482
      %515 = vst [vmem:[#allocation3 + $0x828] sm:$0xff] %v483
      %516 = vst [vmem:[#allocation3 + $0x870] sm:$0xff] %v484
      %517 = vst [vmem:[#allocation3 + $0x8b8] sm:$0xff] %v485
      %v518 = vld [vmem:[#allocation2 + $0x1] sm:$0xff]
      %v519 = vld [vmem:[#allocation2 + $0x9] sm:$0xff]
      %v520 = vld [vmem:[#allocation2 + $0x19] sm:$0xff]
      %v521 = vld [vmem:[#allocation2 + $0x21] sm:$0xff]
      %v522 = vld [vmem:[#allocation2 + $0x31] sm:$0xff]
      %v523 = vld [vmem:[#allocation2 + $0x39] sm:$0xff]
      %v524 = vld [vmem:[#allocation2 + $0x49] sm:$0xff]
      %v525 = vld [vmem:[#allocation2 + $0x51] sm:$0xff]
      %v526 = vld [vmem:[#allocation2 + $0x61] sm:$0xff]
      %v527 = vld [vmem:[#allocation2 + $0x69] sm:$0xff]
      %v528 = vld [vmem:[#allocation2 + $0x79] sm:$0xff]
      %v529 = vld [vmem:[#allocation2 + $0x81] sm:$0xff]
      %v530 = vld [vmem:[#allocation2 + $0x91] sm:$0xff]
      %v531 = vld [vmem:[#allocation2 + $0x99] sm:$0xff]
      %v532 = vld [vmem:[#allocation2 + $0xa9] sm:$0xff]
      %v533 = vld [vmem:[#allocation2 + $0xb1] sm:$0xff]
      %v534 = vld [vmem:[#allocation2 + $0xc1] sm:$0xff]
      %v535 = vld [vmem:[#allocation2 + $0xc9] sm:$0xff]
      %v536 = vld [vmem:[#allocation2 + $0xd9] sm:$0xff]
      %v537 = vld [vmem:[#allocation2 + $0xe1] sm:$0xff]
      %v538 = vld [vmem:[#allocation2 + $0xf1] sm:$0xff]
      %v539 = vld [vmem:[#allocation2 + $0xf9] sm:$0xff]
      %v540 = vld [vmem:[#allocation2 + $0x109] sm:$0xff]
      %v541 = vld [vmem:[#allocation2 + $0x111] sm:$0xff]
      %v542 = vld [vmem:[#allocation2 + $0x121] sm:$0xff]
      %v543 = vld [vmem:[#allocation2 + $0x129] sm:$0xff]
      %v544 = vld [vmem:[#allocation2 + $0x139] sm:$0xff]
      %v545 = vld [vmem:[#allocation2 + $0x141] sm:$0xff]
      %v546 = vld [vmem:[#allocation2 + $0x151] sm:$0xff]
      %v547 = vld [vmem:[#allocation2 + $0x159] sm:$0xff]
      %v548 = vld [vmem:[#allocation2 + $0x169] sm:$0xff]
      %v549 = vld [vmem:[#allocation2 + $0x171] sm:$0xff]
      %550 = vst [vmem:[#allocation3 + $0x8] sm:$0xff] %v518
      %551 = vst [vmem:[#allocation3 + $0x50] sm:$0xff] %v519
      %552 = vst [vmem:[#allocation3 + $0x98] sm:$0xff] %v520
      %553 = vst [vmem:[#allocation3 + $0xe0] sm:$0xff] %v521
      %554 = vst [vmem:[#allocation3 + $0x128] sm:$0xff] %v522
      %555 = vst [vmem:[#allocation3 + $0x170] sm:$0xff] %v523
      %556 = vst [vmem:[#allocation3 + $0x1b8] sm:$0xff] %v524
      %557 = vst [vmem:[#allocation3 + $0x200] sm:$0xff] %v525
      %558 = vst [vmem:[#allocation3 + $0x248] sm:$0xff] %v526
      %559 = vst [vmem:[#allocation3 + $0x290] sm:$0xff] %v527
      %560 = vst [vmem:[#allocation3 + $0x2d8] sm:$0xff] %v528
      %561 = vst [vmem:[#allocation3 + $0x320] sm:$0xff] %v529
      %562 = vst [vmem:[#allocation3 + $0x368] sm:$0xff] %v530
      %563 = vst [vmem:[#allocation3 + $0x3b0] sm:$0xff] %v531
      %564 = vst [vmem:[#allocation3 + $0x3f8] sm:$0xff] %v532
      %565 = vst [vmem:[#allocation3 + $0x440] sm:$0xff] %v533
      %566 = vst [vmem:[#allocation3 + $0x488] sm:$0xff] %v534
      %567 = vst [vmem:[#allocation3 + $0x4d0] sm:$0xff] %v535
      %568 = vst [vmem:[#allocation3 + $0x518] sm:$0xff] %v536
      %569 = vst [vmem:[#allocation3 + $0x560] sm:$0xff] %v537
      %570 = vst [vmem:[#allocation3 + $0x5a8] sm:$0xff] %v538
      %571 = vst [vmem:[#allocation3 + $0x5f0] sm:$0xff] %v539
      %572 = vst [vmem:[#allocation3 + $0x638] sm:$0xff] %v540
      %573 = vst [vmem:[#allocation3 + $0x680] sm:$0xff] %v541
      %574 = vst [vmem:[#allocation3 + $0x6c8] sm:$0xff] %v542
      %575 = vst [vmem:[#allocation3 + $0x710] sm:$0xff] %v543
      %576 = vst [vmem:[#allocation3 + $0x758] sm:$0xff] %v544
      %577 = vst [vmem:[#allocation3 + $0x7a0] sm:$0xff] %v545
      %578 = vst [vmem:[#allocation3 + $0x7e8] sm:$0xff] %v546
      %579 = vst [vmem:[#allocation3 + $0x830] sm:$0xff] %v547
      %580 = vst [vmem:[#allocation3 + $0x878] sm:$0xff] %v548
      %581 = vst [vmem:[#allocation3 + $0x8c0] sm:$0xff] %v549
      %v582 = vld [vmem:[#allocation2 + $0x2] sm:$0xff]
      %v583 = vld [vmem:[#allocation2 + $0xa] sm:$0xff]
      %v584 = vld [vmem:[#allocation2 + $0x1a] sm:$0xff]
      %v585 = vld [vmem:[#allocation2 + $0x22] sm:$0xff]
      %v586 = vld [vmem:[#allocation2 + $0x32] sm:$0xff]
      %v587 = vld [vmem:[#allocation2 + $0x3a] sm:$0xff]
      %v588 = vld [vmem:[#allocation2 + $0x4a] sm:$0xff]
      %v589 = vld [vmem:[#allocation2 + $0x52] sm:$0xff]
      %v590 = vld [vmem:[#allocation2 + $0x62] sm:$0xff]
      %v591 = vld [vmem:[#allocation2 + $0x6a] sm:$0xff]
      %v592 = vld [vmem:[#allocation2 + $0x7a] sm:$0xff]
      %v593 = vld [vmem:[#allocation2 + $0x82] sm:$0xff]
      %v594 = vld [vmem:[#allocation2 + $0x92] sm:$0xff]
      %v595 = vld [vmem:[#allocation2 + $0x9a] sm:$0xff]
      %v596 = vld [vmem:[#allocation2 + $0xaa] sm:$0xff]
      %v597 = vld [vmem:[#allocation2 + $0xb2] sm:$0xff]
      %v598 = vld [vmem:[#allocation2 + $0xc2] sm:$0xff]
      %v599 = vld [vmem:[#allocation2 + $0xca] sm:$0xff]
      %v600 = vld [vmem:[#allocation2 + $0xda] sm:$0xff]
      %v601 = vld [vmem:[#allocation2 + $0xe2] sm:$0xff]
      %v602 = vld [vmem:[#allocation2 + $0xf2] sm:$0xff]
      %v603 = vld [vmem:[#allocation2 + $0xfa] sm:$0xff]
      %v604 = vld [vmem:[#allocation2 + $0x10a] sm:$0xff]
      %v605 = vld [vmem:[#allocation2 + $0x112] sm:$0xff]
      %v606 = vld [vmem:[#allocation2 + $0x122] sm:$0xff]
      %v607 = vld [vmem:[#allocation2 + $0x12a] sm:$0xff]
      %v608 = vld [vmem:[#allocation2 + $0x13a] sm:$0xff]
      %v609 = vld [vmem:[#allocation2 + $0x142] sm:$0xff]
      %v610 = vld [vmem:[#allocation2 + $0x152] sm:$0xff]
      %v611 = vld [vmem:[#allocation2 + $0x15a] sm:$0xff]
      %v612 = vld [vmem:[#allocation2 + $0x16a] sm:$0xff]
      %v613 = vld [vmem:[#allocation2 + $0x172] sm:$0xff]
      %614 = vst [vmem:[#allocation3 + $0x10] sm:$0xff] %v582
      %615 = vst [vmem:[#allocation3 + $0x58] sm:$0xff] %v583
      %616 = vst [vmem:[#allocation3 + $0xa0] sm:$0xff] %v584
      %617 = vst [vmem:[#allocation3 + $0xe8] sm:$0xff] %v585
      %618 = vst [vmem:[#allocation3 + $0x130] sm:$0xff] %v586
      %619 = vst [vmem:[#allocation3 + $0x178] sm:$0xff] %v587
      %620 = vst [vmem:[#allocation3 + $0x1c0] sm:$0xff] %v588
      %621 = vst [vmem:[#allocation3 + $0x208] sm:$0xff] %v589
      %622 = vst [vmem:[#allocation3 + $0x250] sm:$0xff] %v590
      %623 = vst [vmem:[#allocation3 + $0x298] sm:$0xff] %v591
      %624 = vst [vmem:[#allocation3 + $0x2e0] sm:$0xff] %v592
      %625 = vst [vmem:[#allocation3 + $0x328] sm:$0xff] %v593
      %626 = vst [vmem:[#allocation3 + $0x370] sm:$0xff] %v594
      %627 = vst [vmem:[#allocation3 + $0x3b8] sm:$0xff] %v595
      %628 = vst [vmem:[#allocation3 + $0x400] sm:$0xff] %v596
      %629 = vst [vmem:[#allocation3 + $0x448] sm:$0xff] %v597
      %630 = vst [vmem:[#allocation3 + $0x490] sm:$0xff] %v598
      %631 = vst [vmem:[#allocation3 + $0x4d8] sm:$0xff] %v599
      %632 = vst [vmem:[#allocation3 + $0x520] sm:$0xff] %v600
      %633 = vst [vmem:[#allocation3 + $0x568] sm:$0xff] %v601
      %634 = vst [vmem:[#allocation3 + $0x5b0] sm:$0xff] %v602
      %635 = vst [vmem:[#allocation3 + $0x5f8] sm:$0xff] %v603
      %636 = vst [vmem:[#allocation3 + $0x640] sm:$0xff] %v604
      %637 = vst [vmem:[#allocation3 + $0x688] sm:$0xff] %v605
      %638 = vst [vmem:[#allocation3 + $0x6d0] sm:$0xff] %v606
      %639 = vst [vmem:[#allocation3 + $0x718] sm:$0xff] %v607
      %640 = vst [vmem:[#allocation3 + $0x760] sm:$0xff] %v608
      %641 = vst [vmem:[#allocation3 + $0x7a8] sm:$0xff] %v609
      %642 = vst [vmem:[#allocation3 + $0x7f0] sm:$0xff] %v610
      %643 = vst [vmem:[#allocation3 + $0x838] sm:$0xff] %v611
      %644 = vst [vmem:[#allocation3 + $0x880] sm:$0xff] %v612
      %645 = vst [vmem:[#allocation3 + $0x8c8] sm:$0xff] %v613
      %v646 = vld [vmem:[%s421] sm:$0xff]
      %v647 = vld [vmem:[%s421 + $0x8] sm:$0xff]
      %v648 = vld [vmem:[%s421 + $0x18] sm:$0xff]
      %v649 = vld [vmem:[%s421 + $0x20] sm:$0xff]
      %v650 = vld [vmem:[%s421 + $0x30] sm:$0xff]
      %v651 = vld [vmem:[%s421 + $0x38] sm:$0xff]
      %v652 = vld [vmem:[%s421 + $0x48] sm:$0xff]
      %v653 = vld [vmem:[%s421 + $0x50] sm:$0xff]
      %v654 = vld [vmem:[%s421 + $0x60] sm:$0xff]
      %v655 = vld [vmem:[%s421 + $0x68] sm:$0xff]
      %v656 = vld [vmem:[%s421 + $0x78] sm:$0xff]
      %v657 = vld [vmem:[%s421 + $0x80] sm:$0xff]
      %v658 = vld [vmem:[%s421 + $0x90] sm:$0xff]
      %v659 = vld [vmem:[%s421 + $0x98] sm:$0xff]
      %v660 = vld [vmem:[%s421 + $0xa8] sm:$0xff]
      %v661 = vld [vmem:[%s421 + $0xb0] sm:$0xff]
      %v662 = vld [vmem:[%s421 + $0xc0] sm:$0xff]
      %v663 = vld [vmem:[%s421 + $0xc8] sm:$0xff]
      %v664 = vld [vmem:[%s421 + $0xd8] sm:$0xff]
      %v665 = vld [vmem:[%s421 + $0xe0] sm:$0xff]
      %v666 = vld [vmem:[%s421 + $0xf0] sm:$0xff]
      %v667 = vld [vmem:[%s421 + $0xf8] sm:$0xff]
      %v668 = vld [vmem:[%s421 + $0x108] sm:$0xff]
      %v669 = vld [vmem:[%s421 + $0x110] sm:$0xff]
      %v670 = vld [vmem:[%s421 + $0x120] sm:$0xff]
      %v671 = vld [vmem:[%s421 + $0x128] sm:$0xff]
      %v672 = vld [vmem:[%s421 + $0x138] sm:$0xff]
      %v673 = vld [vmem:[%s421 + $0x140] sm:$0xff]
      %v674 = vld [vmem:[%s421 + $0x150] sm:$0xff]
      %v675 = vld [vmem:[%s421 + $0x158] sm:$0xff]
      %v676 = vld [vmem:[%s421 + $0x168] sm:$0xff]
      %v677 = vld [vmem:[%s421 + $0x170] sm:$0xff]
      %678 = vst [vmem:[#allocation3 + $0x18] sm:$0xff] %v646
      %679 = vst [vmem:[#allocation3 + $0x60] sm:$0xff] %v647
      %680 = vst [vmem:[#allocation3 + $0xa8] sm:$0xff] %v648
      %681 = vst [vmem:[#allocation3 + $0xf0] sm:$0xff] %v649
      %682 = vst [vmem:[#allocation3 + $0x138] sm:$0xff] %v650
      %683 = vst [vmem:[#allocation3 + $0x180] sm:$0xff] %v651
      %684 = vst [vmem:[#allocation3 + $0x1c8] sm:$0xff] %v652
      %685 = vst [vmem:[#allocation3 + $0x210] sm:$0xff] %v653
      %686 = vst [vmem:[#allocation3 + $0x258] sm:$0xff] %v654
      %687 = vst [vmem:[#allocation3 + $0x2a0] sm:$0xff] %v655
      %688 = vst [vmem:[#allocation3 + $0x2e8] sm:$0xff] %v656
      %689 = vst [vmem:[#allocation3 + $0x330] sm:$0xff] %v657
      %690 = vst [vmem:[#allocation3 + $0x378] sm:$0xff] %v658
      %691 = vst [vmem:[#allocation3 + $0x3c0] sm:$0xff] %v659
      %692 = vst [vmem:[#allocation3 + $0x408] sm:$0xff] %v660
      %693 = vst [vmem:[#allocation3 + $0x450] sm:$0xff] %v661
      %694 = vst [vmem:[#allocation3 + $0x498] sm:$0xff] %v662
      %695 = vst [vmem:[#allocation3 + $0x4e0] sm:$0xff] %v663
      %696 = vst [vmem:[#allocation3 + $0x528] sm:$0xff] %v664
      %697 = vst [vmem:[#allocation3 + $0x570] sm:$0xff] %v665
      %698 = vst [vmem:[#allocation3 + $0x5b8] sm:$0xff] %v666
      %699 = vst [vmem:[#allocation3 + $0x600] sm:$0xff] %v667
      %700 = vst [vmem:[#allocation3 + $0x648] sm:$0xff] %v668
      %701 = vst [vmem:[#allocation3 + $0x690] sm:$0xff] %v669
      %702 = vst [vmem:[#allocation3 + $0x6d8] sm:$0xff] %v670
      %703 = vst [vmem:[#allocation3 + $0x720] sm:$0xff] %v671
      %704 = vst [vmem:[#allocation3 + $0x768] sm:$0xff] %v672
      %705 = vst [vmem:[#allocation3 + $0x7b0] sm:$0xff] %v673
      %706 = vst [vmem:[#allocation3 + $0x7f8] sm:$0xff] %v674
      %707 = vst [vmem:[#allocation3 + $0x840] sm:$0xff] %v675
      %708 = vst [vmem:[#allocation3 + $0x888] sm:$0xff] %v676
      %709 = vst [vmem:[#allocation3 + $0x8d0] sm:$0xff] %v677
      %v710 = vld [vmem:[%s421 + $0x1] sm:$0xff]
      %v711 = vld [vmem:[%s421 + $0x9] sm:$0xff]
      %v712 = vld [vmem:[%s421 + $0x19] sm:$0xff]
      %v713 = vld [vmem:[%s421 + $0x21] sm:$0xff]
      %v714 = vld [vmem:[%s421 + $0x31] sm:$0xff]
      %v715 = vld [vmem:[%s421 + $0x39] sm:$0xff]
      %v716 = vld [vmem:[%s421 + $0x49] sm:$0xff]
      %v717 = vld [vmem:[%s421 + $0x51] sm:$0xff]
      %v718 = vld [vmem:[%s421 + $0x61] sm:$0xff]
      %v719 = vld [vmem:[%s421 + $0x69] sm:$0xff]
      %v720 = vld [vmem:[%s421 + $0x79] sm:$0xff]
      %v721 = vld [vmem:[%s421 + $0x81] sm:$0xff]
      %v722 = vld [vmem:[%s421 + $0x91] sm:$0xff]
      %v723 = vld [vmem:[%s421 + $0x99] sm:$0xff]
      %v724 = vld [vmem:[%s421 + $0xa9] sm:$0xff]
      %v725 = vld [vmem:[%s421 + $0xb1] sm:$0xff]
      %v726 = vld [vmem:[%s421 + $0xc1] sm:$0xff]
      %v727 = vld [vmem:[%s421 + $0xc9] sm:$0xff]
      %v728 = vld [vmem:[%s421 + $0xd9] sm:$0xff]
      %v729 = vld [vmem:[%s421 + $0xe1] sm:$0xff]
      %v730 = vld [vmem:[%s421 + $0xf1] sm:$0xff]
      %v731 = vld [vmem:[%s421 + $0xf9] sm:$0xff]
      %v732 = vld [vmem:[%s421 + $0x109] sm:$0xff]
      %v733 = vld [vmem:[%s421 + $0x111] sm:$0xff]
      %v734 = vld [vmem:[%s421 + $0x121] sm:$0xff]
      %v735 = vld [vmem:[%s421 + $0x129] sm:$0xff]
      %v736 = vld [vmem:[%s421 + $0x139] sm:$0xff]
      %v737 = vld [vmem:[%s421 + $0x141] sm:$0xff]
      %v738 = vld [vmem:[%s421 + $0x151] sm:$0xff]
      %v739 = vld [vmem:[%s421 + $0x159] sm:$0xff]
      %v740 = vld [vmem:[%s421 + $0x169] sm:$0xff]
      %v741 = vld [vmem:[%s421 + $0x171] sm:$0xff]
      %742 = vst [vmem:[#allocation3 + $0x20] sm:$0xff] %v710
      %743 = vst [vmem:[#allocation3 + $0x68] sm:$0xff] %v711
      %744 = vst [vmem:[#allocation3 + $0xb0] sm:$0xff] %v712
      %745 = vst [vmem:[#allocation3 + $0xf8] sm:$0xff] %v713
      %746 = vst [vmem:[#allocation3 + $0x140] sm:$0xff] %v714
      %747 = vst [vmem:[#allocation3 + $0x188] sm:$0xff] %v715
      %748 = vst [vmem:[#allocation3 + $0x1d0] sm:$0xff] %v716
      %749 = vst [vmem:[#allocation3 + $0x218] sm:$0xff] %v717
      %750 = vst [vmem:[#allocation3 + $0x260] sm:$0xff] %v718
      %751 = vst [vmem:[#allocation3 + $0x2a8] sm:$0xff] %v719
      %752 = vst [vmem:[#allocation3 + $0x2f0] sm:$0xff] %v720
      %753 = vst [vmem:[#allocation3 + $0x338] sm:$0xff] %v721
      %754 = vst [vmem:[#allocation3 + $0x380] sm:$0xff] %v722
      %755 = vst [vmem:[#allocation3 + $0x3c8] sm:$0xff] %v723
      %756 = vst [vmem:[#allocation3 + $0x410] sm:$0xff] %v724
      %757 = vst [vmem:[#allocation3 + $0x458] sm:$0xff] %v725
      %758 = vst [vmem:[#allocation3 + $0x4a0] sm:$0xff] %v726
      %759 = vst [vmem:[#allocation3 + $0x4e8] sm:$0xff] %v727
      %760 = vst [vmem:[#allocation3 + $0x530] sm:$0xff] %v728
      %761 = vst [vmem:[#allocation3 + $0x578] sm:$0xff] %v729
      %762 = vst [vmem:[#allocation3 + $0x5c0] sm:$0xff] %v730
      %763 = vst [vmem:[#allocation3 + $0x608] sm:$0xff] %v731
      %764 = vst [vmem:[#allocation3 + $0x650] sm:$0xff] %v732
      %765 = vst [vmem:[#allocation3 + $0x698] sm:$0xff] %v733
      %766 = vst [vmem:[#allocation3 + $0x6e0] sm:$0xff] %v734
      %767 = vst [vmem:[#allocation3 + $0x728] sm:$0xff] %v735
      %768 = vst [vmem:[#allocation3 + $0x770] sm:$0xff] %v736
      %769 = vst [vmem:[#allocation3 + $0x7b8] sm:$0xff] %v737
      %770 = vst [vmem:[#allocation3 + $0x800] sm:$0xff] %v738
      %771 = vst [vmem:[#allocation3 + $0x848] sm:$0xff] %v739
      %772 = vst [vmem:[#allocation3 + $0x890] sm:$0xff] %v740
      %773 = vst [vmem:[#allocation3 + $0x8d8] sm:$0xff] %v741
      %v774 = vld [vmem:[%s421 + $0x2] sm:$0xff]
      %v775 = vld [vmem:[%s421 + $0xa] sm:$0xff]
      %v776 = vld [vmem:[%s421 + $0x1a] sm:$0xff]
      %v777 = vld [vmem:[%s421 + $0x22] sm:$0xff]
      %v778 = vld [vmem:[%s421 + $0x32] sm:$0xff]
      %v779 = vld [vmem:[%s421 + $0x3a] sm:$0xff]
      %v780 = vld [vmem:[%s421 + $0x4a] sm:$0xff]
      %v781 = vld [vmem:[%s421 + $0x52] sm:$0xff]
      %v782 = vld [vmem:[%s421 + $0x62] sm:$0xff]
      %v783 = vld [vmem:[%s421 + $0x6a] sm:$0xff]
      %v784 = vld [vmem:[%s421 + $0x7a] sm:$0xff]
      %v785 = vld [vmem:[%s421 + $0x82] sm:$0xff]
      %v786 = vld [vmem:[%s421 + $0x92] sm:$0xff]
      %v787 = vld [vmem:[%s421 + $0x9a] sm:$0xff]
      %v788 = vld [vmem:[%s421 + $0xaa] sm:$0xff]
      %v789 = vld [vmem:[%s421 + $0xb2] sm:$0xff]
      %v790 = vld [vmem:[%s421 + $0xc2] sm:$0xff]
      %v791 = vld [vmem:[%s421 + $0xca] sm:$0xff]
      %v792 = vld [vmem:[%s421 + $0xda] sm:$0xff]
      %v793 = vld [vmem:[%s421 + $0xe2] sm:$0xff]
      %v794 = vld [vmem:[%s421 + $0xf2] sm:$0xff]
      %v795 = vld [vmem:[%s421 + $0xfa] sm:$0xff]
      %v796 = vld [vmem:[%s421 + $0x10a] sm:$0xff]
      %v797 = vld [vmem:[%s421 + $0x112] sm:$0xff]
      %v798 = vld [vmem:[%s421 + $0x122] sm:$0xff]
      %v799 = vld [vmem:[%s421 + $0x12a] sm:$0xff]
      %v800 = vld [vmem:[%s421 + $0x13a] sm:$0xff]
      %v801 = vld [vmem:[%s421 + $0x142] sm:$0xff]
      %v802 = vld [vmem:[%s421 + $0x152] sm:$0xff]
      %v803 = vld [vmem:[%s421 + $0x15a] sm:$0xff]
      %v804 = vld [vmem:[%s421 + $0x16a] sm:$0xff]
      %v805 = vld [vmem:[%s421 + $0x172] sm:$0xff]
      %806 = vst [vmem:[#allocation3 + $0x28] sm:$0xff] %v774
      %807 = vst [vmem:[#allocation3 + $0x70] sm:$0xff] %v775
      %808 = vst [vmem:[#allocation3 + $0xb8] sm:$0xff] %v776
      %809 = vst [vmem:[#allocation3 + $0x100] sm:$0xff] %v777
      %810 = vst [vmem:[#allocation3 + $0x148] sm:$0xff] %v778
      %811 = vst [vmem:[#allocation3 + $0x190] sm:$0xff] %v779
      %812 = vst [vmem:[#allocation3 + $0x1d8] sm:$0xff] %v780
      %813 = vst [vmem:[#allocation3 + $0x220] sm:$0xff] %v781
      %814 = vst [vmem:[#allocation3 + $0x268] sm:$0xff] %v782
      %815 = vst [vmem:[#allocation3 + $0x2b0] sm:$0xff] %v783
      %816 = vst [vmem:[#allocation3 + $0x2f8] sm:$0xff] %v784
      %817 = vst [vmem:[#allocation3 + $0x340] sm:$0xff] %v785
      %818 = vst [vmem:[#allocation3 + $0x388] sm:$0xff] %v786
      %819 = vst [vmem:[#allocation3 + $0x3d0] sm:$0xff] %v787
      %820 = vst [vmem:[#allocation3 + $0x418] sm:$0xff] %v788
      %821 = vst [vmem:[#allocation3 + $0x460] sm:$0xff] %v789
      %822 = vst [vmem:[#allocation3 + $0x4a8] sm:$0xff] %v790
      %823 = vst [vmem:[#allocation3 + $0x4f0] sm:$0xff] %v791
      %824 = vst [vmem:[#allocation3 + $0x538] sm:$0xff] %v792
      %825 = vst [vmem:[#allocation3 + $0x580] sm:$0xff] %v793
      %826 = vst [vmem:[#allocation3 + $0x5c8] sm:$0xff] %v794
      %827 = vst [vmem:[#allocation3 + $0x610] sm:$0xff] %v795
      %828 = vst [vmem:[#allocation3 + $0x658] sm:$0xff] %v796
      %829 = vst [vmem:[#allocation3 + $0x6a0] sm:$0xff] %v797
      %830 = vst [vmem:[#allocation3 + $0x6e8] sm:$0xff] %v798
      %831 = vst [vmem:[#allocation3 + $0x730] sm:$0xff] %v799
      %832 = vst [vmem:[#allocation3 + $0x778] sm:$0xff] %v800
      %833 = vst [vmem:[#allocation3 + $0x7c0] sm:$0xff] %v801
      %834 = vst [vmem:[#allocation3 + $0x808] sm:$0xff] %v802
      %835 = vst [vmem:[#allocation3 + $0x850] sm:$0xff] %v803
      %836 = vst [vmem:[#allocation3 + $0x898] sm:$0xff] %v804
      %837 = vst [vmem:[#allocation3 + $0x8e0] sm:$0xff] %v805
      %s838 = scalar_lea.vmem [#allocation2], 48
      %v839 = vld [vmem:[%s838] sm:$0xff]
      %v840 = vld [vmem:[%s838 + $0x8] sm:$0xff]
      %v841 = vld [vmem:[%s838 + $0x18] sm:$0xff]
      %v842 = vld [vmem:[%s838 + $0x20] sm:$0xff]
      %v843 = vld [vmem:[%s838 + $0x30] sm:$0xff]
      %v844 = vld [vmem:[%s838 + $0x38] sm:$0xff]
      %v845 = vld [vmem:[%s838 + $0x48] sm:$0xff]
      %v846 = vld [vmem:[%s838 + $0x50] sm:$0xff]
      %v847 = vld [vmem:[%s838 + $0x60] sm:$0xff]
      %v848 = vld [vmem:[%s838 + $0x68] sm:$0xff]
      %v849 = vld [vmem:[%s838 + $0x78] sm:$0xff]
      %v850 = vld [vmem:[%s838 + $0x80] sm:$0xff]
      %v851 = vld [vmem:[%s838 + $0x90] sm:$0xff]
      %v852 = vld [vmem:[%s838 + $0x98] sm:$0xff]
      %v853 = vld [vmem:[%s838 + $0xa8] sm:$0xff]
      %v854 = vld [vmem:[%s838 + $0xb0] sm:$0xff]
      %v855 = vld [vmem:[%s838 + $0xc0] sm:$0xff]
      %v856 = vld [vmem:[%s838 + $0xc8] sm:$0xff]
      %v857 = vld [vmem:[%s838 + $0xd8] sm:$0xff]
      %v858 = vld [vmem:[%s838 + $0xe0] sm:$0xff]
      %v859 = vld [vmem:[%s838 + $0xf0] sm:$0xff]
      %v860 = vld [vmem:[%s838 + $0xf8] sm:$0xff]
      %v861 = vld [vmem:[%s838 + $0x108] sm:$0xff]
      %v862 = vld [vmem:[%s838 + $0x110] sm:$0xff]
      %v863 = vld [vmem:[%s838 + $0x120] sm:$0xff]
      %v864 = vld [vmem:[%s838 + $0x128] sm:$0xff]
      %v865 = vld [vmem:[%s838 + $0x138] sm:$0xff]
      %v866 = vld [vmem:[%s838 + $0x140] sm:$0xff]
      %v867 = vld [vmem:[%s838 + $0x150] sm:$0xff]
      %v868 = vld [vmem:[%s838 + $0x158] sm:$0xff]
      %v869 = vld [vmem:[%s838 + $0x168] sm:$0xff]
      %v870 = vld [vmem:[%s838 + $0x170] sm:$0xff]
      %871 = vst [vmem:[#allocation3 + $0x30] sm:$0xff] %v839
      %872 = vst [vmem:[#allocation3 + $0x78] sm:$0xff] %v840
      %873 = vst [vmem:[#allocation3 + $0xc0] sm:$0xff] %v841
      %874 = vst [vmem:[#allocation3 + $0x108] sm:$0xff] %v842
      %875 = vst [vmem:[#allocation3 + $0x150] sm:$0xff] %v843
      %876 = vst [vmem:[#allocation3 + $0x198] sm:$0xff] %v844
      %877 = vst [vmem:[#allocation3 + $0x1e0] sm:$0xff] %v845
      %878 = vst [vmem:[#allocation3 + $0x228] sm:$0xff] %v846
      %879 = vst [vmem:[#allocation3 + $0x270] sm:$0xff] %v847
      %880 = vst [vmem:[#allocation3 + $0x2b8] sm:$0xff] %v848
      %881 = vst [vmem:[#allocation3 + $0x300] sm:$0xff] %v849
      %882 = vst [vmem:[#allocation3 + $0x348] sm:$0xff] %v850
      %883 = vst [vmem:[#allocation3 + $0x390] sm:$0xff] %v851
      %884 = vst [vmem:[#allocation3 + $0x3d8] sm:$0xff] %v852
      %885 = vst [vmem:[#allocation3 + $0x420] sm:$0xff] %v853
      %886 = vst [vmem:[#allocation3 + $0x468] sm:$0xff] %v854
      %887 = vst [vmem:[#allocation3 + $0x4b0] sm:$0xff] %v855
      %888 = vst [vmem:[#allocation3 + $0x4f8] sm:$0xff] %v856
      %889 = vst [vmem:[#allocation3 + $0x540] sm:$0xff] %v857
      %890 = vst [vmem:[#allocation3 + $0x588] sm:$0xff] %v858
      %891 = vst [vmem:[#allocation3 + $0x5d0] sm:$0xff] %v859
      %892 = vst [vmem:[#allocation3 + $0x618] sm:$0xff] %v860
      %893 = vst [vmem:[#allocation3 + $0x660] sm:$0xff] %v861
      %894 = vst [vmem:[#allocation3 + $0x6a8] sm:$0xff] %v862
      %895 = vst [vmem:[#allocation3 + $0x6f0] sm:$0xff] %v863
      %896 = vst [vmem:[#allocation3 + $0x738] sm:$0xff] %v864
      %897 = vst [vmem:[#allocation3 + $0x780] sm:$0xff] %v865
      %898 = vst [vmem:[#allocation3 + $0x7c8] sm:$0xff] %v866
      %899 = vst [vmem:[#allocation3 + $0x810] sm:$0xff] %v867
      %900 = vst [vmem:[#allocation3 + $0x858] sm:$0xff] %v868
      %901 = vst [vmem:[#allocation3 + $0x8a0] sm:$0xff] %v869
      %902 = vst [vmem:[#allocation3 + $0x8e8] sm:$0xff] %v870
      %v903 = vld [vmem:[%s838 + $0x1] sm:$0xff]
      %v904 = vld [vmem:[%s838 + $0x9] sm:$0xff]
      %v905 = vld [vmem:[%s838 + $0x19] sm:$0xff]
      %v906 = vld [vmem:[%s838 + $0x21] sm:$0xff]
      %v907 = vld [vmem:[%s838 + $0x31] sm:$0xff]
      %v908 = vld [vmem:[%s838 + $0x39] sm:$0xff]
      %v909 = vld [vmem:[%s838 + $0x49] sm:$0xff]
      %v910 = vld [vmem:[%s838 + $0x51] sm:$0xff]
      %v911 = vld [vmem:[%s838 + $0x61] sm:$0xff]
      %v912 = vld [vmem:[%s838 + $0x69] sm:$0xff]
      %v913 = vld [vmem:[%s838 + $0x79] sm:$0xff]
      %v914 = vld [vmem:[%s838 + $0x81] sm:$0xff]
      %v915 = vld [vmem:[%s838 + $0x91] sm:$0xff]
      %v916 = vld [vmem:[%s838 + $0x99] sm:$0xff]
      %v917 = vld [vmem:[%s838 + $0xa9] sm:$0xff]
      %v918 = vld [vmem:[%s838 + $0xb1] sm:$0xff]
      %v919 = vld [vmem:[%s838 + $0xc1] sm:$0xff]
      %v920 = vld [vmem:[%s838 + $0xc9] sm:$0xff]
      %v921 = vld [vmem:[%s838 + $0xd9] sm:$0xff]
      %v922 = vld [vmem:[%s838 + $0xe1] sm:$0xff]
      %v923 = vld [vmem:[%s838 + $0xf1] sm:$0xff]
      %v924 = vld [vmem:[%s838 + $0xf9] sm:$0xff]
      %v925 = vld [vmem:[%s838 + $0x109] sm:$0xff]
      %v926 = vld [vmem:[%s838 + $0x111] sm:$0xff]
      %v927 = vld [vmem:[%s838 + $0x121] sm:$0xff]
      %v928 = vld [vmem:[%s838 + $0x129] sm:$0xff]
      %v929 = vld [vmem:[%s838 + $0x139] sm:$0xff]
      %v930 = vld [vmem:[%s838 + $0x141] sm:$0xff]
      %v931 = vld [vmem:[%s838 + $0x151] sm:$0xff]
      %v932 = vld [vmem:[%s838 + $0x159] sm:$0xff]
      %v933 = vld [vmem:[%s838 + $0x169] sm:$0xff]
      %v934 = vld [vmem:[%s838 + $0x171] sm:$0xff]
      %935 = vst [vmem:[#allocation3 + $0x38] sm:$0xff] %v903
      %936 = vst [vmem:[#allocation3 + $0x80] sm:$0xff] %v904
      %937 = vst [vmem:[#allocation3 + $0xc8] sm:$0xff] %v905
      %938 = vst [vmem:[#allocation3 + $0x110] sm:$0xff] %v906
      %939 = vst [vmem:[#allocation3 + $0x158] sm:$0xff] %v907
      %940 = vst [vmem:[#allocation3 + $0x1a0] sm:$0xff] %v908
      %941 = vst [vmem:[#allocation3 + $0x1e8] sm:$0xff] %v909
      %942 = vst [vmem:[#allocation3 + $0x230] sm:$0xff] %v910
      %943 = vst [vmem:[#allocation3 + $0x278] sm:$0xff] %v911
      %944 = vst [vmem:[#allocation3 + $0x2c0] sm:$0xff] %v912
      %945 = vst [vmem:[#allocation3 + $0x308] sm:$0xff] %v913
      %946 = vst [vmem:[#allocation3 + $0x350] sm:$0xff] %v914
      %947 = vst [vmem:[#allocation3 + $0x398] sm:$0xff] %v915
      %948 = vst [vmem:[#allocation3 + $0x3e0] sm:$0xff] %v916
      %949 = vst [vmem:[#allocation3 + $0x428] sm:$0xff] %v917
      %950 = vst [vmem:[#allocation3 + $0x470] sm:$0xff] %v918
      %951 = vst [vmem:[#allocation3 + $0x4b8] sm:$0xff] %v919
      %952 = vst [vmem:[#allocation3 + $0x500] sm:$0xff] %v920
      %953 = vst [vmem:[#allocation3 + $0x548] sm:$0xff] %v921
      %954 = vst [vmem:[#allocation3 + $0x590] sm:$0xff] %v922
      %955 = vst [vmem:[#allocation3 + $0x5d8] sm:$0xff] %v923
      %956 = vst [vmem:[#allocation3 + $0x620] sm:$0xff] %v924
      %957 = vst [vmem:[#allocation3 + $0x668] sm:$0xff] %v925
      %958 = vst [vmem:[#allocation3 + $0x6b0] sm:$0xff] %v926
      %959 = vst [vmem:[#allocation3 + $0x6f8] sm:$0xff] %v927
      %960 = vst [vmem:[#allocation3 + $0x740] sm:$0xff] %v928
      %961 = vst [vmem:[#allocation3 + $0x788] sm:$0xff] %v929
      %962 = vst [vmem:[#allocation3 + $0x7d0] sm:$0xff] %v930
      %963 = vst [vmem:[#allocation3 + $0x818] sm:$0xff] %v931
      %964 = vst [vmem:[#allocation3 + $0x860] sm:$0xff] %v932
      %965 = vst [vmem:[#allocation3 + $0x8a8] sm:$0xff] %v933
      %966 = vst [vmem:[#allocation3 + $0x8f0] sm:$0xff] %v934
      %v967 = vld [vmem:[%s838 + $0x2] sm:$0xff]
      %v968 = vld [vmem:[%s838 + $0xa] sm:$0xff]
      %v969 = vld [vmem:[%s838 + $0x1a] sm:$0xff]
      %v970 = vld [vmem:[%s838 + $0x22] sm:$0xff]
      %v971 = vld [vmem:[%s838 + $0x32] sm:$0xff]
      %v972 = vld [vmem:[%s838 + $0x3a] sm:$0xff]
      %v973 = vld [vmem:[%s838 + $0x4a] sm:$0xff]
      %v974 = vld [vmem:[%s838 + $0x52] sm:$0xff]
      %v975 = vld [vmem:[%s838 + $0x62] sm:$0xff]
      %v976 = vld [vmem:[%s838 + $0x6a] sm:$0xff]
      %v977 = vld [vmem:[%s838 + $0x7a] sm:$0xff]
      %v978 = vld [vmem:[%s838 + $0x82] sm:$0xff]
      %v979 = vld [vmem:[%s838 + $0x92] sm:$0xff]
      %v980 = vld [vmem:[%s838 + $0x9a] sm:$0xff]
      %v981 = vld [vmem:[%s838 + $0xaa] sm:$0xff]
      %v982 = vld [vmem:[%s838 + $0xb2] sm:$0xff]
      %v983 = vld [vmem:[%s838 + $0xc2] sm:$0xff]
      %v984 = vld [vmem:[%s838 + $0xca] sm:$0xff]
      %v985 = vld [vmem:[%s838 + $0xda] sm:$0xff]
      %v986 = vld [vmem:[%s838 + $0xe2] sm:$0xff]
      %v987 = vld [vmem:[%s838 + $0xf2] sm:$0xff]
      %v988 = vld [vmem:[%s838 + $0xfa] sm:$0xff]
      %v989 = vld [vmem:[%s838 + $0x10a] sm:$0xff]
      %v990 = vld [vmem:[%s838 + $0x112] sm:$0xff]
      %v991 = vld [vmem:[%s838 + $0x122] sm:$0xff]
      %v992 = vld [vmem:[%s838 + $0x12a] sm:$0xff]
      %v993 = vld [vmem:[%s838 + $0x13a] sm:$0xff]
      %v994 = vld [vmem:[%s838 + $0x142] sm:$0xff]
      %v995 = vld [vmem:[%s838 + $0x152] sm:$0xff]
      %v996 = vld [vmem:[%s838 + $0x15a] sm:$0xff]
      %v997 = vld [vmem:[%s838 + $0x16a] sm:$0xff]
      %v998 = vld [vmem:[%s838 + $0x172] sm:$0xff]
      %999 = vst [vmem:[#allocation3 + $0x40] sm:$0xff] %v967
      %1000 = vst [vmem:[#allocation3 + $0x88] sm:$0xff] %v968
      %1001 = vst [vmem:[#allocation3 + $0xd0] sm:$0xff] %v969
      %1002 = vst [vmem:[#allocation3 + $0x118] sm:$0xff] %v970
      %1003 = vst [vmem:[#allocation3 + $0x160] sm:$0xff] %v971
      %1004 = vst [vmem:[#allocation3 + $0x1a8] sm:$0xff] %v972
      %1005 = vst [vmem:[#allocation3 + $0x1f0] sm:$0xff] %v973
      %1006 = vst [vmem:[#allocation3 + $0x238] sm:$0xff] %v974
      %1007 = vst [vmem:[#allocation3 + $0x280] sm:$0xff] %v975
      %1008 = vst [vmem:[#allocation3 + $0x2c8] sm:$0xff] %v976
      %1009 = vst [vmem:[#allocation3 + $0x310] sm:$0xff] %v977
      %1010 = vst [vmem:[#allocation3 + $0x358] sm:$0xff] %v978
      %1011 = vst [vmem:[#allocation3 + $0x3a0] sm:$0xff] %v979
      %1012 = vst [vmem:[#allocation3 + $0x3e8] sm:$0xff] %v980
      %1013 = vst [vmem:[#allocation3 + $0x430] sm:$0xff] %v981
      %1014 = vst [vmem:[#allocation3 + $0x478] sm:$0xff] %v982
      %1015 = vst [vmem:[#allocation3 + $0x4c0] sm:$0xff] %v983
      %1016 = vst [vmem:[#allocation3 + $0x508] sm:$0xff] %v984
      %1017 = vst [vmem:[#allocation3 + $0x550] sm:$0xff] %v985
      %1018 = vst [vmem:[#allocation3 + $0x598] sm:$0xff] %v986
      %1019 = vst [vmem:[#allocation3 + $0x5e0] sm:$0xff] %v987
      %1020 = vst [vmem:[#allocation3 + $0x628] sm:$0xff] %v988
      %1021 = vst [vmem:[#allocation3 + $0x670] sm:$0xff] %v989
      %1022 = vst [vmem:[#allocation3 + $0x6b8] sm:$0xff] %v990
      %1023 = vst [vmem:[#allocation3 + $0x700] sm:$0xff] %v991
      %1024 = vst [vmem:[#allocation3 + $0x748] sm:$0xff] %v992
      %1025 = vst [vmem:[#allocation3 + $0x790] sm:$0xff] %v993
      %1026 = vst [vmem:[#allocation3 + $0x7d8] sm:$0xff] %v994
      %1027 = vst [vmem:[#allocation3 + $0x820] sm:$0xff] %v995
      %1028 = vst [vmem:[#allocation3 + $0x868] sm:$0xff] %v996
      %1029 = vst [vmem:[#allocation3 + $0x8b0] sm:$0xff] %v997
      %1030 = vst [vmem:[#allocation3 + $0x8f8] sm:$0xff] %v998
      %v1031 = vld [vmem:[#allocation3] sm:$0xff]
      %v1032 = vld [vmem:[#allocation3 + $0x8] sm:$0xff]
      %v1033 = vld [vmem:[#allocation3 + $0x10] sm:$0xff]
      %v1034 = vld [vmem:[#allocation3 + $0x18] sm:$0xff]
      %v1035 = vld [vmem:[#allocation3 + $0x20] sm:$0xff]
      %v1036 = vld [vmem:[#allocation3 + $0x28] sm:$0xff]
      %v1037 = vld [vmem:[#allocation3 + $0x30] sm:$0xff]
      %v1038 = vld [vmem:[#allocation3 + $0x38] sm:$0xff]
      %v1039 = vld [vmem:[#allocation3 + $0x40] sm:$0xff]
      %v1040 = vld [vmem:[#allocation3 + $0x48] sm:$0xff]
      %v1041 = vld [vmem:[#allocation3 + $0x50] sm:$0xff]
      %v1042 = vld [vmem:[#allocation3 + $0x58] sm:$0xff]
      %v1043 = vld [vmem:[#allocation3 + $0x60] sm:$0xff]
      %v1044 = vld [vmem:[#allocation3 + $0x68] sm:$0xff]
      %v1045 = vld [vmem:[#allocation3 + $0x70] sm:$0xff]
      %v1046 = vld [vmem:[#allocation3 + $0x78] sm:$0xff]
      %v1047 = vld [vmem:[#allocation3 + $0x80] sm:$0xff]
      %v1048 = vld [vmem:[#allocation3 + $0x88] sm:$0xff]
      %v1049 = vld [vmem:[#allocation3 + $0x90] sm:$0xff]
      %v1050 = vld [vmem:[#allocation3 + $0x98] sm:$0xff]
      %v1051 = vld [vmem:[#allocation3 + $0xa0] sm:$0xff]
      %v1052 = vld [vmem:[#allocation3 + $0xa8] sm:$0xff]
      %v1053 = vld [vmem:[#allocation3 + $0xb0] sm:$0xff]
      %v1054 = vld [vmem:[#allocation3 + $0xb8] sm:$0xff]
      %v1055 = vld [vmem:[#allocation3 + $0xc0] sm:$0xff]
      %v1056 = vld [vmem:[#allocation3 + $0xc8] sm:$0xff]
      %v1057 = vld [vmem:[#allocation3 + $0xd0] sm:$0xff]
      %v1058 = vld [vmem:[#allocation3 + $0xd8] sm:$0xff]
      %v1059 = vld [vmem:[#allocation3 + $0xe0] sm:$0xff]
      %v1060 = vld [vmem:[#allocation3 + $0xe8] sm:$0xff]
      %v1061 = vld [vmem:[#allocation3 + $0xf0] sm:$0xff]
      %v1062 = vld [vmem:[#allocation3 + $0xf8] sm:$0xff]
      %v1063 = vld [vmem:[#allocation3 + $0x100] sm:$0xff]
      %v1064 = vld [vmem:[#allocation3 + $0x108] sm:$0xff]
      %v1065 = vld [vmem:[#allocation3 + $0x110] sm:$0xff]
      %v1066 = vld [vmem:[#allocation3 + $0x118] sm:$0xff]
      %v1067 = vld [vmem:[#allocation3 + $0x120] sm:$0xff]
      %v1068 = vld [vmem:[#allocation3 + $0x128] sm:$0xff]
      %v1069 = vld [vmem:[#allocation3 + $0x130] sm:$0xff]
      %v1070 = vld [vmem:[#allocation3 + $0x138] sm:$0xff]
      %v1071 = vld [vmem:[#allocation3 + $0x140] sm:$0xff]
      %v1072 = vld [vmem:[#allocation3 + $0x148] sm:$0xff]
      %v1073 = vld [vmem:[#allocation3 + $0x150] sm:$0xff]
      %v1074 = vld [vmem:[#allocation3 + $0x158] sm:$0xff]
      %v1075 = vld [vmem:[#allocation3 + $0x160] sm:$0xff]
      %v1076 = vld [vmem:[#allocation3 + $0x168] sm:$0xff]
      %v1077 = vld [vmem:[#allocation3 + $0x170] sm:$0xff]
      %v1078 = vld [vmem:[#allocation3 + $0x178] sm:$0xff]
      %v1079 = vld [vmem:[#allocation3 + $0x180] sm:$0xff]
      %v1080 = vld [vmem:[#allocation3 + $0x188] sm:$0xff]
      %v1081 = vld [vmem:[#allocation3 + $0x190] sm:$0xff]
      %v1082 = vld [vmem:[#allocation3 + $0x198] sm:$0xff]
      %v1083 = vld [vmem:[#allocation3 + $0x1a0] sm:$0xff]
      %v1084 = vld [vmem:[#allocation3 + $0x1a8] sm:$0xff]
      %v1085 = vld [vmem:[#allocation3 + $0x1b0] sm:$0xff]
      %v1086 = vld [vmem:[#allocation3 + $0x1b8] sm:$0xff]
      %v1087 = vld [vmem:[#allocation3 + $0x1c0] sm:$0xff]
      %v1088 = vld [vmem:[#allocation3 + $0x1c8] sm:$0xff]
      %v1089 = vld [vmem:[#allocation3 + $0x1d0] sm:$0xff]
      %v1090 = vld [vmem:[#allocation3 + $0x1d8] sm:$0xff]
      %v1091 = vld [vmem:[#allocation3 + $0x1e0] sm:$0xff]
      %v1092 = vld [vmem:[#allocation3 + $0x1e8] sm:$0xff]
      %v1093 = vld [vmem:[#allocation3 + $0x1f0] sm:$0xff]
      %v1094 = vld [vmem:[#allocation3 + $0x1f8] sm:$0xff]
      %v1095 = vld [vmem:[#allocation3 + $0x200] sm:$0xff]
      %v1096 = vld [vmem:[#allocation3 + $0x208] sm:$0xff]
      %v1097 = vld [vmem:[#allocation3 + $0x210] sm:$0xff]
      %v1098 = vld [vmem:[#allocation3 + $0x218] sm:$0xff]
      %v1099 = vld [vmem:[#allocation3 + $0x220] sm:$0xff]
      %v1100 = vld [vmem:[#allocation3 + $0x228] sm:$0xff]
      %v1101 = vld [vmem:[#allocation3 + $0x230] sm:$0xff]
      %v1102 = vld [vmem:[#allocation3 + $0x238] sm:$0xff]
      %v1103 = vld [vmem:[#allocation3 + $0x240] sm:$0xff]
      %v1104 = vld [vmem:[#allocation3 + $0x248] sm:$0xff]
      %v1105 = vld [vmem:[#allocation3 + $0x250] sm:$0xff]
      %v1106 = vld [vmem:[#allocation3 + $0x258] sm:$0xff]
      %v1107 = vld [vmem:[#allocation3 + $0x260] sm:$0xff]
      %v1108 = vld [vmem:[#allocation3 + $0x268] sm:$0xff]
      %v1109 = vld [vmem:[#allocation3 + $0x270] sm:$0xff]
      %v1110 = vld [vmem:[#allocation3 + $0x278] sm:$0xff]
      %v1111 = vld [vmem:[#allocation3 + $0x280] sm:$0xff]
      %v1112 = vld [vmem:[#allocation3 + $0x288] sm:$0xff]
      %v1113 = vld [vmem:[#allocation3 + $0x290] sm:$0xff]
      %v1114 = vld [vmem:[#allocation3 + $0x298] sm:$0xff]
      %v1115 = vld [vmem:[#allocation3 + $0x2a0] sm:$0xff]
      %v1116 = vld [vmem:[#allocation3 + $0x2a8] sm:$0xff]
      %v1117 = vld [vmem:[#allocation3 + $0x2b0] sm:$0xff]
      %v1118 = vld [vmem:[#allocation3 + $0x2b8] sm:$0xff]
      %v1119 = vld [vmem:[#allocation3 + $0x2c0] sm:$0xff]
      %v1120 = vld [vmem:[#allocation3 + $0x2c8] sm:$0xff]
      %v1121 = vld [vmem:[#allocation3 + $0x2d0] sm:$0xff]
      %v1122 = vld [vmem:[#allocation3 + $0x2d8] sm:$0xff]
      %v1123 = vld [vmem:[#allocation3 + $0x2e0] sm:$0xff]
      %v1124 = vld [vmem:[#allocation3 + $0x2e8] sm:$0xff]
      %v1125 = vld [vmem:[#allocation3 + $0x2f0] sm:$0xff]
      %v1126 = vld [vmem:[#allocation3 + $0x2f8] sm:$0xff]
      %v1127 = vld [vmem:[#allocation3 + $0x300] sm:$0xff]
      %v1128 = vld [vmem:[#allocation3 + $0x308] sm:$0xff]
      %v1129 = vld [vmem:[#allocation3 + $0x310] sm:$0xff]
      %v1130 = vld [vmem:[#allocation3 + $0x318] sm:$0xff]
      %v1131 = vld [vmem:[#allocation3 + $0x320] sm:$0xff]
      %v1132 = vld [vmem:[#allocation3 + $0x328] sm:$0xff]
      %v1133 = vld [vmem:[#allocation3 + $0x330] sm:$0xff]
      %v1134 = vld [vmem:[#allocation3 + $0x338] sm:$0xff]
      %v1135 = vld [vmem:[#allocation3 + $0x340] sm:$0xff]
      %v1136 = vld [vmem:[#allocation3 + $0x348] sm:$0xff]
      %v1137 = vld [vmem:[#allocation3 + $0x350] sm:$0xff]
      %v1138 = vld [vmem:[#allocation3 + $0x358] sm:$0xff]
      %v1139 = vld [vmem:[#allocation3 + $0x360] sm:$0xff]
      %v1140 = vld [vmem:[#allocation3 + $0x368] sm:$0xff]
      %v1141 = vld [vmem:[#allocation3 + $0x370] sm:$0xff]
      %v1142 = vld [vmem:[#allocation3 + $0x378] sm:$0xff]
      %v1143 = vld [vmem:[#allocation3 + $0x380] sm:$0xff]
      %v1144 = vld [vmem:[#allocation3 + $0x388] sm:$0xff]
      %v1145 = vld [vmem:[#allocation3 + $0x390] sm:$0xff]
      %v1146 = vld [vmem:[#allocation3 + $0x398] sm:$0xff]
      %v1147 = vld [vmem:[#allocation3 + $0x3a0] sm:$0xff]
      %v1148 = vld [vmem:[#allocation3 + $0x3a8] sm:$0xff]
      %v1149 = vld [vmem:[#allocation3 + $0x3b0] sm:$0xff]
      %v1150 = vld [vmem:[#allocation3 + $0x3b8] sm:$0xff]
      %v1151 = vld [vmem:[#allocation3 + $0x3c0] sm:$0xff]
      %v1152 = vld [vmem:[#allocation3 + $0x3c8] sm:$0xff]
      %v1153 = vld [vmem:[#allocation3 + $0x3d0] sm:$0xff]
      %v1154 = vld [vmem:[#allocation3 + $0x3d8] sm:$0xff]
      %v1155 = vld [vmem:[#allocation3 + $0x3e0] sm:$0xff]
      %v1156 = vld [vmem:[#allocation3 + $0x3e8] sm:$0xff]
      %v1157 = vld [vmem:[#allocation3 + $0x3f0] sm:$0xff]
      %v1158 = vld [vmem:[#allocation3 + $0x3f8] sm:$0xff]
      %v1159 = vld [vmem:[#allocation3 + $0x400] sm:$0xff]
      %v1160 = vld [vmem:[#allocation3 + $0x408] sm:$0xff]
      %v1161 = vld [vmem:[#allocation3 + $0x410] sm:$0xff]
      %v1162 = vld [vmem:[#allocation3 + $0x418] sm:$0xff]
      %v1163 = vld [vmem:[#allocation3 + $0x420] sm:$0xff]
      %v1164 = vld [vmem:[#allocation3 + $0x428] sm:$0xff]
      %v1165 = vld [vmem:[#allocation3 + $0x430] sm:$0xff]
      %v1166 = vld [vmem:[#allocation3 + $0x438] sm:$0xff]
      %v1167 = vld [vmem:[#allocation3 + $0x440] sm:$0xff]
      %v1168 = vld [vmem:[#allocation3 + $0x448] sm:$0xff]
      %v1169 = vld [vmem:[#allocation3 + $0x450] sm:$0xff]
      %v1170 = vld [vmem:[#allocation3 + $0x458] sm:$0xff]
      %v1171 = vld [vmem:[#allocation3 + $0x460] sm:$0xff]
      %v1172 = vld [vmem:[#allocation3 + $0x468] sm:$0xff]
      %v1173 = vld [vmem:[#allocation3 + $0x470] sm:$0xff]
      %v1174 = vld [vmem:[#allocation3 + $0x478] sm:$0xff]
      %v1175 = vld [vmem:[#allocation3 + $0x480] sm:$0xff]
      %v1176 = vld [vmem:[#allocation3 + $0x488] sm:$0xff]
      %v1177 = vld [vmem:[#allocation3 + $0x490] sm:$0xff]
      %v1178 = vld [vmem:[#allocation3 + $0x498] sm:$0xff]
      %v1179 = vld [vmem:[#allocation3 + $0x4a0] sm:$0xff]
      %v1180 = vld [vmem:[#allocation3 + $0x4a8] sm:$0xff]
      %v1181 = vld [vmem:[#allocation3 + $0x4b0] sm:$0xff]
      %v1182 = vld [vmem:[#allocation3 + $0x4b8] sm:$0xff]
      %v1183 = vld [vmem:[#allocation3 + $0x4c0] sm:$0xff]
      %v1184 = vld [vmem:[#allocation3 + $0x4c8] sm:$0xff]
      %v1185 = vld [vmem:[#allocation3 + $0x4d0] sm:$0xff]
      %v1186 = vld [vmem:[#allocation3 + $0x4d8] sm:$0xff]
      %v1187 = vld [vmem:[#allocation3 + $0x4e0] sm:$0xff]
      %v1188 = vld [vmem:[#allocation3 + $0x4e8] sm:$0xff]
      %v1189 = vld [vmem:[#allocation3 + $0x4f0] sm:$0xff]
      %v1190 = vld [vmem:[#allocation3 + $0x4f8] sm:$0xff]
      %v1191 = vld [vmem:[#allocation3 + $0x500] sm:$0xff]
      %v1192 = vld [vmem:[#allocation3 + $0x508] sm:$0xff]
      %v1193 = vld [vmem:[#allocation3 + $0x510] sm:$0xff]
      %v1194 = vld [vmem:[#allocation3 + $0x518] sm:$0xff]
      %v1195 = vld [vmem:[#allocation3 + $0x520] sm:$0xff]
      %v1196 = vld [vmem:[#allocation3 + $0x528] sm:$0xff]
      %v1197 = vld [vmem:[#allocation3 + $0x530] sm:$0xff]
      %v1198 = vld [vmem:[#allocation3 + $0x538] sm:$0xff]
      %v1199 = vld [vmem:[#allocation3 + $0x540] sm:$0xff]
      %v1200 = vld [vmem:[#allocation3 + $0x548] sm:$0xff]
      %v1201 = vld [vmem:[#allocation3 + $0x550] sm:$0xff]
      %v1202 = vld [vmem:[#allocation3 + $0x558] sm:$0xff]
      %v1203 = vld [vmem:[#allocation3 + $0x560] sm:$0xff]
      %v1204 = vld [vmem:[#allocation3 + $0x568] sm:$0xff]
      %v1205 = vld [vmem:[#allocation3 + $0x570] sm:$0xff]
      %v1206 = vld [vmem:[#allocation3 + $0x578] sm:$0xff]
      %v1207 = vld [vmem:[#allocation3 + $0x580] sm:$0xff]
      %v1208 = vld [vmem:[#allocation3 + $0x588] sm:$0xff]
      %v1209 = vld [vmem:[#allocation3 + $0x590] sm:$0xff]
      %v1210 = vld [vmem:[#allocation3 + $0x598] sm:$0xff]
      %v1211 = vld [vmem:[#allocation3 + $0x5a0] sm:$0xff]
      %v1212 = vld [vmem:[#allocation3 + $0x5a8] sm:$0xff]
      %v1213 = vld [vmem:[#allocation3 + $0x5b0] sm:$0xff]
      %v1214 = vld [vmem:[#allocation3 + $0x5b8] sm:$0xff]
      %v1215 = vld [vmem:[#allocation3 + $0x5c0] sm:$0xff]
      %v1216 = vld [vmem:[#allocation3 + $0x5c8] sm:$0xff]
      %v1217 = vld [vmem:[#allocation3 + $0x5d0] sm:$0xff]
      %v1218 = vld [vmem:[#allocation3 + $0x5d8] sm:$0xff]
      %v1219 = vld [vmem:[#allocation3 + $0x5e0] sm:$0xff]
      %v1220 = vld [vmem:[#allocation3 + $0x5e8] sm:$0xff]
      %v1221 = vld [vmem:[#allocation3 + $0x5f0] sm:$0xff]
      %v1222 = vld [vmem:[#allocation3 + $0x5f8] sm:$0xff]
      %v1223 = vld [vmem:[#allocation3 + $0x600] sm:$0xff]
      %v1224 = vld [vmem:[#allocation3 + $0x608] sm:$0xff]
      %v1225 = vld [vmem:[#allocation3 + $0x610] sm:$0xff]
      %v1226 = vld [vmem:[#allocation3 + $0x618] sm:$0xff]
      %v1227 = vld [vmem:[#allocation3 + $0x620] sm:$0xff]
      %v1228 = vld [vmem:[#allocation3 + $0x628] sm:$0xff]
      %v1229 = vld [vmem:[#allocation3 + $0x630] sm:$0xff]
      %v1230 = vld [vmem:[#allocation3 + $0x638] sm:$0xff]
      %v1231 = vld [vmem:[#allocation3 + $0x640] sm:$0xff]
      %v1232 = vld [vmem:[#allocation3 + $0x648] sm:$0xff]
      %v1233 = vld [vmem:[#allocation3 + $0x650] sm:$0xff]
      %v1234 = vld [vmem:[#allocation3 + $0x658] sm:$0xff]
      %v1235 = vld [vmem:[#allocation3 + $0x660] sm:$0xff]
      %v1236 = vld [vmem:[#allocation3 + $0x668] sm:$0xff]
      %v1237 = vld [vmem:[#allocation3 + $0x670] sm:$0xff]
      %v1238 = vld [vmem:[#allocation3 + $0x678] sm:$0xff]
      %v1239 = vld [vmem:[#allocation3 + $0x680] sm:$0xff]
      %v1240 = vld [vmem:[#allocation3 + $0x688] sm:$0xff]
      %v1241 = vld [vmem:[#allocation3 + $0x690] sm:$0xff]
      %v1242 = vld [vmem:[#allocation3 + $0x698] sm:$0xff]
      %v1243 = vld [vmem:[#allocation3 + $0x6a0] sm:$0xff]
      %v1244 = vld [vmem:[#allocation3 + $0x6a8] sm:$0xff]
      %v1245 = vld [vmem:[#allocation3 + $0x6b0] sm:$0xff]
      %v1246 = vld [vmem:[#allocation3 + $0x6b8] sm:$0xff]
      %v1247 = vld [vmem:[#allocation3 + $0x6c0] sm:$0xff]
      %v1248 = vld [vmem:[#allocation3 + $0x6c8] sm:$0xff]
      %v1249 = vld [vmem:[#allocation3 + $0x6d0] sm:$0xff]
      %v1250 = vld [vmem:[#allocation3 + $0x6d8] sm:$0xff]
      %v1251 = vld [vmem:[#allocation3 + $0x6e0] sm:$0xff]
      %v1252 = vld [vmem:[#allocation3 + $0x6e8] sm:$0xff]
      %v1253 = vld [vmem:[#allocation3 + $0x6f0] sm:$0xff]
      %v1254 = vld [vmem:[#allocation3 + $0x6f8] sm:$0xff]
      %v1255 = vld [vmem:[#allocation3 + $0x700] sm:$0xff]
      %v1256 = vld [vmem:[#allocation3 + $0x708] sm:$0xff]
      %v1257 = vld [vmem:[#allocation3 + $0x710] sm:$0xff]
      %v1258 = vld [vmem:[#allocation3 + $0x718] sm:$0xff]
      %v1259 = vld [vmem:[#allocation3 + $0x720] sm:$0xff]
      %v1260 = vld [vmem:[#allocation3 + $0x728] sm:$0xff]
      %v1261 = vld [vmem:[#allocation3 + $0x730] sm:$0xff]
      %v1262 = vld [vmem:[#allocation3 + $0x738] sm:$0xff]
      %v1263 = vld [vmem:[#allocation3 + $0x740] sm:$0xff]
      %v1264 = vld [vmem:[#allocation3 + $0x748] sm:$0xff]
      %v1265 = vld [vmem:[#allocation3 + $0x750] sm:$0xff]
      %v1266 = vld [vmem:[#allocation3 + $0x758] sm:$0xff]
      %v1267 = vld [vmem:[#allocation3 + $0x760] sm:$0xff]
      %v1268 = vld [vmem:[#allocation3 + $0x768] sm:$0xff]
      %v1269 = vld [vmem:[#allocation3 + $0x770] sm:$0xff]
      %v1270 = vld [vmem:[#allocation3 + $0x778] sm:$0xff]
      %v1271 = vld [vmem:[#allocation3 + $0x780] sm:$0xff]
      %v1272 = vld [vmem:[#allocation3 + $0x788] sm:$0xff]
      %v1273 = vld [vmem:[#allocation3 + $0x790] sm:$0xff]
      %v1274 = vld [vmem:[#allocation3 + $0x798] sm:$0xff]
      %v1275 = vld [vmem:[#allocation3 + $0x7a0] sm:$0xff]
      %v1276 = vld [vmem:[#allocation3 + $0x7a8] sm:$0xff]
      %v1277 = vld [vmem:[#allocation3 + $0x7b0] sm:$0xff]
      %v1278 = vld [vmem:[#allocation3 + $0x7b8] sm:$0xff]
      %v1279 = vld [vmem:[#allocation3 + $0x7c0] sm:$0xff]
      %v1280 = vld [vmem:[#allocation3 + $0x7c8] sm:$0xff]
      %v1281 = vld [vmem:[#allocation3 + $0x7d0] sm:$0xff]
      %v1282 = vld [vmem:[#allocation3 + $0x7d8] sm:$0xff]
      %v1283 = vld [vmem:[#allocation3 + $0x7e0] sm:$0xff]
      %v1284 = vld [vmem:[#allocation3 + $0x7e8] sm:$0xff]
      %v1285 = vld [vmem:[#allocation3 + $0x7f0] sm:$0xff]
      %v1286 = vld [vmem:[#allocation3 + $0x7f8] sm:$0xff]
      %v1287 = vld [vmem:[#allocation3 + $0x800] sm:$0xff]
      %v1288 = vld [vmem:[#allocation3 + $0x808] sm:$0xff]
      %v1289 = vld [vmem:[#allocation3 + $0x810] sm:$0xff]
      %v1290 = vld [vmem:[#allocation3 + $0x818] sm:$0xff]
      %v1291 = vld [vmem:[#allocation3 + $0x820] sm:$0xff]
      %v1292 = vld [vmem:[#allocation3 + $0x828] sm:$0xff]
      %v1293 = vld [vmem:[#allocation3 + $0x830] sm:$0xff]
      %v1294 = vld [vmem:[#allocation3 + $0x838] sm:$0xff]
      %v1295 = vld [vmem:[#allocation3 + $0x840] sm:$0xff]
      %v1296 = vld [vmem:[#allocation3 + $0x848] sm:$0xff]
      %v1297 = vld [vmem:[#allocation3 + $0x850] sm:$0xff]
      %v1298 = vld [vmem:[#allocation3 + $0x858] sm:$0xff]
      %v1299 = vld [vmem:[#allocation3 + $0x860] sm:$0xff]
      %v1300 = vld [vmem:[#allocation3 + $0x868] sm:$0xff]
      %v1301 = vld [vmem:[#allocation3 + $0x870] sm:$0xff]
      %v1302 = vld [vmem:[#allocation3 + $0x878] sm:$0xff]
      %v1303 = vld [vmem:[#allocation3 + $0x880] sm:$0xff]
      %v1304 = vld [vmem:[#allocation3 + $0x888] sm:$0xff]
      %v1305 = vld [vmem:[#allocation3 + $0x890] sm:$0xff]
      %v1306 = vld [vmem:[#allocation3 + $0x898] sm:$0xff]
      %v1307 = vld [vmem:[#allocation3 + $0x8a0] sm:$0xff]
      %v1308 = vld [vmem:[#allocation3 + $0x8a8] sm:$0xff]
      %v1309 = vld [vmem:[#allocation3 + $0x8b0] sm:$0xff]
      %v1310 = vld [vmem:[#allocation3 + $0x8b8] sm:$0xff]
      %v1311 = vld [vmem:[#allocation3 + $0x8c0] sm:$0xff]
      %v1312 = vld [vmem:[#allocation3 + $0x8c8] sm:$0xff]
      %v1313 = vld [vmem:[#allocation3 + $0x8d0] sm:$0xff]
      %v1314 = vld [vmem:[#allocation3 + $0x8d8] sm:$0xff]
      %v1315 = vld [vmem:[#allocation3 + $0x8e0] sm:$0xff]
      %v1316 = vld [vmem:[#allocation3 + $0x8e8] sm:$0xff]
      %v1317 = vld [vmem:[#allocation3 + $0x8f0] sm:$0xff]
      %v1318 = vld [vmem:[#allocation3 + $0x8f8] sm:$0xff]
      %v1319 = vld [vmem:[%s3] sm:$0xff]
      %v1320 = vld [vmem:[%s3 + $0x8] sm:$0xff]
      %v1321 = vld [vmem:[%s3 + $0x10] sm:$0xff]
      %v1322 = vld [vmem:[%s3 + $0x18] sm:$0xff]
      %v1323 = vld [vmem:[%s3 + $0x20] sm:$0xff]
      %v1324 = vld [vmem:[%s3 + $0x28] sm:$0xff]
      %v1325 = vld [vmem:[%s3 + $0x30] sm:$0xff]
      %v1326 = vld [vmem:[%s3 + $0x38] sm:$0xff]
      %v1327 = vld [vmem:[%s3 + $0x40] sm:$0xff]
      %v1328 = vld [vmem:[%s3 + $0x48] sm:$0xff]
      %v1329 = vld [vmem:[%s3 + $0x50] sm:$0xff]
      %v1330 = vld [vmem:[%s3 + $0x58] sm:$0xff]
      %v1331 = vld [vmem:[%s3 + $0x60] sm:$0xff]
      %v1332 = vld [vmem:[%s3 + $0x68] sm:$0xff]
      %v1333 = vld [vmem:[%s3 + $0x70] sm:$0xff]
      %v1334 = vld [vmem:[%s3 + $0x78] sm:$0xff]
      %v1335 = vld [vmem:[%s3 + $0x80] sm:$0xff]
      %v1336 = vld [vmem:[%s3 + $0x88] sm:$0xff]
      %v1337 = vld [vmem:[%s3 + $0x90] sm:$0xff]
      %v1338 = vld [vmem:[%s3 + $0x98] sm:$0xff]
      %v1339 = vld [vmem:[%s3 + $0xa0] sm:$0xff]
      %v1340 = vld [vmem:[%s3 + $0xa8] sm:$0xff]
      %v1341 = vld [vmem:[%s3 + $0xb0] sm:$0xff]
      %v1342 = vld [vmem:[%s3 + $0xb8] sm:$0xff]
      %v1343 = vld [vmem:[%s3 + $0xc0] sm:$0xff]
      %v1344 = vld [vmem:[%s3 + $0xc8] sm:$0xff]
      %v1345 = vld [vmem:[%s3 + $0xd0] sm:$0xff]
      %v1346 = vld [vmem:[%s3 + $0xd8] sm:$0xff]
      %v1347 = vld [vmem:[%s3 + $0xe0] sm:$0xff]
      %v1348 = vld [vmem:[%s3 + $0xe8] sm:$0xff]
      %v1349 = vld [vmem:[%s3 + $0xf0] sm:$0xff]
      %v1350 = vld [vmem:[%s3 + $0xf8] sm:$0xff]
      %v1351 = vld [vmem:[%s3 + $0x100] sm:$0xff]
      %v1352 = vld [vmem:[%s3 + $0x108] sm:$0xff]
      %v1353 = vld [vmem:[%s3 + $0x110] sm:$0xff]
      %v1354 = vld [vmem:[%s3 + $0x118] sm:$0xff]
      %v1355 = vld [vmem:[%s3 + $0x120] sm:$0xff]
      %v1356 = vld [vmem:[%s3 + $0x128] sm:$0xff]
      %v1357 = vld [vmem:[%s3 + $0x130] sm:$0xff]
      %v1358 = vld [vmem:[%s3 + $0x138] sm:$0xff]
      %v1359 = vld [vmem:[%s3 + $0x140] sm:$0xff]
      %v1360 = vld [vmem:[%s3 + $0x148] sm:$0xff]
      %v1361 = vld [vmem:[%s3 + $0x150] sm:$0xff]
      %v1362 = vld [vmem:[%s3 + $0x158] sm:$0xff]
      %v1363 = vld [vmem:[%s3 + $0x160] sm:$0xff]
      %v1364 = vld [vmem:[%s3 + $0x168] sm:$0xff]
      %v1365 = vld [vmem:[%s3 + $0x170] sm:$0xff]
      %v1366 = vld [vmem:[%s3 + $0x178] sm:$0xff]
      %v1367 = vld [vmem:[%s3 + $0x180] sm:$0xff]
      %v1368 = vld [vmem:[%s3 + $0x188] sm:$0xff]
      %v1369 = vld [vmem:[%s3 + $0x190] sm:$0xff]
      %v1370 = vld [vmem:[%s3 + $0x198] sm:$0xff]
      %v1371 = vld [vmem:[%s3 + $0x1a0] sm:$0xff]
      %v1372 = vld [vmem:[%s3 + $0x1a8] sm:$0xff]
      %v1373 = vld [vmem:[%s3 + $0x1b0] sm:$0xff]
      %v1374 = vld [vmem:[%s3 + $0x1b8] sm:$0xff]
      %v1375 = vld [vmem:[%s3 + $0x1c0] sm:$0xff]
      %v1376 = vld [vmem:[%s3 + $0x1c8] sm:$0xff]
      %v1377 = vld [vmem:[%s3 + $0x1d0] sm:$0xff]
      %v1378 = vld [vmem:[%s3 + $0x1d8] sm:$0xff]
      %v1379 = vld [vmem:[%s3 + $0x1e0] sm:$0xff]
      %v1380 = vld [vmem:[%s3 + $0x1e8] sm:$0xff]
      %v1381 = vld [vmem:[%s3 + $0x1f0] sm:$0xff]
      %v1382 = vld [vmem:[%s3 + $0x1f8] sm:$0xff]
      %v1383 = vld [vmem:[%s3 + $0x200] sm:$0xff]
      %v1384 = vld [vmem:[%s3 + $0x208] sm:$0xff]
      %v1385 = vld [vmem:[%s3 + $0x210] sm:$0xff]
      %v1386 = vld [vmem:[%s3 + $0x218] sm:$0xff]
      %v1387 = vld [vmem:[%s3 + $0x220] sm:$0xff]
      %v1388 = vld [vmem:[%s3 + $0x228] sm:$0xff]
      %v1389 = vld [vmem:[%s3 + $0x230] sm:$0xff]
      %v1390 = vld [vmem:[%s3 + $0x238] sm:$0xff]
      %v1391 = vld [vmem:[%s3 + $0x240] sm:$0xff]
      %v1392 = vld [vmem:[%s3 + $0x248] sm:$0xff]
      %v1393 = vld [vmem:[%s3 + $0x250] sm:$0xff]
      %v1394 = vld [vmem:[%s3 + $0x258] sm:$0xff]
      %v1395 = vld [vmem:[%s3 + $0x260] sm:$0xff]
      %v1396 = vld [vmem:[%s3 + $0x268] sm:$0xff]
      %v1397 = vld [vmem:[%s3 + $0x270] sm:$0xff]
      %v1398 = vld [vmem:[%s3 + $0x278] sm:$0xff]
      %v1399 = vld [vmem:[%s3 + $0x280] sm:$0xff]
      %v1400 = vld [vmem:[%s3 + $0x288] sm:$0xff]
      %v1401 = vld [vmem:[%s3 + $0x290] sm:$0xff]
      %v1402 = vld [vmem:[%s3 + $0x298] sm:$0xff]
      %v1403 = vld [vmem:[%s3 + $0x2a0] sm:$0xff]
      %v1404 = vld [vmem:[%s3 + $0x2a8] sm:$0xff]
      %v1405 = vld [vmem:[%s3 + $0x2b0] sm:$0xff]
      %v1406 = vld [vmem:[%s3 + $0x2b8] sm:$0xff]
      %v1407 = vld [vmem:[%s3 + $0x2c0] sm:$0xff]
      %v1408 = vld [vmem:[%s3 + $0x2c8] sm:$0xff]
      %v1409 = vld [vmem:[%s3 + $0x2d0] sm:$0xff]
      %v1410 = vld [vmem:[%s3 + $0x2d8] sm:$0xff]
      %v1411 = vld [vmem:[%s3 + $0x2e0] sm:$0xff]
      %v1412 = vld [vmem:[%s3 + $0x2e8] sm:$0xff]
      %v1413 = vld [vmem:[%s3 + $0x2f0] sm:$0xff]
      %v1414 = vld [vmem:[%s3 + $0x2f8] sm:$0xff]
      %v1415 = vld [vmem:[%s3 + $0x300] sm:$0xff]
      %v1416 = vld [vmem:[%s3 + $0x308] sm:$0xff]
      %v1417 = vld [vmem:[%s3 + $0x310] sm:$0xff]
      %v1418 = vld [vmem:[%s3 + $0x318] sm:$0xff]
      %v1419 = vld [vmem:[%s3 + $0x320] sm:$0xff]
      %v1420 = vld [vmem:[%s3 + $0x328] sm:$0xff]
      %v1421 = vld [vmem:[%s3 + $0x330] sm:$0xff]
      %v1422 = vld [vmem:[%s3 + $0x338] sm:$0xff]
      %v1423 = vld [vmem:[%s3 + $0x340] sm:$0xff]
      %v1424 = vld [vmem:[%s3 + $0x348] sm:$0xff]
      %v1425 = vld [vmem:[%s3 + $0x350] sm:$0xff]
      %v1426 = vld [vmem:[%s3 + $0x358] sm:$0xff]
      %v1427 = vld [vmem:[%s3 + $0x360] sm:$0xff]
      %v1428 = vld [vmem:[%s3 + $0x368] sm:$0xff]
      %v1429 = vld [vmem:[%s3 + $0x370] sm:$0xff]
      %v1430 = vld [vmem:[%s3 + $0x378] sm:$0xff]
      %v1431 = vld [vmem:[%s3 + $0x380] sm:$0xff]
      %v1432 = vld [vmem:[%s3 + $0x388] sm:$0xff]
      %v1433 = vld [vmem:[%s3 + $0x390] sm:$0xff]
      %v1434 = vld [vmem:[%s3 + $0x398] sm:$0xff]
      %v1435 = vld [vmem:[%s3 + $0x3a0] sm:$0xff]
      %v1436 = vld [vmem:[%s3 + $0x3a8] sm:$0xff]
      %v1437 = vld [vmem:[%s3 + $0x3b0] sm:$0xff]
      %v1438 = vld [vmem:[%s3 + $0x3b8] sm:$0xff]
      %v1439 = vld [vmem:[%s3 + $0x3c0] sm:$0xff]
      %v1440 = vld [vmem:[%s3 + $0x3c8] sm:$0xff]
      %v1441 = vld [vmem:[%s3 + $0x3d0] sm:$0xff]
      %v1442 = vld [vmem:[%s3 + $0x3d8] sm:$0xff]
      %v1443 = vld [vmem:[%s3 + $0x3e0] sm:$0xff]
      %v1444 = vld [vmem:[%s3 + $0x3e8] sm:$0xff]
      %v1445 = vld [vmem:[%s3 + $0x3f0] sm:$0xff]
      %v1446 = vld [vmem:[%s3 + $0x3f8] sm:$0xff]
      %v1447 = vld [vmem:[%s3 + $0x400] sm:$0xff]
      %v1448 = vld [vmem:[%s3 + $0x408] sm:$0xff]
      %v1449 = vld [vmem:[%s3 + $0x410] sm:$0xff]
      %v1450 = vld [vmem:[%s3 + $0x418] sm:$0xff]
      %v1451 = vld [vmem:[%s3 + $0x420] sm:$0xff]
      %v1452 = vld [vmem:[%s3 + $0x428] sm:$0xff]
      %v1453 = vld [vmem:[%s3 + $0x430] sm:$0xff]
      %v1454 = vld [vmem:[%s3 + $0x438] sm:$0xff]
      %v1455 = vld [vmem:[%s3 + $0x440] sm:$0xff]
      %v1456 = vld [vmem:[%s3 + $0x448] sm:$0xff]
      %v1457 = vld [vmem:[%s3 + $0x450] sm:$0xff]
      %v1458 = vld [vmem:[%s3 + $0x458] sm:$0xff]
      %v1459 = vld [vmem:[%s3 + $0x460] sm:$0xff]
      %v1460 = vld [vmem:[%s3 + $0x468] sm:$0xff]
      %v1461 = vld [vmem:[%s3 + $0x470] sm:$0xff]
      %v1462 = vld [vmem:[%s3 + $0x478] sm:$0xff]
      %1463 = vmatprep.subr.mxu0 0.0
      %1464 = vmatpush1.msra.mxu0 %v1334
      %1465 = vmatprep.subr.mxu0 0.0
      %1466 = vmatpush1.msra.mxu0 %v1333
      %1467 = vmatprep.subr.mxu0 0.0
      %1468 = vmatpush1.msra.mxu0 %v1332
      %1469 = vmatprep.subr.mxu0 0.0
      %1470 = vmatpush1.msra.mxu0 %v1331
      %1471 = vmatprep.subr.mxu0 0.0
      %1472 = vmatpush1.msra.mxu0 %v1330
      %1473 = vmatprep.subr.mxu0 0.0
      %1474 = vmatpush1.msra.mxu0 %v1329
      %1475 = vmatprep.subr.mxu0 0.0
      %1476 = vmatpush1.msra.mxu0 %v1328
      %1477 = vmatprep.subr.mxu0 0.0
      %1478 = vmatpush1.msra.mxu0 %v1327
      %1479 = vmatprep.subr.mxu0 0.0
      %1480 = vmatpush1.msra.mxu0 %v1326
      %1481 = vmatprep.subr.mxu0 0.0
      %1482 = vmatpush1.msra.mxu0 %v1325
      %1483 = vmatprep.subr.mxu0 0.0
      %1484 = vmatpush1.msra.mxu0 %v1324
      %1485 = vmatprep.subr.mxu0 0.0
      %1486 = vmatpush1.msra.mxu0 %v1323
      %1487 = vmatprep.subr.mxu0 0.0
      %1488 = vmatpush1.msra.mxu0 %v1322
      %1489 = vmatprep.subr.mxu0 0.0
      %1490 = vmatpush1.msra.mxu0 %v1321
      %1491 = vmatprep.subr.mxu0 0.0
      %1492 = vmatpush1.msra.mxu0 %v1320
      %1493 = vmatprep.subr.mxu0 0.0
      %1494 = vmatpush1.msra.mxu0 %v1319
      %1495 = vmatprep.subr.mxu0 0.0
      %1496 = vmatpush2.msra.mxu0 %v1350
      %1497 = vmatprep.subr.mxu0 0.0
      %1498 = vmatpush2.msra.mxu0 %v1349
      %1499 = vmatprep.subr.mxu0 0.0
      %1500 = vmatpush2.msra.mxu0 %v1348
      %1501 = vmatprep.subr.mxu0 0.0
      %1502 = vmatpush2.msra.mxu0 %v1347
      %1503 = vmatprep.subr.mxu0 0.0
      %1504 = vmatpush2.msra.mxu0 %v1346
      %1505 = vmatprep.subr.mxu0 0.0
      %1506 = vmatpush2.msra.mxu0 %v1345
      %1507 = vmatprep.subr.mxu0 0.0
      %1508 = vmatpush2.msra.mxu0 %v1344
      %1509 = vmatprep.subr.mxu0 0.0
      %1510 = vmatpush2.msra.mxu0 %v1343
      %1511 = vmatprep.subr.mxu0 0.0
      %1512 = vmatpush2.msra.mxu0 %v1342
      %1513 = vmatprep.subr.mxu0 0.0
      %1514 = vmatpush2.msra.mxu0 %v1341
      %1515 = vmatprep.subr.mxu0 0.0
      %1516 = vmatpush2.msra.mxu0 %v1340
      %1517 = vmatprep.subr.mxu0 0.0
      %1518 = vmatpush2.msra.mxu0 %v1339
      %1519 = vmatprep.subr.mxu0 0.0
      %1520 = vmatpush2.msra.mxu0 %v1338
      %1521 = vmatprep.subr.mxu0 0.0
      %1522 = vmatpush2.msra.mxu0 %v1337
      %1523 = vmatprep.subr.mxu0 0.0
      %1524 = vmatpush2.msra.mxu0 %v1336
      %1525 = vmatprep.subr.mxu0 0.0
      %1526 = vmatpush2.msra.mxu0 %v1335
      %1527 = vmatprep.mubr.f32.mxu0 %v1032
      %1528 = vmatmul.mubr.f32.gmra.mxu0 %v1031
      %v1529 = vpop.f32.mrf.mxu0
      %v1530 = vadd.f32 0.0, %v1529
      %v1531 = vpop.f32.mrf.mxu0
      %1532 = vmatprep.mubr.f32.mxu0 %v1041
      %1533 = vmatmul.mubr.f32.gmra.mxu0 %v1040
      %v1534 = vpop.f32.mrf.mxu0
      %v1535 = vadd.f32 0.0, %v1534
      %v1536 = vpop.f32.mrf.mxu0
      %1537 = vmatprep.mubr.f32.mxu0 %v1050
      %1538 = vmatmul.mubr.f32.gmra.mxu0 %v1049
      %v1539 = vpop.f32.mrf.mxu0
      %v1540 = vadd.f32 0.0, %v1539
      %v1541 = vpop.f32.mrf.mxu0
      %1542 = vmatprep.mubr.f32.mxu0 %v1059
      %1543 = vmatmul.mubr.f32.gmra.mxu0 %v1058
      %v1544 = vpop.f32.mrf.mxu0
      %v1545 = vadd.f32 0.0, %v1544
      %v1546 = vpop.f32.mrf.mxu0
      %1547 = vmatprep.mubr.f32.mxu0 %v1068
      %1548 = vmatmul.mubr.f32.gmra.mxu0 %v1067
      %v1549 = vpop.f32.mrf.mxu0
      %v1550 = vadd.f32 0.0, %v1549
      %v1551 = vpop.f32.mrf.mxu0
      %1552 = vmatprep.mubr.f32.mxu0 %v1077
      %1553 = vmatmul.mubr.f32.gmra.mxu0 %v1076
      %v1554 = vpop.f32.mrf.mxu0
      %v1555 = vadd.f32 0.0, %v1554
      %v1556 = vpop.f32.mrf.mxu0
      %1557 = vmatprep.mubr.f32.mxu0 %v1086
      %1558 = vmatmul.mubr.f32.gmra.mxu0 %v1085
      %v1559 = vpop.f32.mrf.mxu0
      %v1560 = vadd.f32 0.0, %v1559
      %v1561 = vpop.f32.mrf.mxu0
      %1562 = vmatprep.mubr.f32.mxu0 %v1095
      %1563 = vmatmul.mubr.f32.gmra.mxu0 %v1094
      %v1564 = vpop.f32.mrf.mxu0
      %v1565 = vadd.f32 0.0, %v1564
      %v1566 = vpop.f32.mrf.mxu0
      %1567 = vmatprep.mubr.f32.mxu0 %v1104
      %1568 = vmatmul.mubr.f32.gmra.mxu0 %v1103
      %v1569 = vpop.f32.mrf.mxu0
      %v1570 = vadd.f32 0.0, %v1569
      %v1571 = vpop.f32.mrf.mxu0
      %1572 = vmatprep.mubr.f32.mxu0 %v1113
      %1573 = vmatmul.mubr.f32.gmra.mxu0 %v1112
      %v1574 = vpop.f32.mrf.mxu0
      %v1575 = vadd.f32 0.0, %v1574
      %v1576 = vpop.f32.mrf.mxu0
      %1577 = vmatprep.mubr.f32.mxu0 %v1122
      %1578 = vmatmul.mubr.f32.gmra.mxu0 %v1121
      %v1579 = vpop.f32.mrf.mxu0
      %v1580 = vadd.f32 0.0, %v1579
      %v1581 = vpop.f32.mrf.mxu0
      %1582 = vmatprep.mubr.f32.mxu0 %v1131
      %1583 = vmatmul.mubr.f32.gmra.mxu0 %v1130
      %v1584 = vpop.f32.mrf.mxu0
      %v1585 = vadd.f32 0.0, %v1584
      %v1586 = vpop.f32.mrf.mxu0
      %1587 = vmatprep.mubr.f32.mxu0 %v1140
      %1588 = vmatmul.mubr.f32.gmra.mxu0 %v1139
      %v1589 = vpop.f32.mrf.mxu0
      %v1590 = vadd.f32 0.0, %v1589
      %v1591 = vpop.f32.mrf.mxu0
      %1592 = vmatprep.mubr.f32.mxu0 %v1149
      %1593 = vmatmul.mubr.f32.gmra.mxu0 %v1148
      %v1594 = vpop.f32.mrf.mxu0
      %v1595 = vadd.f32 0.0, %v1594
      %v1596 = vpop.f32.mrf.mxu0
      %1597 = vmatprep.mubr.f32.mxu0 %v1158
      %1598 = vmatmul.mubr.f32.gmra.mxu0 %v1157
      %v1599 = vpop.f32.mrf.mxu0
      %v1600 = vadd.f32 0.0, %v1599
      %v1601 = vpop.f32.mrf.mxu0
      %1602 = vmatprep.mubr.f32.mxu0 %v1167
      %1603 = vmatmul.mubr.f32.gmra.mxu0 %v1166
      %v1604 = vpop.f32.mrf.mxu0
      %v1605 = vadd.f32 0.0, %v1604
      %v1606 = vpop.f32.mrf.mxu0
      %1607 = vmatprep.mubr.f32.mxu0 %v1176
      %1608 = vmatmul.mubr.f32.gmra.mxu0 %v1175
      %v1609 = vpop.f32.mrf.mxu0
      %v1610 = vadd.f32 0.0, %v1609
      %v1611 = vpop.f32.mrf.mxu0
      %1612 = vmatprep.mubr.f32.mxu0 %v1185
      %1613 = vmatmul.mubr.f32.gmra.mxu0 %v1184
      %v1614 = vpop.f32.mrf.mxu0
      %v1615 = vadd.f32 0.0, %v1614
      %v1616 = vpop.f32.mrf.mxu0
      %1617 = vmatprep.mubr.f32.mxu0 %v1194
      %1618 = vmatmul.mubr.f32.gmra.mxu0 %v1193
      %v1619 = vpop.f32.mrf.mxu0
      %v1620 = vadd.f32 0.0, %v1619
      %v1621 = vpop.f32.mrf.mxu0
      %1622 = vmatprep.mubr.f32.mxu0 %v1203
      %1623 = vmatmul.mubr.f32.gmra.mxu0 %v1202
      %v1624 = vpop.f32.mrf.mxu0
      %v1625 = vadd.f32 0.0, %v1624
      %v1626 = vpop.f32.mrf.mxu0
      %1627 = vmatprep.mubr.f32.mxu0 %v1212
      %1628 = vmatmul.mubr.f32.gmra.mxu0 %v1211
      %v1629 = vpop.f32.mrf.mxu0
      %v1630 = vadd.f32 0.0, %v1629
      %v1631 = vpop.f32.mrf.mxu0
      %1632 = vmatprep.mubr.f32.mxu0 %v1221
      %1633 = vmatmul.mubr.f32.gmra.mxu0 %v1220
      %v1634 = vpop.f32.mrf.mxu0
      %v1635 = vadd.f32 0.0, %v1634
      %v1636 = vpop.f32.mrf.mxu0
      %1637 = vmatprep.mubr.f32.mxu0 %v1230
      %1638 = vmatmul.mubr.f32.gmra.mxu0 %v1229
      %v1639 = vpop.f32.mrf.mxu0
      %v1640 = vadd.f32 0.0, %v1639
      %v1641 = vpop.f32.mrf.mxu0
      %1642 = vmatprep.mubr.f32.mxu0 %v1239
      %1643 = vmatmul.mubr.f32.gmra.mxu0 %v1238
      %v1644 = vpop.f32.mrf.mxu0
      %v1645 = vadd.f32 0.0, %v1644
      %v1646 = vpop.f32.mrf.mxu0
      %1647 = vmatprep.mubr.f32.mxu0 %v1248
      %1648 = vmatmul.mubr.f32.gmra.mxu0 %v1247
      %v1649 = vpop.f32.mrf.mxu0
      %v1650 = vadd.f32 0.0, %v1649
      %v1651 = vpop.f32.mrf.mxu0
      %1652 = vmatprep.mubr.f32.mxu0 %v1257
      %1653 = vmatmul.mubr.f32.gmra.mxu0 %v1256
      %v1654 = vpop.f32.mrf.mxu0
      %v1655 = vadd.f32 0.0, %v1654
      %v1656 = vpop.f32.mrf.mxu0
      %1657 = vmatprep.mubr.f32.mxu0 %v1266
      %1658 = vmatmul.mubr.f32.gmra.mxu0 %v1265
      %v1659 = vpop.f32.mrf.mxu0
      %v1660 = vadd.f32 0.0, %v1659
      %v1661 = vpop.f32.mrf.mxu0
      %1662 = vmatprep.mubr.f32.mxu0 %v1275
      %1663 = vmatmul.mubr.f32.gmra.mxu0 %v1274
      %v1664 = vpop.f32.mrf.mxu0
      %v1665 = vadd.f32 0.0, %v1664
      %v1666 = vpop.f32.mrf.mxu0
      %1667 = vmatprep.mubr.f32.mxu0 %v1284
      %1668 = vmatmul.mubr.f32.gmra.mxu0 %v1283
      %v1669 = vpop.f32.mrf.mxu0
      %v1670 = vadd.f32 0.0, %v1669
      %v1671 = vpop.f32.mrf.mxu0
      %1672 = vmatprep.mubr.f32.mxu0 %v1293
      %1673 = vmatmul.mubr.f32.gmra.mxu0 %v1292
      %v1674 = vpop.f32.mrf.mxu0
      %v1675 = vadd.f32 0.0, %v1674
      %v1676 = vpop.f32.mrf.mxu0
      %1677 = vmatprep.mubr.f32.mxu0 %v1302
      %1678 = vmatmul.mubr.f32.gmra.mxu0 %v1301
      %v1679 = vpop.f32.mrf.mxu0
      %v1680 = vadd.f32 0.0, %v1679
      %v1681 = vpop.f32.mrf.mxu0
      %1682 = vmatprep.mubr.f32.mxu0 %v1311
      %1683 = vmatmul.mubr.f32.gmra.mxu0 %v1310
      %v1684 = vpop.f32.mrf.mxu0
      %v1685 = vadd.f32 0.0, %v1684
      %v1686 = vpop.f32.mrf.mxu0
      %1687 = vdwg.mxu0
      %1688 = vmatprep.subr.mxu0 0.0
      %1689 = vmatpush1.msra.mxu0 %v1366
      %1690 = vmatprep.subr.mxu0 0.0
      %1691 = vmatpush1.msra.mxu0 %v1365
      %1692 = vmatprep.subr.mxu0 0.0
      %1693 = vmatpush1.msra.mxu0 %v1364
      %1694 = vmatprep.subr.mxu0 0.0
      %1695 = vmatpush1.msra.mxu0 %v1363
      %1696 = vmatprep.subr.mxu0 0.0
      %1697 = vmatpush1.msra.mxu0 %v1362
      %1698 = vmatprep.subr.mxu0 0.0
      %1699 = vmatpush1.msra.mxu0 %v1361
      %1700 = vmatprep.subr.mxu0 0.0
      %1701 = vmatpush1.msra.mxu0 %v1360
      %1702 = vmatprep.subr.mxu0 0.0
      %1703 = vmatpush1.msra.mxu0 %v1359
      %1704 = vmatprep.subr.mxu0 0.0
      %1705 = vmatpush1.msra.mxu0 %v1358
      %1706 = vmatprep.subr.mxu0 0.0
      %1707 = vmatpush1.msra.mxu0 %v1357
      %1708 = vmatprep.subr.mxu0 0.0
      %1709 = vmatpush1.msra.mxu0 %v1356
      %1710 = vmatprep.subr.mxu0 0.0
      %1711 = vmatpush1.msra.mxu0 %v1355
      %1712 = vmatprep.subr.mxu0 0.0
      %1713 = vmatpush1.msra.mxu0 %v1354
      %1714 = vmatprep.subr.mxu0 0.0
      %1715 = vmatpush1.msra.mxu0 %v1353
      %1716 = vmatprep.subr.mxu0 0.0
      %1717 = vmatpush1.msra.mxu0 %v1352
      %1718 = vmatprep.subr.mxu0 0.0
      %1719 = vmatpush1.msra.mxu0 %v1351
      %1720 = vmatprep.subr.mxu0 0.0
      %1721 = vmatpush2.msra.mxu0 %v1382
      %1722 = vmatprep.subr.mxu0 0.0
      %1723 = vmatpush2.msra.mxu0 %v1381
      %1724 = vmatprep.subr.mxu0 0.0
      %1725 = vmatpush2.msra.mxu0 %v1380
      %1726 = vmatprep.subr.mxu0 0.0
      %1727 = vmatpush2.msra.mxu0 %v1379
      %1728 = vmatprep.subr.mxu0 0.0
      %1729 = vmatpush2.msra.mxu0 %v1378
      %1730 = vmatprep.subr.mxu0 0.0
      %1731 = vmatpush2.msra.mxu0 %v1377
      %1732 = vmatprep.subr.mxu0 0.0
      %1733 = vmatpush2.msra.mxu0 %v1376
      %1734 = vmatprep.subr.mxu0 0.0
      %1735 = vmatpush2.msra.mxu0 %v1375
      %1736 = vmatprep.subr.mxu0 0.0
      %1737 = vmatpush2.msra.mxu0 %v1374
      %1738 = vmatprep.subr.mxu0 0.0
      %1739 = vmatpush2.msra.mxu0 %v1373
      %1740 = vmatprep.subr.mxu0 0.0
      %1741 = vmatpush2.msra.mxu0 %v1372
      %1742 = vmatprep.subr.mxu0 0.0
      %1743 = vmatpush2.msra.mxu0 %v1371
      %1744 = vmatprep.subr.mxu0 0.0
      %1745 = vmatpush2.msra.mxu0 %v1370
      %1746 = vmatprep.subr.mxu0 0.0
      %1747 = vmatpush2.msra.mxu0 %v1369
      %1748 = vmatprep.subr.mxu0 0.0
      %1749 = vmatpush2.msra.mxu0 %v1368
      %1750 = vmatprep.subr.mxu0 0.0
      %1751 = vmatpush2.msra.mxu0 %v1367
      %1752 = vmatprep.mubr.f32.mxu0 %v1034
      %1753 = vmatmul.mubr.f32.gmra.mxu0 %v1033
      %v1754 = vpop.f32.mrf.mxu0
      %v1755 = vadd.f32 %v1530, %v1754
      %v1756 = vpop.f32.mrf.mxu0
      %1757 = vmatprep.mubr.f32.mxu0 %v1043
      %1758 = vmatmul.mubr.f32.gmra.mxu0 %v1042
      %v1759 = vpop.f32.mrf.mxu0
      %v1760 = vadd.f32 %v1535, %v1759
      %v1761 = vpop.f32.mrf.mxu0
      %1762 = vmatprep.mubr.f32.mxu0 %v1052
      %1763 = vmatmul.mubr.f32.gmra.mxu0 %v1051
      %v1764 = vpop.f32.mrf.mxu0
      %v1765 = vadd.f32 %v1540, %v1764
      %v1766 = vpop.f32.mrf.mxu0
      %1767 = vmatprep.mubr.f32.mxu0 %v1061
      %1768 = vmatmul.mubr.f32.gmra.mxu0 %v1060
      %v1769 = vpop.f32.mrf.mxu0
      %v1770 = vadd.f32 %v1545, %v1769
      %v1771 = vpop.f32.mrf.mxu0
      %1772 = vmatprep.mubr.f32.mxu0 %v1070
      %1773 = vmatmul.mubr.f32.gmra.mxu0 %v1069
      %v1774 = vpop.f32.mrf.mxu0
      %v1775 = vadd.f32 %v1550, %v1774
      %v1776 = vpop.f32.mrf.mxu0
      %1777 = vmatprep.mubr.f32.mxu0 %v1079
      %1778 = vmatmul.mubr.f32.gmra.mxu0 %v1078
      %v1779 = vpop.f32.mrf.mxu0
      %v1780 = vadd.f32 %v1555, %v1779
      %v1781 = vpop.f32.mrf.mxu0
      %1782 = vmatprep.mubr.f32.mxu0 %v1088
      %1783 = vmatmul.mubr.f32.gmra.mxu0 %v1087
      %v1784 = vpop.f32.mrf.mxu0
      %v1785 = vadd.f32 %v1560, %v1784
      %v1786 = vpop.f32.mrf.mxu0
      %1787 = vmatprep.mubr.f32.mxu0 %v1097
      %1788 = vmatmul.mubr.f32.gmra.mxu0 %v1096
      %v1789 = vpop.f32.mrf.mxu0
      %v1790 = vadd.f32 %v1565, %v1789
      %v1791 = vpop.f32.mrf.mxu0
      %1792 = vmatprep.mubr.f32.mxu0 %v1106
      %1793 = vmatmul.mubr.f32.gmra.mxu0 %v1105
      %v1794 = vpop.f32.mrf.mxu0
      %v1795 = vadd.f32 %v1570, %v1794
      %v1796 = vpop.f32.mrf.mxu0
      %1797 = vmatprep.mubr.f32.mxu0 %v1115
      %1798 = vmatmul.mubr.f32.gmra.mxu0 %v1114
      %v1799 = vpop.f32.mrf.mxu0
      %v1800 = vadd.f32 %v1575, %v1799
      %v1801 = vpop.f32.mrf.mxu0
      %1802 = vmatprep.mubr.f32.mxu0 %v1124
      %1803 = vmatmul.mubr.f32.gmra.mxu0 %v1123
      %v1804 = vpop.f32.mrf.mxu0
      %v1805 = vadd.f32 %v1580, %v1804
      %v1806 = vpop.f32.mrf.mxu0
      %1807 = vmatprep.mubr.f32.mxu0 %v1133
      %1808 = vmatmul.mubr.f32.gmra.mxu0 %v1132
      %v1809 = vpop.f32.mrf.mxu0
      %v1810 = vadd.f32 %v1585, %v1809
      %v1811 = vpop.f32.mrf.mxu0
      %1812 = vmatprep.mubr.f32.mxu0 %v1142
      %1813 = vmatmul.mubr.f32.gmra.mxu0 %v1141
      %v1814 = vpop.f32.mrf.mxu0
      %v1815 = vadd.f32 %v1590, %v1814
      %v1816 = vpop.f32.mrf.mxu0
      %1817 = vmatprep.mubr.f32.mxu0 %v1151
      %1818 = vmatmul.mubr.f32.gmra.mxu0 %v1150
      %v1819 = vpop.f32.mrf.mxu0
      %v1820 = vadd.f32 %v1595, %v1819
      %v1821 = vpop.f32.mrf.mxu0
      %1822 = vmatprep.mubr.f32.mxu0 %v1160
      %1823 = vmatmul.mubr.f32.gmra.mxu0 %v1159
      %v1824 = vpop.f32.mrf.mxu0
      %v1825 = vadd.f32 %v1600, %v1824
      %v1826 = vpop.f32.mrf.mxu0
      %1827 = vmatprep.mubr.f32.mxu0 %v1169
      %1828 = vmatmul.mubr.f32.gmra.mxu0 %v1168
      %v1829 = vpop.f32.mrf.mxu0
      %v1830 = vadd.f32 %v1605, %v1829
      %v1831 = vpop.f32.mrf.mxu0
      %1832 = vmatprep.mubr.f32.mxu0 %v1178
      %1833 = vmatmul.mubr.f32.gmra.mxu0 %v1177
      %v1834 = vpop.f32.mrf.mxu0
      %v1835 = vadd.f32 %v1610, %v1834
      %v1836 = vpop.f32.mrf.mxu0
      %1837 = vmatprep.mubr.f32.mxu0 %v1187
      %1838 = vmatmul.mubr.f32.gmra.mxu0 %v1186
      %v1839 = vpop.f32.mrf.mxu0
      %v1840 = vadd.f32 %v1615, %v1839
      %v1841 = vpop.f32.mrf.mxu0
      %1842 = vmatprep.mubr.f32.mxu0 %v1196
      %1843 = vmatmul.mubr.f32.gmra.mxu0 %v1195
      %v1844 = vpop.f32.mrf.mxu0
      %v1845 = vadd.f32 %v1620, %v1844
      %v1846 = vpop.f32.mrf.mxu0
      %1847 = vmatprep.mubr.f32.mxu0 %v1205
      %1848 = vmatmul.mubr.f32.gmra.mxu0 %v1204
      %v1849 = vpop.f32.mrf.mxu0
      %v1850 = vadd.f32 %v1625, %v1849
      %v1851 = vpop.f32.mrf.mxu0
      %1852 = vmatprep.mubr.f32.mxu0 %v1214
      %1853 = vmatmul.mubr.f32.gmra.mxu0 %v1213
      %v1854 = vpop.f32.mrf.mxu0
      %v1855 = vadd.f32 %v1630, %v1854
      %v1856 = vpop.f32.mrf.mxu0
      %1857 = vmatprep.mubr.f32.mxu0 %v1223
      %1858 = vmatmul.mubr.f32.gmra.mxu0 %v1222
      %v1859 = vpop.f32.mrf.mxu0
      %v1860 = vadd.f32 %v1635, %v1859
      %v1861 = vpop.f32.mrf.mxu0
      %1862 = vmatprep.mubr.f32.mxu0 %v1232
      %1863 = vmatmul.mubr.f32.gmra.mxu0 %v1231
      %v1864 = vpop.f32.mrf.mxu0
      %v1865 = vadd.f32 %v1640, %v1864
      %v1866 = vpop.f32.mrf.mxu0
      %1867 = vmatprep.mubr.f32.mxu0 %v1241
      %1868 = vmatmul.mubr.f32.gmra.mxu0 %v1240
      %v1869 = vpop.f32.mrf.mxu0
      %v1870 = vadd.f32 %v1645, %v1869
      %v1871 = vpop.f32.mrf.mxu0
      %1872 = vmatprep.mubr.f32.mxu0 %v1250
      %1873 = vmatmul.mubr.f32.gmra.mxu0 %v1249
      %v1874 = vpop.f32.mrf.mxu0
      %v1875 = vadd.f32 %v1650, %v1874
      %v1876 = vpop.f32.mrf.mxu0
      %1877 = vmatprep.mubr.f32.mxu0 %v1259
      %1878 = vmatmul.mubr.f32.gmra.mxu0 %v1258
      %v1879 = vpop.f32.mrf.mxu0
      %v1880 = vadd.f32 %v1655, %v1879
      %v1881 = vpop.f32.mrf.mxu0
      %1882 = vmatprep.mubr.f32.mxu0 %v1268
      %1883 = vmatmul.mubr.f32.gmra.mxu0 %v1267
      %v1884 = vpop.f32.mrf.mxu0
      %v1885 = vadd.f32 %v1660, %v1884
      %v1886 = vpop.f32.mrf.mxu0
      %1887 = vmatprep.mubr.f32.mxu0 %v1277
      %1888 = vmatmul.mubr.f32.gmra.mxu0 %v1276
      %v1889 = vpop.f32.mrf.mxu0
      %v1890 = vadd.f32 %v1665, %v1889
      %v1891 = vpop.f32.mrf.mxu0
      %1892 = vmatprep.mubr.f32.mxu0 %v1286
      %1893 = vmatmul.mubr.f32.gmra.mxu0 %v1285
      %v1894 = vpop.f32.mrf.mxu0
      %v1895 = vadd.f32 %v1670, %v1894
      %v1896 = vpop.f32.mrf.mxu0
      %1897 = vmatprep.mubr.f32.mxu0 %v1295
      %1898 = vmatmul.mubr.f32.gmra.mxu0 %v1294
      %v1899 = vpop.f32.mrf.mxu0
      %v1900 = vadd.f32 %v1675, %v1899
      %v1901 = vpop.f32.mrf.mxu0
      %1902 = vmatprep.mubr.f32.mxu0 %v1304
      %1903 = vmatmul.mubr.f32.gmra.mxu0 %v1303
      %v1904 = vpop.f32.mrf.mxu0
      %v1905 = vadd.f32 %v1680, %v1904
      %v1906 = vpop.f32.mrf.mxu0
      %1907 = vmatprep.mubr.f32.mxu0 %v1313
      %1908 = vmatmul.mubr.f32.gmra.mxu0 %v1312
      %v1909 = vpop.f32.mrf.mxu0
      %v1910 = vadd.f32 %v1685, %v1909
      %v1911 = vpop.f32.mrf.mxu0
      %1912 = vdwg.mxu0
      %1913 = vmatprep.subr.mxu0 0.0
      %1914 = vmatpush1.msra.mxu0 %v1398
      %1915 = vmatprep.subr.mxu0 0.0
      %1916 = vmatpush1.msra.mxu0 %v1397
      %1917 = vmatprep.subr.mxu0 0.0
      %1918 = vmatpush1.msra.mxu0 %v1396
      %1919 = vmatprep.subr.mxu0 0.0
      %1920 = vmatpush1.msra.mxu0 %v1395
      %1921 = vmatprep.subr.mxu0 0.0
      %1922 = vmatpush1.msra.mxu0 %v1394
      %1923 = vmatprep.subr.mxu0 0.0
      %1924 = vmatpush1.msra.mxu0 %v1393
      %1925 = vmatprep.subr.mxu0 0.0
      %1926 = vmatpush1.msra.mxu0 %v1392
      %1927 = vmatprep.subr.mxu0 0.0
      %1928 = vmatpush1.msra.mxu0 %v1391
      %1929 = vmatprep.subr.mxu0 0.0
      %1930 = vmatpush1.msra.mxu0 %v1390
      %1931 = vmatprep.subr.mxu0 0.0
      %1932 = vmatpush1.msra.mxu0 %v1389
      %1933 = vmatprep.subr.mxu0 0.0
      %1934 = vmatpush1.msra.mxu0 %v1388
      %1935 = vmatprep.subr.mxu0 0.0
      %1936 = vmatpush1.msra.mxu0 %v1387
      %1937 = vmatprep.subr.mxu0 0.0
      %1938 = vmatpush1.msra.mxu0 %v1386
      %1939 = vmatprep.subr.mxu0 0.0
      %1940 = vmatpush1.msra.mxu0 %v1385
      %1941 = vmatprep.subr.mxu0 0.0
      %1942 = vmatpush1.msra.mxu0 %v1384
      %1943 = vmatprep.subr.mxu0 0.0
      %1944 = vmatpush1.msra.mxu0 %v1383
      %1945 = vmatprep.subr.mxu0 0.0
      %1946 = vmatpush2.msra.mxu0 %v1414
      %1947 = vmatprep.subr.mxu0 0.0
      %1948 = vmatpush2.msra.mxu0 %v1413
      %1949 = vmatprep.subr.mxu0 0.0
      %1950 = vmatpush2.msra.mxu0 %v1412
      %1951 = vmatprep.subr.mxu0 0.0
      %1952 = vmatpush2.msra.mxu0 %v1411
      %1953 = vmatprep.subr.mxu0 0.0
      %1954 = vmatpush2.msra.mxu0 %v1410
      %1955 = vmatprep.subr.mxu0 0.0
      %1956 = vmatpush2.msra.mxu0 %v1409
      %1957 = vmatprep.subr.mxu0 0.0
      %1958 = vmatpush2.msra.mxu0 %v1408
      %1959 = vmatprep.subr.mxu0 0.0
      %1960 = vmatpush2.msra.mxu0 %v1407
      %1961 = vmatprep.subr.mxu0 0.0
      %1962 = vmatpush2.msra.mxu0 %v1406
      %1963 = vmatprep.subr.mxu0 0.0
      %1964 = vmatpush2.msra.mxu0 %v1405
      %1965 = vmatprep.subr.mxu0 0.0
      %1966 = vmatpush2.msra.mxu0 %v1404
      %1967 = vmatprep.subr.mxu0 0.0
      %1968 = vmatpush2.msra.mxu0 %v1403
      %1969 = vmatprep.subr.mxu0 0.0
      %1970 = vmatpush2.msra.mxu0 %v1402
      %1971 = vmatprep.subr.mxu0 0.0
      %1972 = vmatpush2.msra.mxu0 %v1401
      %1973 = vmatprep.subr.mxu0 0.0
      %1974 = vmatpush2.msra.mxu0 %v1400
      %1975 = vmatprep.subr.mxu0 0.0
      %1976 = vmatpush2.msra.mxu0 %v1399
      %1977 = vmatprep.mubr.f32.mxu0 %v1036
      %1978 = vmatmul.mubr.f32.gmra.mxu0 %v1035
      %v1979 = vpop.f32.mrf.mxu0
      %v1980 = vadd.f32 %v1755, %v1979
      %v1981 = vpop.f32.mrf.mxu0
      %1982 = vmatprep.mubr.f32.mxu0 %v1045
      %1983 = vmatmul.mubr.f32.gmra.mxu0 %v1044
      %v1984 = vpop.f32.mrf.mxu0
      %v1985 = vadd.f32 %v1760, %v1984
      %v1986 = vpop.f32.mrf.mxu0
      %1987 = vmatprep.mubr.f32.mxu0 %v1054
      %1988 = vmatmul.mubr.f32.gmra.mxu0 %v1053
      %v1989 = vpop.f32.mrf.mxu0
      %v1990 = vadd.f32 %v1765, %v1989
      %v1991 = vpop.f32.mrf.mxu0
      %1992 = vmatprep.mubr.f32.mxu0 %v1063
      %1993 = vmatmul.mubr.f32.gmra.mxu0 %v1062
      %v1994 = vpop.f32.mrf.mxu0
      %v1995 = vadd.f32 %v1770, %v1994
      %v1996 = vpop.f32.mrf.mxu0
      %1997 = vmatprep.mubr.f32.mxu0 %v1072
      %1998 = vmatmul.mubr.f32.gmra.mxu0 %v1071
      %v1999 = vpop.f32.mrf.mxu0
      %v2000 = vadd.f32 %v1775, %v1999
      %v2001 = vpop.f32.mrf.mxu0
      %2002 = vmatprep.mubr.f32.mxu0 %v1081
      %2003 = vmatmul.mubr.f32.gmra.mxu0 %v1080
      %v2004 = vpop.f32.mrf.mxu0
      %v2005 = vadd.f32 %v1780, %v2004
      %v2006 = vpop.f32.mrf.mxu0
      %2007 = vmatprep.mubr.f32.mxu0 %v1090
      %2008 = vmatmul.mubr.f32.gmra.mxu0 %v1089
      %v2009 = vpop.f32.mrf.mxu0
      %v2010 = vadd.f32 %v1785, %v2009
      %v2011 = vpop.f32.mrf.mxu0
      %2012 = vmatprep.mubr.f32.mxu0 %v1099
      %2013 = vmatmul.mubr.f32.gmra.mxu0 %v1098
      %v2014 = vpop.f32.mrf.mxu0
      %v2015 = vadd.f32 %v1790, %v2014
      %v2016 = vpop.f32.mrf.mxu0
      %2017 = vmatprep.mubr.f32.mxu0 %v1108
      %2018 = vmatmul.mubr.f32.gmra.mxu0 %v1107
      %v2019 = vpop.f32.mrf.mxu0
      %v2020 = vadd.f32 %v1795, %v2019
      %v2021 = vpop.f32.mrf.mxu0
      %2022 = vmatprep.mubr.f32.mxu0 %v1117
      %2023 = vmatmul.mubr.f32.gmra.mxu0 %v1116
      %v2024 = vpop.f32.mrf.mxu0
      %v2025 = vadd.f32 %v1800, %v2024
      %v2026 = vpop.f32.mrf.mxu0
      %2027 = vmatprep.mubr.f32.mxu0 %v1126
      %2028 = vmatmul.mubr.f32.gmra.mxu0 %v1125
      %v2029 = vpop.f32.mrf.mxu0
      %v2030 = vadd.f32 %v1805, %v2029
      %v2031 = vpop.f32.mrf.mxu0
      %2032 = vmatprep.mubr.f32.mxu0 %v1135
      %2033 = vmatmul.mubr.f32.gmra.mxu0 %v1134
      %v2034 = vpop.f32.mrf.mxu0
      %v2035 = vadd.f32 %v1810, %v2034
      %v2036 = vpop.f32.mrf.mxu0
      %2037 = vmatprep.mubr.f32.mxu0 %v1144
      %2038 = vmatmul.mubr.f32.gmra.mxu0 %v1143
      %v2039 = vpop.f32.mrf.mxu0
      %v2040 = vadd.f32 %v1815, %v2039
      %v2041 = vpop.f32.mrf.mxu0
      %2042 = vmatprep.mubr.f32.mxu0 %v1153
      %2043 = vmatmul.mubr.f32.gmra.mxu0 %v1152
      %v2044 = vpop.f32.mrf.mxu0
      %v2045 = vadd.f32 %v1820, %v2044
      %v2046 = vpop.f32.mrf.mxu0
      %2047 = vmatprep.mubr.f32.mxu0 %v1162
      %2048 = vmatmul.mubr.f32.gmra.mxu0 %v1161
      %v2049 = vpop.f32.mrf.mxu0
      %v2050 = vadd.f32 %v1825, %v2049
      %v2051 = vpop.f32.mrf.mxu0
      %2052 = vmatprep.mubr.f32.mxu0 %v1171
      %2053 = vmatmul.mubr.f32.gmra.mxu0 %v1170
      %v2054 = vpop.f32.mrf.mxu0
      %v2055 = vadd.f32 %v1830, %v2054
      %v2056 = vpop.f32.mrf.mxu0
      %2057 = vmatprep.mubr.f32.mxu0 %v1180
      %2058 = vmatmul.mubr.f32.gmra.mxu0 %v1179
      %v2059 = vpop.f32.mrf.mxu0
      %v2060 = vadd.f32 %v1835, %v2059
      %v2061 = vpop.f32.mrf.mxu0
      %2062 = vmatprep.mubr.f32.mxu0 %v1189
      %2063 = vmatmul.mubr.f32.gmra.mxu0 %v1188
      %v2064 = vpop.f32.mrf.mxu0
      %v2065 = vadd.f32 %v1840, %v2064
      %v2066 = vpop.f32.mrf.mxu0
      %2067 = vmatprep.mubr.f32.mxu0 %v1198
      %2068 = vmatmul.mubr.f32.gmra.mxu0 %v1197
      %v2069 = vpop.f32.mrf.mxu0
      %v2070 = vadd.f32 %v1845, %v2069
      %v2071 = vpop.f32.mrf.mxu0
      %2072 = vmatprep.mubr.f32.mxu0 %v1207
      %2073 = vmatmul.mubr.f32.gmra.mxu0 %v1206
      %v2074 = vpop.f32.mrf.mxu0
      %v2075 = vadd.f32 %v1850, %v2074
      %v2076 = vpop.f32.mrf.mxu0
      %2077 = vmatprep.mubr.f32.mxu0 %v1216
      %2078 = vmatmul.mubr.f32.gmra.mxu0 %v1215
      %v2079 = vpop.f32.mrf.mxu0
      %v2080 = vadd.f32 %v1855, %v2079
      %v2081 = vpop.f32.mrf.mxu0
      %2082 = vmatprep.mubr.f32.mxu0 %v1225
      %2083 = vmatmul.mubr.f32.gmra.mxu0 %v1224
      %v2084 = vpop.f32.mrf.mxu0
      %v2085 = vadd.f32 %v1860, %v2084
      %v2086 = vpop.f32.mrf.mxu0
      %2087 = vmatprep.mubr.f32.mxu0 %v1234
      %2088 = vmatmul.mubr.f32.gmra.mxu0 %v1233
      %v2089 = vpop.f32.mrf.mxu0
      %v2090 = vadd.f32 %v1865, %v2089
      %v2091 = vpop.f32.mrf.mxu0
      %2092 = vmatprep.mubr.f32.mxu0 %v1243
      %2093 = vmatmul.mubr.f32.gmra.mxu0 %v1242
      %v2094 = vpop.f32.mrf.mxu0
      %v2095 = vadd.f32 %v1870, %v2094
      %v2096 = vpop.f32.mrf.mxu0
      %2097 = vmatprep.mubr.f32.mxu0 %v1252
      %2098 = vmatmul.mubr.f32.gmra.mxu0 %v1251
      %v2099 = vpop.f32.mrf.mxu0
      %v2100 = vadd.f32 %v1875, %v2099
      %v2101 = vpop.f32.mrf.mxu0
      %2102 = vmatprep.mubr.f32.mxu0 %v1261
      %2103 = vmatmul.mubr.f32.gmra.mxu0 %v1260
      %v2104 = vpop.f32.mrf.mxu0
      %v2105 = vadd.f32 %v1880, %v2104
      %v2106 = vpop.f32.mrf.mxu0
      %2107 = vmatprep.mubr.f32.mxu0 %v1270
      %2108 = vmatmul.mubr.f32.gmra.mxu0 %v1269
      %v2109 = vpop.f32.mrf.mxu0
      %v2110 = vadd.f32 %v1885, %v2109
      %v2111 = vpop.f32.mrf.mxu0
      %2112 = vmatprep.mubr.f32.mxu0 %v1279
      %2113 = vmatmul.mubr.f32.gmra.mxu0 %v1278
      %v2114 = vpop.f32.mrf.mxu0
      %v2115 = vadd.f32 %v1890, %v2114
      %v2116 = vpop.f32.mrf.mxu0
      %2117 = vmatprep.mubr.f32.mxu0 %v1288
      %2118 = vmatmul.mubr.f32.gmra.mxu0 %v1287
      %v2119 = vpop.f32.mrf.mxu0
      %v2120 = vadd.f32 %v1895, %v2119
      %v2121 = vpop.f32.mrf.mxu0
      %2122 = vmatprep.mubr.f32.mxu0 %v1297
      %2123 = vmatmul.mubr.f32.gmra.mxu0 %v1296
      %v2124 = vpop.f32.mrf.mxu0
      %v2125 = vadd.f32 %v1900, %v2124
      %v2126 = vpop.f32.mrf.mxu0
      %2127 = vmatprep.mubr.f32.mxu0 %v1306
      %2128 = vmatmul.mubr.f32.gmra.mxu0 %v1305
      %v2129 = vpop.f32.mrf.mxu0
      %v2130 = vadd.f32 %v1905, %v2129
      %v2131 = vpop.f32.mrf.mxu0
      %2132 = vmatprep.mubr.f32.mxu0 %v1315
      %2133 = vmatmul.mubr.f32.gmra.mxu0 %v1314
      %v2134 = vpop.f32.mrf.mxu0
      %v2135 = vadd.f32 %v1910, %v2134
      %v2136 = vpop.f32.mrf.mxu0
      %2137 = vdwg.mxu0
      %2138 = vmatprep.subr.mxu0 0.0
      %2139 = vmatpush1.msra.mxu0 %v1430
      %2140 = vmatprep.subr.mxu0 0.0
      %2141 = vmatpush1.msra.mxu0 %v1429
      %2142 = vmatprep.subr.mxu0 0.0
      %2143 = vmatpush1.msra.mxu0 %v1428
      %2144 = vmatprep.subr.mxu0 0.0
      %2145 = vmatpush1.msra.mxu0 %v1427
      %2146 = vmatprep.subr.mxu0 0.0
      %2147 = vmatpush1.msra.mxu0 %v1426
      %2148 = vmatprep.subr.mxu0 0.0
      %2149 = vmatpush1.msra.mxu0 %v1425
      %2150 = vmatprep.subr.mxu0 0.0
      %2151 = vmatpush1.msra.mxu0 %v1424
      %2152 = vmatprep.subr.mxu0 0.0
      %2153 = vmatpush1.msra.mxu0 %v1423
      %2154 = vmatprep.subr.mxu0 0.0
      %2155 = vmatpush1.msra.mxu0 %v1422
      %2156 = vmatprep.subr.mxu0 0.0
      %2157 = vmatpush1.msra.mxu0 %v1421
      %2158 = vmatprep.subr.mxu0 0.0
      %2159 = vmatpush1.msra.mxu0 %v1420
      %2160 = vmatprep.subr.mxu0 0.0
      %2161 = vmatpush1.msra.mxu0 %v1419
      %2162 = vmatprep.subr.mxu0 0.0
      %2163 = vmatpush1.msra.mxu0 %v1418
      %2164 = vmatprep.subr.mxu0 0.0
      %2165 = vmatpush1.msra.mxu0 %v1417
      %2166 = vmatprep.subr.mxu0 0.0
      %2167 = vmatpush1.msra.mxu0 %v1416
      %2168 = vmatprep.subr.mxu0 0.0
      %2169 = vmatpush1.msra.mxu0 %v1415
      %2170 = vmatprep.subr.mxu0 0.0
      %2171 = vmatpush2.msra.mxu0 %v1446
      %2172 = vmatprep.subr.mxu0 0.0
      %2173 = vmatpush2.msra.mxu0 %v1445
      %2174 = vmatprep.subr.mxu0 0.0
      %2175 = vmatpush2.msra.mxu0 %v1444
      %2176 = vmatprep.subr.mxu0 0.0
      %2177 = vmatpush2.msra.mxu0 %v1443
      %2178 = vmatprep.subr.mxu0 0.0
      %2179 = vmatpush2.msra.mxu0 %v1442
      %2180 = vmatprep.subr.mxu0 0.0
      %2181 = vmatpush2.msra.mxu0 %v1441
      %2182 = vmatprep.subr.mxu0 0.0
      %2183 = vmatpush2.msra.mxu0 %v1440
      %2184 = vmatprep.subr.mxu0 0.0
      %2185 = vmatpush2.msra.mxu0 %v1439
      %2186 = vmatprep.subr.mxu0 0.0
      %2187 = vmatpush2.msra.mxu0 %v1438
      %2188 = vmatprep.subr.mxu0 0.0
      %2189 = vmatpush2.msra.mxu0 %v1437
      %2190 = vmatprep.subr.mxu0 0.0
      %2191 = vmatpush2.msra.mxu0 %v1436
      %2192 = vmatprep.subr.mxu0 0.0
      %2193 = vmatpush2.msra.mxu0 %v1435
      %2194 = vmatprep.subr.mxu0 0.0
      %2195 = vmatpush2.msra.mxu0 %v1434
      %2196 = vmatprep.subr.mxu0 0.0
      %2197 = vmatpush2.msra.mxu0 %v1433
      %2198 = vmatprep.subr.mxu0 0.0
      %2199 = vmatpush2.msra.mxu0 %v1432
      %2200 = vmatprep.subr.mxu0 0.0
      %2201 = vmatpush2.msra.mxu0 %v1431
      %2202 = vmatprep.mubr.f32.mxu0 %v1038
      %2203 = vmatmul.mubr.f32.gmra.mxu0 %v1037
      %v2204 = vpop.f32.mrf.mxu0
      %v2205 = vadd.f32 %v1980, %v2204
      %v2206 = vpop.f32.mrf.mxu0
      %2207 = vmatprep.mubr.f32.mxu0 %v1047
      %2208 = vmatmul.mubr.f32.gmra.mxu0 %v1046
      %v2209 = vpop.f32.mrf.mxu0
      %v2210 = vadd.f32 %v1985, %v2209
      %v2211 = vpop.f32.mrf.mxu0
      %2212 = vmatprep.mubr.f32.mxu0 %v1056
      %2213 = vmatmul.mubr.f32.gmra.mxu0 %v1055
      %v2214 = vpop.f32.mrf.mxu0
      %v2215 = vadd.f32 %v1990, %v2214
      %v2216 = vpop.f32.mrf.mxu0
      %2217 = vmatprep.mubr.f32.mxu0 %v1065
      %2218 = vmatmul.mubr.f32.gmra.mxu0 %v1064
      %v2219 = vpop.f32.mrf.mxu0
      %v2220 = vadd.f32 %v1995, %v2219
      %v2221 = vpop.f32.mrf.mxu0
      %2222 = vmatprep.mubr.f32.mxu0 %v1074
      %2223 = vmatmul.mubr.f32.gmra.mxu0 %v1073
      %v2224 = vpop.f32.mrf.mxu0
      %v2225 = vadd.f32 %v2000, %v2224
      %v2226 = vpop.f32.mrf.mxu0
      %2227 = vmatprep.mubr.f32.mxu0 %v1083
      %2228 = vmatmul.mubr.f32.gmra.mxu0 %v1082
      %v2229 = vpop.f32.mrf.mxu0
      %v2230 = vadd.f32 %v2005, %v2229
      %v2231 = vpop.f32.mrf.mxu0
      %2232 = vmatprep.mubr.f32.mxu0 %v1092
      %2233 = vmatmul.mubr.f32.gmra.mxu0 %v1091
      %v2234 = vpop.f32.mrf.mxu0
      %v2235 = vadd.f32 %v2010, %v2234
      %v2236 = vpop.f32.mrf.mxu0
      %2237 = vmatprep.mubr.f32.mxu0 %v1101
      %2238 = vmatmul.mubr.f32.gmra.mxu0 %v1100
      %v2239 = vpop.f32.mrf.mxu0
      %v2240 = vadd.f32 %v2015, %v2239
      %v2241 = vpop.f32.mrf.mxu0
      %2242 = vmatprep.mubr.f32.mxu0 %v1110
      %2243 = vmatmul.mubr.f32.gmra.mxu0 %v1109
      %v2244 = vpop.f32.mrf.mxu0
      %v2245 = vadd.f32 %v2020, %v2244
      %v2246 = vpop.f32.mrf.mxu0
      %2247 = vmatprep.mubr.f32.mxu0 %v1119
      %2248 = vmatmul.mubr.f32.gmra.mxu0 %v1118
      %v2249 = vpop.f32.mrf.mxu0
      %v2250 = vadd.f32 %v2025, %v2249
      %v2251 = vpop.f32.mrf.mxu0
      %2252 = vmatprep.mubr.f32.mxu0 %v1128
      %2253 = vmatmul.mubr.f32.gmra.mxu0 %v1127
      %v2254 = vpop.f32.mrf.mxu0
      %v2255 = vadd.f32 %v2030, %v2254
      %v2256 = vpop.f32.mrf.mxu0
      %2257 = vmatprep.mubr.f32.mxu0 %v1137
      %2258 = vmatmul.mubr.f32.gmra.mxu0 %v1136
      %v2259 = vpop.f32.mrf.mxu0
      %v2260 = vadd.f32 %v2035, %v2259
      %v2261 = vpop.f32.mrf.mxu0
      %2262 = vmatprep.mubr.f32.mxu0 %v1146
      %2263 = vmatmul.mubr.f32.gmra.mxu0 %v1145
      %v2264 = vpop.f32.mrf.mxu0
      %v2265 = vadd.f32 %v2040, %v2264
      %v2266 = vpop.f32.mrf.mxu0
      %2267 = vmatprep.mubr.f32.mxu0 %v1155
      %2268 = vmatmul.mubr.f32.gmra.mxu0 %v1154
      %v2269 = vpop.f32.mrf.mxu0
      %v2270 = vadd.f32 %v2045, %v2269
      %v2271 = vpop.f32.mrf.mxu0
      %2272 = vmatprep.mubr.f32.mxu0 %v1164
      %2273 = vmatmul.mubr.f32.gmra.mxu0 %v1163
      %v2274 = vpop.f32.mrf.mxu0
      %v2275 = vadd.f32 %v2050, %v2274
      %v2276 = vpop.f32.mrf.mxu0
      %2277 = vmatprep.mubr.f32.mxu0 %v1173
      %2278 = vmatmul.mubr.f32.gmra.mxu0 %v1172
      %v2279 = vpop.f32.mrf.mxu0
      %v2280 = vadd.f32 %v2055, %v2279
      %v2281 = vpop.f32.mrf.mxu0
      %2282 = vmatprep.mubr.f32.mxu0 %v1182
      %2283 = vmatmul.mubr.f32.gmra.mxu0 %v1181
      %v2284 = vpop.f32.mrf.mxu0
      %v2285 = vadd.f32 %v2060, %v2284
      %v2286 = vpop.f32.mrf.mxu0
      %2287 = vmatprep.mubr.f32.mxu0 %v1191
      %2288 = vmatmul.mubr.f32.gmra.mxu0 %v1190
      %v2289 = vpop.f32.mrf.mxu0
      %v2290 = vadd.f32 %v2065, %v2289
      %v2291 = vpop.f32.mrf.mxu0
      %2292 = vmatprep.mubr.f32.mxu0 %v1200
      %2293 = vmatmul.mubr.f32.gmra.mxu0 %v1199
      %v2294 = vpop.f32.mrf.mxu0
      %v2295 = vadd.f32 %v2070, %v2294
      %v2296 = vpop.f32.mrf.mxu0
      %2297 = vmatprep.mubr.f32.mxu0 %v1209
      %2298 = vmatmul.mubr.f32.gmra.mxu0 %v1208
      %v2299 = vpop.f32.mrf.mxu0
      %v2300 = vadd.f32 %v2075, %v2299
      %v2301 = vpop.f32.mrf.mxu0
      %2302 = vmatprep.mubr.f32.mxu0 %v1218
      %2303 = vmatmul.mubr.f32.gmra.mxu0 %v1217
      %v2304 = vpop.f32.mrf.mxu0
      %v2305 = vadd.f32 %v2080, %v2304
      %v2306 = vpop.f32.mrf.mxu0
      %2307 = vmatprep.mubr.f32.mxu0 %v1227
      %2308 = vmatmul.mubr.f32.gmra.mxu0 %v1226
      %v2309 = vpop.f32.mrf.mxu0
      %v2310 = vadd.f32 %v2085, %v2309
      %v2311 = vpop.f32.mrf.mxu0
      %2312 = vmatprep.mubr.f32.mxu0 %v1236
      %2313 = vmatmul.mubr.f32.gmra.mxu0 %v1235
      %v2314 = vpop.f32.mrf.mxu0
      %v2315 = vadd.f32 %v2090, %v2314
      %v2316 = vpop.f32.mrf.mxu0
      %2317 = vmatprep.mubr.f32.mxu0 %v1245
      %2318 = vmatmul.mubr.f32.gmra.mxu0 %v1244
      %v2319 = vpop.f32.mrf.mxu0
      %v2320 = vadd.f32 %v2095, %v2319
      %v2321 = vpop.f32.mrf.mxu0
      %2322 = vmatprep.mubr.f32.mxu0 %v1254
      %2323 = vmatmul.mubr.f32.gmra.mxu0 %v1253
      %v2324 = vpop.f32.mrf.mxu0
      %v2325 = vadd.f32 %v2100, %v2324
      %v2326 = vpop.f32.mrf.mxu0
      %2327 = vmatprep.mubr.f32.mxu0 %v1263
      %2328 = vmatmul.mubr.f32.gmra.mxu0 %v1262
      %v2329 = vpop.f32.mrf.mxu0
      %v2330 = vadd.f32 %v2105, %v2329
      %v2331 = vpop.f32.mrf.mxu0
      %2332 = vmatprep.mubr.f32.mxu0 %v1272
      %2333 = vmatmul.mubr.f32.gmra.mxu0 %v1271
      %v2334 = vpop.f32.mrf.mxu0
      %v2335 = vadd.f32 %v2110, %v2334
      %v2336 = vpop.f32.mrf.mxu0
      %2337 = vmatprep.mubr.f32.mxu0 %v1281
      %2338 = vmatmul.mubr.f32.gmra.mxu0 %v1280
      %v2339 = vpop.f32.mrf.mxu0
      %v2340 = vadd.f32 %v2115, %v2339
      %v2341 = vpop.f32.mrf.mxu0
      %2342 = vmatprep.mubr.f32.mxu0 %v1290
      %2343 = vmatmul.mubr.f32.gmra.mxu0 %v1289
      %v2344 = vpop.f32.mrf.mxu0
      %v2345 = vadd.f32 %v2120, %v2344
      %v2346 = vpop.f32.mrf.mxu0
      %2347 = vmatprep.mubr.f32.mxu0 %v1299
      %2348 = vmatmul.mubr.f32.gmra.mxu0 %v1298
      %v2349 = vpop.f32.mrf.mxu0
      %v2350 = vadd.f32 %v2125, %v2349
      %v2351 = vpop.f32.mrf.mxu0
      %2352 = vmatprep.mubr.f32.mxu0 %v1308
      %2353 = vmatmul.mubr.f32.gmra.mxu0 %v1307
      %v2354 = vpop.f32.mrf.mxu0
      %v2355 = vadd.f32 %v2130, %v2354
      %v2356 = vpop.f32.mrf.mxu0
      %2357 = vmatprep.mubr.f32.mxu0 %v1317
      %2358 = vmatmul.mubr.f32.gmra.mxu0 %v1316
      %v2359 = vpop.f32.mrf.mxu0
      %v2360 = vadd.f32 %v2135, %v2359
      %v2361 = vpop.f32.mrf.mxu0
      %2362 = vdwg.mxu0
      %2363 = vmatprep.subr.mxu0 0.0
      %2364 = vmatpush1.msra.mxu0 %v1462
      %2365 = vmatprep.subr.mxu0 0.0
      %2366 = vmatpush1.msra.mxu0 %v1461
      %2367 = vmatprep.subr.mxu0 0.0
      %2368 = vmatpush1.msra.mxu0 %v1460
      %2369 = vmatprep.subr.mxu0 0.0
      %2370 = vmatpush1.msra.mxu0 %v1459
      %2371 = vmatprep.subr.mxu0 0.0
      %2372 = vmatpush1.msra.mxu0 %v1458
      %2373 = vmatprep.subr.mxu0 0.0
      %2374 = vmatpush1.msra.mxu0 %v1457
      %2375 = vmatprep.subr.mxu0 0.0
      %2376 = vmatpush1.msra.mxu0 %v1456
      %2377 = vmatprep.subr.mxu0 0.0
      %2378 = vmatpush1.msra.mxu0 %v1455
      %2379 = vmatprep.subr.mxu0 0.0
      %2380 = vmatpush1.msra.mxu0 %v1454
      %2381 = vmatprep.subr.mxu0 0.0
      %2382 = vmatpush1.msra.mxu0 %v1453
      %2383 = vmatprep.subr.mxu0 0.0
      %2384 = vmatpush1.msra.mxu0 %v1452
      %2385 = vmatprep.subr.mxu0 0.0
      %2386 = vmatpush1.msra.mxu0 %v1451
      %2387 = vmatprep.subr.mxu0 0.0
      %2388 = vmatpush1.msra.mxu0 %v1450
      %2389 = vmatprep.subr.mxu0 0.0
      %2390 = vmatpush1.msra.mxu0 %v1449
      %2391 = vmatprep.subr.mxu0 0.0
      %2392 = vmatpush1.msra.mxu0 %v1448
      %2393 = vmatprep.subr.mxu0 0.0
      %2394 = vmatpush1.msra.mxu0 %v1447
      %2395 = vmatprep.subr.mxu0 0.0
      %2396 = vmatpush2.msra.mxu0 0.0
      %2397 = vmatprep.subr.mxu0 0.0
      %2398 = vmatpush2.msra.mxu0 0.0
      %2399 = vmatprep.subr.mxu0 0.0
      %2400 = vmatpush2.msra.mxu0 0.0
      %2401 = vmatprep.subr.mxu0 0.0
      %2402 = vmatpush2.msra.mxu0 0.0
      %2403 = vmatprep.subr.mxu0 0.0
      %2404 = vmatpush2.msra.mxu0 0.0
      %2405 = vmatprep.subr.mxu0 0.0
      %2406 = vmatpush2.msra.mxu0 0.0
      %2407 = vmatprep.subr.mxu0 0.0
      %2408 = vmatpush2.msra.mxu0 0.0
      %2409 = vmatprep.subr.mxu0 0.0
      %2410 = vmatpush2.msra.mxu0 0.0
      %2411 = vmatprep.subr.mxu0 0.0
      %2412 = vmatpush2.msra.mxu0 0.0
      %2413 = vmatprep.subr.mxu0 0.0
      %2414 = vmatpush2.msra.mxu0 0.0
      %2415 = vmatprep.subr.mxu0 0.0
      %2416 = vmatpush2.msra.mxu0 0.0
      %2417 = vmatprep.subr.mxu0 0.0
      %2418 = vmatpush2.msra.mxu0 0.0
      %2419 = vmatprep.subr.mxu0 0.0
      %2420 = vmatpush2.msra.mxu0 0.0
      %2421 = vmatprep.subr.mxu0 0.0
      %2422 = vmatpush2.msra.mxu0 0.0
      %2423 = vmatprep.subr.mxu0 0.0
      %2424 = vmatpush2.msra.mxu0 0.0
      %2425 = vmatprep.subr.mxu0 0.0
      %2426 = vmatpush2.msra.mxu0 0.0
      %2427 = vmatprep.mubr.f32.mxu0 0.0
      %2428 = vmatmul.mubr.f32.gmra.mxu0 %v1039
      %v2429 = vpop.f32.mrf.mxu0
      %v2430 = vadd.f32 %v2205, %v2429
      %v2431 = vpop.f32.mrf.mxu0
      %2432 = vmatprep.mubr.f32.mxu0 0.0
      %2433 = vmatmul.mubr.f32.gmra.mxu0 %v1048
      %v2434 = vpop.f32.mrf.mxu0
      %v2435 = vadd.f32 %v2210, %v2434
      %v2436 = vpop.f32.mrf.mxu0
      %2437 = vmatprep.mubr.f32.mxu0 0.0
      %2438 = vmatmul.mubr.f32.gmra.mxu0 %v1057
      %v2439 = vpop.f32.mrf.mxu0
      %v2440 = vadd.f32 %v2215, %v2439
      %v2441 = vpop.f32.mrf.mxu0
      %2442 = vmatprep.mubr.f32.mxu0 0.0
      %2443 = vmatmul.mubr.f32.gmra.mxu0 %v1066
      %v2444 = vpop.f32.mrf.mxu0
      %v2445 = vadd.f32 %v2220, %v2444
      %v2446 = vpop.f32.mrf.mxu0
      %2447 = vmatprep.mubr.f32.mxu0 0.0
      %2448 = vmatmul.mubr.f32.gmra.mxu0 %v1075
      %v2449 = vpop.f32.mrf.mxu0
      %v2450 = vadd.f32 %v2225, %v2449
      %v2451 = vpop.f32.mrf.mxu0
      %2452 = vmatprep.mubr.f32.mxu0 0.0
      %2453 = vmatmul.mubr.f32.gmra.mxu0 %v1084
      %v2454 = vpop.f32.mrf.mxu0
      %v2455 = vadd.f32 %v2230, %v2454
      %v2456 = vpop.f32.mrf.mxu0
      %2457 = vmatprep.mubr.f32.mxu0 0.0
      %2458 = vmatmul.mubr.f32.gmra.mxu0 %v1093
      %v2459 = vpop.f32.mrf.mxu0
      %v2460 = vadd.f32 %v2235, %v2459
      %v2461 = vpop.f32.mrf.mxu0
      %2462 = vmatprep.mubr.f32.mxu0 0.0
      %2463 = vmatmul.mubr.f32.gmra.mxu0 %v1102
      %v2464 = vpop.f32.mrf.mxu0
      %v2465 = vadd.f32 %v2240, %v2464
      %v2466 = vpop.f32.mrf.mxu0
      %2467 = vmatprep.mubr.f32.mxu0 0.0
      %2468 = vmatmul.mubr.f32.gmra.mxu0 %v1111
      %v2469 = vpop.f32.mrf.mxu0
      %v2470 = vadd.f32 %v2245, %v2469
      %v2471 = vpop.f32.mrf.mxu0
      %2472 = vmatprep.mubr.f32.mxu0 0.0
      %2473 = vmatmul.mubr.f32.gmra.mxu0 %v1120
      %v2474 = vpop.f32.mrf.mxu0
      %v2475 = vadd.f32 %v2250, %v2474
      %v2476 = vpop.f32.mrf.mxu0
      %2477 = vmatprep.mubr.f32.mxu0 0.0
      %2478 = vmatmul.mubr.f32.gmra.mxu0 %v1129
      %v2479 = vpop.f32.mrf.mxu0
      %v2480 = vadd.f32 %v2255, %v2479
      %v2481 = vpop.f32.mrf.mxu0
      %2482 = vmatprep.mubr.f32.mxu0 0.0
      %2483 = vmatmul.mubr.f32.gmra.mxu0 %v1138
      %v2484 = vpop.f32.mrf.mxu0
      %v2485 = vadd.f32 %v2260, %v2484
      %v2486 = vpop.f32.mrf.mxu0
      %2487 = vmatprep.mubr.f32.mxu0 0.0
      %2488 = vmatmul.mubr.f32.gmra.mxu0 %v1147
      %v2489 = vpop.f32.mrf.mxu0
      %v2490 = vadd.f32 %v2265, %v2489
      %v2491 = vpop.f32.mrf.mxu0
      %2492 = vmatprep.mubr.f32.mxu0 0.0
      %2493 = vmatmul.mubr.f32.gmra.mxu0 %v1156
      %v2494 = vpop.f32.mrf.mxu0
      %v2495 = vadd.f32 %v2270, %v2494
      %v2496 = vpop.f32.mrf.mxu0
      %2497 = vmatprep.mubr.f32.mxu0 0.0
      %2498 = vmatmul.mubr.f32.gmra.mxu0 %v1165
      %v2499 = vpop.f32.mrf.mxu0
      %v2500 = vadd.f32 %v2275, %v2499
      %v2501 = vpop.f32.mrf.mxu0
      %2502 = vmatprep.mubr.f32.mxu0 0.0
      %2503 = vmatmul.mubr.f32.gmra.mxu0 %v1174
      %v2504 = vpop.f32.mrf.mxu0
      %v2505 = vadd.f32 %v2280, %v2504
      %v2506 = vpop.f32.mrf.mxu0
      %2507 = vmatprep.mubr.f32.mxu0 0.0
      %2508 = vmatmul.mubr.f32.gmra.mxu0 %v1183
      %v2509 = vpop.f32.mrf.mxu0
      %v2510 = vadd.f32 %v2285, %v2509
      %v2511 = vpop.f32.mrf.mxu0
      %2512 = vmatprep.mubr.f32.mxu0 0.0
      %2513 = vmatmul.mubr.f32.gmra.mxu0 %v1192
      %v2514 = vpop.f32.mrf.mxu0
      %v2515 = vadd.f32 %v2290, %v2514
      %v2516 = vpop.f32.mrf.mxu0
      %2517 = vmatprep.mubr.f32.mxu0 0.0
      %2518 = vmatmul.mubr.f32.gmra.mxu0 %v1201
      %v2519 = vpop.f32.mrf.mxu0
      %v2520 = vadd.f32 %v2295, %v2519
      %v2521 = vpop.f32.mrf.mxu0
      %2522 = vmatprep.mubr.f32.mxu0 0.0
      %2523 = vmatmul.mubr.f32.gmra.mxu0 %v1210
      %v2524 = vpop.f32.mrf.mxu0
      %v2525 = vadd.f32 %v2300, %v2524
      %v2526 = vpop.f32.mrf.mxu0
      %2527 = vmatprep.mubr.f32.mxu0 0.0
      %2528 = vmatmul.mubr.f32.gmra.mxu0 %v1219
      %v2529 = vpop.f32.mrf.mxu0
      %v2530 = vadd.f32 %v2305, %v2529
      %v2531 = vpop.f32.mrf.mxu0
      %2532 = vmatprep.mubr.f32.mxu0 0.0
      %2533 = vmatmul.mubr.f32.gmra.mxu0 %v1228
      %v2534 = vpop.f32.mrf.mxu0
      %v2535 = vadd.f32 %v2310, %v2534
      %v2536 = vpop.f32.mrf.mxu0
      %2537 = vmatprep.mubr.f32.mxu0 0.0
      %2538 = vmatmul.mubr.f32.gmra.mxu0 %v1237
      %v2539 = vpop.f32.mrf.mxu0
      %v2540 = vadd.f32 %v2315, %v2539
      %v2541 = vpop.f32.mrf.mxu0
      %2542 = vmatprep.mubr.f32.mxu0 0.0
      %2543 = vmatmul.mubr.f32.gmra.mxu0 %v1246
      %v2544 = vpop.f32.mrf.mxu0
      %v2545 = vadd.f32 %v2320, %v2544
      %v2546 = vpop.f32.mrf.mxu0
      %2547 = vmatprep.mubr.f32.mxu0 0.0
      %2548 = vmatmul.mubr.f32.gmra.mxu0 %v1255
      %v2549 = vpop.f32.mrf.mxu0
      %v2550 = vadd.f32 %v2325, %v2549
      %v2551 = vpop.f32.mrf.mxu0
      %2552 = vmatprep.mubr.f32.mxu0 0.0
      %2553 = vmatmul.mubr.f32.gmra.mxu0 %v1264
      %v2554 = vpop.f32.mrf.mxu0
      %v2555 = vadd.f32 %v2330, %v2554
      %v2556 = vpop.f32.mrf.mxu0
      %2557 = vmatprep.mubr.f32.mxu0 0.0
      %2558 = vmatmul.mubr.f32.gmra.mxu0 %v1273
      %v2559 = vpop.f32.mrf.mxu0
      %v2560 = vadd.f32 %v2335, %v2559
      %v2561 = vpop.f32.mrf.mxu0
      %2562 = vmatprep.mubr.f32.mxu0 0.0
      %2563 = vmatmul.mubr.f32.gmra.mxu0 %v1282
      %v2564 = vpop.f32.mrf.mxu0
      %v2565 = vadd.f32 %v2340, %v2564
      %v2566 = vpop.f32.mrf.mxu0
      %2567 = vmatprep.mubr.f32.mxu0 0.0
      %2568 = vmatmul.mubr.f32.gmra.mxu0 %v1291
      %v2569 = vpop.f32.mrf.mxu0
      %v2570 = vadd.f32 %v2345, %v2569
      %v2571 = vpop.f32.mrf.mxu0
      %2572 = vmatprep.mubr.f32.mxu0 0.0
      %2573 = vmatmul.mubr.f32.gmra.mxu0 %v1300
      %v2574 = vpop.f32.mrf.mxu0
      %v2575 = vadd.f32 %v2350, %v2574
      %v2576 = vpop.f32.mrf.mxu0
      %2577 = vmatprep.mubr.f32.mxu0 0.0
      %2578 = vmatmul.mubr.f32.gmra.mxu0 %v1309
      %v2579 = vpop.f32.mrf.mxu0
      %v2580 = vadd.f32 %v2355, %v2579
      %v2581 = vpop.f32.mrf.mxu0
      %2582 = vmatprep.mubr.f32.mxu0 0.0
      %2583 = vmatmul.mubr.f32.gmra.mxu0 %v1318
      %v2584 = vpop.f32.mrf.mxu0
      %v2585 = vadd.f32 %v2360, %v2584
      %v2586 = vpop.f32.mrf.mxu0
      %2587 = vdwg.mxu0
      %2588 = vst [vmem:[%s231] sm:$0xff] %v2430
      %2589 = vst [vmem:[%s231 + $0x8] sm:$0xff] %v2435
      %2590 = vst [vmem:[%s231 + $0x10] sm:$0xff] %v2440
      %2591 = vst [vmem:[%s231 + $0x18] sm:$0xff] %v2445
      %2592 = vst [vmem:[%s231 + $0x20] sm:$0xff] %v2450
      %2593 = vst [vmem:[%s231 + $0x28] sm:$0xff] %v2455
      %2594 = vst [vmem:[%s231 + $0x30] sm:$0xff] %v2460
      %2595 = vst [vmem:[%s231 + $0x38] sm:$0xff] %v2465
      %2596 = vst [vmem:[%s231 + $0x40] sm:$0xff] %v2470
      %2597 = vst [vmem:[%s231 + $0x48] sm:$0xff] %v2475
      %2598 = vst [vmem:[%s231 + $0x50] sm:$0xff] %v2480
      %2599 = vst [vmem:[%s231 + $0x58] sm:$0xff] %v2485
      %2600 = vst [vmem:[%s231 + $0x60] sm:$0xff] %v2490
      %2601 = vst [vmem:[%s231 + $0x68] sm:$0xff] %v2495
      %2602 = vst [vmem:[%s231 + $0x70] sm:$0xff] %v2500
      %2603 = vst [vmem:[%s231 + $0x78] sm:$0xff] %v2505
      %2604 = vst [vmem:[%s231 + $0x80] sm:$0xff] %v2510
      %2605 = vst [vmem:[%s231 + $0x88] sm:$0xff] %v2515
      %2606 = vst [vmem:[%s231 + $0x90] sm:$0xff] %v2520
      %2607 = vst [vmem:[%s231 + $0x98] sm:$0xff] %v2525
      %2608 = vst [vmem:[%s231 + $0xa0] sm:$0xff] %v2530
      %2609 = vst [vmem:[%s231 + $0xa8] sm:$0xff] %v2535
      %2610 = vst [vmem:[%s231 + $0xb0] sm:$0xff] %v2540
      %2611 = vst [vmem:[%s231 + $0xb8] sm:$0xff] %v2545
      %2612 = vst [vmem:[%s231 + $0xc0] sm:$0xff] %v2550
      %2613 = vst [vmem:[%s231 + $0xc8] sm:$0xff] %v2555
      %2614 = vst [vmem:[%s231 + $0xd0] sm:$0xff] %v2560
      %2615 = vst [vmem:[%s231 + $0xd8] sm:$0xff] %v2565
      %2616 = vst [vmem:[%s231 + $0xe0] sm:$0xff] %v2570
      %2617 = vst [vmem:[%s231 + $0xe8] sm:$0xff] %v2575
      %2618 = vst [vmem:[%s231 + $0xf0] sm:$0xff] %v2580
      %2619 = vst [vmem:[%s231 + $0xf8] sm:$0xff] %v2585
      %v2620 = vadd.f32 %v2430, %v2435
      %v2621 = vadd.f32 %v2620, %v2440
      %v2622 = vadd.f32 %v2621, %v2445
      %v2623 = vadd.f32 %v2622, %v2450
      %v2624 = vadd.f32 %v2623, %v2455
      %v2625 = vadd.f32 %v2624, %v2460
      %v2626 = vadd.f32 %v2625, %v2465
      %v2627 = vadd.f32 %v2626, %v2470
      %v2628 = vadd.f32 %v2627, %v2475
      %v2629 = vadd.f32 %v2628, %v2480
      %v2630 = vadd.f32 %v2629, %v2485
      %v2631 = vadd.f32 %v2630, %v2490
      %v2632 = vadd.f32 %v2631, %v2495
      %v2633 = vadd.f32 %v2632, %v2500
      %v2634 = vadd.f32 %v2633, %v2505
      %v2635 = vadd.f32 %v2634, %v2510
      %v2636 = vadd.f32 %v2635, %v2515
      %v2637 = vadd.f32 %v2636, %v2520
      %v2638 = vadd.f32 %v2637, %v2525
      %v2639 = vadd.f32 %v2638, %v2530
      %v2640 = vadd.f32 %v2639, %v2535
      %v2641 = vadd.f32 %v2640, %v2540
      %v2642 = vadd.f32 %v2641, %v2545
      %v2643 = vadd.f32 %v2642, %v2550
      %v2644 = vadd.f32 %v2643, %v2555
      %v2645 = vadd.f32 %v2644, %v2560
      %v2646 = vadd.f32 %v2645, %v2565
      %v2647 = vadd.f32 %v2646, %v2570
      %v2648 = vadd.f32 %v2647, %v2575
      %v2649 = vadd.f32 %v2648, %v2580
      %v2650 = vadd.f32 %v2649, %v2585
      %v2651 = vrot.slane %v2650, 4
      %v2652 = vadd.f32 %v2650, %v2651
      %v2653 = vrot.slane %v2652, 2
      %v2654 = vadd.f32 %v2652, %v2653
      %v2655 = vrot.slane %v2654, 1
      %v2656 = vadd.f32 %v2654, %v2655
      %v2657 = vmul.f32 %v2430, %v2430
      %v2658 = vmul.f32 %v2435, %v2435
      %v2659 = vmul.f32 %v2440, %v2440
      %v2660 = vmul.f32 %v2445, %v2445
      %v2661 = vmul.f32 %v2450, %v2450
      %v2662 = vmul.f32 %v2455, %v2455
      %v2663 = vmul.f32 %v2460, %v2460
      %v2664 = vmul.f32 %v2465, %v2465
      %v2665 = vmul.f32 %v2470, %v2470
      %v2666 = vmul.f32 %v2475, %v2475
      %v2667 = vmul.f32 %v2480, %v2480
      %v2668 = vmul.f32 %v2485, %v2485
      %v2669 = vmul.f32 %v2490, %v2490
      %v2670 = vmul.f32 %v2495, %v2495
      %v2671 = vmul.f32 %v2500, %v2500
      %v2672 = vmul.f32 %v2505, %v2505
      %v2673 = vmul.f32 %v2510, %v2510
      %v2674 = vmul.f32 %v2515, %v2515
      %v2675 = vmul.f32 %v2520, %v2520
      %v2676 = vmul.f32 %v2525, %v2525
      %v2677 = vmul.f32 %v2530, %v2530
      %v2678 = vmul.f32 %v2535, %v2535
      %v2679 = vmul.f32 %v2540, %v2540
      %v2680 = vmul.f32 %v2545, %v2545
      %v2681 = vmul.f32 %v2550, %v2550
      %v2682 = vmul.f32 %v2555, %v2555
      %v2683 = vmul.f32 %v2560, %v2560
      %v2684 = vmul.f32 %v2565, %v2565
      %v2685 = vmul.f32 %v2570, %v2570
      %v2686 = vmul.f32 %v2575, %v2575
      %v2687 = vmul.f32 %v2580, %v2580
      %v2688 = vmul.f32 %v2585, %v2585
      %v2689 = vadd.f32 %v2657, %v2658
      %v2690 = vadd.f32 %v2689, %v2659
      %v2691 = vadd.f32 %v2690, %v2660
      %v2692 = vadd.f32 %v2691, %v2661
      %v2693 = vadd.f32 %v2692, %v2662
      %v2694 = vadd.f32 %v2693, %v2663
      %v2695 = vadd.f32 %v2694, %v2664
      %v2696 = vadd.f32 %v2695, %v2665
      %v2697 = vadd.f32 %v2696, %v2666
      %v2698 = vadd.f32 %v2697, %v2667
      %v2699 = vadd.f32 %v2698, %v2668
      %v2700 = vadd.f32 %v2699, %v2669
      %v2701 = vadd.f32 %v2700, %v2670
      %v2702 = vadd.f32 %v2701, %v2671
      %v2703 = vadd.f32 %v2702, %v2672
      %v2704 = vadd.f32 %v2703, %v2673
      %v2705 = vadd.f32 %v2704, %v2674
      %v2706 = vadd.f32 %v2705, %v2675
      %v2707 = vadd.f32 %v2706, %v2676
      %v2708 = vadd.f32 %v2707, %v2677
      %v2709 = vadd.f32 %v2708, %v2678
      %v2710 = vadd.f32 %v2709, %v2679
      %v2711 = vadd.f32 %v2710, %v2680
      %v2712 = vadd.f32 %v2711, %v2681
      %v2713 = vadd.f32 %v2712, %v2682
      %v2714 = vadd.f32 %v2713, %v2683
      %v2715 = vadd.f32 %v2714, %v2684
      %v2716 = vadd.f32 %v2715, %v2685
      %v2717 = vadd.f32 %v2716, %v2686
      %v2718 = vadd.f32 %v2717, %v2687
      %v2719 = vadd.f32 %v2718, %v2688
      %v2720 = vrot.slane %v2719, 4
      %v2721 = vadd.f32 %v2719, %v2720
      %v2722 = vrot.slane %v2721, 2
      %v2723 = vadd.f32 %v2721, %v2722
      %v2724 = vrot.slane %v2723, 1
      %v2725 = vadd.f32 %v2723, %v2724
      %vm2726 = vcmask 1040384
      %v2727 = vsel %vm2726, %v2656, %v2725
      %2728 = vst [vmem:[%s235] sm:$0x3] %v2727
      %p2729 = scmp.lt.s32.totalorder %s17, 1
      %s2730 = scalar_select %p2729, %s17, 1
      %s2731 = smul.addr %s2730, 32
      %s2732 = smul.addr %s2731, 8
      %s2733 = scalar_lea.vmem %s4, %s2732
      %p2734 = scmp.lt.s32.totalorder %s17, 1
      %s2735 = scalar_select %p2734, %s17, 1
      %s2736 = smul.addr %s2735, 2
      %s2737 = scalar_lea.vmem %s5, %s2736
      // Predicated region
      $region37: #{conv_block_forward.4} parent=35 // pred_check
        %p2738 = pneg %p124
      $region38: #{conv_block_forward.4} parent=35 // pred_check_branch
        %2740 = sbr.rel (%p2738) target = $region40
      $region39: #{conv_block_forward.4} parent=35 // pred_region
        _
      $region40: #{conv_block_forward.4} parent=35 // pred_fallthru
        _
      // Predicated region
      $region41: #{conv_block_forward.4} parent=35 // pred_check
        %p2741 = pneg %p150
      $region42: #{conv_block_forward.4} parent=35 // pred_check_branch
        %2743 = sbr.rel (%p2741) target = $region44
      $region43: #{conv_block_forward.4} parent=35 // pred_region
        _
      $region44: #{conv_block_forward.4} parent=35 // pred_fallthru
        _
    $region36: #{conv_block_forward.4} parent=5 // pred_fallthru
      _
    %p2744 = scmp.le.s32.totalorder 2, %s12
    // Predicated region
    $region45: #{conv_block_forward.4} parent=5 // pred_check
      %p2745 = pneg %p2744
    $region46: #{conv_block_forward.4} parent=5 // pred_check_branch
      %2747 = sbr.rel (%p2745) target = $region48
    $region47: #{conv_block_forward.4} parent=5 // pred_region
      %s2748 = ssub.s32 %s12, 2
      // Predicated region
      $region49: #{conv_block_forward.4} parent=47 // pred_check
        %p2749 = pneg %p130
      $region50: #{conv_block_forward.4} parent=47 // pred_check_branch
        %2751 = sbr.rel (%p2749) target = $region52
      $region51: #{conv_block_forward.4} parent=47 // pred_region
        %p2752 = scmp.lt.s32.totalorder %s18, 1
        %s2753 = scalar_select %p2752, %s18, 1
        %s2754 = smul.addr %s2753, 32
        %s2755 = smul.addr %s2754, 8
        %s2756 = scalar_lea.vmem %s4, %s2755
      $region52: #{conv_block_forward.4} parent=47 // pred_fallthru
        _
      // Predicated region
      $region53: #{conv_block_forward.4} parent=47 // pred_check
        %p2757 = pneg %p156
      $region54: #{conv_block_forward.4} parent=47 // pred_check_branch
        %2759 = sbr.rel (%p2757) target = $region56
      $region55: #{conv_block_forward.4} parent=47 // pred_region
        %p2760 = scmp.lt.s32.totalorder %s18, 1
        %s2761 = scalar_select %p2760, %s18, 1
        %s2762 = smul.addr %s2761, 2
        %s2763 = scalar_lea.vmem %s5, %s2762
      $region56: #{conv_block_forward.4} parent=47 // pred_fallthru
        _
    $region48: #{conv_block_forward.4} parent=5 // pred_fallthru
      _
  $region6: #{conv_block_forward.4} parent=0 // loop_footer
    %s16 = sadd.s32 1, %s12
  $region7: #{conv_block_forward.4} parent=0 // loop_footer_branch
    %11 = sbr.rel target = $region3
  $region8: #{conv_block_forward.4} parent=0 // loop_exit
    _

</llo_original>
